<compile_context>
chip_gen: v5e
topology: v5e:2x2
jax: 0.10.0
libtpu: 0.0.40
codegen_flags: <defaults>
</compile_context>

<pallas_src>
import functools
import math

import jax
import jax.numpy as jnp
from jax.experimental import pallas as pl
from jax.experimental.pallas import tpu as pltpu

_EPS = 1e-6                       # LayerNorm eps used everywhere in the module
_VMEM_LIMIT = 32 * 1024 * 1024    # safe on v5e/v6e (128 MiB) and v7x (64 MiB/TC)


def _round_up(x, m):
    return ((x + m - 1) // m) * m


# ---------------------------------------------------------------------------
# In-kernel helpers / kernels
# ---------------------------------------------------------------------------
def _ln_silu(y, gamma, beta, eps):
    """Per-pixel LayerNorm over the channel (lane) axis + SiLU.  y is f32."""
    u = jnp.mean(y, axis=-1, keepdims=True)
    s = jnp.mean((y - u) ** 2, axis=-1, keepdims=True)
    y = (y - u) * jax.lax.rsqrt(s + eps)       # rsqrt -> EUP slot
    y = gamma * y + beta
    return y * jax.nn.sigmoid(y)


def _proj_kernel(p_ref, w_ref, g_ref, b_ref, o_ref, *, eps, precision):
    # (tp, K) @ (K, C): bf16 operands on the MXU, f32 accumulation.
    y = jnp.dot(p_ref[...], w_ref[...],
                preferred_element_type=jnp.float32, precision=precision)
    o_ref[...] = _ln_silu(y, g_ref[...], b_ref[...], eps).astype(o_ref.dtype)


def _dual_kernel(p_ref, w_ref, g_ref, b_ref, o_ref, *, c1, eps, precision):
    # conv1 (grouped) + conv2 (PTConv) fused: one matmul over the shared
    # stride-2 patches, then two independent LayerNorms via lane masks
    # (no in-kernel slicing / concat; output is the lane-dense [c1 | c2] slab).
    y = jnp.dot(p_ref[...], w_ref[...],
                preferred_element_type=jnp.float32, precision=precision)
    c2 = y.shape[-1] - c1
    lane = jax.lax.broadcasted_iota(jnp.int32, y.shape, 1)
    m1 = (lane < c1).astype(jnp.float32)
    m2 = 1.0 - m1
    u1 = jnp.sum(y * m1, axis=-1, keepdims=True) / c1
    u2 = jnp.sum(y * m2, axis=-1, keepdims=True) / c2
    u = m1 * u1 + m2 * u2
    d = y - u
    v1 = jnp.sum(d * d * m1, axis=-1, keepdims=True) / c1
    v2 = jnp.sum(d * d * m2, axis=-1, keepdims=True) / c2
    v = m1 * v1 + m2 * v2
    yn = d * jax.lax.rsqrt(v + eps)
    yn = g_ref[...] * yn + b_ref[...]
    o_ref[...] = (yn * jax.nn.sigmoid(yn)).astype(o_ref.dtype)


def _dwt_kernel(a_ref, b_ref, c_ref, d_ref, wl_ref, wh_ref, bias_ref,
                g_ref, be_ref, o_ref, *, eps, precision):
    # Haar DWT (J=1, 'zero' mode) fused on the VPU.  Using the identity
    # yL + HL + LH + HH == 2 * x[0::2, 0::2], the high-pass sum needs no DWT
    # math at all, and the (P, 2*Cin) feature tensor never hits HBM.
    a = a_ref[...].astype(jnp.float32)
    b = b_ref[...].astype(jnp.float32)
    c = c_ref[...].astype(jnp.float32)
    d = d_ref[...].astype(jnp.float32)
    yl = (0.5 * (a + b + c + d)).astype(wl_ref.dtype)
    hs = (a + a).astype(wh_ref.dtype)
    y = jnp.dot(yl, wl_ref[...], preferred_element_type=jnp.float32,
                precision=precision)
    y = y + jnp.dot(hs, wh_ref[...], preferred_element_type=jnp.float32,
                    precision=precision)
    y = y + bias_ref[...]
    o_ref[...] = _ln_silu(y, g_ref[...], be_ref[...], eps).astype(o_ref.dtype)


def _cat_proj_kernel(x1_ref, x2_ref, w1_ref, w2_ref, g_ref, b_ref, o_ref,
                     *, eps, precision):
    # cat([c1, c2, w], -1) @ W_pl fused as two accumulating matmuls — the
    # (P, 2*Cout) concat tensor is never materialized.
    y = jnp.dot(x1_ref[...], w1_ref[...], preferred_element_type=jnp.float32,
                precision=precision)
    y = y + jnp.dot(x2_ref[...], w2_ref[...], preferred_element_type=jnp.float32,
                    precision=precision)
    o_ref[...] = _ln_silu(y, g_ref[...], b_ref[...], eps).astype(o_ref.dtype)


# ---------------------------------------------------------------------------
# Pixel-tiled pallas_call wrapper
# ---------------------------------------------------------------------------
def _choose_tile(P, tile):
    p8 = _round_up(max(P, 8), 8)
    tp = min(_round_up(tile, 8), p8)
    # keep >= 2 grid steps when possible so "parallel" can shard across the
    # two TensorCores of a v7x chip.
    if tp == p8 and p8 >= 16:
        tp = _round_up(p8 // 2, 8)
    return tp


def _pixel_call(kernel, streamed, broadcast, out_channels, out_dtype, tile):
    """Run `kernel` over row (pixel) tiles of flattened (P, C) operands.

    `streamed` arrays are tiled over rows and software-pipelined; `broadcast`
    arrays (packed conv weights, LN affines, bias) are small (1, C)/(K, C)
    blocks mapped whole into VMEM every grid step.
    """
    P = streamed[0].shape[0]
    tp = _choose_tile(P, tile)
    Pp = _round_up(P, tp)
    if Pp != P:
        streamed = [jnp.pad(s, ((0, Pp - P), (0, 0))) for s in streamed]

    in_specs = [pl.BlockSpec((tp, s.shape[1]), lambda i: (i, 0)) for s in streamed]
    in_specs += [pl.BlockSpec(b.shape, lambda i: (0, 0)) for b in broadcast]

    out = pl.pallas_call(
        kernel,
        out_shape=jax.ShapeDtypeStruct((Pp, out_channels), out_dtype),
        grid_spec=pltpu.PrefetchScalarGridSpec(
            num_scalar_prefetch=0,
            grid=(Pp // tp,),
            in_specs=in_specs,
            out_specs=pl.BlockSpec((tp, out_channels), lambda i: (i, 0)),
        ),
        compiler_params=pltpu.CompilerParams(
            dimension_semantics=("parallel",),
            vmem_limit_bytes=_VMEM_LIMIT,
        ),
    )(*streamed, *broadcast)
    return out[:P]


# ---------------------------------------------------------------------------
# Glue: im2col + weight packing (grouped conv / PTConv shuffle absorbed here)
# ---------------------------------------------------------------------------
def _im2col(x_nhwc, k, stride, pad):
    """-> patches (B*Ho*Wo, Cin*k*k) flattened in (cin, kh, kw) order."""
    B, H, W, C = x_nhwc.shape
    xp = jnp.pad(x_nhwc, ((0, 0), (pad, pad), (pad, pad), (0, 0)))
    Ho = (H + 2 * pad - k) // stride + 1
    Wo = (W + 2 * pad - k) // stride + 1
    cols = []
    for i in range(k):
        for j in range(k):
            cols.append(xp[:, i:i + stride * Ho:stride, j:j + stride * Wo:stride, :])
    pat = jnp.stack(cols, axis=3)                # (B,Ho,Wo,k*k,C)
    pat = jnp.transpose(pat, (0, 1, 2, 4, 3))    # (B,Ho,Wo,C,k*k)
    pat = pat.reshape(B * Ho * Wo, C * k * k)
    return pat, (B, Ho, Wo)


def _grouped_weight(w_oihw, groups):
    """PyTorch (Cout, Cin/g, kh, kw) grouped weight -> dense (Cin*kh*kw, Cout)."""
    Cout, cin_g, kh, kw = w_oihw.shape
    cog = Cout // groups
    Kg = cin_g * kh * kw
    wb = jnp.zeros((groups * Kg, Cout), jnp.float32)
    for g in range(groups):
        blk = w_oihw[g * cog:(g + 1) * cog].reshape(cog, Kg).T  # (Kg, cog)
        wb = wb.at[g * Kg:(g + 1) * Kg, g * cog:(g + 1) * cog].set(blk)
    return wb


def _ptconv_weight(w1, w2, out_dim):
    """PTConv: conv halves + cat((x2_1, x1, x2_2)) packed into one (K, out) weight."""
    co2, ci2, kh, kw = w1.shape        # co2 = out_dim // 2
    Kg = ci2 * kh * kw
    q = out_dim // 4
    w1f = w1.reshape(co2, Kg).T
    w2f = w2.reshape(co2, Kg).T
    wb = jnp.zeros((2 * Kg, out_dim), jnp.float32)
    wb = wb.at[0:Kg, q:3 * q].set(w1f)                       # x1 -> middle channels
    wb = wb.at[Kg:2 * Kg, 0:q].set(w2f[:, 0:q])              # x2_1 -> leading
    wb = wb.at[Kg:2 * Kg, 3 * q:4 * q].set(w2f[:, q:2 * q])  # x2_2 -> trailing
    return wb


# ---------------------------------------------------------------------------
# MBFD forward
# ---------------------------------------------------------------------------
def mbfd_forward(x_nchw, params, out_channels, *, compute_dtype=jnp.bfloat16,
                 tile=512):
    B, Cin, H, W = x_nchw.shape
    Cout = out_channels
    half = Cout // 2
    cdt = compute_dtype
    precision = (jax.lax.Precision.HIGHEST
                 if jnp.dtype(cdt) == jnp.dtype(jnp.float32) else None)
    inter_dt = cdt  # intermediates stored in HBM at compute precision

    def vec2(v):
        return jnp.asarray(v, jnp.float32).reshape(1, -1)

    x = jnp.transpose(x_nchw, (0, 2, 3, 1)).astype(cdt)  # NHWC

    # ---- proj_first: 3x3 s1 p1, groups=gcd(Cin, Cout), LN + SiLU ----
    g_pf = math.gcd(Cin, Cout)
    pat, (_, Ho, Wo) = _im2col(x, 3, 1, 1)
    w_pf = _grouped_weight(params["w_pf"], g_pf).astype(cdt)
    c = _pixel_call(
        functools.partial(_proj_kernel, eps=_EPS, precision=precision),
        streamed=[pat],
        broadcast=[w_pf, vec2(params["ln_pf_g"]), vec2(params["ln_pf_b"])],
        out_channels=Cout, out_dtype=inter_dt, tile=tile)
    c = c.reshape(B, Ho, Wo, Cout)

    # ---- conv1 (grouped 3x3 s2) + conv2 (PTConv 3x3 s2): fused dual branch ----
    pat1, (_, Ho2, Wo2) = _im2col(c, 3, 2, 1)
    w_dual = jnp.concatenate(
        [_grouped_weight(params["w_c1"], half),
         _ptconv_weight(params["w_pt1"], params["w_pt2"], Cout)],
        axis=1).astype(cdt)
    g_dual = jnp.concatenate([vec2(params["ln_c1_g"]), vec2(params["ln_pt_g"])], axis=1)
    b_dual = jnp.concatenate([vec2(params["ln_c1_b"]), vec2(params["ln_pt_b"])], axis=1)
    dual = _pixel_call(
        functools.partial(_dual_kernel, c1=half, eps=_EPS, precision=precision),
        streamed=[pat1],
        broadcast=[w_dual, g_dual, b_dual],
        out_channels=half + Cout, out_dtype=inter_dt, tile=tile)
    # `dual` columns are already [c1 | c2] — the first 1.5*Cout columns of the
    # final concat, so that concat is never materialized.

    # ---- harr: Haar DWT branch, fully fused into one kernel ----
    a = x[:, 0::2, 0::2, :].reshape(-1, Cin)
    b_ = x[:, 0::2, 1::2, :].reshape(-1, Cin)
    cc = x[:, 1::2, 0::2, :].reshape(-1, Cin)
    dd = x[:, 1::2, 1::2, :].reshape(-1, Cin)
    w_h = jnp.asarray(params["w_h"], jnp.float32).reshape(half, 2 * Cin).T
    wbr = _pixel_call(
        functools.partial(_dwt_kernel, eps=_EPS, precision=precision),
        streamed=[a, b_, cc, dd],
        broadcast=[w_h[:Cin].astype(cdt), w_h[Cin:].astype(cdt),
                   vec2(params["b_h"]), vec2(params["ln_h_g"]),
                   vec2(params["ln_h_b"])],
        out_channels=half, out_dtype=inter_dt, tile=tile)

    # ---- cat([c1, c2, w]) + proj_last: fused two-matmul accumulation ----
    wpl = jnp.asarray(params["w_pl"], jnp.float32).reshape(Cout, 2 * Cout).T
    out = _pixel_call(
        functools.partial(_cat_proj_kernel, eps=_EPS, precision=precision),
        streamed=[dual, wbr],
        broadcast=[wpl[:half + Cout].astype(cdt), wpl[half + Cout:].astype(cdt),
                   vec2(params["ln_pl_g"]), vec2(params["ln_pl_b"])],
        out_channels=Cout, out_dtype=jnp.float32, tile=tile)
    out = out.reshape(B, Ho2, Wo2, Cout)
    return jnp.transpose(out, (0, 3, 1, 2))  # back to NCHW


# ---------------------------------------------------------------------------
# Deterministic parameter init (matches the module's __init__ shapes)
# ---------------------------------------------------------------------------
def init_params(key, in_channels, out_channels):
    half = out_channels // 2
    g = math.gcd(in_channels, out_channels)
    ks = jax.random.split(key, 7)

    def u(k, shape, fan_in):
        b = 1.0 / math.sqrt(fan_in)
        return jax.random.uniform(k, shape, jnp.float32, -b, b)

    return dict(
        # proj_first: Conv2d(in, out, 3, 1, 1, groups=gcd)
        w_pf=u(ks[0], (out_channels, in_channels // g, 3, 3), (in_channels // g) * 9),
        # conv1: Conv2d(out, out//2, 3, 2, 1, groups=out//2)
        w_c1=u(ks[1], (half, out_channels // half, 3, 3), (out_channels // half) * 9),
        # PTConv convs: Conv2d(out//2, out//2, 3, 2, 1)
        w_pt1=u(ks[2], (half, out_channels // 2, 3, 3), (out_channels // 2) * 9),
        w_pt2=u(ks[3], (half, out_channels // 2, 3, 3), (out_channels // 2) * 9),
        # DWTConv 1x1 conv (with bias): Conv2d(2*in, out//2, 1)
        w_h=u(ks[4], (half, 2 * in_channels, 1, 1), 2 * in_channels),
        b_h=u(ks[5], (half,), 2 * in_channels),
        # proj_last: Conv2d(2*out, out, 1, bias=False)
        w_pl=u(ks[6], (out_channels, 2 * out_channels, 1, 1), 2 * out_channels),
        # LayerNorms: weight=1, bias=0 (PyTorch init)
        ln_pf_g=jnp.ones((out_channels,)), ln_pf_b=jnp.zeros((out_channels,)),
        ln_c1_g=jnp.ones((half,)), ln_c1_b=jnp.zeros((half,)),
        ln_pt_g=jnp.ones((out_channels,)), ln_pt_b=jnp.zeros((out_channels,)),
        ln_h_g=jnp.ones((half,)), ln_h_b=jnp.zeros((half,)),
        ln_pl_g=jnp.ones((out_channels,)), ln_pl_b=jnp.zeros((out_channels,)),
    )


# ---------------------------------------------------------------------------
# Pure-JAX reference (NCHW, lax convs, f32 HIGHEST) for correctness checking
# ---------------------------------------------------------------------------
def _ref_ln_silu(y, gamma, beta, eps=_EPS):
    u = y.mean(1, keepdims=True)
    s = ((y - u) ** 2).mean(1, keepdims=True)
    y = (y - u) / jnp.sqrt(s + eps)
    y = gamma[None, :, None, None] * y + beta[None, :, None, None]
    return y * jax.nn.sigmoid(y)


def _ref_conv(x, w, stride, pad, groups, bias=None):
    y = jax.lax.conv_general_dilated(
        x, w, (stride, stride), [(pad, pad), (pad, pad)],
        feature_group_count=groups,
        dimension_numbers=("NCHW", "OIHW", "NCHW"),
        precision=jax.lax.Precision.HIGHEST)
    if bias is not None:
        y = y + bias[None, :, None, None]
    return y


def mbfd_reference(x, params, out_channels):
    Cin = x.shape[1]
    Cout = out_channels
    half, q = Cout // 2, Cout // 4
    g = math.gcd(Cin, Cout)
    c = _ref_ln_silu(_ref_conv(x, params["w_pf"], 1, 1, g),
                     params["ln_pf_g"], params["ln_pf_b"])
    c1 = _ref_ln_silu(_ref_conv(c, params["w_c1"], 2, 1, half),
                      params["ln_c1_g"], params["ln_c1_b"])
    x1, x2 = jnp.split(c, 2, axis=1)
    y1 = _ref_conv(x1, params["w_pt1"], 2, 1, 1)
    y2 = _ref_conv(x2, params["w_pt2"], 2, 1, 1)
    c2 = _ref_ln_silu(jnp.concatenate([y2[:, :q], y1, y2[:, q:]], axis=1),
                      params["ln_pt_g"], params["ln_pt_b"])
    a = x[:, :, 0::2, 0::2]; b_ = x[:, :, 0::2, 1::2]
    cc = x[:, :, 1::2, 0::2]; dd = x[:, :, 1::2, 1::2]
    yL = 0.5 * (a + b_ + cc + dd)
    ysum = (0.5 * (a + b_ - cc - dd) + 0.5 * (a - b_ + cc - dd)
            + 0.5 * (a - b_ - cc + dd))
    feat = jnp.concatenate([yL, yL + ysum], axis=1)
    wbr = _ref_ln_silu(_ref_conv(feat, params["w_h"], 1, 0, 1, params["b_h"]),
                       params["ln_h_g"], params["ln_h_b"])
    cat = jnp.concatenate([c1, c2, wbr], axis=1)
    return _ref_ln_silu(_ref_conv(cat, params["w_pl"], 1, 0, 1),
                        params["ln_pl_g"], params["ln_pl_b"])


if __name__ == "__main__":
    key = jax.random.PRNGKey(0)
    kx, kp = jax.random.split(key)
    B, Cin, H, W = 2, 4, 16, 16
    Cout = 8
    x = jax.random.normal(kx, (B, Cin, H, W), jnp.float32)
    params = init_params(kp, Cin, Cout)

    y_ref = jax.block_until_ready(mbfd_reference(x, params, Cout))

    # Exact-math check of the fused-kernel structure (f32 operands, HIGHEST).
    fwd_f32 = jax.jit(functools.partial(mbfd_forward, out_channels=Cout,
                                        compute_dtype=jnp.float32))
    y32 = jax.block_until_ready(fwd_f32(x, params))
    assert y32.shape == (B, Cout, H // 2, W // 2), y32.shape
    err32 = float(jnp.max(jnp.abs(y32 - y_ref)))
    assert jnp.allclose(y32, y_ref, atol=1e-4, rtol=1e-4), f"f32 max abs err = {err32}"

    # Performance path: bf16 MXU operands with f32 accumulation.
    fwd_bf16 = jax.jit(functools.partial(mbfd_forward, out_channels=Cout,
                                         compute_dtype=jnp.bfloat16))
    ybf = jax.block_until_ready(fwd_bf16(x, params))
    errbf = float(jnp.max(jnp.abs(ybf - y_ref)))
    assert jnp.allclose(ybf, y_ref, atol=1e-1, rtol=1e-1), f"bf16 max abs err = {errbf}"

    print("KERNEL_OK")
</pallas_src>

<mosaic_0001>
module attributes {stable_mosaic.version = 11 : i64} {
  func.func @_proj_kernel(%arg0: i32, %arg1: memref<256x36xf32, #tpu.memory_space<vmem>>, %arg2: memref<36x8xf32, #tpu.memory_space<vmem>>, %arg3: memref<1x8xf32, #tpu.memory_space<vmem>>, %arg4: memref<1x8xf32, #tpu.memory_space<vmem>>, %arg5: memref<256x8xf32, #tpu.memory_space<vmem>>) attributes {dimension_semantics = [#tpu.dimension_semantics<parallel>], iteration_bounds = array<i64: 2>, scalar_prefetch = 0 : i64, scratch_operands = 0 : i64, tpu.core_type = #tpu.core_type<tc>, window_params = [{transform_indices = @transform_0, window_bounds = array<i64: 256, 36>}, {pipeline_mode = #tpu.pipeline_mode<synchronous>, transform_indices = @transform_1, window_bounds = array<i64: 36, 8>}, {pipeline_mode = #tpu.pipeline_mode<synchronous>, transform_indices = @transform_2, window_bounds = array<i64: 1, 8>}, {pipeline_mode = #tpu.pipeline_mode<synchronous>, transform_indices = @transform_3, window_bounds = array<i64: 1, 8>}, {transform_indices = @transform_4, window_bounds = array<i64: 256, 8>}]} {
    %c0 = arith.constant 0 : index
    %c0_0 = arith.constant 0 : index
    %0 = vector.load %arg1[%c0, %c0_0] : memref<256x36xf32, #tpu.memory_space<vmem>>, vector<256x36xf32>
    %c0_1 = arith.constant 0 : index
    %c0_2 = arith.constant 0 : index
    %1 = vector.load %arg2[%c0_1, %c0_2] : memref<36x8xf32, #tpu.memory_space<vmem>>, vector<36x8xf32>
    %cst = arith.constant dense<0.000000e+00> : vector<256x8xf32>
    %2 = tpu.matmul %0, %1, %cst {dimension_numbers = #tpu.dot_dimension_numbers<[1], [0], [0], [1], [0, 0, 1, 1], [], []>, precision = #tpu.contract_precision<fp32>} : vector<256x36xf32>, vector<36x8xf32>, vector<256x8xf32> -> vector<256x8xf32>
    %c0_3 = arith.constant 0 : index
    %c0_4 = arith.constant 0 : index
    %3 = vector.load %arg3[%c0_3, %c0_4] : memref<1x8xf32, #tpu.memory_space<vmem>>, vector<1x8xf32>
    %c0_5 = arith.constant 0 : index
    %c0_6 = arith.constant 0 : index
    %4 = vector.load %arg4[%c0_5, %c0_6] : memref<1x8xf32, #tpu.memory_space<vmem>>, vector<1x8xf32>
    %cst_7 = arith.constant dense<0.000000e+00> : vector<256xf32>
    %5 = vector.multi_reduction <add>, %2, %cst_7 [1] : vector<256x8xf32> to vector<256xf32>
    %6 = vector.shape_cast %5 : vector<256xf32> to vector<256x1xf32>
    %cst_8 = arith.constant 8.000000e+00 : f32
    %7 = vector.broadcast %cst_8 : f32 to vector<256x1xf32>
    %8 = arith.divf %6, %7 : vector<256x1xf32>
    %9 = vector.broadcast %8 : vector<256x1xf32> to vector<256x8xf32>
    %10 = arith.subf %2, %9 : vector<256x8xf32>
    %11 = arith.mulf %10, %10 : vector<256x8xf32>
    %cst_9 = arith.constant dense<0.000000e+00> : vector<256xf32>
    %12 = vector.multi_reduction <add>, %11, %cst_9 [1] : vector<256x8xf32> to vector<256xf32>
    %13 = vector.shape_cast %12 : vector<256xf32> to vector<256x1xf32>
    %cst_10 = arith.constant 8.000000e+00 : f32
    %14 = vector.broadcast %cst_10 : f32 to vector<256x1xf32>
    %15 = arith.divf %13, %14 : vector<256x1xf32>
    %16 = vector.broadcast %8 : vector<256x1xf32> to vector<256x8xf32>
    %17 = arith.subf %2, %16 : vector<256x8xf32>
    %cst_11 = arith.constant 9.99999997E-7 : f32
    %18 = vector.broadcast %cst_11 : f32 to vector<256x1xf32>
    %19 = arith.addf %15, %18 : vector<256x1xf32>
    %20 = math.rsqrt %19 : vector<256x1xf32>
    %21 = vector.broadcast %20 : vector<256x1xf32> to vector<256x8xf32>
    %22 = arith.mulf %17, %21 : vector<256x8xf32>
    %23 = vector.broadcast %3 : vector<1x8xf32> to vector<256x8xf32>
    %24 = arith.mulf %23, %22 : vector<256x8xf32>
    %25 = vector.broadcast %4 : vector<1x8xf32> to vector<256x8xf32>
    %26 = arith.addf %24, %25 : vector<256x8xf32>
    %27 = arith.negf %26 : vector<256x8xf32>
    %28 = math.exp %27 : vector<256x8xf32>
    %cst_12 = arith.constant 1.000000e+00 : f32
    %29 = vector.broadcast %cst_12 : f32 to vector<256x8xf32>
    %30 = arith.addf %29, %28 : vector<256x8xf32>
    %31 = arith.divf %29, %30 : vector<256x8xf32>
    %32 = arith.mulf %26, %31 : vector<256x8xf32>
    %c0_13 = arith.constant 0 : index
    %c0_14 = arith.constant 0 : index
    %33 = vector.load %arg5[%c0_13, %c0_14] : memref<256x8xf32, #tpu.memory_space<vmem>>, vector<256x8xf32>
    tpu.vector_store %arg5[%c0_13, %c0_14], %32 {strides = array<i32>} : memref<256x8xf32, #tpu.memory_space<vmem>>, vector<256x8xf32>,
    return
  }
  func.func @transform_0(%arg0: i32) -> (i32, i32) {
    %c0_i32 = arith.constant 0 : i32
    %c0_i32_0 = arith.constant 0 : i32
    return %arg0, %c0_i32 : i32, i32
  }
  func.func @transform_1(%arg0: i32) -> (i32, i32) {
    %c0_i32 = arith.constant 0 : i32
    %c0_i32_0 = arith.constant 0 : i32
    %c0_i32_1 = arith.constant 0 : i32
    return %c0_i32, %c0_i32_0 : i32, i32
  }
  func.func @transform_2(%arg0: i32) -> (i32, i32) {
    %c0_i32 = arith.constant 0 : i32
    %c0_i32_0 = arith.constant 0 : i32
    %c0_i32_1 = arith.constant 0 : i32
    return %c0_i32, %c0_i32_0 : i32, i32
  }
  func.func @transform_3(%arg0: i32) -> (i32, i32) {
    %c0_i32 = arith.constant 0 : i32
    %c0_i32_0 = arith.constant 0 : i32
    %c0_i32_1 = arith.constant 0 : i32
    return %c0_i32, %c0_i32_0 : i32, i32
  }
  func.func @transform_4(%arg0: i32) -> (i32, i32) {
    %c0_i32 = arith.constant 0 : i32
    %c0_i32_0 = arith.constant 0 : i32
    return %arg0, %c0_i32 : i32, i32
  }
}

module attributes {stable_mosaic.version = 11 : i64} {
  func.func @_dual_kernel(%arg0: i32, %arg1: memref<64x72xf32, #tpu.memory_space<vmem>>, %arg2: memref<72x12xf32, #tpu.memory_space<vmem>>, %arg3: memref<1x12xf32, #tpu.memory_space<vmem>>, %arg4: memref<1x12xf32, #tpu.memory_space<vmem>>, %arg5: memref<64x12xf32, #tpu.memory_space<vmem>>) attributes {dimension_semantics = [#tpu.dimension_semantics<parallel>], iteration_bounds = array<i64: 2>, scalar_prefetch = 0 : i64, scratch_operands = 0 : i64, tpu.core_type = #tpu.core_type<tc>, window_params = [{transform_indices = @transform_0, window_bounds = array<i64: 64, 72>}, {pipeline_mode = #tpu.pipeline_mode<synchronous>, transform_indices = @transform_1, window_bounds = array<i64: 72, 12>}, {pipeline_mode = #tpu.pipeline_mode<synchronous>, transform_indices = @transform_2, window_bounds = array<i64: 1, 12>}, {pipeline_mode = #tpu.pipeline_mode<synchronous>, transform_indices = @transform_3, window_bounds = array<i64: 1, 12>}, {transform_indices = @transform_4, window_bounds = array<i64: 64, 12>}]} {
    %c0 = arith.constant 0 : index
    %c0_0 = arith.constant 0 : index
    %0 = vector.load %arg1[%c0, %c0_0] : memref<64x72xf32, #tpu.memory_space<vmem>>, vector<64x72xf32>
    %c0_1 = arith.constant 0 : index
    %c0_2 = arith.constant 0 : index
    %1 = vector.load %arg2[%c0_1, %c0_2] : memref<72x12xf32, #tpu.memory_space<vmem>>, vector<72x12xf32>
    %cst = arith.constant dense<0.000000e+00> : vector<64x12xf32>
    %2 = tpu.matmul %0, %1, %cst {dimension_numbers = #tpu.dot_dimension_numbers<[1], [0], [0], [1], [0, 0, 1, 1], [], []>, precision = #tpu.contract_precision<fp32>} : vector<64x72xf32>, vector<72x12xf32>, vector<64x12xf32> -> vector<64x12xf32>
    %3 = tpu.iota {dimensions = array<i32: 1>} : vector<64x12xi32>
    %c4_i32 = arith.constant 4 : i32
    %4 = vector.broadcast %c4_i32 : i32 to vector<64x12xi32>
    %5 = arith.cmpi slt, %3, %4 : vector<64x12xi32>
    %6 = arith.extui %5 : vector<64x12xi1> to vector<64x12xi32>
    %7 = arith.sitofp %6 : vector<64x12xi32> to vector<64x12xf32>
    %cst_3 = arith.constant 1.000000e+00 : f32
    %8 = vector.broadcast %cst_3 : f32 to vector<64x12xf32>
    %9 = arith.subf %8, %7 : vector<64x12xf32>
    %10 = arith.mulf %2, %7 : vector<64x12xf32>
    %cst_4 = arith.constant dense<0.000000e+00> : vector<64xf32>
    %11 = vector.multi_reduction <add>, %10, %cst_4 [1] : vector<64x12xf32> to vector<64xf32>
    %12 = vector.shape_cast %11 : vector<64xf32> to vector<64x1xf32>
    %cst_5 = arith.constant 4.000000e+00 : f32
    %13 = vector.broadcast %cst_5 : f32 to vector<64x1xf32>
    %14 = arith.divf %12, %13 : vector<64x1xf32>
    %15 = arith.mulf %2, %9 : vector<64x12xf32>
    %cst_6 = arith.constant dense<0.000000e+00> : vector<64xf32>
    %16 = vector.multi_reduction <add>, %15, %cst_6 [1] : vector<64x12xf32> to vector<64xf32>
    %17 = vector.shape_cast %16 : vector<64xf32> to vector<64x1xf32>
    %cst_7 = arith.constant 8.000000e+00 : f32
    %18 = vector.broadcast %cst_7 : f32 to vector<64x1xf32>
    %19 = arith.divf %17, %18 : vector<64x1xf32>
    %20 = vector.broadcast %14 : vector<64x1xf32> to vector<64x12xf32>
    %21 = arith.mulf %7, %20 : vector<64x12xf32>
    %22 = vector.broadcast %19 : vector<64x1xf32> to vector<64x12xf32>
    %23 = arith.mulf %9, %22 : vector<64x12xf32>
    %24 = arith.addf %21, %23 : vector<64x12xf32>
    %25 = arith.subf %2, %24 : vector<64x12xf32>
    %26 = arith.mulf %25, %25 : vector<64x12xf32>
    %27 = arith.mulf %26, %7 : vector<64x12xf32>
    %cst_8 = arith.constant dense<0.000000e+00> : vector<64xf32>
    %28 = vector.multi_reduction <add>, %27, %cst_8 [1] : vector<64x12xf32> to vector<64xf32>
    %29 = vector.shape_cast %28 : vector<64xf32> to vector<64x1xf32>
    %cst_9 = arith.constant 4.000000e+00 : f32
    %30 = vector.broadcast %cst_9 : f32 to vector<64x1xf32>
    %31 = arith.divf %29, %30 : vector<64x1xf32>
    %32 = arith.mulf %25, %25 : vector<64x12xf32>
    %33 = arith.mulf %32, %9 : vector<64x12xf32>
    %cst_10 = arith.constant dense<0.000000e+00> : vector<64xf32>
    %34 = vector.multi_reduction <add>, %33, %cst_10 [1] : vector<64x12xf32> to vector<64xf32>
    %35 = vector.shape_cast %34 : vector<64xf32> to vector<64x1xf32>
    %cst_11 = arith.constant 8.000000e+00 : f32
    %36 = vector.broadcast %cst_11 : f32 to vector<64x1xf32>
    %37 = arith.divf %35, %36 : vector<64x1xf32>
    %38 = vector.broadcast %31 : vector<64x1xf32> to vector<64x12xf32>
    %39 = arith.mulf %7, %38 : vector<64x12xf32>
    %40 = vector.broadcast %37 : vector<64x1xf32> to vector<64x12xf32>
    %41 = arith.mulf %9, %40 : vector<64x12xf32>
    %42 = arith.addf %39, %41 : vector<64x12xf32>
    %cst_12 = arith.constant 9.99999997E-7 : f32
    %43 = vector.broadcast %cst_12 : f32 to vector<64x12xf32>
    %44 = arith.addf %42, %43 : vector<64x12xf32>
    %45 = math.rsqrt %44 : vector<64x12xf32>
    %46 = arith.mulf %25, %45 : vector<64x12xf32>
    %c0_13 = arith.constant 0 : index
    %c0_14 = arith.constant 0 : index
    %47 = vector.load %arg3[%c0_13, %c0_14] : memref<1x12xf32, #tpu.memory_space<vmem>>, vector<1x12xf32>
    %48 = vector.broadcast %47 : vector<1x12xf32> to vector<64x12xf32>
    %49 = arith.mulf %48, %46 : vector<64x12xf32>
    %c0_15 = arith.constant 0 : index
    %c0_16 = arith.constant 0 : index
    %50 = vector.load %arg4[%c0_15, %c0_16] : memref<1x12xf32, #tpu.memory_space<vmem>>, vector<1x12xf32>
    %51 = vector.broadcast %50 : vector<1x12xf32> to vector<64x12xf32>
    %52 = arith.addf %49, %51 : vector<64x12xf32>
    %53 = arith.negf %52 : vector<64x12xf32>
    %54 = math.exp %53 : vector<64x12xf32>
    %cst_17 = arith.constant 1.000000e+00 : f32
    %55 = vector.broadcast %cst_17 : f32 to vector<64x12xf32>
    %56 = arith.addf %55, %54 : vector<64x12xf32>
    %57 = arith.divf %55, %56 : vector<64x12xf32>
    %58 = arith.mulf %52, %57 : vector<64x12xf32>
    %c0_18 = arith.constant 0 : index
    %c0_19 = arith.constant 0 : index
    %59 = vector.load %arg5[%c0_18, %c0_19] : memref<64x12xf32, #tpu.memory_space<vmem>>, vector<64x12xf32>
    tpu.vector_store %arg5[%c0_18, %c0_19], %58 {strides = array<i32>} : memref<64x12xf32, #tpu.memory_space<vmem>>, vector<64x12xf32>,
    return
  }
  func.func @transform_0(%arg0: i32) -> (i32, i32) {
    %c0_i32 = arith.constant 0 : i32
    %c0_i32_0 = arith.constant 0 : i32
    return %arg0, %c0_i32 : i32, i32
  }
  func.func @transform_1(%arg0: i32) -> (i32, i32) {
    %c0_i32 = arith.constant 0 : i32
    %c0_i32_0 = arith.constant 0 : i32
    %c0_i32_1 = arith.constant 0 : i32
    return %c0_i32, %c0_i32_0 : i32, i32
  }
  func.func @transform_2(%arg0: i32) -> (i32, i32) {
    %c0_i32 = arith.constant 0 : i32
    %c0_i32_0 = arith.constant 0 : i32
    %c0_i32_1 = arith.constant 0 : i32
    return %c0_i32, %c0_i32_0 : i32, i32
  }
  func.func @transform_3(%arg0: i32) -> (i32, i32) {
    %c0_i32 = arith.constant 0 : i32
    %c0_i32_0 = arith.constant 0 : i32
    %c0_i32_1 = arith.constant 0 : i32
    return %c0_i32, %c0_i32_0 : i32, i32
  }
  func.func @transform_4(%arg0: i32) -> (i32, i32) {
    %c0_i32 = arith.constant 0 : i32
    %c0_i32_0 = arith.constant 0 : i32
    return %arg0, %c0_i32 : i32, i32
  }
}

module attributes {stable_mosaic.version = 11 : i64} {
  func.func @_cat_proj_kernel(%arg0: i32, %arg1: memref<64x12xf32, #tpu.memory_space<vmem>>, %arg2: memref<64x4xf32, #tpu.memory_space<vmem>>, %arg3: memref<12x8xf32, #tpu.memory_space<vmem>>, %arg4: memref<4x8xf32, #tpu.memory_space<vmem>>, %arg5: memref<1x8xf32, #tpu.memory_space<vmem>>, %arg6: memref<1x8xf32, #tpu.memory_space<vmem>>, %arg7: memref<64x8xf32, #tpu.memory_space<vmem>>) attributes {dimension_semantics = [#tpu.dimension_semantics<parallel>], iteration_bounds = array<i64: 2>, scalar_prefetch = 0 : i64, scratch_operands = 0 : i64, tpu.core_type = #tpu.core_type<tc>, window_params = [{transform_indices = @transform_0, window_bounds = array<i64: 64, 12>}, {transform_indices = @transform_1, window_bounds = array<i64: 64, 4>}, {pipeline_mode = #tpu.pipeline_mode<synchronous>, transform_indices = @transform_2, window_bounds = array<i64: 12, 8>}, {pipeline_mode = #tpu.pipeline_mode<synchronous>, transform_indices = @transform_3, window_bounds = array<i64: 4, 8>}, {pipeline_mode = #tpu.pipeline_mode<synchronous>, transform_indices = @transform_4, window_bounds = array<i64: 1, 8>}, {pipeline_mode = #tpu.pipeline_mode<synchronous>, transform_indices = @transform_5, window_bounds = array<i64: 1, 8>}, {transform_indices = @transform_6, window_bounds = array<i64: 64, 8>}]} {
    %c0 = arith.constant 0 : index
    %c0_0 = arith.constant 0 : index
    %0 = vector.load %arg1[%c0, %c0_0] : memref<64x12xf32, #tpu.memory_space<vmem>>, vector<64x12xf32>
    %c0_1 = arith.constant 0 : index
    %c0_2 = arith.constant 0 : index
    %1 = vector.load %arg3[%c0_1, %c0_2] : memref<12x8xf32, #tpu.memory_space<vmem>>, vector<12x8xf32>
    %cst = arith.constant dense<0.000000e+00> : vector<64x8xf32>
    %2 = tpu.matmul %0, %1, %cst {dimension_numbers = #tpu.dot_dimension_numbers<[1], [0], [0], [1], [0, 0, 1, 1], [], []>, precision = #tpu.contract_precision<fp32>} : vector<64x12xf32>, vector<12x8xf32>, vector<64x8xf32> -> vector<64x8xf32>
    %c0_3 = arith.constant 0 : index
    %c0_4 = arith.constant 0 : index
    %3 = vector.load %arg2[%c0_3, %c0_4] : memref<64x4xf32, #tpu.memory_space<vmem>>, vector<64x4xf32>
    %c0_5 = arith.constant 0 : index
    %c0_6 = arith.constant 0 : index
    %4 = vector.load %arg4[%c0_5, %c0_6] : memref<4x8xf32, #tpu.memory_space<vmem>>, vector<4x8xf32>
    %cst_7 = arith.constant dense<0.000000e+00> : vector<64x8xf32>
    %5 = tpu.matmul %3, %4, %cst_7 {dimension_numbers = #tpu.dot_dimension_numbers<[1], [0], [0], [1], [0, 0, 1, 1], [], []>, precision = #tpu.contract_precision<fp32>} : vector<64x4xf32>, vector<4x8xf32>, vector<64x8xf32> -> vector<64x8xf32>
    %6 = arith.addf %2, %5 : vector<64x8xf32>
    %c0_8 = arith.constant 0 : index
    %c0_9 = arith.constant 0 : index
    %7 = vector.load %arg5[%c0_8, %c0_9] : memref<1x8xf32, #tpu.memory_space<vmem>>, vector<1x8xf32>
    %c0_10 = arith.constant 0 : index
    %c0_11 = arith.constant 0 : index
    %8 = vector.load %arg6[%c0_10, %c0_11] : memref<1x8xf32, #tpu.memory_space<vmem>>, vector<1x8xf32>
    %cst_12 = arith.constant dense<0.000000e+00> : vector<64xf32>
    %9 = vector.multi_reduction <add>, %6, %cst_12 [1] : vector<64x8xf32> to vector<64xf32>
    %10 = vector.shape_cast %9 : vector<64xf32> to vector<64x1xf32>
    %cst_13 = arith.constant 8.000000e+00 : f32
    %11 = vector.broadcast %cst_13 : f32 to vector<64x1xf32>
    %12 = arith.divf %10, %11 : vector<64x1xf32>
    %13 = vector.broadcast %12 : vector<64x1xf32> to vector<64x8xf32>
    %14 = arith.subf %6, %13 : vector<64x8xf32>
    %15 = arith.mulf %14, %14 : vector<64x8xf32>
    %cst_14 = arith.constant dense<0.000000e+00> : vector<64xf32>
    %16 = vector.multi_reduction <add>, %15, %cst_14 [1] : vector<64x8xf32> to vector<64xf32>
    %17 = vector.shape_cast %16 : vector<64xf32> to vector<64x1xf32>
    %cst_15 = arith.constant 8.000000e+00 : f32
    %18 = vector.broadcast %cst_15 : f32 to vector<64x1xf32>
    %19 = arith.divf %17, %18 : vector<64x1xf32>
    %20 = vector.broadcast %12 : vector<64x1xf32> to vector<64x8xf32>
    %21 = arith.subf %6, %20 : vector<64x8xf32>
    %cst_16 = arith.constant 9.99999997E-7 : f32
    %22 = vector.broadcast %cst_16 : f32 to vector<64x1xf32>
    %23 = arith.addf %19, %22 : vector<64x1xf32>
    %24 = math.rsqrt %23 : vector<64x1xf32>
    %25 = vector.broadcast %24 : vector<64x1xf32> to vector<64x8xf32>
    %26 = arith.mulf %21, %25 : vector<64x8xf32>
    %27 = vector.broadcast %7 : vector<1x8xf32> to vector<64x8xf32>
    %28 = arith.mulf %27, %26 : vector<64x8xf32>
    %29 = vector.broadcast %8 : vector<1x8xf32> to vector<64x8xf32>
    %30 = arith.addf %28, %29 : vector<64x8xf32>
    %31 = arith.negf %30 : vector<64x8xf32>
    %32 = math.exp %31 : vector<64x8xf32>
    %cst_17 = arith.constant 1.000000e+00 : f32
    %33 = vector.broadcast %cst_17 : f32 to vector<64x8xf32>
    %34 = arith.addf %33, %32 : vector<64x8xf32>
    %35 = arith.divf %33, %34 : vector<64x8xf32>
    %36 = arith.mulf %30, %35 : vector<64x8xf32>
    %c0_18 = arith.constant 0 : index
    %c0_19 = arith.constant 0 : index
    %37 = vector.load %arg7[%c0_18, %c0_19] : memref<64x8xf32, #tpu.memory_space<vmem>>, vector<64x8xf32>
    tpu.vector_store %arg7[%c0_18, %c0_19], %36 {strides = array<i32>} : memref<64x8xf32, #tpu.memory_space<vmem>>, vector<64x8xf32>,
    return
  }
  func.func @transform_0(%arg0: i32) -> (i32, i32) {
    %c0_i32 = arith.constant 0 : i32
    %c0_i32_0 = arith.constant 0 : i32
    return %arg0, %c0_i32 : i32, i32
  }
  func.func @transform_1(%arg0: i32) -> (i32, i32) {
    %c0_i32 = arith.constant 0 : i32
    %c0_i32_0 = arith.constant 0 : i32
    return %arg0, %c0_i32 : i32, i32
  }
  func.func @transform_2(%arg0: i32) -> (i32, i32) {
    %c0_i32 = arith.constant 0 : i32
    %c0_i32_0 = arith.constant 0 : i32
    %c0_i32_1 = arith.constant 0 : i32
    return %c0_i32, %c0_i32_0 : i32, i32
  }
  func.func @transform_3(%arg0: i32) -> (i32, i32) {
    %c0_i32 = arith.constant 0 : i32
    %c0_i32_0 = arith.constant 0 : i32
    %c0_i32_1 = arith.constant 0 : i32
    return %c0_i32, %c0_i32_0 : i32, i32
  }
  func.func @transform_4(%arg0: i32) -> (i32, i32) {
    %c0_i32 = arith.constant 0 : i32
    %c0_i32_0 = arith.constant 0 : i32
    %c0_i32_1 = arith.constant 0 : i32
    return %c0_i32, %c0_i32_0 : i32, i32
  }
  func.func @transform_5(%arg0: i32) -> (i32, i32) {
    %c0_i32 = arith.constant 0 : i32
    %c0_i32_0 = arith.constant 0 : i32
    %c0_i32_1 = arith.constant 0 : i32
    return %c0_i32, %c0_i32_0 : i32, i32
  }
  func.func @transform_6(%arg0: i32) -> (i32, i32) {
    %c0_i32 = arith.constant 0 : i32
    %c0_i32_0 = arith.constant 0 : i32
    return %arg0, %c0_i32 : i32, i32
  }
}

module attributes {stable_mosaic.version = 11 : i64} {
  func.func @_dwt_kernel(%arg0: i32, %arg1: memref<64x4xf32, #tpu.memory_space<vmem>>, %arg2: memref<64x4xf32, #tpu.memory_space<vmem>>, %arg3: memref<64x4xf32, #tpu.memory_space<vmem>>, %arg4: memref<64x4xf32, #tpu.memory_space<vmem>>, %arg5: memref<4x4xf32, #tpu.memory_space<vmem>>, %arg6: memref<4x4xf32, #tpu.memory_space<vmem>>, %arg7: memref<1x4xf32, #tpu.memory_space<vmem>>, %arg8: memref<1x4xf32, #tpu.memory_space<vmem>>, %arg9: memref<1x4xf32, #tpu.memory_space<vmem>>, %arg10: memref<64x4xf32, #tpu.memory_space<vmem>>) attributes {dimension_semantics = [#tpu.dimension_semantics<parallel>], iteration_bounds = array<i64: 2>, scalar_prefetch = 0 : i64, scratch_operands = 0 : i64, tpu.core_type = #tpu.core_type<tc>, window_params = [{transform_indices = @transform_0, window_bounds = array<i64: 64, 4>}, {transform_indices = @transform_1, window_bounds = array<i64: 64, 4>}, {transform_indices = @transform_2, window_bounds = array<i64: 64, 4>}, {transform_indices = @transform_3, window_bounds = array<i64: 64, 4>}, {pipeline_mode = #tpu.pipeline_mode<synchronous>, transform_indices = @transform_4, window_bounds = array<i64: 4, 4>}, {pipeline_mode = #tpu.pipeline_mode<synchronous>, transform_indices = @transform_5, window_bounds = array<i64: 4, 4>}, {pipeline_mode = #tpu.pipeline_mode<synchronous>, transform_indices = @transform_6, window_bounds = array<i64: 1, 4>}, {pipeline_mode = #tpu.pipeline_mode<synchronous>, transform_indices = @transform_7, window_bounds = array<i64: 1, 4>}, {pipeline_mode = #tpu.pipeline_mode<synchronous>, transform_indices = @transform_8, window_bounds = array<i64: 1, 4>}, {transform_indices = @transform_9, window_bounds = array<i64: 64, 4>}]} {
    %c0 = arith.constant 0 : index
    %c0_0 = arith.constant 0 : index
    %0 = vector.load %arg1[%c0, %c0_0] : memref<64x4xf32, #tpu.memory_space<vmem>>, vector<64x4xf32>
    %c0_1 = arith.constant 0 : index
    %c0_2 = arith.constant 0 : index
    %1 = vector.load %arg2[%c0_1, %c0_2] : memref<64x4xf32, #tpu.memory_space<vmem>>, vector<64x4xf32>
    %c0_3 = arith.constant 0 : index
    %c0_4 = arith.constant 0 : index
    %2 = vector.load %arg3[%c0_3, %c0_4] : memref<64x4xf32, #tpu.memory_space<vmem>>, vector<64x4xf32>
    %c0_5 = arith.constant 0 : index
    %c0_6 = arith.constant 0 : index
    %3 = vector.load %arg4[%c0_5, %c0_6] : memref<64x4xf32, #tpu.memory_space<vmem>>, vector<64x4xf32>
    %4 = arith.addf %0, %1 : vector<64x4xf32>
    %5 = arith.addf %4, %2 : vector<64x4xf32>
    %6 = arith.addf %5, %3 : vector<64x4xf32>
    %cst = arith.constant 5.000000e-01 : f32
    %7 = vector.broadcast %cst : f32 to vector<64x4xf32>
    %8 = arith.mulf %7, %6 : vector<64x4xf32>
    %9 = arith.addf %0, %0 : vector<64x4xf32>
    %c0_7 = arith.constant 0 : index
    %c0_8 = arith.constant 0 : index
    %10 = vector.load %arg5[%c0_7, %c0_8] : memref<4x4xf32, #tpu.memory_space<vmem>>, vector<4x4xf32>
    %cst_9 = arith.constant dense<0.000000e+00> : vector<64x4xf32>
    %11 = tpu.matmul %8, %10, %cst_9 {dimension_numbers = #tpu.dot_dimension_numbers<[1], [0], [0], [1], [0, 0, 1, 1], [], []>, precision = #tpu.contract_precision<fp32>} : vector<64x4xf32>, vector<4x4xf32>, vector<64x4xf32> -> vector<64x4xf32>
    %c0_10 = arith.constant 0 : index
    %c0_11 = arith.constant 0 : index
    %12 = vector.load %arg6[%c0_10, %c0_11] : memref<4x4xf32, #tpu.memory_space<vmem>>, vector<4x4xf32>
    %cst_12 = arith.constant dense<0.000000e+00> : vector<64x4xf32>
    %13 = tpu.matmul %9, %12, %cst_12 {dimension_numbers = #tpu.dot_dimension_numbers<[1], [0], [0], [1], [0, 0, 1, 1], [], []>, precision = #tpu.contract_precision<fp32>} : vector<64x4xf32>, vector<4x4xf32>, vector<64x4xf32> -> vector<64x4xf32>
    %14 = arith.addf %11, %13 : vector<64x4xf32>
    %c0_13 = arith.constant 0 : index
    %c0_14 = arith.constant 0 : index
    %15 = vector.load %arg7[%c0_13, %c0_14] : memref<1x4xf32, #tpu.memory_space<vmem>>, vector<1x4xf32>
    %16 = vector.broadcast %15 : vector<1x4xf32> to vector<64x4xf32>
    %17 = arith.addf %14, %16 : vector<64x4xf32>
    %c0_15 = arith.constant 0 : index
    %c0_16 = arith.constant 0 : index
    %18 = vector.load %arg8[%c0_15, %c0_16] : memref<1x4xf32, #tpu.memory_space<vmem>>, vector<1x4xf32>
    %c0_17 = arith.constant 0 : index
    %c0_18 = arith.constant 0 : index
    %19 = vector.load %arg9[%c0_17, %c0_18] : memref<1x4xf32, #tpu.memory_space<vmem>>, vector<1x4xf32>
    %cst_19 = arith.constant dense<0.000000e+00> : vector<64xf32>
    %20 = vector.multi_reduction <add>, %17, %cst_19 [1] : vector<64x4xf32> to vector<64xf32>
    %21 = vector.shape_cast %20 : vector<64xf32> to vector<64x1xf32>
    %cst_20 = arith.constant 4.000000e+00 : f32
    %22 = vector.broadcast %cst_20 : f32 to vector<64x1xf32>
    %23 = arith.divf %21, %22 : vector<64x1xf32>
    %24 = vector.broadcast %23 : vector<64x1xf32> to vector<64x4xf32>
    %25 = arith.subf %17, %24 : vector<64x4xf32>
    %26 = arith.mulf %25, %25 : vector<64x4xf32>
    %cst_21 = arith.constant dense<0.000000e+00> : vector<64xf32>
    %27 = vector.multi_reduction <add>, %26, %cst_21 [1] : vector<64x4xf32> to vector<64xf32>
    %28 = vector.shape_cast %27 : vector<64xf32> to vector<64x1xf32>
    %cst_22 = arith.constant 4.000000e+00 : f32
    %29 = vector.broadcast %cst_22 : f32 to vector<64x1xf32>
    %30 = arith.divf %28, %29 : vector<64x1xf32>
    %31 = vector.broadcast %23 : vector<64x1xf32> to vector<64x4xf32>
    %32 = arith.subf %17, %31 : vector<64x4xf32>
    %cst_23 = arith.constant 9.99999997E-7 : f32
    %33 = vector.broadcast %cst_23 : f32 to vector<64x1xf32>
    %34 = arith.addf %30, %33 : vector<64x1xf32>
    %35 = math.rsqrt %34 : vector<64x1xf32>
    %36 = vector.broadcast %35 : vector<64x1xf32> to vector<64x4xf32>
    %37 = arith.mulf %32, %36 : vector<64x4xf32>
    %38 = vector.broadcast %18 : vector<1x4xf32> to vector<64x4xf32>
    %39 = arith.mulf %38, %37 : vector<64x4xf32>
    %40 = vector.broadcast %19 : vector<1x4xf32> to vector<64x4xf32>
    %41 = arith.addf %39, %40 : vector<64x4xf32>
    %42 = arith.negf %41 : vector<64x4xf32>
    %43 = math.exp %42 : vector<64x4xf32>
    %cst_24 = arith.constant 1.000000e+00 : f32
    %44 = vector.broadcast %cst_24 : f32 to vector<64x4xf32>
    %45 = arith.addf %44, %43 : vector<64x4xf32>
    %46 = arith.divf %44, %45 : vector<64x4xf32>
    %47 = arith.mulf %41, %46 : vector<64x4xf32>
    %c0_25 = arith.constant 0 : index
    %c0_26 = arith.constant 0 : index
    %48 = vector.load %arg10[%c0_25, %c0_26] : memref<64x4xf32, #tpu.memory_space<vmem>>, vector<64x4xf32>
    tpu.vector_store %arg10[%c0_25, %c0_26], %47 {strides = array<i32>} : memref<64x4xf32, #tpu.memory_space<vmem>>, vector<64x4xf32>,
    return
  }
  func.func @transform_0(%arg0: i32) -> (i32, i32) {
    %c0_i32 = arith.constant 0 : i32
    %c0_i32_0 = arith.constant 0 : i32
    return %arg0, %c0_i32 : i32, i32
  }
  func.func @transform_1(%arg0: i32) -> (i32, i32) {
    %c0_i32 = arith.constant 0 : i32
    %c0_i32_0 = arith.constant 0 : i32
    return %arg0, %c0_i32 : i32, i32
  }
  func.func @transform_2(%arg0: i32) -> (i32, i32) {
    %c0_i32 = arith.constant 0 : i32
    %c0_i32_0 = arith.constant 0 : i32
    return %arg0, %c0_i32 : i32, i32
  }
  func.func @transform_3(%arg0: i32) -> (i32, i32) {
    %c0_i32 = arith.constant 0 : i32
    %c0_i32_0 = arith.constant 0 : i32
    return %arg0, %c0_i32 : i32, i32
  }
  func.func @transform_4(%arg0: i32) -> (i32, i32) {
    %c0_i32 = arith.constant 0 : i32
    %c0_i32_0 = arith.constant 0 : i32
    %c0_i32_1 = arith.constant 0 : i32
    return %c0_i32, %c0_i32_0 : i32, i32
  }
  func.func @transform_5(%arg0: i32) -> (i32, i32) {
    %c0_i32 = arith.constant 0 : i32
    %c0_i32_0 = arith.constant 0 : i32
    %c0_i32_1 = arith.constant 0 : i32
    return %c0_i32, %c0_i32_0 : i32, i32
  }
  func.func @transform_6(%arg0: i32) -> (i32, i32) {
    %c0_i32 = arith.constant 0 : i32
    %c0_i32_0 = arith.constant 0 : i32
    %c0_i32_1 = arith.constant 0 : i32
    return %c0_i32, %c0_i32_0 : i32, i32
  }
  func.func @transform_7(%arg0: i32) -> (i32, i32) {
    %c0_i32 = arith.constant 0 : i32
    %c0_i32_0 = arith.constant 0 : i32
    %c0_i32_1 = arith.constant 0 : i32
    return %c0_i32, %c0_i32_0 : i32, i32
  }
  func.func @transform_8(%arg0: i32) -> (i32, i32) {
    %c0_i32 = arith.constant 0 : i32
    %c0_i32_0 = arith.constant 0 : i32
    %c0_i32_1 = arith.constant 0 : i32
    return %c0_i32, %c0_i32_0 : i32, i32
  }
  func.func @transform_9(%arg0: i32) -> (i32, i32) {
    %c0_i32 = arith.constant 0 : i32
    %c0_i32_0 = arith.constant 0 : i32
    return %arg0, %c0_i32 : i32, i32
  }
}

</mosaic_0001>

<llo_original>
// kernel: mbfd_forward.4
$region0: #{mbfd_forward.4}
  #allocation0 [shape = 'u32[]', space=smem, size = 0x4, offset = 0x4, fixed_abs, tag = 'smem constant byte address 0x4 - core index']
  #allocation1 [shape = 'u32[72,128]{1,0:T(1,128)}', space=vmem, size = 0x9000, scoped, tag = 'internal scratch']
  %s0 = inlined_call_operand.vmem [shape: f32[512,36], index: 0, kind: input, shape index: {}]
  %s1 = inlined_call_operand.vmem [shape: f32[36,8], index: 1, kind: input, shape index: {}]
  %s2 = inlined_call_operand.vmem [shape: f32[1,8], index: 2, kind: input, shape index: {}]
  %s3 = inlined_call_operand.vmem [shape: f32[1,8], index: 3, kind: input, shape index: {}]
  %s4 = inlined_call_operand.vmem [shape: f32[512,8], index: 4, kind: output, shape index: {}]
  %s5 = sld [smem:[#allocation0]]
  $region49: #{mbfd_forward.4} parent=0
    _
  %s7 = ssub.s32 1, %s5
  %s8 = scalar_select 0, %s7, %s5
  loop: start=0, step=1, limit=4
  $region2: #{mbfd_forward.4} parent=0 // loop_pre_header
    _
  $region3: #{mbfd_forward.4} parent=0 // loop_header
    %s10 = sphi 0, %s14
    %p11 = scmp.ge.s32.totalorder %s10, 4
    %s20 = sphi 0, %s22
    %s23 = sphi 0, %s20
    %s24 = sphi 0, %s23
    %s40 = sphi 0, %s24
    %s44 = sphi 0, %s44
    %s46 = sphi 0, %s44
    %s47 = sphi 0, %s46
    %s61 = sphi 0, %s47
    %s65 = sphi 0, %s65
    %s67 = sphi 0, %s65
    %s68 = sphi 0, %s67
    %s82 = sphi 0, %s68
    %s86 = sphi 0, %s86
    %s88 = sphi 0, %s86
    %s89 = sphi 0, %s88
    %s103 = sphi 0, %s89
    %s109 = sphi 0, %s111
    %s112 = sphi 0, %s109
    %s113 = sphi 0, %s112
    %s129 = sphi 0, %s113
  $region4: #{mbfd_forward.4} parent=0 // loop_header_branch
    %13 = sbr.rel (%p11) target = $region8
  $region5: #{mbfd_forward.4} parent=0 // loop_body
    %s15 = ssub.s32 %s10, 1
    %s16 = ssub.s32 %s10, 2
    %s17 = sadd.s32 %s10, 1
    %s18 = ssub.s32 %s10, %s17
    %p19 = scmp.eq.s32.totalorder %s18, 0
    %s21 = sadd.s32 %s20, 1
    %s22 = scalar_select %p19, %s20, %s21
    %p25 = pneg %p19
    %p26 = scmp.eq.s32.totalorder %s10, 1
    %p27 = por %p25, %p26
    %p28 = scmp.ne.s32.totalorder %s20, %s23
    %p29 = scmp.eq.s32.totalorder %s10, 0
    %p30 = por %p28, %p29
    %p31 = scmp.ne.s32.totalorder %s20, %s23
    %p32 = scmp.eq.s32.totalorder %s15, 1
    %p33 = por %p31, %p32
    %p34 = scmp.ne.s32.totalorder %s23, %s24
    %p35 = scmp.eq.s32.totalorder %s15, 0
    %p36 = por %p34, %p35
    %p37 = scmp.ne.s32.totalorder %s23, %s24
    %p38 = scmp.eq.s32.totalorder %s16, 1
    %p39 = por %p37, %p38
    %p41 = scmp.ne.s32.totalorder %s24, %s40
    %p42 = scmp.eq.s32.totalorder %s16, 0
    %p43 = por %p41, %p42
    %s45 = sadd.s32 %s44, 1
    %p48 = scmp.eq.s32.totalorder %s10, 1
    %p49 = scmp.ne.s32.totalorder %s44, %s46
    %p50 = scmp.eq.s32.totalorder %s10, 0
    %p51 = por %p49, %p50
    %p52 = scmp.ne.s32.totalorder %s44, %s46
    %p53 = scmp.eq.s32.totalorder %s15, 1
    %p54 = por %p52, %p53
    %p55 = scmp.ne.s32.totalorder %s46, %s47
    %p56 = scmp.eq.s32.totalorder %s15, 0
    %p57 = por %p55, %p56
    %p58 = scmp.ne.s32.totalorder %s46, %s47
    %p59 = scmp.eq.s32.totalorder %s16, 1
    %p60 = por %p58, %p59
    %p62 = scmp.ne.s32.totalorder %s47, %s61
    %p63 = scmp.eq.s32.totalorder %s16, 0
    %p64 = por %p62, %p63
    %s66 = sadd.s32 %s65, 1
    %p69 = scmp.eq.s32.totalorder %s10, 1
    %p70 = scmp.ne.s32.totalorder %s65, %s67
    %p71 = scmp.eq.s32.totalorder %s10, 0
    %p72 = por %p70, %p71
    %p73 = scmp.ne.s32.totalorder %s65, %s67
    %p74 = scmp.eq.s32.totalorder %s15, 1
    %p75 = por %p73, %p74
    %p76 = scmp.ne.s32.totalorder %s67, %s68
    %p77 = scmp.eq.s32.totalorder %s15, 0
    %p78 = por %p76, %p77
    %p79 = scmp.ne.s32.totalorder %s67, %s68
    %p80 = scmp.eq.s32.totalorder %s16, 1
    %p81 = por %p79, %p80
    %p83 = scmp.ne.s32.totalorder %s68, %s82
    %p84 = scmp.eq.s32.totalorder %s16, 0
    %p85 = por %p83, %p84
    %s87 = sadd.s32 %s86, 1
    %p90 = scmp.eq.s32.totalorder %s10, 1
    %p91 = scmp.ne.s32.totalorder %s86, %s88
    %p92 = scmp.eq.s32.totalorder %s10, 0
    %p93 = por %p91, %p92
    %p94 = scmp.ne.s32.totalorder %s86, %s88
    %p95 = scmp.eq.s32.totalorder %s15, 1
    %p96 = por %p94, %p95
    %p97 = scmp.ne.s32.totalorder %s88, %s89
    %p98 = scmp.eq.s32.totalorder %s15, 0
    %p99 = por %p97, %p98
    %p100 = scmp.ne.s32.totalorder %s88, %s89
    %p101 = scmp.eq.s32.totalorder %s16, 1
    %p102 = por %p100, %p101
    %p104 = scmp.ne.s32.totalorder %s89, %s103
    %p105 = scmp.eq.s32.totalorder %s16, 0
    %p106 = por %p104, %p105
    %s107 = ssub.s32 %s10, %s17
    %p108 = scmp.eq.s32.totalorder %s107, 0
    %s110 = sadd.s32 %s109, 1
    %s111 = scalar_select %p108, %s109, %s110
    %p114 = pneg %p108
    %p115 = scmp.eq.s32.totalorder %s10, 1
    %p116 = por %p114, %p115
    %p117 = scmp.ne.s32.totalorder %s109, %s112
    %p118 = scmp.eq.s32.totalorder %s10, 0
    %p119 = por %p117, %p118
    %p120 = scmp.ne.s32.totalorder %s109, %s112
    %p121 = scmp.eq.s32.totalorder %s15, 1
    %p122 = por %p120, %p121
    %p123 = scmp.ne.s32.totalorder %s112, %s113
    %p124 = scmp.eq.s32.totalorder %s15, 0
    %p125 = por %p123, %p124
    %p126 = scmp.ne.s32.totalorder %s112, %s113
    %p127 = scmp.eq.s32.totalorder %s16, 1
    %p128 = por %p126, %p127
    %p130 = scmp.ne.s32.totalorder %s113, %s129
    %p131 = scmp.eq.s32.totalorder %s16, 0
    %p132 = por %p130, %p131
    %p133 = scmp.le.s32.totalorder 1, %s10
    %p134 = scmp.lt.s32.totalorder %s10, 3
    %p135 = pnand %p133, %p134
    %p136 = pneg %p135
    // Predicated region
    $region9: #{mbfd_forward.4} parent=5 // pred_check
      _
    $region10: #{mbfd_forward.4} parent=5 // pred_check_branch
      %138 = sbr.rel (%p135) target = $region12
    $region11: #{mbfd_forward.4} parent=5 // pred_region
      %s139 = ssub.s32 %s10, 1
      // Predicated region
      $region13: #{mbfd_forward.4} parent=11 // pred_check
        %p140 = pneg %p57
      $region14: #{mbfd_forward.4} parent=11 // pred_check_branch
        %142 = sbr.rel (%p140) target = $region16
      $region15: #{mbfd_forward.4} parent=11 // pred_region
        _
      $region16: #{mbfd_forward.4} parent=11 // pred_fallthru
        _
      // Predicated region
      $region17: #{mbfd_forward.4} parent=11 // pred_check
        %p143 = pneg %p78
      $region18: #{mbfd_forward.4} parent=11 // pred_check_branch
        %145 = sbr.rel (%p143) target = $region20
      $region19: #{mbfd_forward.4} parent=11 // pred_region
        _
      $region20: #{mbfd_forward.4} parent=11 // pred_fallthru
        _
      // Predicated region
      $region21: #{mbfd_forward.4} parent=11 // pred_check
        %p146 = pneg %p99
      $region22: #{mbfd_forward.4} parent=11 // pred_check_branch
        %148 = sbr.rel (%p146) target = $region24
      $region23: #{mbfd_forward.4} parent=11 // pred_region
        _
      $region24: #{mbfd_forward.4} parent=11 // pred_fallthru
        _
    $region12: #{mbfd_forward.4} parent=5 // pred_fallthru
      _
    %p149 = scmp.lt.s32.totalorder %s10, 2
    // Predicated region
    $region25: #{mbfd_forward.4} parent=5 // pred_check
      %p150 = pneg %p149
    $region26: #{mbfd_forward.4} parent=5 // pred_check_branch
      %152 = sbr.rel (%p150) target = $region28
    $region27: #{mbfd_forward.4} parent=5 // pred_region
      // Predicated region
      $region29: #{mbfd_forward.4} parent=27 // pred_check
        %p153 = pneg %p30
      $region30: #{mbfd_forward.4} parent=27 // pred_check_branch
        %155 = sbr.rel (%p153) target = $region32
      $region31: #{mbfd_forward.4} parent=27 // pred_region
        %s156 = smul.u32 32, %s10
        %p157 = scmp.lt.s32.totalorder %s156, 63
        %s158 = scalar_select %p157, %s156, 63
        %s159 = smul.addr %s158, 8
        %s160 = scalar_lea.vmem %s0, %s159
        %s161 = smul.u32 32, %s10
      $region32: #{mbfd_forward.4} parent=27 // pred_fallthru
        _
    $region28: #{mbfd_forward.4} parent=5 // pred_fallthru
      _
    %p162 = scmp.le.s32.totalorder 1, %s10
    %p163 = scmp.lt.s32.totalorder %s10, 3
    %p164 = pnand %p162, %p163
    %p165 = pneg %p164
    // Predicated region
    $region33: #{mbfd_forward.4} parent=5 // pred_check
      _
    $region34: #{mbfd_forward.4} parent=5 // pred_check_branch
      %167 = sbr.rel (%p164) target = $region36
    $region35: #{mbfd_forward.4} parent=5 // pred_region
      %s168 = ssub.s32 %s10, 1
      %s169 = smul.u32 32, %s15
      %p170 = scmp.lt.s32.totalorder %s169, 63
      %s171 = scalar_select %p170, %s169, 63
      %s172 = smul.addr %s171, 8
      %s173 = scalar_lea.vmem %s0, %s172
      %p174 = pneg %p36
      %p175 = pneg %p33
      %p176 = pneg %p57
      %p177 = pneg %p54
      %p178 = pneg %p78
      %p179 = pneg %p75
      %p180 = pneg %p99
      %p181 = pneg %p96
      %p182 = pneg %p125
      %p183 = pneg %p122
      %s184 = smul.u32 32, %s15
      %p185 = scmp.lt.s32.totalorder %s184, 63
      %s186 = scalar_select %p185, %s184, 63
      %s187 = smul.addr %s186, 8
      %s188 = scalar_lea.vmem %s4, %s187
      %s189 = smul.u32 32, %s15
      %p190 = scmp.lt.s32.totalorder %s189, 63
      %s191 = scalar_select %p190, %s189, 63
      %s192 = smul.addr %s191, 8
      %s193 = scalar_lea.vmem %s0, %s192
      %s194 = smul.u32 32, %s15
      %s195 = smul.u32 32, %s15
      %p196 = scmp.lt.s32.totalorder %s195, 63
      %s197 = scalar_select %p196, %s195, 63
      %s198 = smul.addr %s197, 8
      %s199 = scalar_lea.vmem %s4, %s198
      %s200 = smul.u32 32, %s15
      %v201 = vld [vmem:[%s193] sm:$0xff]
      %v202 = vld [vmem:[%s193 + $0x8] sm:$0xff]
      %v203 = vld [vmem:[%s193 + $0x10] sm:$0xff]
      %v204 = vld [vmem:[%s193 + $0x18] sm:$0xff]
      %v205 = vld [vmem:[%s193 + $0x20] sm:$0xff]
      %v206 = vld [vmem:[%s193 + $0x28] sm:$0xff]
      %v207 = vld [vmem:[%s193 + $0x30] sm:$0xff]
      %v208 = vld [vmem:[%s193 + $0x38] sm:$0xff]
      %v209 = vld [vmem:[%s193 + $0x40] sm:$0xff]
      %v210 = vld [vmem:[%s193 + $0x48] sm:$0xff]
      %v211 = vld [vmem:[%s193 + $0x50] sm:$0xff]
      %v212 = vld [vmem:[%s193 + $0x58] sm:$0xff]
      %v213 = vld [vmem:[%s193 + $0x60] sm:$0xff]
      %v214 = vld [vmem:[%s193 + $0x68] sm:$0xff]
      %v215 = vld [vmem:[%s193 + $0x70] sm:$0xff]
      %v216 = vld [vmem:[%s193 + $0x78] sm:$0xff]
      %v217 = vld [vmem:[%s193 + $0x80] sm:$0xff]
      %v218 = vld [vmem:[%s193 + $0x88] sm:$0xff]
      %v219 = vld [vmem:[%s193 + $0x90] sm:$0xff]
      %v220 = vld [vmem:[%s193 + $0x98] sm:$0xff]
      %v221 = vld [vmem:[%s193 + $0xa0] sm:$0xff]
      %v222 = vld [vmem:[%s193 + $0xa8] sm:$0xff]
      %v223 = vld [vmem:[%s193 + $0xb0] sm:$0xff]
      %v224 = vld [vmem:[%s193 + $0xb8] sm:$0xff]
      %v225 = vld [vmem:[%s193 + $0xc0] sm:$0xff]
      %v226 = vld [vmem:[%s193 + $0xc8] sm:$0xff]
      %v227 = vld [vmem:[%s193 + $0xd0] sm:$0xff]
      %v228 = vld [vmem:[%s193 + $0xd8] sm:$0xff]
      %v229 = vld [vmem:[%s193 + $0xe0] sm:$0xff]
      %v230 = vld [vmem:[%s193 + $0xe8] sm:$0xff]
      %v231 = vld [vmem:[%s193 + $0xf0] sm:$0xff]
      %v232 = vld [vmem:[%s193 + $0xf8] sm:$0xff]
      %v233 = vld [vmem:[%s1] sm:$0xff]
      %v234 = vld [vmem:[%s1 + $0x8] sm:$0xff]
      %v235 = vld [vmem:[%s1 + $0x10] sm:$0xff]
      %v236 = vld [vmem:[%s1 + $0x18] sm:$0xff]
      %v237 = vld [vmem:[%s1 + $0x20] sm:$0xf]
      %vm238 = vcmask 293888
      %v240 = vsel %vm238, %v201, 0
      %v243 = vsel %vm238, %v202, 0
      %v246 = vsel %vm238, %v203, 0
      %v249 = vsel %vm238, %v204, 0
      %v252 = vsel %vm238, %v205, 0
      %v255 = vsel %vm238, %v206, 0
      %v258 = vsel %vm238, %v207, 0
      %v261 = vsel %vm238, %v208, 0
      %v264 = vsel %vm238, %v209, 0
      %v267 = vsel %vm238, %v210, 0
      %v270 = vsel %vm238, %v211, 0
      %v273 = vsel %vm238, %v212, 0
      %v276 = vsel %vm238, %v213, 0
      %v279 = vsel %vm238, %v214, 0
      %v282 = vsel %vm238, %v215, 0
      %v285 = vsel %vm238, %v216, 0
      %v288 = vsel %vm238, %v217, 0
      %v291 = vsel %vm238, %v218, 0
      %v294 = vsel %vm238, %v219, 0
      %v297 = vsel %vm238, %v220, 0
      %v300 = vsel %vm238, %v221, 0
      %v303 = vsel %vm238, %v222, 0
      %v306 = vsel %vm238, %v223, 0
      %v309 = vsel %vm238, %v224, 0
      %v312 = vsel %vm238, %v225, 0
      %v315 = vsel %vm238, %v226, 0
      %v318 = vsel %vm238, %v227, 0
      %v321 = vsel %vm238, %v228, 0
      %v324 = vsel %vm238, %v229, 0
      %v327 = vsel %vm238, %v230, 0
      %v330 = vsel %vm238, %v231, 0
      %v333 = vsel %vm238, %v232, 0
      %vm335 = vcmask 1043456
      %v337 = vsel %vm335, %v237, 0
      %339 = vmatpush.msra.mxu0 0.0
      %340 = vmatpush.msra.mxu0 0.0
      %341 = vmatpush.msra.mxu0 0.0
      %342 = vmatpush.msra.mxu0 0.0
      %343 = vmatpush.msra.mxu0 0.0
      %344 = vmatpush.msra.mxu0 0.0
      %345 = vmatpush.msra.mxu0 0.0
      %346 = vmatpush.msra.mxu0 0.0
      %347 = vmatpush.msra.mxu0 0.0
      %348 = vmatpush.msra.mxu0 0.0
      %349 = vmatpush.msra.mxu0 0.0
      %v350 = vand.u32 %v337, 4294901760
      %351 = vmatpush.msra.mxu0 %v350
      %v352 = vand.u32 %v236, 4294901760
      %353 = vmatpush.msra.mxu0 %v352
      %v354 = vand.u32 %v235, 4294901760
      %355 = vmatpush.msra.mxu0 %v354
      %v356 = vand.u32 %v234, 4294901760
      %357 = vmatpush.msra.mxu0 %v356
      %v358 = vand.u32 %v233, 4294901760
      %359 = vmatpush.msra.mxu0 %v358
      %v360 = vand.u32 %v240, 4294901760
      %v361 = vsub.f32 %v240, %v360
      %v362 = vand.u32 %v361, 4294901760
      %v363 = vsub.f32 %v361, %v362
      %v364 = vand.u32 %v363, 4294901760
      %365 = vmatmul.f32.gmra.mxu0 %v364
      %v366 = vpop.f32.mrf.mxu0
      %v367 = vadd.f32 0.0, %v366
      %v368 = vand.u32 %v243, 4294901760
      %v369 = vsub.f32 %v243, %v368
      %v370 = vand.u32 %v369, 4294901760
      %v371 = vsub.f32 %v369, %v370
      %v372 = vand.u32 %v371, 4294901760
      %373 = vmatmul.f32.gmra.mxu0 %v372
      %v374 = vpop.f32.mrf.mxu0
      %v375 = vadd.f32 0.0, %v374
      %v376 = vand.u32 %v246, 4294901760
      %v377 = vsub.f32 %v246, %v376
      %v378 = vand.u32 %v377, 4294901760
      %v379 = vsub.f32 %v377, %v378
      %v380 = vand.u32 %v379, 4294901760
      %381 = vmatmul.f32.gmra.mxu0 %v380
      %v382 = vpop.f32.mrf.mxu0
      %v383 = vadd.f32 0.0, %v382
      %v384 = vand.u32 %v249, 4294901760
      %v385 = vsub.f32 %v249, %v384
      %v386 = vand.u32 %v385, 4294901760
      %v387 = vsub.f32 %v385, %v386
      %v388 = vand.u32 %v387, 4294901760
      %389 = vmatmul.f32.gmra.mxu0 %v388
      %v390 = vpop.f32.mrf.mxu0
      %v391 = vadd.f32 0.0, %v390
      %v392 = vand.u32 %v252, 4294901760
      %v393 = vsub.f32 %v252, %v392
      %v394 = vand.u32 %v393, 4294901760
      %v395 = vsub.f32 %v393, %v394
      %v396 = vand.u32 %v395, 4294901760
      %397 = vmatmul.f32.gmra.mxu0 %v396
      %v398 = vpop.f32.mrf.mxu0
      %v399 = vadd.f32 0.0, %v398
      %v400 = vand.u32 %v255, 4294901760
      %v401 = vsub.f32 %v255, %v400
      %v402 = vand.u32 %v401, 4294901760
      %v403 = vsub.f32 %v401, %v402
      %v404 = vand.u32 %v403, 4294901760
      %405 = vmatmul.f32.gmra.mxu0 %v404
      %v406 = vpop.f32.mrf.mxu0
      %v407 = vadd.f32 0.0, %v406
      %v408 = vand.u32 %v258, 4294901760
      %v409 = vsub.f32 %v258, %v408
      %v410 = vand.u32 %v409, 4294901760
      %v411 = vsub.f32 %v409, %v410
      %v412 = vand.u32 %v411, 4294901760
      %413 = vmatmul.f32.gmra.mxu0 %v412
      %v414 = vpop.f32.mrf.mxu0
      %v415 = vadd.f32 0.0, %v414
      %v416 = vand.u32 %v261, 4294901760
      %v417 = vsub.f32 %v261, %v416
      %v418 = vand.u32 %v417, 4294901760
      %v419 = vsub.f32 %v417, %v418
      %v420 = vand.u32 %v419, 4294901760
      %421 = vmatmul.f32.gmra.mxu0 %v420
      %v422 = vpop.f32.mrf.mxu0
      %v423 = vadd.f32 0.0, %v422
      %v424 = vand.u32 %v264, 4294901760
      %v425 = vsub.f32 %v264, %v424
      %v426 = vand.u32 %v425, 4294901760
      %v427 = vsub.f32 %v425, %v426
      %v428 = vand.u32 %v427, 4294901760
      %429 = vmatmul.f32.gmra.mxu0 %v428
      %v430 = vpop.f32.mrf.mxu0
      %v431 = vadd.f32 0.0, %v430
      %v432 = vand.u32 %v267, 4294901760
      %v433 = vsub.f32 %v267, %v432
      %v434 = vand.u32 %v433, 4294901760
      %v435 = vsub.f32 %v433, %v434
      %v436 = vand.u32 %v435, 4294901760
      %437 = vmatmul.f32.gmra.mxu0 %v436
      %v438 = vpop.f32.mrf.mxu0
      %v439 = vadd.f32 0.0, %v438
      %v440 = vand.u32 %v270, 4294901760
      %v441 = vsub.f32 %v270, %v440
      %v442 = vand.u32 %v441, 4294901760
      %v443 = vsub.f32 %v441, %v442
      %v444 = vand.u32 %v443, 4294901760
      %445 = vmatmul.f32.gmra.mxu0 %v444
      %v446 = vpop.f32.mrf.mxu0
      %v447 = vadd.f32 0.0, %v446
      %v448 = vand.u32 %v273, 4294901760
      %v449 = vsub.f32 %v273, %v448
      %v450 = vand.u32 %v449, 4294901760
      %v451 = vsub.f32 %v449, %v450
      %v452 = vand.u32 %v451, 4294901760
      %453 = vmatmul.f32.gmra.mxu0 %v452
      %v454 = vpop.f32.mrf.mxu0
      %v455 = vadd.f32 0.0, %v454
      %v456 = vand.u32 %v276, 4294901760
      %v457 = vsub.f32 %v276, %v456
      %v458 = vand.u32 %v457, 4294901760
      %v459 = vsub.f32 %v457, %v458
      %v460 = vand.u32 %v459, 4294901760
      %461 = vmatmul.f32.gmra.mxu0 %v460
      %v462 = vpop.f32.mrf.mxu0
      %v463 = vadd.f32 0.0, %v462
      %v464 = vand.u32 %v279, 4294901760
      %v465 = vsub.f32 %v279, %v464
      %v466 = vand.u32 %v465, 4294901760
      %v467 = vsub.f32 %v465, %v466
      %v468 = vand.u32 %v467, 4294901760
      %469 = vmatmul.f32.gmra.mxu0 %v468
      %v470 = vpop.f32.mrf.mxu0
      %v471 = vadd.f32 0.0, %v470
      %v472 = vand.u32 %v282, 4294901760
      %v473 = vsub.f32 %v282, %v472
      %v474 = vand.u32 %v473, 4294901760
      %v475 = vsub.f32 %v473, %v474
      %v476 = vand.u32 %v475, 4294901760
      %477 = vmatmul.f32.gmra.mxu0 %v476
      %v478 = vpop.f32.mrf.mxu0
      %v479 = vadd.f32 0.0, %v478
      %v480 = vand.u32 %v285, 4294901760
      %v481 = vsub.f32 %v285, %v480
      %v482 = vand.u32 %v481, 4294901760
      %v483 = vsub.f32 %v481, %v482
      %v484 = vand.u32 %v483, 4294901760
      %485 = vmatmul.f32.gmra.mxu0 %v484
      %v486 = vpop.f32.mrf.mxu0
      %v487 = vadd.f32 0.0, %v486
      %v488 = vand.u32 %v288, 4294901760
      %v489 = vsub.f32 %v288, %v488
      %v490 = vand.u32 %v489, 4294901760
      %v491 = vsub.f32 %v489, %v490
      %v492 = vand.u32 %v491, 4294901760
      %493 = vmatmul.f32.gmra.mxu0 %v492
      %v494 = vpop.f32.mrf.mxu0
      %v495 = vadd.f32 0.0, %v494
      %v496 = vand.u32 %v291, 4294901760
      %v497 = vsub.f32 %v291, %v496
      %v498 = vand.u32 %v497, 4294901760
      %v499 = vsub.f32 %v497, %v498
      %v500 = vand.u32 %v499, 4294901760
      %501 = vmatmul.f32.gmra.mxu0 %v500
      %v502 = vpop.f32.mrf.mxu0
      %v503 = vadd.f32 0.0, %v502
      %v504 = vand.u32 %v294, 4294901760
      %v505 = vsub.f32 %v294, %v504
      %v506 = vand.u32 %v505, 4294901760
      %v507 = vsub.f32 %v505, %v506
      %v508 = vand.u32 %v507, 4294901760
      %509 = vmatmul.f32.gmra.mxu0 %v508
      %v510 = vpop.f32.mrf.mxu0
      %v511 = vadd.f32 0.0, %v510
      %v512 = vand.u32 %v297, 4294901760
      %v513 = vsub.f32 %v297, %v512
      %v514 = vand.u32 %v513, 4294901760
      %v515 = vsub.f32 %v513, %v514
      %v516 = vand.u32 %v515, 4294901760
      %517 = vmatmul.f32.gmra.mxu0 %v516
      %v518 = vpop.f32.mrf.mxu0
      %v519 = vadd.f32 0.0, %v518
      %v520 = vand.u32 %v300, 4294901760
      %v521 = vsub.f32 %v300, %v520
      %v522 = vand.u32 %v521, 4294901760
      %v523 = vsub.f32 %v521, %v522
      %v524 = vand.u32 %v523, 4294901760
      %525 = vmatmul.f32.gmra.mxu0 %v524
      %v526 = vpop.f32.mrf.mxu0
      %v527 = vadd.f32 0.0, %v526
      %v528 = vand.u32 %v303, 4294901760
      %v529 = vsub.f32 %v303, %v528
      %v530 = vand.u32 %v529, 4294901760
      %v531 = vsub.f32 %v529, %v530
      %v532 = vand.u32 %v531, 4294901760
      %533 = vmatmul.f32.gmra.mxu0 %v532
      %v534 = vpop.f32.mrf.mxu0
      %v535 = vadd.f32 0.0, %v534
      %v536 = vand.u32 %v306, 4294901760
      %v537 = vsub.f32 %v306, %v536
      %v538 = vand.u32 %v537, 4294901760
      %v539 = vsub.f32 %v537, %v538
      %v540 = vand.u32 %v539, 4294901760
      %541 = vmatmul.f32.gmra.mxu0 %v540
      %v542 = vpop.f32.mrf.mxu0
      %v543 = vadd.f32 0.0, %v542
      %v544 = vand.u32 %v309, 4294901760
      %v545 = vsub.f32 %v309, %v544
      %v546 = vand.u32 %v545, 4294901760
      %v547 = vsub.f32 %v545, %v546
      %v548 = vand.u32 %v547, 4294901760
      %549 = vmatmul.f32.gmra.mxu0 %v548
      %v550 = vpop.f32.mrf.mxu0
      %v551 = vadd.f32 0.0, %v550
      %v552 = vand.u32 %v312, 4294901760
      %v553 = vsub.f32 %v312, %v552
      %v554 = vand.u32 %v553, 4294901760
      %v555 = vsub.f32 %v553, %v554
      %v556 = vand.u32 %v555, 4294901760
      %557 = vmatmul.f32.gmra.mxu0 %v556
      %v558 = vpop.f32.mrf.mxu0
      %v559 = vadd.f32 0.0, %v558
      %v560 = vand.u32 %v315, 4294901760
      %v561 = vsub.f32 %v315, %v560
      %v562 = vand.u32 %v561, 4294901760
      %v563 = vsub.f32 %v561, %v562
      %v564 = vand.u32 %v563, 4294901760
      %565 = vmatmul.f32.gmra.mxu0 %v564
      %v566 = vpop.f32.mrf.mxu0
      %v567 = vadd.f32 0.0, %v566
      %v568 = vand.u32 %v318, 4294901760
      %v569 = vsub.f32 %v318, %v568
      %v570 = vand.u32 %v569, 4294901760
      %v571 = vsub.f32 %v569, %v570
      %v572 = vand.u32 %v571, 4294901760
      %573 = vmatmul.f32.gmra.mxu0 %v572
      %v574 = vpop.f32.mrf.mxu0
      %v575 = vadd.f32 0.0, %v574
      %v576 = vand.u32 %v321, 4294901760
      %v577 = vsub.f32 %v321, %v576
      %v578 = vand.u32 %v577, 4294901760
      %v579 = vsub.f32 %v577, %v578
      %v580 = vand.u32 %v579, 4294901760
      %581 = vmatmul.f32.gmra.mxu0 %v580
      %v582 = vpop.f32.mrf.mxu0
      %v583 = vadd.f32 0.0, %v582
      %v584 = vand.u32 %v324, 4294901760
      %v585 = vsub.f32 %v324, %v584
      %v586 = vand.u32 %v585, 4294901760
      %v587 = vsub.f32 %v585, %v586
      %v588 = vand.u32 %v587, 4294901760
      %589 = vmatmul.f32.gmra.mxu0 %v588
      %v590 = vpop.f32.mrf.mxu0
      %v591 = vadd.f32 0.0, %v590
      %v592 = vand.u32 %v327, 4294901760
      %v593 = vsub.f32 %v327, %v592
      %v594 = vand.u32 %v593, 4294901760
      %v595 = vsub.f32 %v593, %v594
      %v596 = vand.u32 %v595, 4294901760
      %597 = vmatmul.f32.gmra.mxu0 %v596
      %v598 = vpop.f32.mrf.mxu0
      %v599 = vadd.f32 0.0, %v598
      %v600 = vand.u32 %v330, 4294901760
      %v601 = vsub.f32 %v330, %v600
      %v602 = vand.u32 %v601, 4294901760
      %v603 = vsub.f32 %v601, %v602
      %v604 = vand.u32 %v603, 4294901760
      %605 = vmatmul.f32.gmra.mxu0 %v604
      %v606 = vpop.f32.mrf.mxu0
      %v607 = vadd.f32 0.0, %v606
      %v608 = vand.u32 %v333, 4294901760
      %v609 = vsub.f32 %v333, %v608
      %v610 = vand.u32 %v609, 4294901760
      %v611 = vsub.f32 %v609, %v610
      %v612 = vand.u32 %v611, 4294901760
      %613 = vmatmul.f32.gmra.mxu0 %v612
      %v614 = vpop.f32.mrf.mxu0
      %v615 = vadd.f32 0.0, %v614
      %616 = vdwg.mxu0
      %617 = vmatpush.msra.mxu0 0.0
      %618 = vmatpush.msra.mxu0 0.0
      %619 = vmatpush.msra.mxu0 0.0
      %620 = vmatpush.msra.mxu0 0.0
      %621 = vmatpush.msra.mxu0 0.0
      %622 = vmatpush.msra.mxu0 0.0
      %623 = vmatpush.msra.mxu0 0.0
      %624 = vmatpush.msra.mxu0 0.0
      %625 = vmatpush.msra.mxu0 0.0
      %626 = vmatpush.msra.mxu0 0.0
      %627 = vmatpush.msra.mxu0 0.0
      %v628 = vand.u32 %v337, 4294901760
      %v629 = vsub.f32 %v337, %v628
      %v630 = vand.u32 %v629, 4294901760
      %v631 = vsub.f32 %v629, %v630
      %v632 = vand.u32 %v631, 4294901760
      %633 = vmatpush.msra.mxu0 %v632
      %v634 = vand.u32 %v236, 4294901760
      %v635 = vsub.f32 %v236, %v634
      %v636 = vand.u32 %v635, 4294901760
      %v637 = vsub.f32 %v635, %v636
      %v638 = vand.u32 %v637, 4294901760
      %639 = vmatpush.msra.mxu0 %v638
      %v640 = vand.u32 %v235, 4294901760
      %v641 = vsub.f32 %v235, %v640
      %v642 = vand.u32 %v641, 4294901760
      %v643 = vsub.f32 %v641, %v642
      %v644 = vand.u32 %v643, 4294901760
      %645 = vmatpush.msra.mxu0 %v644
      %v646 = vand.u32 %v234, 4294901760
      %v647 = vsub.f32 %v234, %v646
      %v648 = vand.u32 %v647, 4294901760
      %v649 = vsub.f32 %v647, %v648
      %v650 = vand.u32 %v649, 4294901760
      %651 = vmatpush.msra.mxu0 %v650
      %v652 = vand.u32 %v233, 4294901760
      %v653 = vsub.f32 %v233, %v652
      %v654 = vand.u32 %v653, 4294901760
      %v655 = vsub.f32 %v653, %v654
      %v656 = vand.u32 %v655, 4294901760
      %657 = vmatpush.msra.mxu0 %v656
      %v658 = vand.u32 %v240, 4294901760
      %659 = vmatmul.f32.gmra.mxu0 %v658
      %v660 = vpop.f32.mrf.mxu0
      %v661 = vadd.f32 %v367, %v660
      %v662 = vand.u32 %v243, 4294901760
      %663 = vmatmul.f32.gmra.mxu0 %v662
      %v664 = vpop.f32.mrf.mxu0
      %v665 = vadd.f32 %v375, %v664
      %v666 = vand.u32 %v246, 4294901760
      %667 = vmatmul.f32.gmra.mxu0 %v666
      %v668 = vpop.f32.mrf.mxu0
      %v669 = vadd.f32 %v383, %v668
      %v670 = vand.u32 %v249, 4294901760
      %671 = vmatmul.f32.gmra.mxu0 %v670
      %v672 = vpop.f32.mrf.mxu0
      %v673 = vadd.f32 %v391, %v672
      %v674 = vand.u32 %v252, 4294901760
      %675 = vmatmul.f32.gmra.mxu0 %v674
      %v676 = vpop.f32.mrf.mxu0
      %v677 = vadd.f32 %v399, %v676
      %v678 = vand.u32 %v255, 4294901760
      %679 = vmatmul.f32.gmra.mxu0 %v678
      %v680 = vpop.f32.mrf.mxu0
      %v681 = vadd.f32 %v407, %v680
      %v682 = vand.u32 %v258, 4294901760
      %683 = vmatmul.f32.gmra.mxu0 %v682
      %v684 = vpop.f32.mrf.mxu0
      %v685 = vadd.f32 %v415, %v684
      %v686 = vand.u32 %v261, 4294901760
      %687 = vmatmul.f32.gmra.mxu0 %v686
      %v688 = vpop.f32.mrf.mxu0
      %v689 = vadd.f32 %v423, %v688
      %v690 = vand.u32 %v264, 4294901760
      %691 = vmatmul.f32.gmra.mxu0 %v690
      %v692 = vpop.f32.mrf.mxu0
      %v693 = vadd.f32 %v431, %v692
      %v694 = vand.u32 %v267, 4294901760
      %695 = vmatmul.f32.gmra.mxu0 %v694
      %v696 = vpop.f32.mrf.mxu0
      %v697 = vadd.f32 %v439, %v696
      %v698 = vand.u32 %v270, 4294901760
      %699 = vmatmul.f32.gmra.mxu0 %v698
      %v700 = vpop.f32.mrf.mxu0
      %v701 = vadd.f32 %v447, %v700
      %v702 = vand.u32 %v273, 4294901760
      %703 = vmatmul.f32.gmra.mxu0 %v702
      %v704 = vpop.f32.mrf.mxu0
      %v705 = vadd.f32 %v455, %v704
      %v706 = vand.u32 %v276, 4294901760
      %707 = vmatmul.f32.gmra.mxu0 %v706
      %v708 = vpop.f32.mrf.mxu0
      %v709 = vadd.f32 %v463, %v708
      %v710 = vand.u32 %v279, 4294901760
      %711 = vmatmul.f32.gmra.mxu0 %v710
      %v712 = vpop.f32.mrf.mxu0
      %v713 = vadd.f32 %v471, %v712
      %v714 = vand.u32 %v282, 4294901760
      %715 = vmatmul.f32.gmra.mxu0 %v714
      %v716 = vpop.f32.mrf.mxu0
      %v717 = vadd.f32 %v479, %v716
      %v718 = vand.u32 %v285, 4294901760
      %719 = vmatmul.f32.gmra.mxu0 %v718
      %v720 = vpop.f32.mrf.mxu0
      %v721 = vadd.f32 %v487, %v720
      %v722 = vand.u32 %v288, 4294901760
      %723 = vmatmul.f32.gmra.mxu0 %v722
      %v724 = vpop.f32.mrf.mxu0
      %v725 = vadd.f32 %v495, %v724
      %v726 = vand.u32 %v291, 4294901760
      %727 = vmatmul.f32.gmra.mxu0 %v726
      %v728 = vpop.f32.mrf.mxu0
      %v729 = vadd.f32 %v503, %v728
      %v730 = vand.u32 %v294, 4294901760
      %731 = vmatmul.f32.gmra.mxu0 %v730
      %v732 = vpop.f32.mrf.mxu0
      %v733 = vadd.f32 %v511, %v732
      %v734 = vand.u32 %v297, 4294901760
      %735 = vmatmul.f32.gmra.mxu0 %v734
      %v736 = vpop.f32.mrf.mxu0
      %v737 = vadd.f32 %v519, %v736
      %v738 = vand.u32 %v300, 4294901760
      %739 = vmatmul.f32.gmra.mxu0 %v738
      %v740 = vpop.f32.mrf.mxu0
      %v741 = vadd.f32 %v527, %v740
      %v742 = vand.u32 %v303, 4294901760
      %743 = vmatmul.f32.gmra.mxu0 %v742
      %v744 = vpop.f32.mrf.mxu0
      %v745 = vadd.f32 %v535, %v744
      %v746 = vand.u32 %v306, 4294901760
      %747 = vmatmul.f32.gmra.mxu0 %v746
      %v748 = vpop.f32.mrf.mxu0
      %v749 = vadd.f32 %v543, %v748
      %v750 = vand.u32 %v309, 4294901760
      %751 = vmatmul.f32.gmra.mxu0 %v750
      %v752 = vpop.f32.mrf.mxu0
      %v753 = vadd.f32 %v551, %v752
      %v754 = vand.u32 %v312, 4294901760
      %755 = vmatmul.f32.gmra.mxu0 %v754
      %v756 = vpop.f32.mrf.mxu0
      %v757 = vadd.f32 %v559, %v756
      %v758 = vand.u32 %v315, 4294901760
      %759 = vmatmul.f32.gmra.mxu0 %v758
      %v760 = vpop.f32.mrf.mxu0
      %v761 = vadd.f32 %v567, %v760
      %v762 = vand.u32 %v318, 4294901760
      %763 = vmatmul.f32.gmra.mxu0 %v762
      %v764 = vpop.f32.mrf.mxu0
      %v765 = vadd.f32 %v575, %v764
      %v766 = vand.u32 %v321, 4294901760
      %767 = vmatmul.f32.gmra.mxu0 %v766
      %v768 = vpop.f32.mrf.mxu0
      %v769 = vadd.f32 %v583, %v768
      %v770 = vand.u32 %v324, 4294901760
      %771 = vmatmul.f32.gmra.mxu0 %v770
      %v772 = vpop.f32.mrf.mxu0
      %v773 = vadd.f32 %v591, %v772
      %v774 = vand.u32 %v327, 4294901760
      %775 = vmatmul.f32.gmra.mxu0 %v774
      %v776 = vpop.f32.mrf.mxu0
      %v777 = vadd.f32 %v599, %v776
      %v778 = vand.u32 %v330, 4294901760
      %779 = vmatmul.f32.gmra.mxu0 %v778
      %v780 = vpop.f32.mrf.mxu0
      %v781 = vadd.f32 %v607, %v780
      %v782 = vand.u32 %v333, 4294901760
      %783 = vmatmul.f32.gmra.mxu0 %v782
      %v784 = vpop.f32.mrf.mxu0
      %v785 = vadd.f32 %v615, %v784
      %786 = vdwg.mxu0
      %787 = vmatpush.msra.mxu0 0.0
      %788 = vmatpush.msra.mxu0 0.0
      %789 = vmatpush.msra.mxu0 0.0
      %790 = vmatpush.msra.mxu0 0.0
      %791 = vmatpush.msra.mxu0 0.0
      %792 = vmatpush.msra.mxu0 0.0
      %793 = vmatpush.msra.mxu0 0.0
      %794 = vmatpush.msra.mxu0 0.0
      %795 = vmatpush.msra.mxu0 0.0
      %796 = vmatpush.msra.mxu0 0.0
      %797 = vmatpush.msra.mxu0 0.0
      %v798 = vand.u32 %v337, 4294901760
      %v799 = vsub.f32 %v337, %v798
      %800 = vmatpush.msra.mxu0 %v799
      %v801 = vand.u32 %v236, 4294901760
      %v802 = vsub.f32 %v236, %v801
      %803 = vmatpush.msra.mxu0 %v802
      %v804 = vand.u32 %v235, 4294901760
      %v805 = vsub.f32 %v235, %v804
      %806 = vmatpush.msra.mxu0 %v805
      %v807 = vand.u32 %v234, 4294901760
      %v808 = vsub.f32 %v234, %v807
      %809 = vmatpush.msra.mxu0 %v808
      %v810 = vand.u32 %v233, 4294901760
      %v811 = vsub.f32 %v233, %v810
      %812 = vmatpush.msra.mxu0 %v811
      %v813 = vand.u32 %v240, 4294901760
      %v814 = vsub.f32 %v240, %v813
      %815 = vmatmul.f32.gmra.mxu0 %v814
      %v816 = vpop.f32.mrf.mxu0
      %v817 = vadd.f32 %v661, %v816
      %v818 = vand.u32 %v243, 4294901760
      %v819 = vsub.f32 %v243, %v818
      %820 = vmatmul.f32.gmra.mxu0 %v819
      %v821 = vpop.f32.mrf.mxu0
      %v822 = vadd.f32 %v665, %v821
      %v823 = vand.u32 %v246, 4294901760
      %v824 = vsub.f32 %v246, %v823
      %825 = vmatmul.f32.gmra.mxu0 %v824
      %v826 = vpop.f32.mrf.mxu0
      %v827 = vadd.f32 %v669, %v826
      %v828 = vand.u32 %v249, 4294901760
      %v829 = vsub.f32 %v249, %v828
      %830 = vmatmul.f32.gmra.mxu0 %v829
      %v831 = vpop.f32.mrf.mxu0
      %v832 = vadd.f32 %v673, %v831
      %v833 = vand.u32 %v252, 4294901760
      %v834 = vsub.f32 %v252, %v833
      %835 = vmatmul.f32.gmra.mxu0 %v834
      %v836 = vpop.f32.mrf.mxu0
      %v837 = vadd.f32 %v677, %v836
      %v838 = vand.u32 %v255, 4294901760
      %v839 = vsub.f32 %v255, %v838
      %840 = vmatmul.f32.gmra.mxu0 %v839
      %v841 = vpop.f32.mrf.mxu0
      %v842 = vadd.f32 %v681, %v841
      %v843 = vand.u32 %v258, 4294901760
      %v844 = vsub.f32 %v258, %v843
      %845 = vmatmul.f32.gmra.mxu0 %v844
      %v846 = vpop.f32.mrf.mxu0
      %v847 = vadd.f32 %v685, %v846
      %v848 = vand.u32 %v261, 4294901760
      %v849 = vsub.f32 %v261, %v848
      %850 = vmatmul.f32.gmra.mxu0 %v849
      %v851 = vpop.f32.mrf.mxu0
      %v852 = vadd.f32 %v689, %v851
      %v853 = vand.u32 %v264, 4294901760
      %v854 = vsub.f32 %v264, %v853
      %855 = vmatmul.f32.gmra.mxu0 %v854
      %v856 = vpop.f32.mrf.mxu0
      %v857 = vadd.f32 %v693, %v856
      %v858 = vand.u32 %v267, 4294901760
      %v859 = vsub.f32 %v267, %v858
      %860 = vmatmul.f32.gmra.mxu0 %v859
      %v861 = vpop.f32.mrf.mxu0
      %v862 = vadd.f32 %v697, %v861
      %v863 = vand.u32 %v270, 4294901760
      %v864 = vsub.f32 %v270, %v863
      %865 = vmatmul.f32.gmra.mxu0 %v864
      %v866 = vpop.f32.mrf.mxu0
      %v867 = vadd.f32 %v701, %v866
      %v868 = vand.u32 %v273, 4294901760
      %v869 = vsub.f32 %v273, %v868
      %870 = vmatmul.f32.gmra.mxu0 %v869
      %v871 = vpop.f32.mrf.mxu0
      %v872 = vadd.f32 %v705, %v871
      %v873 = vand.u32 %v276, 4294901760
      %v874 = vsub.f32 %v276, %v873
      %875 = vmatmul.f32.gmra.mxu0 %v874
      %v876 = vpop.f32.mrf.mxu0
      %v877 = vadd.f32 %v709, %v876
      %v878 = vand.u32 %v279, 4294901760
      %v879 = vsub.f32 %v279, %v878
      %880 = vmatmul.f32.gmra.mxu0 %v879
      %v881 = vpop.f32.mrf.mxu0
      %v882 = vadd.f32 %v713, %v881
      %v883 = vand.u32 %v282, 4294901760
      %v884 = vsub.f32 %v282, %v883
      %885 = vmatmul.f32.gmra.mxu0 %v884
      %v886 = vpop.f32.mrf.mxu0
      %v887 = vadd.f32 %v717, %v886
      %v888 = vand.u32 %v285, 4294901760
      %v889 = vsub.f32 %v285, %v888
      %890 = vmatmul.f32.gmra.mxu0 %v889
      %v891 = vpop.f32.mrf.mxu0
      %v892 = vadd.f32 %v721, %v891
      %v893 = vand.u32 %v288, 4294901760
      %v894 = vsub.f32 %v288, %v893
      %895 = vmatmul.f32.gmra.mxu0 %v894
      %v896 = vpop.f32.mrf.mxu0
      %v897 = vadd.f32 %v725, %v896
      %v898 = vand.u32 %v291, 4294901760
      %v899 = vsub.f32 %v291, %v898
      %900 = vmatmul.f32.gmra.mxu0 %v899
      %v901 = vpop.f32.mrf.mxu0
      %v902 = vadd.f32 %v729, %v901
      %v903 = vand.u32 %v294, 4294901760
      %v904 = vsub.f32 %v294, %v903
      %905 = vmatmul.f32.gmra.mxu0 %v904
      %v906 = vpop.f32.mrf.mxu0
      %v907 = vadd.f32 %v733, %v906
      %v908 = vand.u32 %v297, 4294901760
      %v909 = vsub.f32 %v297, %v908
      %910 = vmatmul.f32.gmra.mxu0 %v909
      %v911 = vpop.f32.mrf.mxu0
      %v912 = vadd.f32 %v737, %v911
      %v913 = vand.u32 %v300, 4294901760
      %v914 = vsub.f32 %v300, %v913
      %915 = vmatmul.f32.gmra.mxu0 %v914
      %v916 = vpop.f32.mrf.mxu0
      %v917 = vadd.f32 %v741, %v916
      %v918 = vand.u32 %v303, 4294901760
      %v919 = vsub.f32 %v303, %v918
      %920 = vmatmul.f32.gmra.mxu0 %v919
      %v921 = vpop.f32.mrf.mxu0
      %v922 = vadd.f32 %v745, %v921
      %v923 = vand.u32 %v306, 4294901760
      %v924 = vsub.f32 %v306, %v923
      %925 = vmatmul.f32.gmra.mxu0 %v924
      %v926 = vpop.f32.mrf.mxu0
      %v927 = vadd.f32 %v749, %v926
      %v928 = vand.u32 %v309, 4294901760
      %v929 = vsub.f32 %v309, %v928
      %930 = vmatmul.f32.gmra.mxu0 %v929
      %v931 = vpop.f32.mrf.mxu0
      %v932 = vadd.f32 %v753, %v931
      %v933 = vand.u32 %v312, 4294901760
      %v934 = vsub.f32 %v312, %v933
      %935 = vmatmul.f32.gmra.mxu0 %v934
      %v936 = vpop.f32.mrf.mxu0
      %v937 = vadd.f32 %v757, %v936
      %v938 = vand.u32 %v315, 4294901760
      %v939 = vsub.f32 %v315, %v938
      %940 = vmatmul.f32.gmra.mxu0 %v939
      %v941 = vpop.f32.mrf.mxu0
      %v942 = vadd.f32 %v761, %v941
      %v943 = vand.u32 %v318, 4294901760
      %v944 = vsub.f32 %v318, %v943
      %945 = vmatmul.f32.gmra.mxu0 %v944
      %v946 = vpop.f32.mrf.mxu0
      %v947 = vadd.f32 %v765, %v946
      %v948 = vand.u32 %v321, 4294901760
      %v949 = vsub.f32 %v321, %v948
      %950 = vmatmul.f32.gmra.mxu0 %v949
      %v951 = vpop.f32.mrf.mxu0
      %v952 = vadd.f32 %v769, %v951
      %v953 = vand.u32 %v324, 4294901760
      %v954 = vsub.f32 %v324, %v953
      %955 = vmatmul.f32.gmra.mxu0 %v954
      %v956 = vpop.f32.mrf.mxu0
      %v957 = vadd.f32 %v773, %v956
      %v958 = vand.u32 %v327, 4294901760
      %v959 = vsub.f32 %v327, %v958
      %960 = vmatmul.f32.gmra.mxu0 %v959
      %v961 = vpop.f32.mrf.mxu0
      %v962 = vadd.f32 %v777, %v961
      %v963 = vand.u32 %v330, 4294901760
      %v964 = vsub.f32 %v330, %v963
      %965 = vmatmul.f32.gmra.mxu0 %v964
      %v966 = vpop.f32.mrf.mxu0
      %v967 = vadd.f32 %v781, %v966
      %v968 = vand.u32 %v333, 4294901760
      %v969 = vsub.f32 %v333, %v968
      %970 = vmatmul.f32.gmra.mxu0 %v969
      %v971 = vpop.f32.mrf.mxu0
      %v972 = vadd.f32 %v785, %v971
      %973 = vdwg.mxu0
      %974 = vmatpush.msra.mxu0 0.0
      %975 = vmatpush.msra.mxu0 0.0
      %976 = vmatpush.msra.mxu0 0.0
      %977 = vmatpush.msra.mxu0 0.0
      %978 = vmatpush.msra.mxu0 0.0
      %979 = vmatpush.msra.mxu0 0.0
      %980 = vmatpush.msra.mxu0 0.0
      %981 = vmatpush.msra.mxu0 0.0
      %982 = vmatpush.msra.mxu0 0.0
      %983 = vmatpush.msra.mxu0 0.0
      %984 = vmatpush.msra.mxu0 0.0
      %v985 = vand.u32 %v337, 4294901760
      %986 = vmatpush.msra.mxu0 %v985
      %v987 = vand.u32 %v236, 4294901760
      %988 = vmatpush.msra.mxu0 %v987
      %v989 = vand.u32 %v235, 4294901760
      %990 = vmatpush.msra.mxu0 %v989
      %v991 = vand.u32 %v234, 4294901760
      %992 = vmatpush.msra.mxu0 %v991
      %v993 = vand.u32 %v233, 4294901760
      %994 = vmatpush.msra.mxu0 %v993
      %v995 = vand.u32 %v240, 4294901760
      %v996 = vsub.f32 %v240, %v995
      %v997 = vand.u32 %v996, 4294901760
      %998 = vmatmul.f32.gmra.mxu0 %v997
      %v999 = vpop.f32.mrf.mxu0
      %v1000 = vadd.f32 %v817, %v999
      %v1001 = vand.u32 %v243, 4294901760
      %v1002 = vsub.f32 %v243, %v1001
      %v1003 = vand.u32 %v1002, 4294901760
      %1004 = vmatmul.f32.gmra.mxu0 %v1003
      %v1005 = vpop.f32.mrf.mxu0
      %v1006 = vadd.f32 %v822, %v1005
      %v1007 = vand.u32 %v246, 4294901760
      %v1008 = vsub.f32 %v246, %v1007
      %v1009 = vand.u32 %v1008, 4294901760
      %1010 = vmatmul.f32.gmra.mxu0 %v1009
      %v1011 = vpop.f32.mrf.mxu0
      %v1012 = vadd.f32 %v827, %v1011
      %v1013 = vand.u32 %v249, 4294901760
      %v1014 = vsub.f32 %v249, %v1013
      %v1015 = vand.u32 %v1014, 4294901760
      %1016 = vmatmul.f32.gmra.mxu0 %v1015
      %v1017 = vpop.f32.mrf.mxu0
      %v1018 = vadd.f32 %v832, %v1017
      %v1019 = vand.u32 %v252, 4294901760
      %v1020 = vsub.f32 %v252, %v1019
      %v1021 = vand.u32 %v1020, 4294901760
      %1022 = vmatmul.f32.gmra.mxu0 %v1021
      %v1023 = vpop.f32.mrf.mxu0
      %v1024 = vadd.f32 %v837, %v1023
      %v1025 = vand.u32 %v255, 4294901760
      %v1026 = vsub.f32 %v255, %v1025
      %v1027 = vand.u32 %v1026, 4294901760
      %1028 = vmatmul.f32.gmra.mxu0 %v1027
      %v1029 = vpop.f32.mrf.mxu0
      %v1030 = vadd.f32 %v842, %v1029
      %v1031 = vand.u32 %v258, 4294901760
      %v1032 = vsub.f32 %v258, %v1031
      %v1033 = vand.u32 %v1032, 4294901760
      %1034 = vmatmul.f32.gmra.mxu0 %v1033
      %v1035 = vpop.f32.mrf.mxu0
      %v1036 = vadd.f32 %v847, %v1035
      %v1037 = vand.u32 %v261, 4294901760
      %v1038 = vsub.f32 %v261, %v1037
      %v1039 = vand.u32 %v1038, 4294901760
      %1040 = vmatmul.f32.gmra.mxu0 %v1039
      %v1041 = vpop.f32.mrf.mxu0
      %v1042 = vadd.f32 %v852, %v1041
      %v1043 = vand.u32 %v264, 4294901760
      %v1044 = vsub.f32 %v264, %v1043
      %v1045 = vand.u32 %v1044, 4294901760
      %1046 = vmatmul.f32.gmra.mxu0 %v1045
      %v1047 = vpop.f32.mrf.mxu0
      %v1048 = vadd.f32 %v857, %v1047
      %v1049 = vand.u32 %v267, 4294901760
      %v1050 = vsub.f32 %v267, %v1049
      %v1051 = vand.u32 %v1050, 4294901760
      %1052 = vmatmul.f32.gmra.mxu0 %v1051
      %v1053 = vpop.f32.mrf.mxu0
      %v1054 = vadd.f32 %v862, %v1053
      %v1055 = vand.u32 %v270, 4294901760
      %v1056 = vsub.f32 %v270, %v1055
      %v1057 = vand.u32 %v1056, 4294901760
      %1058 = vmatmul.f32.gmra.mxu0 %v1057
      %v1059 = vpop.f32.mrf.mxu0
      %v1060 = vadd.f32 %v867, %v1059
      %v1061 = vand.u32 %v273, 4294901760
      %v1062 = vsub.f32 %v273, %v1061
      %v1063 = vand.u32 %v1062, 4294901760
      %1064 = vmatmul.f32.gmra.mxu0 %v1063
      %v1065 = vpop.f32.mrf.mxu0
      %v1066 = vadd.f32 %v872, %v1065
      %v1067 = vand.u32 %v276, 4294901760
      %v1068 = vsub.f32 %v276, %v1067
      %v1069 = vand.u32 %v1068, 4294901760
      %1070 = vmatmul.f32.gmra.mxu0 %v1069
      %v1071 = vpop.f32.mrf.mxu0
      %v1072 = vadd.f32 %v877, %v1071
      %v1073 = vand.u32 %v279, 4294901760
      %v1074 = vsub.f32 %v279, %v1073
      %v1075 = vand.u32 %v1074, 4294901760
      %1076 = vmatmul.f32.gmra.mxu0 %v1075
      %v1077 = vpop.f32.mrf.mxu0
      %v1078 = vadd.f32 %v882, %v1077
      %v1079 = vand.u32 %v282, 4294901760
      %v1080 = vsub.f32 %v282, %v1079
      %v1081 = vand.u32 %v1080, 4294901760
      %1082 = vmatmul.f32.gmra.mxu0 %v1081
      %v1083 = vpop.f32.mrf.mxu0
      %v1084 = vadd.f32 %v887, %v1083
      %v1085 = vand.u32 %v285, 4294901760
      %v1086 = vsub.f32 %v285, %v1085
      %v1087 = vand.u32 %v1086, 4294901760
      %1088 = vmatmul.f32.gmra.mxu0 %v1087
      %v1089 = vpop.f32.mrf.mxu0
      %v1090 = vadd.f32 %v892, %v1089
      %v1091 = vand.u32 %v288, 4294901760
      %v1092 = vsub.f32 %v288, %v1091
      %v1093 = vand.u32 %v1092, 4294901760
      %1094 = vmatmul.f32.gmra.mxu0 %v1093
      %v1095 = vpop.f32.mrf.mxu0
      %v1096 = vadd.f32 %v897, %v1095
      %v1097 = vand.u32 %v291, 4294901760
      %v1098 = vsub.f32 %v291, %v1097
      %v1099 = vand.u32 %v1098, 4294901760
      %1100 = vmatmul.f32.gmra.mxu0 %v1099
      %v1101 = vpop.f32.mrf.mxu0
      %v1102 = vadd.f32 %v902, %v1101
      %v1103 = vand.u32 %v294, 4294901760
      %v1104 = vsub.f32 %v294, %v1103
      %v1105 = vand.u32 %v1104, 4294901760
      %1106 = vmatmul.f32.gmra.mxu0 %v1105
      %v1107 = vpop.f32.mrf.mxu0
      %v1108 = vadd.f32 %v907, %v1107
      %v1109 = vand.u32 %v297, 4294901760
      %v1110 = vsub.f32 %v297, %v1109
      %v1111 = vand.u32 %v1110, 4294901760
      %1112 = vmatmul.f32.gmra.mxu0 %v1111
      %v1113 = vpop.f32.mrf.mxu0
      %v1114 = vadd.f32 %v912, %v1113
      %v1115 = vand.u32 %v300, 4294901760
      %v1116 = vsub.f32 %v300, %v1115
      %v1117 = vand.u32 %v1116, 4294901760
      %1118 = vmatmul.f32.gmra.mxu0 %v1117
      %v1119 = vpop.f32.mrf.mxu0
      %v1120 = vadd.f32 %v917, %v1119
      %v1121 = vand.u32 %v303, 4294901760
      %v1122 = vsub.f32 %v303, %v1121
      %v1123 = vand.u32 %v1122, 4294901760
      %1124 = vmatmul.f32.gmra.mxu0 %v1123
      %v1125 = vpop.f32.mrf.mxu0
      %v1126 = vadd.f32 %v922, %v1125
      %v1127 = vand.u32 %v306, 4294901760
      %v1128 = vsub.f32 %v306, %v1127
      %v1129 = vand.u32 %v1128, 4294901760
      %1130 = vmatmul.f32.gmra.mxu0 %v1129
      %v1131 = vpop.f32.mrf.mxu0
      %v1132 = vadd.f32 %v927, %v1131
      %v1133 = vand.u32 %v309, 4294901760
      %v1134 = vsub.f32 %v309, %v1133
      %v1135 = vand.u32 %v1134, 4294901760
      %1136 = vmatmul.f32.gmra.mxu0 %v1135
      %v1137 = vpop.f32.mrf.mxu0
      %v1138 = vadd.f32 %v932, %v1137
      %v1139 = vand.u32 %v312, 4294901760
      %v1140 = vsub.f32 %v312, %v1139
      %v1141 = vand.u32 %v1140, 4294901760
      %1142 = vmatmul.f32.gmra.mxu0 %v1141
      %v1143 = vpop.f32.mrf.mxu0
      %v1144 = vadd.f32 %v937, %v1143
      %v1145 = vand.u32 %v315, 4294901760
      %v1146 = vsub.f32 %v315, %v1145
      %v1147 = vand.u32 %v1146, 4294901760
      %1148 = vmatmul.f32.gmra.mxu0 %v1147
      %v1149 = vpop.f32.mrf.mxu0
      %v1150 = vadd.f32 %v942, %v1149
      %v1151 = vand.u32 %v318, 4294901760
      %v1152 = vsub.f32 %v318, %v1151
      %v1153 = vand.u32 %v1152, 4294901760
      %1154 = vmatmul.f32.gmra.mxu0 %v1153
      %v1155 = vpop.f32.mrf.mxu0
      %v1156 = vadd.f32 %v947, %v1155
      %v1157 = vand.u32 %v321, 4294901760
      %v1158 = vsub.f32 %v321, %v1157
      %v1159 = vand.u32 %v1158, 4294901760
      %1160 = vmatmul.f32.gmra.mxu0 %v1159
      %v1161 = vpop.f32.mrf.mxu0
      %v1162 = vadd.f32 %v952, %v1161
      %v1163 = vand.u32 %v324, 4294901760
      %v1164 = vsub.f32 %v324, %v1163
      %v1165 = vand.u32 %v1164, 4294901760
      %1166 = vmatmul.f32.gmra.mxu0 %v1165
      %v1167 = vpop.f32.mrf.mxu0
      %v1168 = vadd.f32 %v957, %v1167
      %v1169 = vand.u32 %v327, 4294901760
      %v1170 = vsub.f32 %v327, %v1169
      %v1171 = vand.u32 %v1170, 4294901760
      %1172 = vmatmul.f32.gmra.mxu0 %v1171
      %v1173 = vpop.f32.mrf.mxu0
      %v1174 = vadd.f32 %v962, %v1173
      %v1175 = vand.u32 %v330, 4294901760
      %v1176 = vsub.f32 %v330, %v1175
      %v1177 = vand.u32 %v1176, 4294901760
      %1178 = vmatmul.f32.gmra.mxu0 %v1177
      %v1179 = vpop.f32.mrf.mxu0
      %v1180 = vadd.f32 %v967, %v1179
      %v1181 = vand.u32 %v333, 4294901760
      %v1182 = vsub.f32 %v333, %v1181
      %v1183 = vand.u32 %v1182, 4294901760
      %1184 = vmatmul.f32.gmra.mxu0 %v1183
      %v1185 = vpop.f32.mrf.mxu0
      %v1186 = vadd.f32 %v972, %v1185
      %1187 = vdwg.mxu0
      %1188 = vmatpush.msra.mxu0 0.0
      %1189 = vmatpush.msra.mxu0 0.0
      %1190 = vmatpush.msra.mxu0 0.0
      %1191 = vmatpush.msra.mxu0 0.0
      %1192 = vmatpush.msra.mxu0 0.0
      %1193 = vmatpush.msra.mxu0 0.0
      %1194 = vmatpush.msra.mxu0 0.0
      %1195 = vmatpush.msra.mxu0 0.0
      %1196 = vmatpush.msra.mxu0 0.0
      %1197 = vmatpush.msra.mxu0 0.0
      %1198 = vmatpush.msra.mxu0 0.0
      %v1199 = vand.u32 %v337, 4294901760
      %v1200 = vsub.f32 %v337, %v1199
      %v1201 = vand.u32 %v1200, 4294901760
      %1202 = vmatpush.msra.mxu0 %v1201
      %v1203 = vand.u32 %v236, 4294901760
      %v1204 = vsub.f32 %v236, %v1203
      %v1205 = vand.u32 %v1204, 4294901760
      %1206 = vmatpush.msra.mxu0 %v1205
      %v1207 = vand.u32 %v235, 4294901760
      %v1208 = vsub.f32 %v235, %v1207
      %v1209 = vand.u32 %v1208, 4294901760
      %1210 = vmatpush.msra.mxu0 %v1209
      %v1211 = vand.u32 %v234, 4294901760
      %v1212 = vsub.f32 %v234, %v1211
      %v1213 = vand.u32 %v1212, 4294901760
      %1214 = vmatpush.msra.mxu0 %v1213
      %v1215 = vand.u32 %v233, 4294901760
      %v1216 = vsub.f32 %v233, %v1215
      %v1217 = vand.u32 %v1216, 4294901760
      %1218 = vmatpush.msra.mxu0 %v1217
      %v1219 = vand.u32 %v240, 4294901760
      %1220 = vmatmul.f32.gmra.mxu0 %v1219
      %v1221 = vpop.f32.mrf.mxu0
      %v1222 = vadd.f32 %v1000, %v1221
      %v1223 = vand.u32 %v243, 4294901760
      %1224 = vmatmul.f32.gmra.mxu0 %v1223
      %v1225 = vpop.f32.mrf.mxu0
      %v1226 = vadd.f32 %v1006, %v1225
      %v1227 = vand.u32 %v246, 4294901760
      %1228 = vmatmul.f32.gmra.mxu0 %v1227
      %v1229 = vpop.f32.mrf.mxu0
      %v1230 = vadd.f32 %v1012, %v1229
      %v1231 = vand.u32 %v249, 4294901760
      %1232 = vmatmul.f32.gmra.mxu0 %v1231
      %v1233 = vpop.f32.mrf.mxu0
      %v1234 = vadd.f32 %v1018, %v1233
      %v1235 = vand.u32 %v252, 4294901760
      %1236 = vmatmul.f32.gmra.mxu0 %v1235
      %v1237 = vpop.f32.mrf.mxu0
      %v1238 = vadd.f32 %v1024, %v1237
      %v1239 = vand.u32 %v255, 4294901760
      %1240 = vmatmul.f32.gmra.mxu0 %v1239
      %v1241 = vpop.f32.mrf.mxu0
      %v1242 = vadd.f32 %v1030, %v1241
      %v1243 = vand.u32 %v258, 4294901760
      %1244 = vmatmul.f32.gmra.mxu0 %v1243
      %v1245 = vpop.f32.mrf.mxu0
      %v1246 = vadd.f32 %v1036, %v1245
      %v1247 = vand.u32 %v261, 4294901760
      %1248 = vmatmul.f32.gmra.mxu0 %v1247
      %v1249 = vpop.f32.mrf.mxu0
      %v1250 = vadd.f32 %v1042, %v1249
      %v1251 = vand.u32 %v264, 4294901760
      %1252 = vmatmul.f32.gmra.mxu0 %v1251
      %v1253 = vpop.f32.mrf.mxu0
      %v1254 = vadd.f32 %v1048, %v1253
      %v1255 = vand.u32 %v267, 4294901760
      %1256 = vmatmul.f32.gmra.mxu0 %v1255
      %v1257 = vpop.f32.mrf.mxu0
      %v1258 = vadd.f32 %v1054, %v1257
      %v1259 = vand.u32 %v270, 4294901760
      %1260 = vmatmul.f32.gmra.mxu0 %v1259
      %v1261 = vpop.f32.mrf.mxu0
      %v1262 = vadd.f32 %v1060, %v1261
      %v1263 = vand.u32 %v273, 4294901760
      %1264 = vmatmul.f32.gmra.mxu0 %v1263
      %v1265 = vpop.f32.mrf.mxu0
      %v1266 = vadd.f32 %v1066, %v1265
      %v1267 = vand.u32 %v276, 4294901760
      %1268 = vmatmul.f32.gmra.mxu0 %v1267
      %v1269 = vpop.f32.mrf.mxu0
      %v1270 = vadd.f32 %v1072, %v1269
      %v1271 = vand.u32 %v279, 4294901760
      %1272 = vmatmul.f32.gmra.mxu0 %v1271
      %v1273 = vpop.f32.mrf.mxu0
      %v1274 = vadd.f32 %v1078, %v1273
      %v1275 = vand.u32 %v282, 4294901760
      %1276 = vmatmul.f32.gmra.mxu0 %v1275
      %v1277 = vpop.f32.mrf.mxu0
      %v1278 = vadd.f32 %v1084, %v1277
      %v1279 = vand.u32 %v285, 4294901760
      %1280 = vmatmul.f32.gmra.mxu0 %v1279
      %v1281 = vpop.f32.mrf.mxu0
      %v1282 = vadd.f32 %v1090, %v1281
      %v1283 = vand.u32 %v288, 4294901760
      %1284 = vmatmul.f32.gmra.mxu0 %v1283
      %v1285 = vpop.f32.mrf.mxu0
      %v1286 = vadd.f32 %v1096, %v1285
      %v1287 = vand.u32 %v291, 4294901760
      %1288 = vmatmul.f32.gmra.mxu0 %v1287
      %v1289 = vpop.f32.mrf.mxu0
      %v1290 = vadd.f32 %v1102, %v1289
      %v1291 = vand.u32 %v294, 4294901760
      %1292 = vmatmul.f32.gmra.mxu0 %v1291
      %v1293 = vpop.f32.mrf.mxu0
      %v1294 = vadd.f32 %v1108, %v1293
      %v1295 = vand.u32 %v297, 4294901760
      %1296 = vmatmul.f32.gmra.mxu0 %v1295
      %v1297 = vpop.f32.mrf.mxu0
      %v1298 = vadd.f32 %v1114, %v1297
      %v1299 = vand.u32 %v300, 4294901760
      %1300 = vmatmul.f32.gmra.mxu0 %v1299
      %v1301 = vpop.f32.mrf.mxu0
      %v1302 = vadd.f32 %v1120, %v1301
      %v1303 = vand.u32 %v303, 4294901760
      %1304 = vmatmul.f32.gmra.mxu0 %v1303
      %v1305 = vpop.f32.mrf.mxu0
      %v1306 = vadd.f32 %v1126, %v1305
      %v1307 = vand.u32 %v306, 4294901760
      %1308 = vmatmul.f32.gmra.mxu0 %v1307
      %v1309 = vpop.f32.mrf.mxu0
      %v1310 = vadd.f32 %v1132, %v1309
      %v1311 = vand.u32 %v309, 4294901760
      %1312 = vmatmul.f32.gmra.mxu0 %v1311
      %v1313 = vpop.f32.mrf.mxu0
      %v1314 = vadd.f32 %v1138, %v1313
      %v1315 = vand.u32 %v312, 4294901760
      %1316 = vmatmul.f32.gmra.mxu0 %v1315
      %v1317 = vpop.f32.mrf.mxu0
      %v1318 = vadd.f32 %v1144, %v1317
      %v1319 = vand.u32 %v315, 4294901760
      %1320 = vmatmul.f32.gmra.mxu0 %v1319
      %v1321 = vpop.f32.mrf.mxu0
      %v1322 = vadd.f32 %v1150, %v1321
      %v1323 = vand.u32 %v318, 4294901760
      %1324 = vmatmul.f32.gmra.mxu0 %v1323
      %v1325 = vpop.f32.mrf.mxu0
      %v1326 = vadd.f32 %v1156, %v1325
      %v1327 = vand.u32 %v321, 4294901760
      %1328 = vmatmul.f32.gmra.mxu0 %v1327
      %v1329 = vpop.f32.mrf.mxu0
      %v1330 = vadd.f32 %v1162, %v1329
      %v1331 = vand.u32 %v324, 4294901760
      %1332 = vmatmul.f32.gmra.mxu0 %v1331
      %v1333 = vpop.f32.mrf.mxu0
      %v1334 = vadd.f32 %v1168, %v1333
      %v1335 = vand.u32 %v327, 4294901760
      %1336 = vmatmul.f32.gmra.mxu0 %v1335
      %v1337 = vpop.f32.mrf.mxu0
      %v1338 = vadd.f32 %v1174, %v1337
      %v1339 = vand.u32 %v330, 4294901760
      %1340 = vmatmul.f32.gmra.mxu0 %v1339
      %v1341 = vpop.f32.mrf.mxu0
      %v1342 = vadd.f32 %v1180, %v1341
      %v1343 = vand.u32 %v333, 4294901760
      %1344 = vmatmul.f32.gmra.mxu0 %v1343
      %v1345 = vpop.f32.mrf.mxu0
      %v1346 = vadd.f32 %v1186, %v1345
      %1347 = vdwg.mxu0
      %1348 = vmatpush.msra.mxu0 0.0
      %1349 = vmatpush.msra.mxu0 0.0
      %1350 = vmatpush.msra.mxu0 0.0
      %1351 = vmatpush.msra.mxu0 0.0
      %1352 = vmatpush.msra.mxu0 0.0
      %1353 = vmatpush.msra.mxu0 0.0
      %1354 = vmatpush.msra.mxu0 0.0
      %1355 = vmatpush.msra.mxu0 0.0
      %1356 = vmatpush.msra.mxu0 0.0
      %1357 = vmatpush.msra.mxu0 0.0
      %1358 = vmatpush.msra.mxu0 0.0
      %v1359 = vand.u32 %v337, 4294901760
      %1360 = vmatpush.msra.mxu0 %v1359
      %v1361 = vand.u32 %v236, 4294901760
      %1362 = vmatpush.msra.mxu0 %v1361
      %v1363 = vand.u32 %v235, 4294901760
      %1364 = vmatpush.msra.mxu0 %v1363
      %v1365 = vand.u32 %v234, 4294901760
      %1366 = vmatpush.msra.mxu0 %v1365
      %v1367 = vand.u32 %v233, 4294901760
      %1368 = vmatpush.msra.mxu0 %v1367
      %v1369 = vand.u32 %v240, 4294901760
      %1370 = vmatmul.f32.gmra.mxu0 %v1369
      %v1371 = vpop.f32.mrf.mxu0
      %v1372 = vadd.f32 %v1222, %v1371
      %v1373 = vand.u32 %v243, 4294901760
      %1374 = vmatmul.f32.gmra.mxu0 %v1373
      %v1375 = vpop.f32.mrf.mxu0
      %v1376 = vadd.f32 %v1226, %v1375
      %v1377 = vand.u32 %v246, 4294901760
      %1378 = vmatmul.f32.gmra.mxu0 %v1377
      %v1379 = vpop.f32.mrf.mxu0
      %v1380 = vadd.f32 %v1230, %v1379
      %v1381 = vand.u32 %v249, 4294901760
      %1382 = vmatmul.f32.gmra.mxu0 %v1381
      %v1383 = vpop.f32.mrf.mxu0
      %v1384 = vadd.f32 %v1234, %v1383
      %v1385 = vand.u32 %v252, 4294901760
      %1386 = vmatmul.f32.gmra.mxu0 %v1385
      %v1387 = vpop.f32.mrf.mxu0
      %v1388 = vadd.f32 %v1238, %v1387
      %v1389 = vand.u32 %v255, 4294901760
      %1390 = vmatmul.f32.gmra.mxu0 %v1389
      %v1391 = vpop.f32.mrf.mxu0
      %v1392 = vadd.f32 %v1242, %v1391
      %v1393 = vand.u32 %v258, 4294901760
      %1394 = vmatmul.f32.gmra.mxu0 %v1393
      %v1395 = vpop.f32.mrf.mxu0
      %v1396 = vadd.f32 %v1246, %v1395
      %v1397 = vand.u32 %v261, 4294901760
      %1398 = vmatmul.f32.gmra.mxu0 %v1397
      %v1399 = vpop.f32.mrf.mxu0
      %v1400 = vadd.f32 %v1250, %v1399
      %v1401 = vand.u32 %v264, 4294901760
      %1402 = vmatmul.f32.gmra.mxu0 %v1401
      %v1403 = vpop.f32.mrf.mxu0
      %v1404 = vadd.f32 %v1254, %v1403
      %v1405 = vand.u32 %v267, 4294901760
      %1406 = vmatmul.f32.gmra.mxu0 %v1405
      %v1407 = vpop.f32.mrf.mxu0
      %v1408 = vadd.f32 %v1258, %v1407
      %v1409 = vand.u32 %v270, 4294901760
      %1410 = vmatmul.f32.gmra.mxu0 %v1409
      %v1411 = vpop.f32.mrf.mxu0
      %v1412 = vadd.f32 %v1262, %v1411
      %v1413 = vand.u32 %v273, 4294901760
      %1414 = vmatmul.f32.gmra.mxu0 %v1413
      %v1415 = vpop.f32.mrf.mxu0
      %v1416 = vadd.f32 %v1266, %v1415
      %v1417 = vand.u32 %v276, 4294901760
      %1418 = vmatmul.f32.gmra.mxu0 %v1417
      %v1419 = vpop.f32.mrf.mxu0
      %v1420 = vadd.f32 %v1270, %v1419
      %v1421 = vand.u32 %v279, 4294901760
      %1422 = vmatmul.f32.gmra.mxu0 %v1421
      %v1423 = vpop.f32.mrf.mxu0
      %v1424 = vadd.f32 %v1274, %v1423
      %v1425 = vand.u32 %v282, 4294901760
      %1426 = vmatmul.f32.gmra.mxu0 %v1425
      %v1427 = vpop.f32.mrf.mxu0
      %v1428 = vadd.f32 %v1278, %v1427
      %v1429 = vand.u32 %v285, 4294901760
      %1430 = vmatmul.f32.gmra.mxu0 %v1429
      %v1431 = vpop.f32.mrf.mxu0
      %v1432 = vadd.f32 %v1282, %v1431
      %v1433 = vand.u32 %v288, 4294901760
      %1434 = vmatmul.f32.gmra.mxu0 %v1433
      %v1435 = vpop.f32.mrf.mxu0
      %v1436 = vadd.f32 %v1286, %v1435
      %v1437 = vand.u32 %v291, 4294901760
      %1438 = vmatmul.f32.gmra.mxu0 %v1437
      %v1439 = vpop.f32.mrf.mxu0
      %v1440 = vadd.f32 %v1290, %v1439
      %v1441 = vand.u32 %v294, 4294901760
      %1442 = vmatmul.f32.gmra.mxu0 %v1441
      %v1443 = vpop.f32.mrf.mxu0
      %v1444 = vadd.f32 %v1294, %v1443
      %v1445 = vand.u32 %v297, 4294901760
      %1446 = vmatmul.f32.gmra.mxu0 %v1445
      %v1447 = vpop.f32.mrf.mxu0
      %v1448 = vadd.f32 %v1298, %v1447
      %v1449 = vand.u32 %v300, 4294901760
      %1450 = vmatmul.f32.gmra.mxu0 %v1449
      %v1451 = vpop.f32.mrf.mxu0
      %v1452 = vadd.f32 %v1302, %v1451
      %v1453 = vand.u32 %v303, 4294901760
      %1454 = vmatmul.f32.gmra.mxu0 %v1453
      %v1455 = vpop.f32.mrf.mxu0
      %v1456 = vadd.f32 %v1306, %v1455
      %v1457 = vand.u32 %v306, 4294901760
      %1458 = vmatmul.f32.gmra.mxu0 %v1457
      %v1459 = vpop.f32.mrf.mxu0
      %v1460 = vadd.f32 %v1310, %v1459
      %v1461 = vand.u32 %v309, 4294901760
      %1462 = vmatmul.f32.gmra.mxu0 %v1461
      %v1463 = vpop.f32.mrf.mxu0
      %v1464 = vadd.f32 %v1314, %v1463
      %v1465 = vand.u32 %v312, 4294901760
      %1466 = vmatmul.f32.gmra.mxu0 %v1465
      %v1467 = vpop.f32.mrf.mxu0
      %v1468 = vadd.f32 %v1318, %v1467
      %v1469 = vand.u32 %v315, 4294901760
      %1470 = vmatmul.f32.gmra.mxu0 %v1469
      %v1471 = vpop.f32.mrf.mxu0
      %v1472 = vadd.f32 %v1322, %v1471
      %v1473 = vand.u32 %v318, 4294901760
      %1474 = vmatmul.f32.gmra.mxu0 %v1473
      %v1475 = vpop.f32.mrf.mxu0
      %v1476 = vadd.f32 %v1326, %v1475
      %v1477 = vand.u32 %v321, 4294901760
      %1478 = vmatmul.f32.gmra.mxu0 %v1477
      %v1479 = vpop.f32.mrf.mxu0
      %v1480 = vadd.f32 %v1330, %v1479
      %v1481 = vand.u32 %v324, 4294901760
      %1482 = vmatmul.f32.gmra.mxu0 %v1481
      %v1483 = vpop.f32.mrf.mxu0
      %v1484 = vadd.f32 %v1334, %v1483
      %v1485 = vand.u32 %v327, 4294901760
      %1486 = vmatmul.f32.gmra.mxu0 %v1485
      %v1487 = vpop.f32.mrf.mxu0
      %v1488 = vadd.f32 %v1338, %v1487
      %v1489 = vand.u32 %v330, 4294901760
      %1490 = vmatmul.f32.gmra.mxu0 %v1489
      %v1491 = vpop.f32.mrf.mxu0
      %v1492 = vadd.f32 %v1342, %v1491
      %v1493 = vand.u32 %v333, 4294901760
      %1494 = vmatmul.f32.gmra.mxu0 %v1493
      %v1495 = vpop.f32.mrf.mxu0
      %v1496 = vadd.f32 %v1346, %v1495
      %1497 = vdwg.mxu0
      %v1498 = vld [vmem:[%s2] sm:$0x1]
      %v1499 = vld [vmem:[%s3] sm:$0x1]
      %vm1500 = vcmask 64512
      %v1501 = vsel %vm1500, %v1372, 0.0
      %1502 = vadd.xlane.f32.xlu0 %v1501
      %v1503 = vpop.xlane.xlu0 %1502
      %v1504 = vsel %vm1500, %v1376, 0.0
      %1505 = vadd.xlane.f32.xlu0 %v1504
      %v1506 = vpop.xlane.xlu0 %1505
      %v1507 = vsel %vm1500, %v1380, 0.0
      %1508 = vadd.xlane.f32.xlu0 %v1507
      %v1509 = vpop.xlane.xlu0 %1508
      %v1510 = vsel %vm1500, %v1384, 0.0
      %1511 = vadd.xlane.f32.xlu0 %v1510
      %v1512 = vpop.xlane.xlu0 %1511
      %v1513 = vsel %vm1500, %v1388, 0.0
      %1514 = vadd.xlane.f32.xlu0 %v1513
      %v1515 = vpop.xlane.xlu0 %1514
      %v1516 = vsel %vm1500, %v1392, 0.0
      %1517 = vadd.xlane.f32.xlu0 %v1516
      %v1518 = vpop.xlane.xlu0 %1517
      %v1519 = vsel %vm1500, %v1396, 0.0
      %1520 = vadd.xlane.f32.xlu0 %v1519
      %v1521 = vpop.xlane.xlu0 %1520
      %v1522 = vsel %vm1500, %v1400, 0.0
      %1523 = vadd.xlane.f32.xlu0 %v1522
      %v1524 = vpop.xlane.xlu0 %1523
      %v1525 = vsel %vm1500, %v1404, 0.0
      %1526 = vadd.xlane.f32.xlu0 %v1525
      %v1527 = vpop.xlane.xlu0 %1526
      %v1528 = vsel %vm1500, %v1408, 0.0
      %1529 = vadd.xlane.f32.xlu0 %v1528
      %v1530 = vpop.xlane.xlu0 %1529
      %v1531 = vsel %vm1500, %v1412, 0.0
      %1532 = vadd.xlane.f32.xlu0 %v1531
      %v1533 = vpop.xlane.xlu0 %1532
      %v1534 = vsel %vm1500, %v1416, 0.0
      %1535 = vadd.xlane.f32.xlu0 %v1534
      %v1536 = vpop.xlane.xlu0 %1535
      %v1537 = vsel %vm1500, %v1420, 0.0
      %1538 = vadd.xlane.f32.xlu0 %v1537
      %v1539 = vpop.xlane.xlu0 %1538
      %v1540 = vsel %vm1500, %v1424, 0.0
      %1541 = vadd.xlane.f32.xlu0 %v1540
      %v1542 = vpop.xlane.xlu0 %1541
      %v1543 = vsel %vm1500, %v1428, 0.0
      %1544 = vadd.xlane.f32.xlu0 %v1543
      %v1545 = vpop.xlane.xlu0 %1544
      %v1546 = vsel %vm1500, %v1432, 0.0
      %1547 = vadd.xlane.f32.xlu0 %v1546
      %v1548 = vpop.xlane.xlu0 %1547
      %v1549 = vsel %vm1500, %v1436, 0.0
      %1550 = vadd.xlane.f32.xlu0 %v1549
      %v1551 = vpop.xlane.xlu0 %1550
      %v1552 = vsel %vm1500, %v1440, 0.0
      %1553 = vadd.xlane.f32.xlu0 %v1552
      %v1554 = vpop.xlane.xlu0 %1553
      %v1555 = vsel %vm1500, %v1444, 0.0
      %1556 = vadd.xlane.f32.xlu0 %v1555
      %v1557 = vpop.xlane.xlu0 %1556
      %v1558 = vsel %vm1500, %v1448, 0.0
      %1559 = vadd.xlane.f32.xlu0 %v1558
      %v1560 = vpop.xlane.xlu0 %1559
      %v1561 = vsel %vm1500, %v1452, 0.0
      %1562 = vadd.xlane.f32.xlu0 %v1561
      %v1563 = vpop.xlane.xlu0 %1562
      %v1564 = vsel %vm1500, %v1456, 0.0
      %1565 = vadd.xlane.f32.xlu0 %v1564
      %v1566 = vpop.xlane.xlu0 %1565
      %v1567 = vsel %vm1500, %v1460, 0.0
      %1568 = vadd.xlane.f32.xlu0 %v1567
      %v1569 = vpop.xlane.xlu0 %1568
      %v1570 = vsel %vm1500, %v1464, 0.0
      %1571 = vadd.xlane.f32.xlu0 %v1570
      %v1572 = vpop.xlane.xlu0 %1571
      %v1573 = vsel %vm1500, %v1468, 0.0
      %1574 = vadd.xlane.f32.xlu0 %v1573
      %v1575 = vpop.xlane.xlu0 %1574
      %v1576 = vsel %vm1500, %v1472, 0.0
      %1577 = vadd.xlane.f32.xlu0 %v1576
      %v1578 = vpop.xlane.xlu0 %1577
      %v1579 = vsel %vm1500, %v1476, 0.0
      %1580 = vadd.xlane.f32.xlu0 %v1579
      %v1581 = vpop.xlane.xlu0 %1580
      %v1582 = vsel %vm1500, %v1480, 0.0
      %1583 = vadd.xlane.f32.xlu0 %v1582
      %v1584 = vpop.xlane.xlu0 %1583
      %v1585 = vsel %vm1500, %v1484, 0.0
      %1586 = vadd.xlane.f32.xlu0 %v1585
      %v1587 = vpop.xlane.xlu0 %1586
      %v1588 = vsel %vm1500, %v1488, 0.0
      %1589 = vadd.xlane.f32.xlu0 %v1588
      %v1590 = vpop.xlane.xlu0 %1589
      %v1591 = vsel %vm1500, %v1492, 0.0
      %1592 = vadd.xlane.f32.xlu0 %v1591
      %v1593 = vpop.xlane.xlu0 %1592
      %v1594 = vsel %vm1500, %v1496, 0.0
      %1595 = vadd.xlane.f32.xlu0 %v1594
      %v1596 = vpop.xlane.xlu0 %1595
      %v1597 = vrcp.pop 8.0
      %v1598 = vmul.f32 8.0, %v1597
      %v1599 = vsub.f32 1.0, %v1598
      %v1600 = vmul.f32 %v1597, %v1599
      %v1601 = vadd.f32 %v1597, %v1600
      %vm1602 = vweird.f32 %v1597
      %v1603 = vsel %vm1602, %v1597, %v1601
      %v1604 = vmul.f32 %v1503, %v1603
      %v1605 = vmul.f32 %v1506, %v1603
      %v1606 = vmul.f32 %v1509, %v1603
      %v1607 = vmul.f32 %v1512, %v1603
      %v1608 = vmul.f32 %v1515, %v1603
      %v1609 = vmul.f32 %v1518, %v1603
      %v1610 = vmul.f32 %v1521, %v1603
      %v1611 = vmul.f32 %v1524, %v1603
      %v1612 = vmul.f32 %v1527, %v1603
      %v1613 = vmul.f32 %v1530, %v1603
      %v1614 = vmul.f32 %v1533, %v1603
      %v1615 = vmul.f32 %v1536, %v1603
      %v1616 = vmul.f32 %v1539, %v1603
      %v1617 = vmul.f32 %v1542, %v1603
      %v1618 = vmul.f32 %v1545, %v1603
      %v1619 = vmul.f32 %v1548, %v1603
      %v1620 = vmul.f32 %v1551, %v1603
      %v1621 = vmul.f32 %v1554, %v1603
      %v1622 = vmul.f32 %v1557, %v1603
      %v1623 = vmul.f32 %v1560, %v1603
      %v1624 = vmul.f32 %v1563, %v1603
      %v1625 = vmul.f32 %v1566, %v1603
      %v1626 = vmul.f32 %v1569, %v1603
      %v1627 = vmul.f32 %v1572, %v1603
      %v1628 = vmul.f32 %v1575, %v1603
      %v1629 = vmul.f32 %v1578, %v1603
      %v1630 = vmul.f32 %v1581, %v1603
      %v1631 = vmul.f32 %v1584, %v1603
      %v1632 = vmul.f32 %v1587, %v1603
      %v1633 = vmul.f32 %v1590, %v1603
      %v1634 = vmul.f32 %v1593, %v1603
      %v1635 = vmul.f32 %v1596, %v1603
      %v1636 = vsub.f32 %v1372, %v1604
      %v1637 = vsub.f32 %v1376, %v1605
      %v1638 = vsub.f32 %v1380, %v1606
      %v1639 = vsub.f32 %v1384, %v1607
      %v1640 = vsub.f32 %v1388, %v1608
      %v1641 = vsub.f32 %v1392, %v1609
      %v1642 = vsub.f32 %v1396, %v1610
      %v1643 = vsub.f32 %v1400, %v1611
      %v1644 = vsub.f32 %v1404, %v1612
      %v1645 = vsub.f32 %v1408, %v1613
      %v1646 = vsub.f32 %v1412, %v1614
      %v1647 = vsub.f32 %v1416, %v1615
      %v1648 = vsub.f32 %v1420, %v1616
      %v1649 = vsub.f32 %v1424, %v1617
      %v1650 = vsub.f32 %v1428, %v1618
      %v1651 = vsub.f32 %v1432, %v1619
      %v1652 = vsub.f32 %v1436, %v1620
      %v1653 = vsub.f32 %v1440, %v1621
      %v1654 = vsub.f32 %v1444, %v1622
      %v1655 = vsub.f32 %v1448, %v1623
      %v1656 = vsub.f32 %v1452, %v1624
      %v1657 = vsub.f32 %v1456, %v1625
      %v1658 = vsub.f32 %v1460, %v1626
      %v1659 = vsub.f32 %v1464, %v1627
      %v1660 = vsub.f32 %v1468, %v1628
      %v1661 = vsub.f32 %v1472, %v1629
      %v1662 = vsub.f32 %v1476, %v1630
      %v1663 = vsub.f32 %v1480, %v1631
      %v1664 = vsub.f32 %v1484, %v1632
      %v1665 = vsub.f32 %v1488, %v1633
      %v1666 = vsub.f32 %v1492, %v1634
      %v1667 = vsub.f32 %v1496, %v1635
      %v1668 = vmul.f32 %v1636, %v1636
      %v1669 = vmul.f32 %v1637, %v1637
      %v1670 = vmul.f32 %v1638, %v1638
      %v1671 = vmul.f32 %v1639, %v1639
      %v1672 = vmul.f32 %v1640, %v1640
      %v1673 = vmul.f32 %v1641, %v1641
      %v1674 = vmul.f32 %v1642, %v1642
      %v1675 = vmul.f32 %v1643, %v1643
      %v1676 = vmul.f32 %v1644, %v1644
      %v1677 = vmul.f32 %v1645, %v1645
      %v1678 = vmul.f32 %v1646, %v1646
      %v1679 = vmul.f32 %v1647, %v1647
      %v1680 = vmul.f32 %v1648, %v1648
      %v1681 = vmul.f32 %v1649, %v1649
      %v1682 = vmul.f32 %v1650, %v1650
      %v1683 = vmul.f32 %v1651, %v1651
      %v1684 = vmul.f32 %v1652, %v1652
      %v1685 = vmul.f32 %v1653, %v1653
      %v1686 = vmul.f32 %v1654, %v1654
      %v1687 = vmul.f32 %v1655, %v1655
      %v1688 = vmul.f32 %v1656, %v1656
      %v1689 = vmul.f32 %v1657, %v1657
      %v1690 = vmul.f32 %v1658, %v1658
      %v1691 = vmul.f32 %v1659, %v1659
      %v1692 = vmul.f32 %v1660, %v1660
      %v1693 = vmul.f32 %v1661, %v1661
      %v1694 = vmul.f32 %v1662, %v1662
      %v1695 = vmul.f32 %v1663, %v1663
      %v1696 = vmul.f32 %v1664, %v1664
      %v1697 = vmul.f32 %v1665, %v1665
      %v1698 = vmul.f32 %v1666, %v1666
      %v1699 = vmul.f32 %v1667, %v1667
      %v1700 = vsel %vm1500, %v1668, 0.0
      %1701 = vadd.xlane.f32.xlu0 %v1700
      %v1702 = vpop.xlane.xlu0 %1701
      %v1703 = vsel %vm1500, %v1669, 0.0
      %1704 = vadd.xlane.f32.xlu0 %v1703
      %v1705 = vpop.xlane.xlu0 %1704
      %v1706 = vsel %vm1500, %v1670, 0.0
      %1707 = vadd.xlane.f32.xlu0 %v1706
      %v1708 = vpop.xlane.xlu0 %1707
      %v1709 = vsel %vm1500, %v1671, 0.0
      %1710 = vadd.xlane.f32.xlu0 %v1709
      %v1711 = vpop.xlane.xlu0 %1710
      %v1712 = vsel %vm1500, %v1672, 0.0
      %1713 = vadd.xlane.f32.xlu0 %v1712
      %v1714 = vpop.xlane.xlu0 %1713
      %v1715 = vsel %vm1500, %v1673, 0.0
      %1716 = vadd.xlane.f32.xlu0 %v1715
      %v1717 = vpop.xlane.xlu0 %1716
      %v1718 = vsel %vm1500, %v1674, 0.0
      %1719 = vadd.xlane.f32.xlu0 %v1718
      %v1720 = vpop.xlane.xlu0 %1719
      %v1721 = vsel %vm1500, %v1675, 0.0
      %1722 = vadd.xlane.f32.xlu0 %v1721
      %v1723 = vpop.xlane.xlu0 %1722
      %v1724 = vsel %vm1500, %v1676, 0.0
      %1725 = vadd.xlane.f32.xlu0 %v1724
      %v1726 = vpop.xlane.xlu0 %1725
      %v1727 = vsel %vm1500, %v1677, 0.0
      %1728 = vadd.xlane.f32.xlu0 %v1727
      %v1729 = vpop.xlane.xlu0 %1728
      %v1730 = vsel %vm1500, %v1678, 0.0
      %1731 = vadd.xlane.f32.xlu0 %v1730
      %v1732 = vpop.xlane.xlu0 %1731
      %v1733 = vsel %vm1500, %v1679, 0.0
      %1734 = vadd.xlane.f32.xlu0 %v1733
      %v1735 = vpop.xlane.xlu0 %1734
      %v1736 = vsel %vm1500, %v1680, 0.0
      %1737 = vadd.xlane.f32.xlu0 %v1736
      %v1738 = vpop.xlane.xlu0 %1737
      %v1739 = vsel %vm1500, %v1681, 0.0
      %1740 = vadd.xlane.f32.xlu0 %v1739
      %v1741 = vpop.xlane.xlu0 %1740
      %v1742 = vsel %vm1500, %v1682, 0.0
      %1743 = vadd.xlane.f32.xlu0 %v1742
      %v1744 = vpop.xlane.xlu0 %1743
      %v1745 = vsel %vm1500, %v1683, 0.0
      %1746 = vadd.xlane.f32.xlu0 %v1745
      %v1747 = vpop.xlane.xlu0 %1746
      %v1748 = vsel %vm1500, %v1684, 0.0
      %1749 = vadd.xlane.f32.xlu0 %v1748
      %v1750 = vpop.xlane.xlu0 %1749
      %v1751 = vsel %vm1500, %v1685, 0.0
      %1752 = vadd.xlane.f32.xlu0 %v1751
      %v1753 = vpop.xlane.xlu0 %1752
      %v1754 = vsel %vm1500, %v1686, 0.0
      %1755 = vadd.xlane.f32.xlu0 %v1754
      %v1756 = vpop.xlane.xlu0 %1755
      %v1757 = vsel %vm1500, %v1687, 0.0
      %1758 = vadd.xlane.f32.xlu0 %v1757
      %v1759 = vpop.xlane.xlu0 %1758
      %v1760 = vsel %vm1500, %v1688, 0.0
      %1761 = vadd.xlane.f32.xlu0 %v1760
      %v1762 = vpop.xlane.xlu0 %1761
      %v1763 = vsel %vm1500, %v1689, 0.0
      %1764 = vadd.xlane.f32.xlu0 %v1763
      %v1765 = vpop.xlane.xlu0 %1764
      %v1766 = vsel %vm1500, %v1690, 0.0
      %1767 = vadd.xlane.f32.xlu0 %v1766
      %v1768 = vpop.xlane.xlu0 %1767
      %v1769 = vsel %vm1500, %v1691, 0.0
      %1770 = vadd.xlane.f32.xlu0 %v1769
      %v1771 = vpop.xlane.xlu0 %1770
      %v1772 = vsel %vm1500, %v1692, 0.0
      %1773 = vadd.xlane.f32.xlu0 %v1772
      %v1774 = vpop.xlane.xlu0 %1773
      %v1775 = vsel %vm1500, %v1693, 0.0
      %1776 = vadd.xlane.f32.xlu0 %v1775
      %v1777 = vpop.xlane.xlu0 %1776
      %v1778 = vsel %vm1500, %v1694, 0.0
      %1779 = vadd.xlane.f32.xlu0 %v1778
      %v1780 = vpop.xlane.xlu0 %1779
      %v1781 = vsel %vm1500, %v1695, 0.0
      %1782 = vadd.xlane.f32.xlu0 %v1781
      %v1783 = vpop.xlane.xlu0 %1782
      %v1784 = vsel %vm1500, %v1696, 0.0
      %1785 = vadd.xlane.f32.xlu0 %v1784
      %v1786 = vpop.xlane.xlu0 %1785
      %v1787 = vsel %vm1500, %v1697, 0.0
      %1788 = vadd.xlane.f32.xlu0 %v1787
      %v1789 = vpop.xlane.xlu0 %1788
      %v1790 = vsel %vm1500, %v1698, 0.0
      %1791 = vadd.xlane.f32.xlu0 %v1790
      %v1792 = vpop.xlane.xlu0 %1791
      %v1793 = vsel %vm1500, %v1699, 0.0
      %1794 = vadd.xlane.f32.xlu0 %v1793
      %v1795 = vpop.xlane.xlu0 %1794
      %v1796 = vmul.f32 %v1702, %v1603
      %v1797 = vmul.f32 %v1705, %v1603
      %v1798 = vmul.f32 %v1708, %v1603
      %v1799 = vmul.f32 %v1711, %v1603
      %v1800 = vmul.f32 %v1714, %v1603
      %v1801 = vmul.f32 %v1717, %v1603
      %v1802 = vmul.f32 %v1720, %v1603
      %v1803 = vmul.f32 %v1723, %v1603
      %v1804 = vmul.f32 %v1726, %v1603
      %v1805 = vmul.f32 %v1729, %v1603
      %v1806 = vmul.f32 %v1732, %v1603
      %v1807 = vmul.f32 %v1735, %v1603
      %v1808 = vmul.f32 %v1738, %v1603
      %v1809 = vmul.f32 %v1741, %v1603
      %v1810 = vmul.f32 %v1744, %v1603
      %v1811 = vmul.f32 %v1747, %v1603
      %v1812 = vmul.f32 %v1750, %v1603
      %v1813 = vmul.f32 %v1753, %v1603
      %v1814 = vmul.f32 %v1756, %v1603
      %v1815 = vmul.f32 %v1759, %v1603
      %v1816 = vmul.f32 %v1762, %v1603
      %v1817 = vmul.f32 %v1765, %v1603
      %v1818 = vmul.f32 %v1768, %v1603
      %v1819 = vmul.f32 %v1771, %v1603
      %v1820 = vmul.f32 %v1774, %v1603
      %v1821 = vmul.f32 %v1777, %v1603
      %v1822 = vmul.f32 %v1780, %v1603
      %v1823 = vmul.f32 %v1783, %v1603
      %v1824 = vmul.f32 %v1786, %v1603
      %v1825 = vmul.f32 %v1789, %v1603
      %v1826 = vmul.f32 %v1792, %v1603
      %v1827 = vmul.f32 %v1795, %v1603
      %v1828 = vadd.f32 %v1796, 1e-06
      %v1829 = vadd.f32 %v1797, 1e-06
      %v1830 = vadd.f32 %v1798, 1e-06
      %v1831 = vadd.f32 %v1799, 1e-06
      %v1832 = vadd.f32 %v1800, 1e-06
      %v1833 = vadd.f32 %v1801, 1e-06
      %v1834 = vadd.f32 %v1802, 1e-06
      %v1835 = vadd.f32 %v1803, 1e-06
      %v1836 = vadd.f32 %v1804, 1e-06
      %v1837 = vadd.f32 %v1805, 1e-06
      %v1838 = vadd.f32 %v1806, 1e-06
      %v1839 = vadd.f32 %v1807, 1e-06
      %v1840 = vadd.f32 %v1808, 1e-06
      %v1841 = vadd.f32 %v1809, 1e-06
      %v1842 = vadd.f32 %v1810, 1e-06
      %v1843 = vadd.f32 %v1811, 1e-06
      %v1844 = vadd.f32 %v1812, 1e-06
      %v1845 = vadd.f32 %v1813, 1e-06
      %v1846 = vadd.f32 %v1814, 1e-06
      %v1847 = vadd.f32 %v1815, 1e-06
      %v1848 = vadd.f32 %v1816, 1e-06
      %v1849 = vadd.f32 %v1817, 1e-06
      %v1850 = vadd.f32 %v1818, 1e-06
      %v1851 = vadd.f32 %v1819, 1e-06
      %v1852 = vadd.f32 %v1820, 1e-06
      %v1853 = vadd.f32 %v1821, 1e-06
      %v1854 = vadd.f32 %v1822, 1e-06
      %v1855 = vadd.f32 %v1823, 1e-06
      %v1856 = vadd.f32 %v1824, 1e-06
      %v1857 = vadd.f32 %v1825, 1e-06
      %v1858 = vadd.f32 %v1826, 1e-06
      %v1859 = vadd.f32 %v1827, 1e-06
      %v1860 = vrsqrt.pop %v1828
      %v1861 = vmul.f32 %v1860, %v1828
      %v1862 = vmul.f32 %v1861, %v1860
      %v1863 = vmul.f32 0.5, %v1862
      %v1864 = vsub.f32 1.5, %v1863
      %v1865 = vmul.f32 %v1860, %v1864
      %vm1866 = vweird.f32 %v1828
      %vm1867 = vweird.f32 %v1860
      %vm1868 = vmor %vm1866, %vm1867
      %v1869 = vsel %vm1868, %v1860, %v1865
      %v1870 = vrsqrt.pop %v1829
      %v1871 = vmul.f32 %v1870, %v1829
      %v1872 = vmul.f32 %v1871, %v1870
      %v1873 = vmul.f32 0.5, %v1872
      %v1874 = vsub.f32 1.5, %v1873
      %v1875 = vmul.f32 %v1870, %v1874
      %vm1876 = vweird.f32 %v1829
      %vm1877 = vweird.f32 %v1870
      %vm1878 = vmor %vm1876, %vm1877
      %v1879 = vsel %vm1878, %v1870, %v1875
      %v1880 = vrsqrt.pop %v1830
      %v1881 = vmul.f32 %v1880, %v1830
      %v1882 = vmul.f32 %v1881, %v1880
      %v1883 = vmul.f32 0.5, %v1882
      %v1884 = vsub.f32 1.5, %v1883
      %v1885 = vmul.f32 %v1880, %v1884
      %vm1886 = vweird.f32 %v1830
      %vm1887 = vweird.f32 %v1880
      %vm1888 = vmor %vm1886, %vm1887
      %v1889 = vsel %vm1888, %v1880, %v1885
      %v1890 = vrsqrt.pop %v1831
      %v1891 = vmul.f32 %v1890, %v1831
      %v1892 = vmul.f32 %v1891, %v1890
      %v1893 = vmul.f32 0.5, %v1892
      %v1894 = vsub.f32 1.5, %v1893
      %v1895 = vmul.f32 %v1890, %v1894
      %vm1896 = vweird.f32 %v1831
      %vm1897 = vweird.f32 %v1890
      %vm1898 = vmor %vm1896, %vm1897
      %v1899 = vsel %vm1898, %v1890, %v1895
      %v1900 = vrsqrt.pop %v1832
      %v1901 = vmul.f32 %v1900, %v1832
      %v1902 = vmul.f32 %v1901, %v1900
      %v1903 = vmul.f32 0.5, %v1902
      %v1904 = vsub.f32 1.5, %v1903
      %v1905 = vmul.f32 %v1900, %v1904
      %vm1906 = vweird.f32 %v1832
      %vm1907 = vweird.f32 %v1900
      %vm1908 = vmor %vm1906, %vm1907
      %v1909 = vsel %vm1908, %v1900, %v1905
      %v1910 = vrsqrt.pop %v1833
      %v1911 = vmul.f32 %v1910, %v1833
      %v1912 = vmul.f32 %v1911, %v1910
      %v1913 = vmul.f32 0.5, %v1912
      %v1914 = vsub.f32 1.5, %v1913
      %v1915 = vmul.f32 %v1910, %v1914
      %vm1916 = vweird.f32 %v1833
      %vm1917 = vweird.f32 %v1910
      %vm1918 = vmor %vm1916, %vm1917
      %v1919 = vsel %vm1918, %v1910, %v1915
      %v1920 = vrsqrt.pop %v1834
      %v1921 = vmul.f32 %v1920, %v1834
      %v1922 = vmul.f32 %v1921, %v1920
      %v1923 = vmul.f32 0.5, %v1922
      %v1924 = vsub.f32 1.5, %v1923
      %v1925 = vmul.f32 %v1920, %v1924
      %vm1926 = vweird.f32 %v1834
      %vm1927 = vweird.f32 %v1920
      %vm1928 = vmor %vm1926, %vm1927
      %v1929 = vsel %vm1928, %v1920, %v1925
      %v1930 = vrsqrt.pop %v1835
      %v1931 = vmul.f32 %v1930, %v1835
      %v1932 = vmul.f32 %v1931, %v1930
      %v1933 = vmul.f32 0.5, %v1932
      %v1934 = vsub.f32 1.5, %v1933
      %v1935 = vmul.f32 %v1930, %v1934
      %vm1936 = vweird.f32 %v1835
      %vm1937 = vweird.f32 %v1930
      %vm1938 = vmor %vm1936, %vm1937
      %v1939 = vsel %vm1938, %v1930, %v1935
      %v1940 = vrsqrt.pop %v1836
      %v1941 = vmul.f32 %v1940, %v1836
      %v1942 = vmul.f32 %v1941, %v1940
      %v1943 = vmul.f32 0.5, %v1942
      %v1944 = vsub.f32 1.5, %v1943
      %v1945 = vmul.f32 %v1940, %v1944
      %vm1946 = vweird.f32 %v1836
      %vm1947 = vweird.f32 %v1940
      %vm1948 = vmor %vm1946, %vm1947
      %v1949 = vsel %vm1948, %v1940, %v1945
      %v1950 = vrsqrt.pop %v1837
      %v1951 = vmul.f32 %v1950, %v1837
      %v1952 = vmul.f32 %v1951, %v1950
      %v1953 = vmul.f32 0.5, %v1952
      %v1954 = vsub.f32 1.5, %v1953
      %v1955 = vmul.f32 %v1950, %v1954
      %vm1956 = vweird.f32 %v1837
      %vm1957 = vweird.f32 %v1950
      %vm1958 = vmor %vm1956, %vm1957
      %v1959 = vsel %vm1958, %v1950, %v1955
      %v1960 = vrsqrt.pop %v1838
      %v1961 = vmul.f32 %v1960, %v1838
      %v1962 = vmul.f32 %v1961, %v1960
      %v1963 = vmul.f32 0.5, %v1962
      %v1964 = vsub.f32 1.5, %v1963
      %v1965 = vmul.f32 %v1960, %v1964
      %vm1966 = vweird.f32 %v1838
      %vm1967 = vweird.f32 %v1960
      %vm1968 = vmor %vm1966, %vm1967
      %v1969 = vsel %vm1968, %v1960, %v1965
      %v1970 = vrsqrt.pop %v1839
      %v1971 = vmul.f32 %v1970, %v1839
      %v1972 = vmul.f32 %v1971, %v1970
      %v1973 = vmul.f32 0.5, %v1972
      %v1974 = vsub.f32 1.5, %v1973
      %v1975 = vmul.f32 %v1970, %v1974
      %vm1976 = vweird.f32 %v1839
      %vm1977 = vweird.f32 %v1970
      %vm1978 = vmor %vm1976, %vm1977
      %v1979 = vsel %vm1978, %v1970, %v1975
      %v1980 = vrsqrt.pop %v1840
      %v1981 = vmul.f32 %v1980, %v1840
      %v1982 = vmul.f32 %v1981, %v1980
      %v1983 = vmul.f32 0.5, %v1982
      %v1984 = vsub.f32 1.5, %v1983
      %v1985 = vmul.f32 %v1980, %v1984
      %vm1986 = vweird.f32 %v1840
      %vm1987 = vweird.f32 %v1980
      %vm1988 = vmor %vm1986, %vm1987
      %v1989 = vsel %vm1988, %v1980, %v1985
      %v1990 = vrsqrt.pop %v1841
      %v1991 = vmul.f32 %v1990, %v1841
      %v1992 = vmul.f32 %v1991, %v1990
      %v1993 = vmul.f32 0.5, %v1992
      %v1994 = vsub.f32 1.5, %v1993
      %v1995 = vmul.f32 %v1990, %v1994
      %vm1996 = vweird.f32 %v1841
      %vm1997 = vweird.f32 %v1990
      %vm1998 = vmor %vm1996, %vm1997
      %v1999 = vsel %vm1998, %v1990, %v1995
      %v2000 = vrsqrt.pop %v1842
      %v2001 = vmul.f32 %v2000, %v1842
      %v2002 = vmul.f32 %v2001, %v2000
      %v2003 = vmul.f32 0.5, %v2002
      %v2004 = vsub.f32 1.5, %v2003
      %v2005 = vmul.f32 %v2000, %v2004
      %vm2006 = vweird.f32 %v1842
      %vm2007 = vweird.f32 %v2000
      %vm2008 = vmor %vm2006, %vm2007
      %v2009 = vsel %vm2008, %v2000, %v2005
      %v2010 = vrsqrt.pop %v1843
      %v2011 = vmul.f32 %v2010, %v1843
      %v2012 = vmul.f32 %v2011, %v2010
      %v2013 = vmul.f32 0.5, %v2012
      %v2014 = vsub.f32 1.5, %v2013
      %v2015 = vmul.f32 %v2010, %v2014
      %vm2016 = vweird.f32 %v1843
      %vm2017 = vweird.f32 %v2010
      %vm2018 = vmor %vm2016, %vm2017
      %v2019 = vsel %vm2018, %v2010, %v2015
      %v2020 = vrsqrt.pop %v1844
      %v2021 = vmul.f32 %v2020, %v1844
      %v2022 = vmul.f32 %v2021, %v2020
      %v2023 = vmul.f32 0.5, %v2022
      %v2024 = vsub.f32 1.5, %v2023
      %v2025 = vmul.f32 %v2020, %v2024
      %vm2026 = vweird.f32 %v1844
      %vm2027 = vweird.f32 %v2020
      %vm2028 = vmor %vm2026, %vm2027
      %v2029 = vsel %vm2028, %v2020, %v2025
      %v2030 = vrsqrt.pop %v1845
      %v2031 = vmul.f32 %v2030, %v1845
      %v2032 = vmul.f32 %v2031, %v2030
      %v2033 = vmul.f32 0.5, %v2032
      %v2034 = vsub.f32 1.5, %v2033
      %v2035 = vmul.f32 %v2030, %v2034
      %vm2036 = vweird.f32 %v1845
      %vm2037 = vweird.f32 %v2030
      %vm2038 = vmor %vm2036, %vm2037
      %v2039 = vsel %vm2038, %v2030, %v2035
      %v2040 = vrsqrt.pop %v1846
      %v2041 = vmul.f32 %v2040, %v1846
      %v2042 = vmul.f32 %v2041, %v2040
      %v2043 = vmul.f32 0.5, %v2042
      %v2044 = vsub.f32 1.5, %v2043
      %v2045 = vmul.f32 %v2040, %v2044
      %vm2046 = vweird.f32 %v1846
      %vm2047 = vweird.f32 %v2040
      %vm2048 = vmor %vm2046, %vm2047
      %v2049 = vsel %vm2048, %v2040, %v2045
      %v2050 = vrsqrt.pop %v1847
      %v2051 = vmul.f32 %v2050, %v1847
      %v2052 = vmul.f32 %v2051, %v2050
      %v2053 = vmul.f32 0.5, %v2052
      %v2054 = vsub.f32 1.5, %v2053
      %v2055 = vmul.f32 %v2050, %v2054
      %vm2056 = vweird.f32 %v1847
      %vm2057 = vweird.f32 %v2050
      %vm2058 = vmor %vm2056, %vm2057
      %v2059 = vsel %vm2058, %v2050, %v2055
      %v2060 = vrsqrt.pop %v1848
      %v2061 = vmul.f32 %v2060, %v1848
      %v2062 = vmul.f32 %v2061, %v2060
      %v2063 = vmul.f32 0.5, %v2062
      %v2064 = vsub.f32 1.5, %v2063
      %v2065 = vmul.f32 %v2060, %v2064
      %vm2066 = vweird.f32 %v1848
      %vm2067 = vweird.f32 %v2060
      %vm2068 = vmor %vm2066, %vm2067
      %v2069 = vsel %vm2068, %v2060, %v2065
      %v2070 = vrsqrt.pop %v1849
      %v2071 = vmul.f32 %v2070, %v1849
      %v2072 = vmul.f32 %v2071, %v2070
      %v2073 = vmul.f32 0.5, %v2072
      %v2074 = vsub.f32 1.5, %v2073
      %v2075 = vmul.f32 %v2070, %v2074
      %vm2076 = vweird.f32 %v1849
      %vm2077 = vweird.f32 %v2070
      %vm2078 = vmor %vm2076, %vm2077
      %v2079 = vsel %vm2078, %v2070, %v2075
      %v2080 = vrsqrt.pop %v1850
      %v2081 = vmul.f32 %v2080, %v1850
      %v2082 = vmul.f32 %v2081, %v2080
      %v2083 = vmul.f32 0.5, %v2082
      %v2084 = vsub.f32 1.5, %v2083
      %v2085 = vmul.f32 %v2080, %v2084
      %vm2086 = vweird.f32 %v1850
      %vm2087 = vweird.f32 %v2080
      %vm2088 = vmor %vm2086, %vm2087
      %v2089 = vsel %vm2088, %v2080, %v2085
      %v2090 = vrsqrt.pop %v1851
      %v2091 = vmul.f32 %v2090, %v1851
      %v2092 = vmul.f32 %v2091, %v2090
      %v2093 = vmul.f32 0.5, %v2092
      %v2094 = vsub.f32 1.5, %v2093
      %v2095 = vmul.f32 %v2090, %v2094
      %vm2096 = vweird.f32 %v1851
      %vm2097 = vweird.f32 %v2090
      %vm2098 = vmor %vm2096, %vm2097
      %v2099 = vsel %vm2098, %v2090, %v2095
      %v2100 = vrsqrt.pop %v1852
      %v2101 = vmul.f32 %v2100, %v1852
      %v2102 = vmul.f32 %v2101, %v2100
      %v2103 = vmul.f32 0.5, %v2102
      %v2104 = vsub.f32 1.5, %v2103
      %v2105 = vmul.f32 %v2100, %v2104
      %vm2106 = vweird.f32 %v1852
      %vm2107 = vweird.f32 %v2100
      %vm2108 = vmor %vm2106, %vm2107
      %v2109 = vsel %vm2108, %v2100, %v2105
      %v2110 = vrsqrt.pop %v1853
      %v2111 = vmul.f32 %v2110, %v1853
      %v2112 = vmul.f32 %v2111, %v2110
      %v2113 = vmul.f32 0.5, %v2112
      %v2114 = vsub.f32 1.5, %v2113
      %v2115 = vmul.f32 %v2110, %v2114
      %vm2116 = vweird.f32 %v1853
      %vm2117 = vweird.f32 %v2110
      %vm2118 = vmor %vm2116, %vm2117
      %v2119 = vsel %vm2118, %v2110, %v2115
      %v2120 = vrsqrt.pop %v1854
      %v2121 = vmul.f32 %v2120, %v1854
      %v2122 = vmul.f32 %v2121, %v2120
      %v2123 = vmul.f32 0.5, %v2122
      %v2124 = vsub.f32 1.5, %v2123
      %v2125 = vmul.f32 %v2120, %v2124
      %vm2126 = vweird.f32 %v1854
      %vm2127 = vweird.f32 %v2120
      %vm2128 = vmor %vm2126, %vm2127
      %v2129 = vsel %vm2128, %v2120, %v2125
      %v2130 = vrsqrt.pop %v1855
      %v2131 = vmul.f32 %v2130, %v1855
      %v2132 = vmul.f32 %v2131, %v2130
      %v2133 = vmul.f32 0.5, %v2132
      %v2134 = vsub.f32 1.5, %v2133
      %v2135 = vmul.f32 %v2130, %v2134
      %vm2136 = vweird.f32 %v1855
      %vm2137 = vweird.f32 %v2130
      %vm2138 = vmor %vm2136, %vm2137
      %v2139 = vsel %vm2138, %v2130, %v2135
      %v2140 = vrsqrt.pop %v1856
      %v2141 = vmul.f32 %v2140, %v1856
      %v2142 = vmul.f32 %v2141, %v2140
      %v2143 = vmul.f32 0.5, %v2142
      %v2144 = vsub.f32 1.5, %v2143
      %v2145 = vmul.f32 %v2140, %v2144
      %vm2146 = vweird.f32 %v1856
      %vm2147 = vweird.f32 %v2140
      %vm2148 = vmor %vm2146, %vm2147
      %v2149 = vsel %vm2148, %v2140, %v2145
      %v2150 = vrsqrt.pop %v1857
      %v2151 = vmul.f32 %v2150, %v1857
      %v2152 = vmul.f32 %v2151, %v2150
      %v2153 = vmul.f32 0.5, %v2152
      %v2154 = vsub.f32 1.5, %v2153
      %v2155 = vmul.f32 %v2150, %v2154
      %vm2156 = vweird.f32 %v1857
      %vm2157 = vweird.f32 %v2150
      %vm2158 = vmor %vm2156, %vm2157
      %v2159 = vsel %vm2158, %v2150, %v2155
      %v2160 = vrsqrt.pop %v1858
      %v2161 = vmul.f32 %v2160, %v1858
      %v2162 = vmul.f32 %v2161, %v2160
      %v2163 = vmul.f32 0.5, %v2162
      %v2164 = vsub.f32 1.5, %v2163
      %v2165 = vmul.f32 %v2160, %v2164
      %vm2166 = vweird.f32 %v1858
      %vm2167 = vweird.f32 %v2160
      %vm2168 = vmor %vm2166, %vm2167
      %v2169 = vsel %vm2168, %v2160, %v2165
      %v2170 = vrsqrt.pop %v1859
      %v2171 = vmul.f32 %v2170, %v1859
      %v2172 = vmul.f32 %v2171, %v2170
      %v2173 = vmul.f32 0.5, %v2172
      %v2174 = vsub.f32 1.5, %v2173
      %v2175 = vmul.f32 %v2170, %v2174
      %vm2176 = vweird.f32 %v1859
      %vm2177 = vweird.f32 %v2170
      %vm2178 = vmor %vm2176, %vm2177
      %v2179 = vsel %vm2178, %v2170, %v2175
      %v2180 = vmul.f32 %v1636, %v1869
      %v2181 = vmul.f32 %v1637, %v1879
      %v2182 = vmul.f32 %v1638, %v1889
      %v2183 = vmul.f32 %v1639, %v1899
      %v2184 = vmul.f32 %v1640, %v1909
      %v2185 = vmul.f32 %v1641, %v1919
      %v2186 = vmul.f32 %v1642, %v1929
      %v2187 = vmul.f32 %v1643, %v1939
      %v2188 = vmul.f32 %v1644, %v1949
      %v2189 = vmul.f32 %v1645, %v1959
      %v2190 = vmul.f32 %v1646, %v1969
      %v2191 = vmul.f32 %v1647, %v1979
      %v2192 = vmul.f32 %v1648, %v1989
      %v2193 = vmul.f32 %v1649, %v1999
      %v2194 = vmul.f32 %v1650, %v2009
      %v2195 = vmul.f32 %v1651, %v2019
      %v2196 = vmul.f32 %v1652, %v2029
      %v2197 = vmul.f32 %v1653, %v2039
      %v2198 = vmul.f32 %v1654, %v2049
      %v2199 = vmul.f32 %v1655, %v2059
      %v2200 = vmul.f32 %v1656, %v2069
      %v2201 = vmul.f32 %v1657, %v2079
      %v2202 = vmul.f32 %v1658, %v2089
      %v2203 = vmul.f32 %v1659, %v2099
      %v2204 = vmul.f32 %v1660, %v2109
      %v2205 = vmul.f32 %v1661, %v2119
      %v2206 = vmul.f32 %v1662, %v2129
      %v2207 = vmul.f32 %v1663, %v2139
      %v2208 = vmul.f32 %v1664, %v2149
      %v2209 = vmul.f32 %v1665, %v2159
      %v2210 = vmul.f32 %v1666, %v2169
      %v2211 = vmul.f32 %v1667, %v2179
      %v2213 = vperm.slane %v1498, 0
      %v2215 = vmul.f32 %v2213, %v2180
      %v2216 = vmul.f32 %v2213, %v2181
      %v2217 = vmul.f32 %v2213, %v2182
      %v2218 = vmul.f32 %v2213, %v2183
      %v2219 = vmul.f32 %v2213, %v2184
      %v2220 = vmul.f32 %v2213, %v2185
      %v2221 = vmul.f32 %v2213, %v2186
      %v2222 = vmul.f32 %v2213, %v2187
      %v2223 = vmul.f32 %v2213, %v2188
      %v2224 = vmul.f32 %v2213, %v2189
      %v2225 = vmul.f32 %v2213, %v2190
      %v2226 = vmul.f32 %v2213, %v2191
      %v2227 = vmul.f32 %v2213, %v2192
      %v2228 = vmul.f32 %v2213, %v2193
      %v2229 = vmul.f32 %v2213, %v2194
      %v2230 = vmul.f32 %v2213, %v2195
      %v2231 = vmul.f32 %v2213, %v2196
      %v2232 = vmul.f32 %v2213, %v2197
      %v2233 = vmul.f32 %v2213, %v2198
      %v2234 = vmul.f32 %v2213, %v2199
      %v2235 = vmul.f32 %v2213, %v2200
      %v2236 = vmul.f32 %v2213, %v2201
      %v2237 = vmul.f32 %v2213, %v2202
      %v2238 = vmul.f32 %v2213, %v2203
      %v2239 = vmul.f32 %v2213, %v2204
      %v2240 = vmul.f32 %v2213, %v2205
      %v2241 = vmul.f32 %v2213, %v2206
      %v2242 = vmul.f32 %v2213, %v2207
      %v2243 = vmul.f32 %v2213, %v2208
      %v2244 = vmul.f32 %v2213, %v2209
      %v2245 = vmul.f32 %v2213, %v2210
      %v2246 = vmul.f32 %v2213, %v2211
      %v2248 = vperm.slane %v1499, 0
      %v2250 = vadd.f32 %v2215, %v2248
      %v2251 = vadd.f32 %v2216, %v2248
      %v2252 = vadd.f32 %v2217, %v2248
      %v2253 = vadd.f32 %v2218, %v2248
      %v2254 = vadd.f32 %v2219, %v2248
      %v2255 = vadd.f32 %v2220, %v2248
      %v2256 = vadd.f32 %v2221, %v2248
      %v2257 = vadd.f32 %v2222, %v2248
      %v2258 = vadd.f32 %v2223, %v2248
      %v2259 = vadd.f32 %v2224, %v2248
      %v2260 = vadd.f32 %v2225, %v2248
      %v2261 = vadd.f32 %v2226, %v2248
      %v2262 = vadd.f32 %v2227, %v2248
      %v2263 = vadd.f32 %v2228, %v2248
      %v2264 = vadd.f32 %v2229, %v2248
      %v2265 = vadd.f32 %v2230, %v2248
      %v2266 = vadd.f32 %v2231, %v2248
      %v2267 = vadd.f32 %v2232, %v2248
      %v2268 = vadd.f32 %v2233, %v2248
      %v2269 = vadd.f32 %v2234, %v2248
      %v2270 = vadd.f32 %v2235, %v2248
      %v2271 = vadd.f32 %v2236, %v2248
      %v2272 = vadd.f32 %v2237, %v2248
      %v2273 = vadd.f32 %v2238, %v2248
      %v2274 = vadd.f32 %v2239, %v2248
      %v2275 = vadd.f32 %v2240, %v2248
      %v2276 = vadd.f32 %v2241, %v2248
      %v2277 = vadd.f32 %v2242, %v2248
      %v2278 = vadd.f32 %v2243, %v2248
      %v2279 = vadd.f32 %v2244, %v2248
      %v2280 = vadd.f32 %v2245, %v2248
      %v2281 = vadd.f32 %v2246, %v2248
      %v2282 = vxor.u32 %v2250, 2147483648
      %v2283 = vxor.u32 %v2251, 2147483648
      %v2284 = vxor.u32 %v2252, 2147483648
      %v2285 = vxor.u32 %v2253, 2147483648
      %v2286 = vxor.u32 %v2254, 2147483648
      %v2287 = vxor.u32 %v2255, 2147483648
      %v2288 = vxor.u32 %v2256, 2147483648
      %v2289 = vxor.u32 %v2257, 2147483648
      %v2290 = vxor.u32 %v2258, 2147483648
      %v2291 = vxor.u32 %v2259, 2147483648
      %v2292 = vxor.u32 %v2260, 2147483648
      %v2293 = vxor.u32 %v2261, 2147483648
      %v2294 = vxor.u32 %v2262, 2147483648
      %v2295 = vxor.u32 %v2263, 2147483648
      %v2296 = vxor.u32 %v2264, 2147483648
      %v2297 = vxor.u32 %v2265, 2147483648
      %v2298 = vxor.u32 %v2266, 2147483648
      %v2299 = vxor.u32 %v2267, 2147483648
      %v2300 = vxor.u32 %v2268, 2147483648
      %v2301 = vxor.u32 %v2269, 2147483648
      %v2302 = vxor.u32 %v2270, 2147483648
      %v2303 = vxor.u32 %v2271, 2147483648
      %v2304 = vxor.u32 %v2272, 2147483648
      %v2305 = vxor.u32 %v2273, 2147483648
      %v2306 = vxor.u32 %v2274, 2147483648
      %v2307 = vxor.u32 %v2275, 2147483648
      %v2308 = vxor.u32 %v2276, 2147483648
      %v2309 = vxor.u32 %v2277, 2147483648
      %v2310 = vxor.u32 %v2278, 2147483648
      %v2311 = vxor.u32 %v2279, 2147483648
      %v2312 = vxor.u32 %v2280, 2147483648
      %v2313 = vxor.u32 %v2281, 2147483648
      %v2314 = vmul.f32 %v2282, 1.442695
      %v2315 = vpow.pop %v2314
      %v2316 = vmul.f32 %v2283, 1.442695
      %v2317 = vpow.pop %v2316
      %v2318 = vmul.f32 %v2284, 1.442695
      %v2319 = vpow.pop %v2318
      %v2320 = vmul.f32 %v2285, 1.442695
      %v2321 = vpow.pop %v2320
      %v2322 = vmul.f32 %v2286, 1.442695
      %v2323 = vpow.pop %v2322
      %v2324 = vmul.f32 %v2287, 1.442695
      %v2325 = vpow.pop %v2324
      %v2326 = vmul.f32 %v2288, 1.442695
      %v2327 = vpow.pop %v2326
      %v2328 = vmul.f32 %v2289, 1.442695
      %v2329 = vpow.pop %v2328
      %v2330 = vmul.f32 %v2290, 1.442695
      %v2331 = vpow.pop %v2330
      %v2332 = vmul.f32 %v2291, 1.442695
      %v2333 = vpow.pop %v2332
      %v2334 = vmul.f32 %v2292, 1.442695
      %v2335 = vpow.pop %v2334
      %v2336 = vmul.f32 %v2293, 1.442695
      %v2337 = vpow.pop %v2336
      %v2338 = vmul.f32 %v2294, 1.442695
      %v2339 = vpow.pop %v2338
      %v2340 = vmul.f32 %v2295, 1.442695
      %v2341 = vpow.pop %v2340
      %v2342 = vmul.f32 %v2296, 1.442695
      %v2343 = vpow.pop %v2342
      %v2344 = vmul.f32 %v2297, 1.442695
      %v2345 = vpow.pop %v2344
      %v2346 = vmul.f32 %v2298, 1.442695
      %v2347 = vpow.pop %v2346
      %v2348 = vmul.f32 %v2299, 1.442695
      %v2349 = vpow.pop %v2348
      %v2350 = vmul.f32 %v2300, 1.442695
      %v2351 = vpow.pop %v2350
      %v2352 = vmul.f32 %v2301, 1.442695
      %v2353 = vpow.pop %v2352
      %v2354 = vmul.f32 %v2302, 1.442695
      %v2355 = vpow.pop %v2354
      %v2356 = vmul.f32 %v2303, 1.442695
      %v2357 = vpow.pop %v2356
      %v2358 = vmul.f32 %v2304, 1.442695
      %v2359 = vpow.pop %v2358
      %v2360 = vmul.f32 %v2305, 1.442695
      %v2361 = vpow.pop %v2360
      %v2362 = vmul.f32 %v2306, 1.442695
      %v2363 = vpow.pop %v2362
      %v2364 = vmul.f32 %v2307, 1.442695
      %v2365 = vpow.pop %v2364
      %v2366 = vmul.f32 %v2308, 1.442695
      %v2367 = vpow.pop %v2366
      %v2368 = vmul.f32 %v2309, 1.442695
      %v2369 = vpow.pop %v2368
      %v2370 = vmul.f32 %v2310, 1.442695
      %v2371 = vpow.pop %v2370
      %v2372 = vmul.f32 %v2311, 1.442695
      %v2373 = vpow.pop %v2372
      %v2374 = vmul.f32 %v2312, 1.442695
      %v2375 = vpow.pop %v2374
      %v2376 = vmul.f32 %v2313, 1.442695
      %v2377 = vpow.pop %v2376
      %v2378 = vadd.f32 %v2315, 1.0
      %v2379 = vadd.f32 %v2317, 1.0
      %v2380 = vadd.f32 %v2319, 1.0
      %v2381 = vadd.f32 %v2321, 1.0
      %v2382 = vadd.f32 %v2323, 1.0
      %v2383 = vadd.f32 %v2325, 1.0
      %v2384 = vadd.f32 %v2327, 1.0
      %v2385 = vadd.f32 %v2329, 1.0
      %v2386 = vadd.f32 %v2331, 1.0
      %v2387 = vadd.f32 %v2333, 1.0
      %v2388 = vadd.f32 %v2335, 1.0
      %v2389 = vadd.f32 %v2337, 1.0
      %v2390 = vadd.f32 %v2339, 1.0
      %v2391 = vadd.f32 %v2341, 1.0
      %v2392 = vadd.f32 %v2343, 1.0
      %v2393 = vadd.f32 %v2345, 1.0
      %v2394 = vadd.f32 %v2347, 1.0
      %v2395 = vadd.f32 %v2349, 1.0
      %v2396 = vadd.f32 %v2351, 1.0
      %v2397 = vadd.f32 %v2353, 1.0
      %v2398 = vadd.f32 %v2355, 1.0
      %v2399 = vadd.f32 %v2357, 1.0
      %v2400 = vadd.f32 %v2359, 1.0
      %v2401 = vadd.f32 %v2361, 1.0
      %v2402 = vadd.f32 %v2363, 1.0
      %v2403 = vadd.f32 %v2365, 1.0
      %v2404 = vadd.f32 %v2367, 1.0
      %v2405 = vadd.f32 %v2369, 1.0
      %v2406 = vadd.f32 %v2371, 1.0
      %v2407 = vadd.f32 %v2373, 1.0
      %v2408 = vadd.f32 %v2375, 1.0
      %v2409 = vadd.f32 %v2377, 1.0
      %v2410 = vrcp.pop %v2378
      %v2411 = vmul.f32 %v2378, %v2410
      %v2412 = vsub.f32 1.0, %v2411
      %v2413 = vmul.f32 %v2410, %v2412
      %v2414 = vadd.f32 %v2410, %v2413
      %vm2415 = vweird.f32 %v2378
      %vm2416 = vweird.f32 %v2410
      %vm2417 = vmor %vm2415, %vm2416
      %v2418 = vsel %vm2417, %v2410, %v2414
      %v2419 = vand.u32 2147483647, %v2378
      %vm2420 = vcmp.eq.f32.partialorder %v2419, 8.507059e+37
      %v2421 = vand.u32 %v2378, 2147483648
      %v2422 = vor.u32 1.1754944e-38, %v2421
      %v2423 = vsel %vm2420, %v2422, %v2418
      %v2424 = vmul.f32 1.0, %v2423
      %v2425 = vrcp.pop %v2379
      %v2426 = vmul.f32 %v2379, %v2425
      %v2427 = vsub.f32 1.0, %v2426
      %v2428 = vmul.f32 %v2425, %v2427
      %v2429 = vadd.f32 %v2425, %v2428
      %vm2430 = vweird.f32 %v2379
      %vm2431 = vweird.f32 %v2425
      %vm2432 = vmor %vm2430, %vm2431
      %v2433 = vsel %vm2432, %v2425, %v2429
      %v2434 = vand.u32 2147483647, %v2379
      %vm2435 = vcmp.eq.f32.partialorder %v2434, 8.507059e+37
      %v2436 = vand.u32 %v2379, 2147483648
      %v2437 = vor.u32 1.1754944e-38, %v2436
      %v2438 = vsel %vm2435, %v2437, %v2433
      %v2439 = vmul.f32 1.0, %v2438
      %v2440 = vrcp.pop %v2380
      %v2441 = vmul.f32 %v2380, %v2440
      %v2442 = vsub.f32 1.0, %v2441
      %v2443 = vmul.f32 %v2440, %v2442
      %v2444 = vadd.f32 %v2440, %v2443
      %vm2445 = vweird.f32 %v2380
      %vm2446 = vweird.f32 %v2440
      %vm2447 = vmor %vm2445, %vm2446
      %v2448 = vsel %vm2447, %v2440, %v2444
      %v2449 = vand.u32 2147483647, %v2380
      %vm2450 = vcmp.eq.f32.partialorder %v2449, 8.507059e+37
      %v2451 = vand.u32 %v2380, 2147483648
      %v2452 = vor.u32 1.1754944e-38, %v2451
      %v2453 = vsel %vm2450, %v2452, %v2448
      %v2454 = vmul.f32 1.0, %v2453
      %v2455 = vrcp.pop %v2381
      %v2456 = vmul.f32 %v2381, %v2455
      %v2457 = vsub.f32 1.0, %v2456
      %v2458 = vmul.f32 %v2455, %v2457
      %v2459 = vadd.f32 %v2455, %v2458
      %vm2460 = vweird.f32 %v2381
      %vm2461 = vweird.f32 %v2455
      %vm2462 = vmor %vm2460, %vm2461
      %v2463 = vsel %vm2462, %v2455, %v2459
      %v2464 = vand.u32 2147483647, %v2381
      %vm2465 = vcmp.eq.f32.partialorder %v2464, 8.507059e+37
      %v2466 = vand.u32 %v2381, 2147483648
      %v2467 = vor.u32 1.1754944e-38, %v2466
      %v2468 = vsel %vm2465, %v2467, %v2463
      %v2469 = vmul.f32 1.0, %v2468
      %v2470 = vrcp.pop %v2382
      %v2471 = vmul.f32 %v2382, %v2470
      %v2472 = vsub.f32 1.0, %v2471
      %v2473 = vmul.f32 %v2470, %v2472
      %v2474 = vadd.f32 %v2470, %v2473
      %vm2475 = vweird.f32 %v2382
      %vm2476 = vweird.f32 %v2470
      %vm2477 = vmor %vm2475, %vm2476
      %v2478 = vsel %vm2477, %v2470, %v2474
      %v2479 = vand.u32 2147483647, %v2382
      %vm2480 = vcmp.eq.f32.partialorder %v2479, 8.507059e+37
      %v2481 = vand.u32 %v2382, 2147483648
      %v2482 = vor.u32 1.1754944e-38, %v2481
      %v2483 = vsel %vm2480, %v2482, %v2478
      %v2484 = vmul.f32 1.0, %v2483
      %v2485 = vrcp.pop %v2383
      %v2486 = vmul.f32 %v2383, %v2485
      %v2487 = vsub.f32 1.0, %v2486
      %v2488 = vmul.f32 %v2485, %v2487
      %v2489 = vadd.f32 %v2485, %v2488
      %vm2490 = vweird.f32 %v2383
      %vm2491 = vweird.f32 %v2485
      %vm2492 = vmor %vm2490, %vm2491
      %v2493 = vsel %vm2492, %v2485, %v2489
      %v2494 = vand.u32 2147483647, %v2383
      %vm2495 = vcmp.eq.f32.partialorder %v2494, 8.507059e+37
      %v2496 = vand.u32 %v2383, 2147483648
      %v2497 = vor.u32 1.1754944e-38, %v2496
      %v2498 = vsel %vm2495, %v2497, %v2493
      %v2499 = vmul.f32 1.0, %v2498
      %v2500 = vrcp.pop %v2384
      %v2501 = vmul.f32 %v2384, %v2500
      %v2502 = vsub.f32 1.0, %v2501
      %v2503 = vmul.f32 %v2500, %v2502
      %v2504 = vadd.f32 %v2500, %v2503
      %vm2505 = vweird.f32 %v2384
      %vm2506 = vweird.f32 %v2500
      %vm2507 = vmor %vm2505, %vm2506
      %v2508 = vsel %vm2507, %v2500, %v2504
      %v2509 = vand.u32 2147483647, %v2384
      %vm2510 = vcmp.eq.f32.partialorder %v2509, 8.507059e+37
      %v2511 = vand.u32 %v2384, 2147483648
      %v2512 = vor.u32 1.1754944e-38, %v2511
      %v2513 = vsel %vm2510, %v2512, %v2508
      %v2514 = vmul.f32 1.0, %v2513
      %v2515 = vrcp.pop %v2385
      %v2516 = vmul.f32 %v2385, %v2515
      %v2517 = vsub.f32 1.0, %v2516
      %v2518 = vmul.f32 %v2515, %v2517
      %v2519 = vadd.f32 %v2515, %v2518
      %vm2520 = vweird.f32 %v2385
      %vm2521 = vweird.f32 %v2515
      %vm2522 = vmor %vm2520, %vm2521
      %v2523 = vsel %vm2522, %v2515, %v2519
      %v2524 = vand.u32 2147483647, %v2385
      %vm2525 = vcmp.eq.f32.partialorder %v2524, 8.507059e+37
      %v2526 = vand.u32 %v2385, 2147483648
      %v2527 = vor.u32 1.1754944e-38, %v2526
      %v2528 = vsel %vm2525, %v2527, %v2523
      %v2529 = vmul.f32 1.0, %v2528
      %v2530 = vrcp.pop %v2386
      %v2531 = vmul.f32 %v2386, %v2530
      %v2532 = vsub.f32 1.0, %v2531
      %v2533 = vmul.f32 %v2530, %v2532
      %v2534 = vadd.f32 %v2530, %v2533
      %vm2535 = vweird.f32 %v2386
      %vm2536 = vweird.f32 %v2530
      %vm2537 = vmor %vm2535, %vm2536
      %v2538 = vsel %vm2537, %v2530, %v2534
      %v2539 = vand.u32 2147483647, %v2386
      %vm2540 = vcmp.eq.f32.partialorder %v2539, 8.507059e+37
      %v2541 = vand.u32 %v2386, 2147483648
      %v2542 = vor.u32 1.1754944e-38, %v2541
      %v2543 = vsel %vm2540, %v2542, %v2538
      %v2544 = vmul.f32 1.0, %v2543
      %v2545 = vrcp.pop %v2387
      %v2546 = vmul.f32 %v2387, %v2545
      %v2547 = vsub.f32 1.0, %v2546
      %v2548 = vmul.f32 %v2545, %v2547
      %v2549 = vadd.f32 %v2545, %v2548
      %vm2550 = vweird.f32 %v2387
      %vm2551 = vweird.f32 %v2545
      %vm2552 = vmor %vm2550, %vm2551
      %v2553 = vsel %vm2552, %v2545, %v2549
      %v2554 = vand.u32 2147483647, %v2387
      %vm2555 = vcmp.eq.f32.partialorder %v2554, 8.507059e+37
      %v2556 = vand.u32 %v2387, 2147483648
      %v2557 = vor.u32 1.1754944e-38, %v2556
      %v2558 = vsel %vm2555, %v2557, %v2553
      %v2559 = vmul.f32 1.0, %v2558
      %v2560 = vrcp.pop %v2388
      %v2561 = vmul.f32 %v2388, %v2560
      %v2562 = vsub.f32 1.0, %v2561
      %v2563 = vmul.f32 %v2560, %v2562
      %v2564 = vadd.f32 %v2560, %v2563
      %vm2565 = vweird.f32 %v2388
      %vm2566 = vweird.f32 %v2560
      %vm2567 = vmor %vm2565, %vm2566
      %v2568 = vsel %vm2567, %v2560, %v2564
      %v2569 = vand.u32 2147483647, %v2388
      %vm2570 = vcmp.eq.f32.partialorder %v2569, 8.507059e+37
      %v2571 = vand.u32 %v2388, 2147483648
      %v2572 = vor.u32 1.1754944e-38, %v2571
      %v2573 = vsel %vm2570, %v2572, %v2568
      %v2574 = vmul.f32 1.0, %v2573
      %v2575 = vrcp.pop %v2389
      %v2576 = vmul.f32 %v2389, %v2575
      %v2577 = vsub.f32 1.0, %v2576
      %v2578 = vmul.f32 %v2575, %v2577
      %v2579 = vadd.f32 %v2575, %v2578
      %vm2580 = vweird.f32 %v2389
      %vm2581 = vweird.f32 %v2575
      %vm2582 = vmor %vm2580, %vm2581
      %v2583 = vsel %vm2582, %v2575, %v2579
      %v2584 = vand.u32 2147483647, %v2389
      %vm2585 = vcmp.eq.f32.partialorder %v2584, 8.507059e+37
      %v2586 = vand.u32 %v2389, 2147483648
      %v2587 = vor.u32 1.1754944e-38, %v2586
      %v2588 = vsel %vm2585, %v2587, %v2583
      %v2589 = vmul.f32 1.0, %v2588
      %v2590 = vrcp.pop %v2390
      %v2591 = vmul.f32 %v2390, %v2590
      %v2592 = vsub.f32 1.0, %v2591
      %v2593 = vmul.f32 %v2590, %v2592
      %v2594 = vadd.f32 %v2590, %v2593
      %vm2595 = vweird.f32 %v2390
      %vm2596 = vweird.f32 %v2590
      %vm2597 = vmor %vm2595, %vm2596
      %v2598 = vsel %vm2597, %v2590, %v2594
      %v2599 = vand.u32 2147483647, %v2390
      %vm2600 = vcmp.eq.f32.partialorder %v2599, 8.507059e+37
      %v2601 = vand.u32 %v2390, 2147483648
      %v2602 = vor.u32 1.1754944e-38, %v2601
      %v2603 = vsel %vm2600, %v2602, %v2598
      %v2604 = vmul.f32 1.0, %v2603
      %v2605 = vrcp.pop %v2391
      %v2606 = vmul.f32 %v2391, %v2605
      %v2607 = vsub.f32 1.0, %v2606
      %v2608 = vmul.f32 %v2605, %v2607
      %v2609 = vadd.f32 %v2605, %v2608
      %vm2610 = vweird.f32 %v2391
      %vm2611 = vweird.f32 %v2605
      %vm2612 = vmor %vm2610, %vm2611
      %v2613 = vsel %vm2612, %v2605, %v2609
      %v2614 = vand.u32 2147483647, %v2391
      %vm2615 = vcmp.eq.f32.partialorder %v2614, 8.507059e+37
      %v2616 = vand.u32 %v2391, 2147483648
      %v2617 = vor.u32 1.1754944e-38, %v2616
      %v2618 = vsel %vm2615, %v2617, %v2613
      %v2619 = vmul.f32 1.0, %v2618
      %v2620 = vrcp.pop %v2392
      %v2621 = vmul.f32 %v2392, %v2620
      %v2622 = vsub.f32 1.0, %v2621
      %v2623 = vmul.f32 %v2620, %v2622
      %v2624 = vadd.f32 %v2620, %v2623
      %vm2625 = vweird.f32 %v2392
      %vm2626 = vweird.f32 %v2620
      %vm2627 = vmor %vm2625, %vm2626
      %v2628 = vsel %vm2627, %v2620, %v2624
      %v2629 = vand.u32 2147483647, %v2392
      %vm2630 = vcmp.eq.f32.partialorder %v2629, 8.507059e+37
      %v2631 = vand.u32 %v2392, 2147483648
      %v2632 = vor.u32 1.1754944e-38, %v2631
      %v2633 = vsel %vm2630, %v2632, %v2628
      %v2634 = vmul.f32 1.0, %v2633
      %v2635 = vrcp.pop %v2393
      %v2636 = vmul.f32 %v2393, %v2635
      %v2637 = vsub.f32 1.0, %v2636
      %v2638 = vmul.f32 %v2635, %v2637
      %v2639 = vadd.f32 %v2635, %v2638
      %vm2640 = vweird.f32 %v2393
      %vm2641 = vweird.f32 %v2635
      %vm2642 = vmor %vm2640, %vm2641
      %v2643 = vsel %vm2642, %v2635, %v2639
      %v2644 = vand.u32 2147483647, %v2393
      %vm2645 = vcmp.eq.f32.partialorder %v2644, 8.507059e+37
      %v2646 = vand.u32 %v2393, 2147483648
      %v2647 = vor.u32 1.1754944e-38, %v2646
      %v2648 = vsel %vm2645, %v2647, %v2643
      %v2649 = vmul.f32 1.0, %v2648
      %v2650 = vrcp.pop %v2394
      %v2651 = vmul.f32 %v2394, %v2650
      %v2652 = vsub.f32 1.0, %v2651
      %v2653 = vmul.f32 %v2650, %v2652
      %v2654 = vadd.f32 %v2650, %v2653
      %vm2655 = vweird.f32 %v2394
      %vm2656 = vweird.f32 %v2650
      %vm2657 = vmor %vm2655, %vm2656
      %v2658 = vsel %vm2657, %v2650, %v2654
      %v2659 = vand.u32 2147483647, %v2394
      %vm2660 = vcmp.eq.f32.partialorder %v2659, 8.507059e+37
      %v2661 = vand.u32 %v2394, 2147483648
      %v2662 = vor.u32 1.1754944e-38, %v2661
      %v2663 = vsel %vm2660, %v2662, %v2658
      %v2664 = vmul.f32 1.0, %v2663
      %v2665 = vrcp.pop %v2395
      %v2666 = vmul.f32 %v2395, %v2665
      %v2667 = vsub.f32 1.0, %v2666
      %v2668 = vmul.f32 %v2665, %v2667
      %v2669 = vadd.f32 %v2665, %v2668
      %vm2670 = vweird.f32 %v2395
      %vm2671 = vweird.f32 %v2665
      %vm2672 = vmor %vm2670, %vm2671
      %v2673 = vsel %vm2672, %v2665, %v2669
      %v2674 = vand.u32 2147483647, %v2395
      %vm2675 = vcmp.eq.f32.partialorder %v2674, 8.507059e+37
      %v2676 = vand.u32 %v2395, 2147483648
      %v2677 = vor.u32 1.1754944e-38, %v2676
      %v2678 = vsel %vm2675, %v2677, %v2673
      %v2679 = vmul.f32 1.0, %v2678
      %v2680 = vrcp.pop %v2396
      %v2681 = vmul.f32 %v2396, %v2680
      %v2682 = vsub.f32 1.0, %v2681
      %v2683 = vmul.f32 %v2680, %v2682
      %v2684 = vadd.f32 %v2680, %v2683
      %vm2685 = vweird.f32 %v2396
      %vm2686 = vweird.f32 %v2680
      %vm2687 = vmor %vm2685, %vm2686
      %v2688 = vsel %vm2687, %v2680, %v2684
      %v2689 = vand.u32 2147483647, %v2396
      %vm2690 = vcmp.eq.f32.partialorder %v2689, 8.507059e+37
      %v2691 = vand.u32 %v2396, 2147483648
      %v2692 = vor.u32 1.1754944e-38, %v2691
      %v2693 = vsel %vm2690, %v2692, %v2688
      %v2694 = vmul.f32 1.0, %v2693
      %v2695 = vrcp.pop %v2397
      %v2696 = vmul.f32 %v2397, %v2695
      %v2697 = vsub.f32 1.0, %v2696
      %v2698 = vmul.f32 %v2695, %v2697
      %v2699 = vadd.f32 %v2695, %v2698
      %vm2700 = vweird.f32 %v2397
      %vm2701 = vweird.f32 %v2695
      %vm2702 = vmor %vm2700, %vm2701
      %v2703 = vsel %vm2702, %v2695, %v2699
      %v2704 = vand.u32 2147483647, %v2397
      %vm2705 = vcmp.eq.f32.partialorder %v2704, 8.507059e+37
      %v2706 = vand.u32 %v2397, 2147483648
      %v2707 = vor.u32 1.1754944e-38, %v2706
      %v2708 = vsel %vm2705, %v2707, %v2703
      %v2709 = vmul.f32 1.0, %v2708
      %v2710 = vrcp.pop %v2398
      %v2711 = vmul.f32 %v2398, %v2710
      %v2712 = vsub.f32 1.0, %v2711
      %v2713 = vmul.f32 %v2710, %v2712
      %v2714 = vadd.f32 %v2710, %v2713
      %vm2715 = vweird.f32 %v2398
      %vm2716 = vweird.f32 %v2710
      %vm2717 = vmor %vm2715, %vm2716
      %v2718 = vsel %vm2717, %v2710, %v2714
      %v2719 = vand.u32 2147483647, %v2398
      %vm2720 = vcmp.eq.f32.partialorder %v2719, 8.507059e+37
      %v2721 = vand.u32 %v2398, 2147483648
      %v2722 = vor.u32 1.1754944e-38, %v2721
      %v2723 = vsel %vm2720, %v2722, %v2718
      %v2724 = vmul.f32 1.0, %v2723
      %v2725 = vrcp.pop %v2399
      %v2726 = vmul.f32 %v2399, %v2725
      %v2727 = vsub.f32 1.0, %v2726
      %v2728 = vmul.f32 %v2725, %v2727
      %v2729 = vadd.f32 %v2725, %v2728
      %vm2730 = vweird.f32 %v2399
      %vm2731 = vweird.f32 %v2725
      %vm2732 = vmor %vm2730, %vm2731
      %v2733 = vsel %vm2732, %v2725, %v2729
      %v2734 = vand.u32 2147483647, %v2399
      %vm2735 = vcmp.eq.f32.partialorder %v2734, 8.507059e+37
      %v2736 = vand.u32 %v2399, 2147483648
      %v2737 = vor.u32 1.1754944e-38, %v2736
      %v2738 = vsel %vm2735, %v2737, %v2733
      %v2739 = vmul.f32 1.0, %v2738
      %v2740 = vrcp.pop %v2400
      %v2741 = vmul.f32 %v2400, %v2740
      %v2742 = vsub.f32 1.0, %v2741
      %v2743 = vmul.f32 %v2740, %v2742
      %v2744 = vadd.f32 %v2740, %v2743
      %vm2745 = vweird.f32 %v2400
      %vm2746 = vweird.f32 %v2740
      %vm2747 = vmor %vm2745, %vm2746
      %v2748 = vsel %vm2747, %v2740, %v2744
      %v2749 = vand.u32 2147483647, %v2400
      %vm2750 = vcmp.eq.f32.partialorder %v2749, 8.507059e+37
      %v2751 = vand.u32 %v2400, 2147483648
      %v2752 = vor.u32 1.1754944e-38, %v2751
      %v2753 = vsel %vm2750, %v2752, %v2748
      %v2754 = vmul.f32 1.0, %v2753
      %v2755 = vrcp.pop %v2401
      %v2756 = vmul.f32 %v2401, %v2755
      %v2757 = vsub.f32 1.0, %v2756
      %v2758 = vmul.f32 %v2755, %v2757
      %v2759 = vadd.f32 %v2755, %v2758
      %vm2760 = vweird.f32 %v2401
      %vm2761 = vweird.f32 %v2755
      %vm2762 = vmor %vm2760, %vm2761
      %v2763 = vsel %vm2762, %v2755, %v2759
      %v2764 = vand.u32 2147483647, %v2401
      %vm2765 = vcmp.eq.f32.partialorder %v2764, 8.507059e+37
      %v2766 = vand.u32 %v2401, 2147483648
      %v2767 = vor.u32 1.1754944e-38, %v2766
      %v2768 = vsel %vm2765, %v2767, %v2763
      %v2769 = vmul.f32 1.0, %v2768
      %v2770 = vrcp.pop %v2402
      %v2771 = vmul.f32 %v2402, %v2770
      %v2772 = vsub.f32 1.0, %v2771
      %v2773 = vmul.f32 %v2770, %v2772
      %v2774 = vadd.f32 %v2770, %v2773
      %vm2775 = vweird.f32 %v2402
      %vm2776 = vweird.f32 %v2770
      %vm2777 = vmor %vm2775, %vm2776
      %v2778 = vsel %vm2777, %v2770, %v2774
      %v2779 = vand.u32 2147483647, %v2402
      %vm2780 = vcmp.eq.f32.partialorder %v2779, 8.507059e+37
      %v2781 = vand.u32 %v2402, 2147483648
      %v2782 = vor.u32 1.1754944e-38, %v2781
      %v2783 = vsel %vm2780, %v2782, %v2778
      %v2784 = vmul.f32 1.0, %v2783
      %v2785 = vrcp.pop %v2403
      %v2786 = vmul.f32 %v2403, %v2785
      %v2787 = vsub.f32 1.0, %v2786
      %v2788 = vmul.f32 %v2785, %v2787
      %v2789 = vadd.f32 %v2785, %v2788
      %vm2790 = vweird.f32 %v2403
      %vm2791 = vweird.f32 %v2785
      %vm2792 = vmor %vm2790, %vm2791
      %v2793 = vsel %vm2792, %v2785, %v2789
      %v2794 = vand.u32 2147483647, %v2403
      %vm2795 = vcmp.eq.f32.partialorder %v2794, 8.507059e+37
      %v2796 = vand.u32 %v2403, 2147483648
      %v2797 = vor.u32 1.1754944e-38, %v2796
      %v2798 = vsel %vm2795, %v2797, %v2793
      %v2799 = vmul.f32 1.0, %v2798
      %v2800 = vrcp.pop %v2404
      %v2801 = vmul.f32 %v2404, %v2800
      %v2802 = vsub.f32 1.0, %v2801
      %v2803 = vmul.f32 %v2800, %v2802
      %v2804 = vadd.f32 %v2800, %v2803
      %vm2805 = vweird.f32 %v2404
      %vm2806 = vweird.f32 %v2800
      %vm2807 = vmor %vm2805, %vm2806
      %v2808 = vsel %vm2807, %v2800, %v2804
      %v2809 = vand.u32 2147483647, %v2404
      %vm2810 = vcmp.eq.f32.partialorder %v2809, 8.507059e+37
      %v2811 = vand.u32 %v2404, 2147483648
      %v2812 = vor.u32 1.1754944e-38, %v2811
      %v2813 = vsel %vm2810, %v2812, %v2808
      %v2814 = vmul.f32 1.0, %v2813
      %v2815 = vrcp.pop %v2405
      %v2816 = vmul.f32 %v2405, %v2815
      %v2817 = vsub.f32 1.0, %v2816
      %v2818 = vmul.f32 %v2815, %v2817
      %v2819 = vadd.f32 %v2815, %v2818
      %vm2820 = vweird.f32 %v2405
      %vm2821 = vweird.f32 %v2815
      %vm2822 = vmor %vm2820, %vm2821
      %v2823 = vsel %vm2822, %v2815, %v2819
      %v2824 = vand.u32 2147483647, %v2405
      %vm2825 = vcmp.eq.f32.partialorder %v2824, 8.507059e+37
      %v2826 = vand.u32 %v2405, 2147483648
      %v2827 = vor.u32 1.1754944e-38, %v2826
      %v2828 = vsel %vm2825, %v2827, %v2823
      %v2829 = vmul.f32 1.0, %v2828
      %v2830 = vrcp.pop %v2406
      %v2831 = vmul.f32 %v2406, %v2830
      %v2832 = vsub.f32 1.0, %v2831
      %v2833 = vmul.f32 %v2830, %v2832
      %v2834 = vadd.f32 %v2830, %v2833
      %vm2835 = vweird.f32 %v2406
      %vm2836 = vweird.f32 %v2830
      %vm2837 = vmor %vm2835, %vm2836
      %v2838 = vsel %vm2837, %v2830, %v2834
      %v2839 = vand.u32 2147483647, %v2406
      %vm2840 = vcmp.eq.f32.partialorder %v2839, 8.507059e+37
      %v2841 = vand.u32 %v2406, 2147483648
      %v2842 = vor.u32 1.1754944e-38, %v2841
      %v2843 = vsel %vm2840, %v2842, %v2838
      %v2844 = vmul.f32 1.0, %v2843
      %v2845 = vrcp.pop %v2407
      %v2846 = vmul.f32 %v2407, %v2845
      %v2847 = vsub.f32 1.0, %v2846
      %v2848 = vmul.f32 %v2845, %v2847
      %v2849 = vadd.f32 %v2845, %v2848
      %vm2850 = vweird.f32 %v2407
      %vm2851 = vweird.f32 %v2845
      %vm2852 = vmor %vm2850, %vm2851
      %v2853 = vsel %vm2852, %v2845, %v2849
      %v2854 = vand.u32 2147483647, %v2407
      %vm2855 = vcmp.eq.f32.partialorder %v2854, 8.507059e+37
      %v2856 = vand.u32 %v2407, 2147483648
      %v2857 = vor.u32 1.1754944e-38, %v2856
      %v2858 = vsel %vm2855, %v2857, %v2853
      %v2859 = vmul.f32 1.0, %v2858
      %v2860 = vrcp.pop %v2408
      %v2861 = vmul.f32 %v2408, %v2860
      %v2862 = vsub.f32 1.0, %v2861
      %v2863 = vmul.f32 %v2860, %v2862
      %v2864 = vadd.f32 %v2860, %v2863
      %vm2865 = vweird.f32 %v2408
      %vm2866 = vweird.f32 %v2860
      %vm2867 = vmor %vm2865, %vm2866
      %v2868 = vsel %vm2867, %v2860, %v2864
      %v2869 = vand.u32 2147483647, %v2408
      %vm2870 = vcmp.eq.f32.partialorder %v2869, 8.507059e+37
      %v2871 = vand.u32 %v2408, 2147483648
      %v2872 = vor.u32 1.1754944e-38, %v2871
      %v2873 = vsel %vm2870, %v2872, %v2868
      %v2874 = vmul.f32 1.0, %v2873
      %v2875 = vrcp.pop %v2409
      %v2876 = vmul.f32 %v2409, %v2875
      %v2877 = vsub.f32 1.0, %v2876
      %v2878 = vmul.f32 %v2875, %v2877
      %v2879 = vadd.f32 %v2875, %v2878
      %vm2880 = vweird.f32 %v2409
      %vm2881 = vweird.f32 %v2875
      %vm2882 = vmor %vm2880, %vm2881
      %v2883 = vsel %vm2882, %v2875, %v2879
      %v2884 = vand.u32 2147483647, %v2409
      %vm2885 = vcmp.eq.f32.partialorder %v2884, 8.507059e+37
      %v2886 = vand.u32 %v2409, 2147483648
      %v2887 = vor.u32 1.1754944e-38, %v2886
      %v2888 = vsel %vm2885, %v2887, %v2883
      %v2889 = vmul.f32 1.0, %v2888
      %v2890 = vmul.f32 %v2250, %v2424
      %v2891 = vmul.f32 %v2251, %v2439
      %v2892 = vmul.f32 %v2252, %v2454
      %v2893 = vmul.f32 %v2253, %v2469
      %v2894 = vmul.f32 %v2254, %v2484
      %v2895 = vmul.f32 %v2255, %v2499
      %v2896 = vmul.f32 %v2256, %v2514
      %v2897 = vmul.f32 %v2257, %v2529
      %v2898 = vmul.f32 %v2258, %v2544
      %v2899 = vmul.f32 %v2259, %v2559
      %v2900 = vmul.f32 %v2260, %v2574
      %v2901 = vmul.f32 %v2261, %v2589
      %v2902 = vmul.f32 %v2262, %v2604
      %v2903 = vmul.f32 %v2263, %v2619
      %v2904 = vmul.f32 %v2264, %v2634
      %v2905 = vmul.f32 %v2265, %v2649
      %v2906 = vmul.f32 %v2266, %v2664
      %v2907 = vmul.f32 %v2267, %v2679
      %v2908 = vmul.f32 %v2268, %v2694
      %v2909 = vmul.f32 %v2269, %v2709
      %v2910 = vmul.f32 %v2270, %v2724
      %v2911 = vmul.f32 %v2271, %v2739
      %v2912 = vmul.f32 %v2272, %v2754
      %v2913 = vmul.f32 %v2273, %v2769
      %v2914 = vmul.f32 %v2274, %v2784
      %v2915 = vmul.f32 %v2275, %v2799
      %v2916 = vmul.f32 %v2276, %v2814
      %v2917 = vmul.f32 %v2277, %v2829
      %v2918 = vmul.f32 %v2278, %v2844
      %v2919 = vmul.f32 %v2279, %v2859
      %v2920 = vmul.f32 %v2280, %v2874
      %v2921 = vmul.f32 %v2281, %v2889
      %2922 = vst.msk [vmem:[%s199] sm:$0xff] %vm1500, %v2890
      %2923 = vst.msk [vmem:[%s199 + $0x8] sm:$0xff] %vm1500, %v2891
      %2924 = vst.msk [vmem:[%s199 + $0x10] sm:$0xff] %vm1500, %v2892
      %2925 = vst.msk [vmem:[%s199 + $0x18] sm:$0xff] %vm1500, %v2893
      %2926 = vst.msk [vmem:[%s199 + $0x20] sm:$0xff] %vm1500, %v2894
      %2927 = vst.msk [vmem:[%s199 + $0x28] sm:$0xff] %vm1500, %v2895
      %2928 = vst.msk [vmem:[%s199 + $0x30] sm:$0xff] %vm1500, %v2896
      %2929 = vst.msk [vmem:[%s199 + $0x38] sm:$0xff] %vm1500, %v2897
      %2930 = vst.msk [vmem:[%s199 + $0x40] sm:$0xff] %vm1500, %v2898
      %2931 = vst.msk [vmem:[%s199 + $0x48] sm:$0xff] %vm1500, %v2899
      %2932 = vst.msk [vmem:[%s199 + $0x50] sm:$0xff] %vm1500, %v2900
      %2933 = vst.msk [vmem:[%s199 + $0x58] sm:$0xff] %vm1500, %v2901
      %2934 = vst.msk [vmem:[%s199 + $0x60] sm:$0xff] %vm1500, %v2902
      %2935 = vst.msk [vmem:[%s199 + $0x68] sm:$0xff] %vm1500, %v2903
      %2936 = vst.msk [vmem:[%s199 + $0x70] sm:$0xff] %vm1500, %v2904
      %2937 = vst.msk [vmem:[%s199 + $0x78] sm:$0xff] %vm1500, %v2905
      %2938 = vst.msk [vmem:[%s199 + $0x80] sm:$0xff] %vm1500, %v2906
      %2939 = vst.msk [vmem:[%s199 + $0x88] sm:$0xff] %vm1500, %v2907
      %2940 = vst.msk [vmem:[%s199 + $0x90] sm:$0xff] %vm1500, %v2908
      %2941 = vst.msk [vmem:[%s199 + $0x98] sm:$0xff] %vm1500, %v2909
      %2942 = vst.msk [vmem:[%s199 + $0xa0] sm:$0xff] %vm1500, %v2910
      %2943 = vst.msk [vmem:[%s199 + $0xa8] sm:$0xff] %vm1500, %v2911
      %2944 = vst.msk [vmem:[%s199 + $0xb0] sm:$0xff] %vm1500, %v2912
      %2945 = vst.msk [vmem:[%s199 + $0xb8] sm:$0xff] %vm1500, %v2913
      %2946 = vst.msk [vmem:[%s199 + $0xc0] sm:$0xff] %vm1500, %v2914
      %2947 = vst.msk [vmem:[%s199 + $0xc8] sm:$0xff] %vm1500, %v2915
      %2948 = vst.msk [vmem:[%s199 + $0xd0] sm:$0xff] %vm1500, %v2916
      %2949 = vst.msk [vmem:[%s199 + $0xd8] sm:$0xff] %vm1500, %v2917
      %2950 = vst.msk [vmem:[%s199 + $0xe0] sm:$0xff] %vm1500, %v2918
      %2951 = vst.msk [vmem:[%s199 + $0xe8] sm:$0xff] %vm1500, %v2919
      %2952 = vst.msk [vmem:[%s199 + $0xf0] sm:$0xff] %vm1500, %v2920
      %2953 = vst.msk [vmem:[%s199 + $0xf8] sm:$0xff] %vm1500, %v2921
      %s2954 = smul.u32 32, %s15
      %p2955 = scmp.lt.s32.totalorder %s2954, 63
      %s2956 = scalar_select %p2955, %s2954, 63
      %s2957 = smul.addr %s2956, 8
      %s2958 = scalar_lea.vmem %s4, %s2957
      // Predicated region
      $region37: #{mbfd_forward.4} parent=35 // pred_check
        %p2959 = pneg %p122
      $region38: #{mbfd_forward.4} parent=35 // pred_check_branch
        %2961 = sbr.rel (%p2959) target = $region40
      $region39: #{mbfd_forward.4} parent=35 // pred_region
        %s2962 = smul.u32 32, %s15
      $region40: #{mbfd_forward.4} parent=35 // pred_fallthru
        _
    $region36: #{mbfd_forward.4} parent=5 // pred_fallthru
      _
    %p2963 = scmp.le.s32.totalorder 2, %s10
    // Predicated region
    $region41: #{mbfd_forward.4} parent=5 // pred_check
      %p2964 = pneg %p2963
    $region42: #{mbfd_forward.4} parent=5 // pred_check_branch
      %2966 = sbr.rel (%p2964) target = $region44
    $region43: #{mbfd_forward.4} parent=5 // pred_region
      %s2967 = ssub.s32 %s10, 2
      // Predicated region
      $region45: #{mbfd_forward.4} parent=43 // pred_check
        %p2968 = pneg %p128
      $region46: #{mbfd_forward.4} parent=43 // pred_check_branch
        %2970 = sbr.rel (%p2968) target = $region48
      $region47: #{mbfd_forward.4} parent=43 // pred_region
        %s2971 = smul.u32 32, %s16
        %p2972 = scmp.lt.s32.totalorder %s2971, 63
        %s2973 = scalar_select %p2972, %s2971, 63
        %s2974 = smul.addr %s2973, 8
        %s2975 = scalar_lea.vmem %s4, %s2974
      $region48: #{mbfd_forward.4} parent=43 // pred_fallthru
        _
    $region44: #{mbfd_forward.4} parent=5 // pred_fallthru
      _
  $region6: #{mbfd_forward.4} parent=0 // loop_footer
    %s14 = sadd.s32 1, %s10
  $region7: #{mbfd_forward.4} parent=0 // loop_footer_branch
    %9 = sbr.rel target = $region3
  $region8: #{mbfd_forward.4} parent=0 // loop_exit
    _

// kernel: mbfd_forward.5
$region0: #{mbfd_forward.5}
  #allocation0 [shape = 'u32[]', space=smem, size = 0x4, offset = 0x4, fixed_abs, tag = 'smem constant byte address 0x4 - core index']
  #allocation1 [shape = 'u32[72,128]{1,0:T(1,128)}', space=vmem, size = 0x9000, scoped, tag = 'internal scratch']
  %s0 = inlined_call_operand.vmem [shape: f32[128,72], index: 0, kind: input, shape index: {}]
  %s1 = inlined_call_operand.vmem [shape: f32[72,12], index: 1, kind: input, shape index: {}]
  %s2 = inlined_call_operand.vmem [shape: f32[1,12], index: 2, kind: input, shape index: {}]
  %s3 = inlined_call_operand.vmem [shape: f32[1,12], index: 3, kind: input, shape index: {}]
  %s4 = inlined_call_operand.vmem [shape: f32[128,12], index: 4, kind: output, shape index: {}]
  %s5 = sld [smem:[#allocation0]]
  $region49: #{mbfd_forward.5} parent=0
    _
  %s7 = ssub.s32 1, %s5
  %s8 = scalar_select 0, %s7, %s5
  loop: start=0, step=1, limit=4
  $region2: #{mbfd_forward.5} parent=0 // loop_pre_header
    _
  $region3: #{mbfd_forward.5} parent=0 // loop_header
    %s10 = sphi 0, %s14
    %p11 = scmp.ge.s32.totalorder %s10, 4
    %s20 = sphi 0, %s22
    %s23 = sphi 0, %s20
    %s24 = sphi 0, %s23
    %s40 = sphi 0, %s24
    %s44 = sphi 0, %s44
    %s46 = sphi 0, %s44
    %s47 = sphi 0, %s46
    %s61 = sphi 0, %s47
    %s65 = sphi 0, %s65
    %s67 = sphi 0, %s65
    %s68 = sphi 0, %s67
    %s82 = sphi 0, %s68
    %s86 = sphi 0, %s86
    %s88 = sphi 0, %s86
    %s89 = sphi 0, %s88
    %s103 = sphi 0, %s89
    %s109 = sphi 0, %s111
    %s112 = sphi 0, %s109
    %s113 = sphi 0, %s112
    %s129 = sphi 0, %s113
  $region4: #{mbfd_forward.5} parent=0 // loop_header_branch
    %13 = sbr.rel (%p11) target = $region8
  $region5: #{mbfd_forward.5} parent=0 // loop_body
    %s15 = ssub.s32 %s10, 1
    %s16 = ssub.s32 %s10, 2
    %s17 = sadd.s32 %s10, 1
    %s18 = ssub.s32 %s10, %s17
    %p19 = scmp.eq.s32.totalorder %s18, 0
    %s21 = sadd.s32 %s20, 1
    %s22 = scalar_select %p19, %s20, %s21
    %p25 = pneg %p19
    %p26 = scmp.eq.s32.totalorder %s10, 1
    %p27 = por %p25, %p26
    %p28 = scmp.ne.s32.totalorder %s20, %s23
    %p29 = scmp.eq.s32.totalorder %s10, 0
    %p30 = por %p28, %p29
    %p31 = scmp.ne.s32.totalorder %s20, %s23
    %p32 = scmp.eq.s32.totalorder %s15, 1
    %p33 = por %p31, %p32
    %p34 = scmp.ne.s32.totalorder %s23, %s24
    %p35 = scmp.eq.s32.totalorder %s15, 0
    %p36 = por %p34, %p35
    %p37 = scmp.ne.s32.totalorder %s23, %s24
    %p38 = scmp.eq.s32.totalorder %s16, 1
    %p39 = por %p37, %p38
    %p41 = scmp.ne.s32.totalorder %s24, %s40
    %p42 = scmp.eq.s32.totalorder %s16, 0
    %p43 = por %p41, %p42
    %s45 = sadd.s32 %s44, 1
    %p48 = scmp.eq.s32.totalorder %s10, 1
    %p49 = scmp.ne.s32.totalorder %s44, %s46
    %p50 = scmp.eq.s32.totalorder %s10, 0
    %p51 = por %p49, %p50
    %p52 = scmp.ne.s32.totalorder %s44, %s46
    %p53 = scmp.eq.s32.totalorder %s15, 1
    %p54 = por %p52, %p53
    %p55 = scmp.ne.s32.totalorder %s46, %s47
    %p56 = scmp.eq.s32.totalorder %s15, 0
    %p57 = por %p55, %p56
    %p58 = scmp.ne.s32.totalorder %s46, %s47
    %p59 = scmp.eq.s32.totalorder %s16, 1
    %p60 = por %p58, %p59
    %p62 = scmp.ne.s32.totalorder %s47, %s61
    %p63 = scmp.eq.s32.totalorder %s16, 0
    %p64 = por %p62, %p63
    %s66 = sadd.s32 %s65, 1
    %p69 = scmp.eq.s32.totalorder %s10, 1
    %p70 = scmp.ne.s32.totalorder %s65, %s67
    %p71 = scmp.eq.s32.totalorder %s10, 0
    %p72 = por %p70, %p71
    %p73 = scmp.ne.s32.totalorder %s65, %s67
    %p74 = scmp.eq.s32.totalorder %s15, 1
    %p75 = por %p73, %p74
    %p76 = scmp.ne.s32.totalorder %s67, %s68
    %p77 = scmp.eq.s32.totalorder %s15, 0
    %p78 = por %p76, %p77
    %p79 = scmp.ne.s32.totalorder %s67, %s68
    %p80 = scmp.eq.s32.totalorder %s16, 1
    %p81 = por %p79, %p80
    %p83 = scmp.ne.s32.totalorder %s68, %s82
    %p84 = scmp.eq.s32.totalorder %s16, 0
    %p85 = por %p83, %p84
    %s87 = sadd.s32 %s86, 1
    %p90 = scmp.eq.s32.totalorder %s10, 1
    %p91 = scmp.ne.s32.totalorder %s86, %s88
    %p92 = scmp.eq.s32.totalorder %s10, 0
    %p93 = por %p91, %p92
    %p94 = scmp.ne.s32.totalorder %s86, %s88
    %p95 = scmp.eq.s32.totalorder %s15, 1
    %p96 = por %p94, %p95
    %p97 = scmp.ne.s32.totalorder %s88, %s89
    %p98 = scmp.eq.s32.totalorder %s15, 0
    %p99 = por %p97, %p98
    %p100 = scmp.ne.s32.totalorder %s88, %s89
    %p101 = scmp.eq.s32.totalorder %s16, 1
    %p102 = por %p100, %p101
    %p104 = scmp.ne.s32.totalorder %s89, %s103
    %p105 = scmp.eq.s32.totalorder %s16, 0
    %p106 = por %p104, %p105
    %s107 = ssub.s32 %s10, %s17
    %p108 = scmp.eq.s32.totalorder %s107, 0
    %s110 = sadd.s32 %s109, 1
    %s111 = scalar_select %p108, %s109, %s110
    %p114 = pneg %p108
    %p115 = scmp.eq.s32.totalorder %s10, 1
    %p116 = por %p114, %p115
    %p117 = scmp.ne.s32.totalorder %s109, %s112
    %p118 = scmp.eq.s32.totalorder %s10, 0
    %p119 = por %p117, %p118
    %p120 = scmp.ne.s32.totalorder %s109, %s112
    %p121 = scmp.eq.s32.totalorder %s15, 1
    %p122 = por %p120, %p121
    %p123 = scmp.ne.s32.totalorder %s112, %s113
    %p124 = scmp.eq.s32.totalorder %s15, 0
    %p125 = por %p123, %p124
    %p126 = scmp.ne.s32.totalorder %s112, %s113
    %p127 = scmp.eq.s32.totalorder %s16, 1
    %p128 = por %p126, %p127
    %p130 = scmp.ne.s32.totalorder %s113, %s129
    %p131 = scmp.eq.s32.totalorder %s16, 0
    %p132 = por %p130, %p131
    %p133 = scmp.le.s32.totalorder 1, %s10
    %p134 = scmp.lt.s32.totalorder %s10, 3
    %p135 = pnand %p133, %p134
    %p136 = pneg %p135
    // Predicated region
    $region9: #{mbfd_forward.5} parent=5 // pred_check
      _
    $region10: #{mbfd_forward.5} parent=5 // pred_check_branch
      %138 = sbr.rel (%p135) target = $region12
    $region11: #{mbfd_forward.5} parent=5 // pred_region
      %s139 = ssub.s32 %s10, 1
      // Predicated region
      $region13: #{mbfd_forward.5} parent=11 // pred_check
        %p140 = pneg %p57
      $region14: #{mbfd_forward.5} parent=11 // pred_check_branch
        %142 = sbr.rel (%p140) target = $region16
      $region15: #{mbfd_forward.5} parent=11 // pred_region
        _
      $region16: #{mbfd_forward.5} parent=11 // pred_fallthru
        _
      // Predicated region
      $region17: #{mbfd_forward.5} parent=11 // pred_check
        %p143 = pneg %p78
      $region18: #{mbfd_forward.5} parent=11 // pred_check_branch
        %145 = sbr.rel (%p143) target = $region20
      $region19: #{mbfd_forward.5} parent=11 // pred_region
        _
      $region20: #{mbfd_forward.5} parent=11 // pred_fallthru
        _
      // Predicated region
      $region21: #{mbfd_forward.5} parent=11 // pred_check
        %p146 = pneg %p99
      $region22: #{mbfd_forward.5} parent=11 // pred_check_branch
        %148 = sbr.rel (%p146) target = $region24
      $region23: #{mbfd_forward.5} parent=11 // pred_region
        _
      $region24: #{mbfd_forward.5} parent=11 // pred_fallthru
        _
    $region12: #{mbfd_forward.5} parent=5 // pred_fallthru
      _
    %p149 = scmp.lt.s32.totalorder %s10, 2
    // Predicated region
    $region25: #{mbfd_forward.5} parent=5 // pred_check
      %p150 = pneg %p149
    $region26: #{mbfd_forward.5} parent=5 // pred_check_branch
      %152 = sbr.rel (%p150) target = $region28
    $region27: #{mbfd_forward.5} parent=5 // pred_region
      // Predicated region
      $region29: #{mbfd_forward.5} parent=27 // pred_check
        %p153 = pneg %p30
      $region30: #{mbfd_forward.5} parent=27 // pred_check_branch
        %155 = sbr.rel (%p153) target = $region32
      $region31: #{mbfd_forward.5} parent=27 // pred_region
        %s156 = smul.u32 8, %s10
        %p157 = scmp.lt.s32.totalorder %s156, 15
        %s158 = scalar_select %p157, %s156, 15
        %s159 = smul.addr %s158, 8
        %s160 = scalar_lea.vmem %s0, %s159
        %s161 = smul.u32 8, %s10
      $region32: #{mbfd_forward.5} parent=27 // pred_fallthru
        _
    $region28: #{mbfd_forward.5} parent=5 // pred_fallthru
      _
    %p162 = scmp.le.s32.totalorder 1, %s10
    %p163 = scmp.lt.s32.totalorder %s10, 3
    %p164 = pnand %p162, %p163
    %p165 = pneg %p164
    // Predicated region
    $region33: #{mbfd_forward.5} parent=5 // pred_check
      _
    $region34: #{mbfd_forward.5} parent=5 // pred_check_branch
      %167 = sbr.rel (%p164) target = $region36
    $region35: #{mbfd_forward.5} parent=5 // pred_region
      %s168 = ssub.s32 %s10, 1
      %s169 = smul.u32 8, %s15
      %p170 = scmp.lt.s32.totalorder %s169, 15
      %s171 = scalar_select %p170, %s169, 15
      %s172 = smul.addr %s171, 8
      %s173 = scalar_lea.vmem %s0, %s172
      %p174 = pneg %p36
      %p175 = pneg %p33
      %p176 = pneg %p57
      %p177 = pneg %p54
      %p178 = pneg %p78
      %p179 = pneg %p75
      %p180 = pneg %p99
      %p181 = pneg %p96
      %p182 = pneg %p125
      %p183 = pneg %p122
      %s184 = smul.u32 8, %s15
      %p185 = scmp.lt.s32.totalorder %s184, 15
      %s186 = scalar_select %p185, %s184, 15
      %s187 = smul.addr %s186, 8
      %s188 = scalar_lea.vmem %s4, %s187
      %s189 = smul.u32 8, %s15
      %p190 = scmp.lt.s32.totalorder %s189, 15
      %s191 = scalar_select %p190, %s189, 15
      %s192 = smul.addr %s191, 8
      %s193 = scalar_lea.vmem %s0, %s192
      %s194 = smul.u32 8, %s15
      %s195 = smul.u32 8, %s15
      %p196 = scmp.lt.s32.totalorder %s195, 15
      %s197 = scalar_select %p196, %s195, 15
      %s198 = smul.addr %s197, 8
      %s199 = scalar_lea.vmem %s4, %s198
      %s200 = smul.u32 8, %s15
      %v201 = vld [vmem:[%s193] sm:$0xff]
      %v202 = vld [vmem:[%s193 + $0x8] sm:$0xff]
      %v203 = vld [vmem:[%s193 + $0x10] sm:$0xff]
      %v204 = vld [vmem:[%s193 + $0x18] sm:$0xff]
      %v205 = vld [vmem:[%s193 + $0x20] sm:$0xff]
      %v206 = vld [vmem:[%s193 + $0x28] sm:$0xff]
      %v207 = vld [vmem:[%s193 + $0x30] sm:$0xff]
      %v208 = vld [vmem:[%s193 + $0x38] sm:$0xff]
      %v209 = vld [vmem:[%s1] sm:$0xff]
      %v210 = vld [vmem:[%s1 + $0x8] sm:$0xff]
      %v211 = vld [vmem:[%s1 + $0x10] sm:$0xff]
      %v212 = vld [vmem:[%s1 + $0x18] sm:$0xff]
      %v213 = vld [vmem:[%s1 + $0x20] sm:$0xff]
      %v214 = vld [vmem:[%s1 + $0x28] sm:$0xff]
      %v215 = vld [vmem:[%s1 + $0x30] sm:$0xff]
      %v216 = vld [vmem:[%s1 + $0x38] sm:$0xff]
      %v217 = vld [vmem:[%s1 + $0x40] sm:$0xff]
      %vm218 = vcmask 588800
      %v220 = vsel %vm218, %v201, 0
      %v223 = vsel %vm218, %v202, 0
      %v226 = vsel %vm218, %v203, 0
      %v229 = vsel %vm218, %v204, 0
      %v232 = vsel %vm218, %v205, 0
      %v235 = vsel %vm218, %v206, 0
      %v238 = vsel %vm218, %v207, 0
      %v241 = vsel %vm218, %v208, 0
      %243 = vmatpush.msra.mxu0 0.0
      %244 = vmatpush.msra.mxu0 0.0
      %245 = vmatpush.msra.mxu0 0.0
      %246 = vmatpush.msra.mxu0 0.0
      %247 = vmatpush.msra.mxu0 0.0
      %248 = vmatpush.msra.mxu0 0.0
      %249 = vmatpush.msra.mxu0 0.0
      %v250 = vand.u32 %v217, 4294901760
      %251 = vmatpush.msra.mxu0 %v250
      %v252 = vand.u32 %v216, 4294901760
      %253 = vmatpush.msra.mxu0 %v252
      %v254 = vand.u32 %v215, 4294901760
      %255 = vmatpush.msra.mxu0 %v254
      %v256 = vand.u32 %v214, 4294901760
      %257 = vmatpush.msra.mxu0 %v256
      %v258 = vand.u32 %v213, 4294901760
      %259 = vmatpush.msra.mxu0 %v258
      %v260 = vand.u32 %v212, 4294901760
      %261 = vmatpush.msra.mxu0 %v260
      %v262 = vand.u32 %v211, 4294901760
      %263 = vmatpush.msra.mxu0 %v262
      %v264 = vand.u32 %v210, 4294901760
      %265 = vmatpush.msra.mxu0 %v264
      %v266 = vand.u32 %v209, 4294901760
      %267 = vmatpush.msra.mxu0 %v266
      %v268 = vand.u32 %v220, 4294901760
      %v269 = vsub.f32 %v220, %v268
      %v270 = vand.u32 %v269, 4294901760
      %v271 = vsub.f32 %v269, %v270
      %v272 = vand.u32 %v271, 4294901760
      %273 = vmatmul.f32.gmra.mxu0 %v272
      %v274 = vpop.f32.mrf.mxu0
      %v275 = vadd.f32 0.0, %v274
      %v276 = vand.u32 %v223, 4294901760
      %v277 = vsub.f32 %v223, %v276
      %v278 = vand.u32 %v277, 4294901760
      %v279 = vsub.f32 %v277, %v278
      %v280 = vand.u32 %v279, 4294901760
      %281 = vmatmul.f32.gmra.mxu0 %v280
      %v282 = vpop.f32.mrf.mxu0
      %v283 = vadd.f32 0.0, %v282
      %v284 = vand.u32 %v226, 4294901760
      %v285 = vsub.f32 %v226, %v284
      %v286 = vand.u32 %v285, 4294901760
      %v287 = vsub.f32 %v285, %v286
      %v288 = vand.u32 %v287, 4294901760
      %289 = vmatmul.f32.gmra.mxu0 %v288
      %v290 = vpop.f32.mrf.mxu0
      %v291 = vadd.f32 0.0, %v290
      %v292 = vand.u32 %v229, 4294901760
      %v293 = vsub.f32 %v229, %v292
      %v294 = vand.u32 %v293, 4294901760
      %v295 = vsub.f32 %v293, %v294
      %v296 = vand.u32 %v295, 4294901760
      %297 = vmatmul.f32.gmra.mxu0 %v296
      %v298 = vpop.f32.mrf.mxu0
      %v299 = vadd.f32 0.0, %v298
      %v300 = vand.u32 %v232, 4294901760
      %v301 = vsub.f32 %v232, %v300
      %v302 = vand.u32 %v301, 4294901760
      %v303 = vsub.f32 %v301, %v302
      %v304 = vand.u32 %v303, 4294901760
      %305 = vmatmul.f32.gmra.mxu0 %v304
      %v306 = vpop.f32.mrf.mxu0
      %v307 = vadd.f32 0.0, %v306
      %v308 = vand.u32 %v235, 4294901760
      %v309 = vsub.f32 %v235, %v308
      %v310 = vand.u32 %v309, 4294901760
      %v311 = vsub.f32 %v309, %v310
      %v312 = vand.u32 %v311, 4294901760
      %313 = vmatmul.f32.gmra.mxu0 %v312
      %v314 = vpop.f32.mrf.mxu0
      %v315 = vadd.f32 0.0, %v314
      %v316 = vand.u32 %v238, 4294901760
      %v317 = vsub.f32 %v238, %v316
      %v318 = vand.u32 %v317, 4294901760
      %v319 = vsub.f32 %v317, %v318
      %v320 = vand.u32 %v319, 4294901760
      %321 = vmatmul.f32.gmra.mxu0 %v320
      %v322 = vpop.f32.mrf.mxu0
      %v323 = vadd.f32 0.0, %v322
      %v324 = vand.u32 %v241, 4294901760
      %v325 = vsub.f32 %v241, %v324
      %v326 = vand.u32 %v325, 4294901760
      %v327 = vsub.f32 %v325, %v326
      %v328 = vand.u32 %v327, 4294901760
      %329 = vmatmul.f32.gmra.mxu0 %v328
      %v330 = vpop.f32.mrf.mxu0
      %v331 = vadd.f32 0.0, %v330
      %332 = vdwg.mxu0
      %333 = vmatpush.msra.mxu0 0.0
      %334 = vmatpush.msra.mxu0 0.0
      %335 = vmatpush.msra.mxu0 0.0
      %336 = vmatpush.msra.mxu0 0.0
      %337 = vmatpush.msra.mxu0 0.0
      %338 = vmatpush.msra.mxu0 0.0
      %339 = vmatpush.msra.mxu0 0.0
      %v340 = vand.u32 %v217, 4294901760
      %v341 = vsub.f32 %v217, %v340
      %v342 = vand.u32 %v341, 4294901760
      %v343 = vsub.f32 %v341, %v342
      %v344 = vand.u32 %v343, 4294901760
      %345 = vmatpush.msra.mxu0 %v344
      %v346 = vand.u32 %v216, 4294901760
      %v347 = vsub.f32 %v216, %v346
      %v348 = vand.u32 %v347, 4294901760
      %v349 = vsub.f32 %v347, %v348
      %v350 = vand.u32 %v349, 4294901760
      %351 = vmatpush.msra.mxu0 %v350
      %v352 = vand.u32 %v215, 4294901760
      %v353 = vsub.f32 %v215, %v352
      %v354 = vand.u32 %v353, 4294901760
      %v355 = vsub.f32 %v353, %v354
      %v356 = vand.u32 %v355, 4294901760
      %357 = vmatpush.msra.mxu0 %v356
      %v358 = vand.u32 %v214, 4294901760
      %v359 = vsub.f32 %v214, %v358
      %v360 = vand.u32 %v359, 4294901760
      %v361 = vsub.f32 %v359, %v360
      %v362 = vand.u32 %v361, 4294901760
      %363 = vmatpush.msra.mxu0 %v362
      %v364 = vand.u32 %v213, 4294901760
      %v365 = vsub.f32 %v213, %v364
      %v366 = vand.u32 %v365, 4294901760
      %v367 = vsub.f32 %v365, %v366
      %v368 = vand.u32 %v367, 4294901760
      %369 = vmatpush.msra.mxu0 %v368
      %v370 = vand.u32 %v212, 4294901760
      %v371 = vsub.f32 %v212, %v370
      %v372 = vand.u32 %v371, 4294901760
      %v373 = vsub.f32 %v371, %v372
      %v374 = vand.u32 %v373, 4294901760
      %375 = vmatpush.msra.mxu0 %v374
      %v376 = vand.u32 %v211, 4294901760
      %v377 = vsub.f32 %v211, %v376
      %v378 = vand.u32 %v377, 4294901760
      %v379 = vsub.f32 %v377, %v378
      %v380 = vand.u32 %v379, 4294901760
      %381 = vmatpush.msra.mxu0 %v380
      %v382 = vand.u32 %v210, 4294901760
      %v383 = vsub.f32 %v210, %v382
      %v384 = vand.u32 %v383, 4294901760
      %v385 = vsub.f32 %v383, %v384
      %v386 = vand.u32 %v385, 4294901760
      %387 = vmatpush.msra.mxu0 %v386
      %v388 = vand.u32 %v209, 4294901760
      %v389 = vsub.f32 %v209, %v388
      %v390 = vand.u32 %v389, 4294901760
      %v391 = vsub.f32 %v389, %v390
      %v392 = vand.u32 %v391, 4294901760
      %393 = vmatpush.msra.mxu0 %v392
      %v394 = vand.u32 %v220, 4294901760
      %395 = vmatmul.f32.gmra.mxu0 %v394
      %v396 = vpop.f32.mrf.mxu0
      %v397 = vadd.f32 %v275, %v396
      %v398 = vand.u32 %v223, 4294901760
      %399 = vmatmul.f32.gmra.mxu0 %v398
      %v400 = vpop.f32.mrf.mxu0
      %v401 = vadd.f32 %v283, %v400
      %v402 = vand.u32 %v226, 4294901760
      %403 = vmatmul.f32.gmra.mxu0 %v402
      %v404 = vpop.f32.mrf.mxu0
      %v405 = vadd.f32 %v291, %v404
      %v406 = vand.u32 %v229, 4294901760
      %407 = vmatmul.f32.gmra.mxu0 %v406
      %v408 = vpop.f32.mrf.mxu0
      %v409 = vadd.f32 %v299, %v408
      %v410 = vand.u32 %v232, 4294901760
      %411 = vmatmul.f32.gmra.mxu0 %v410
      %v412 = vpop.f32.mrf.mxu0
      %v413 = vadd.f32 %v307, %v412
      %v414 = vand.u32 %v235, 4294901760
      %415 = vmatmul.f32.gmra.mxu0 %v414
      %v416 = vpop.f32.mrf.mxu0
      %v417 = vadd.f32 %v315, %v416
      %v418 = vand.u32 %v238, 4294901760
      %419 = vmatmul.f32.gmra.mxu0 %v418
      %v420 = vpop.f32.mrf.mxu0
      %v421 = vadd.f32 %v323, %v420
      %v422 = vand.u32 %v241, 4294901760
      %423 = vmatmul.f32.gmra.mxu0 %v422
      %v424 = vpop.f32.mrf.mxu0
      %v425 = vadd.f32 %v331, %v424
      %426 = vdwg.mxu0
      %427 = vmatpush.msra.mxu0 0.0
      %428 = vmatpush.msra.mxu0 0.0
      %429 = vmatpush.msra.mxu0 0.0
      %430 = vmatpush.msra.mxu0 0.0
      %431 = vmatpush.msra.mxu0 0.0
      %432 = vmatpush.msra.mxu0 0.0
      %433 = vmatpush.msra.mxu0 0.0
      %v434 = vand.u32 %v217, 4294901760
      %v435 = vsub.f32 %v217, %v434
      %436 = vmatpush.msra.mxu0 %v435
      %v437 = vand.u32 %v216, 4294901760
      %v438 = vsub.f32 %v216, %v437
      %439 = vmatpush.msra.mxu0 %v438
      %v440 = vand.u32 %v215, 4294901760
      %v441 = vsub.f32 %v215, %v440
      %442 = vmatpush.msra.mxu0 %v441
      %v443 = vand.u32 %v214, 4294901760
      %v444 = vsub.f32 %v214, %v443
      %445 = vmatpush.msra.mxu0 %v444
      %v446 = vand.u32 %v213, 4294901760
      %v447 = vsub.f32 %v213, %v446
      %448 = vmatpush.msra.mxu0 %v447
      %v449 = vand.u32 %v212, 4294901760
      %v450 = vsub.f32 %v212, %v449
      %451 = vmatpush.msra.mxu0 %v450
      %v452 = vand.u32 %v211, 4294901760
      %v453 = vsub.f32 %v211, %v452
      %454 = vmatpush.msra.mxu0 %v453
      %v455 = vand.u32 %v210, 4294901760
      %v456 = vsub.f32 %v210, %v455
      %457 = vmatpush.msra.mxu0 %v456
      %v458 = vand.u32 %v209, 4294901760
      %v459 = vsub.f32 %v209, %v458
      %460 = vmatpush.msra.mxu0 %v459
      %v461 = vand.u32 %v220, 4294901760
      %v462 = vsub.f32 %v220, %v461
      %463 = vmatmul.f32.gmra.mxu0 %v462
      %v464 = vpop.f32.mrf.mxu0
      %v465 = vadd.f32 %v397, %v464
      %v466 = vand.u32 %v223, 4294901760
      %v467 = vsub.f32 %v223, %v466
      %468 = vmatmul.f32.gmra.mxu0 %v467
      %v469 = vpop.f32.mrf.mxu0
      %v470 = vadd.f32 %v401, %v469
      %v471 = vand.u32 %v226, 4294901760
      %v472 = vsub.f32 %v226, %v471
      %473 = vmatmul.f32.gmra.mxu0 %v472
      %v474 = vpop.f32.mrf.mxu0
      %v475 = vadd.f32 %v405, %v474
      %v476 = vand.u32 %v229, 4294901760
      %v477 = vsub.f32 %v229, %v476
      %478 = vmatmul.f32.gmra.mxu0 %v477
      %v479 = vpop.f32.mrf.mxu0
      %v480 = vadd.f32 %v409, %v479
      %v481 = vand.u32 %v232, 4294901760
      %v482 = vsub.f32 %v232, %v481
      %483 = vmatmul.f32.gmra.mxu0 %v482
      %v484 = vpop.f32.mrf.mxu0
      %v485 = vadd.f32 %v413, %v484
      %v486 = vand.u32 %v235, 4294901760
      %v487 = vsub.f32 %v235, %v486
      %488 = vmatmul.f32.gmra.mxu0 %v487
      %v489 = vpop.f32.mrf.mxu0
      %v490 = vadd.f32 %v417, %v489
      %v491 = vand.u32 %v238, 4294901760
      %v492 = vsub.f32 %v238, %v491
      %493 = vmatmul.f32.gmra.mxu0 %v492
      %v494 = vpop.f32.mrf.mxu0
      %v495 = vadd.f32 %v421, %v494
      %v496 = vand.u32 %v241, 4294901760
      %v497 = vsub.f32 %v241, %v496
      %498 = vmatmul.f32.gmra.mxu0 %v497
      %v499 = vpop.f32.mrf.mxu0
      %v500 = vadd.f32 %v425, %v499
      %501 = vdwg.mxu0
      %502 = vmatpush.msra.mxu0 0.0
      %503 = vmatpush.msra.mxu0 0.0
      %504 = vmatpush.msra.mxu0 0.0
      %505 = vmatpush.msra.mxu0 0.0
      %506 = vmatpush.msra.mxu0 0.0
      %507 = vmatpush.msra.mxu0 0.0
      %508 = vmatpush.msra.mxu0 0.0
      %v509 = vand.u32 %v217, 4294901760
      %510 = vmatpush.msra.mxu0 %v509
      %v511 = vand.u32 %v216, 4294901760
      %512 = vmatpush.msra.mxu0 %v511
      %v513 = vand.u32 %v215, 4294901760
      %514 = vmatpush.msra.mxu0 %v513
      %v515 = vand.u32 %v214, 4294901760
      %516 = vmatpush.msra.mxu0 %v515
      %v517 = vand.u32 %v213, 4294901760
      %518 = vmatpush.msra.mxu0 %v517
      %v519 = vand.u32 %v212, 4294901760
      %520 = vmatpush.msra.mxu0 %v519
      %v521 = vand.u32 %v211, 4294901760
      %522 = vmatpush.msra.mxu0 %v521
      %v523 = vand.u32 %v210, 4294901760
      %524 = vmatpush.msra.mxu0 %v523
      %v525 = vand.u32 %v209, 4294901760
      %526 = vmatpush.msra.mxu0 %v525
      %v527 = vand.u32 %v220, 4294901760
      %v528 = vsub.f32 %v220, %v527
      %v529 = vand.u32 %v528, 4294901760
      %530 = vmatmul.f32.gmra.mxu0 %v529
      %v531 = vpop.f32.mrf.mxu0
      %v532 = vadd.f32 %v465, %v531
      %v533 = vand.u32 %v223, 4294901760
      %v534 = vsub.f32 %v223, %v533
      %v535 = vand.u32 %v534, 4294901760
      %536 = vmatmul.f32.gmra.mxu0 %v535
      %v537 = vpop.f32.mrf.mxu0
      %v538 = vadd.f32 %v470, %v537
      %v539 = vand.u32 %v226, 4294901760
      %v540 = vsub.f32 %v226, %v539
      %v541 = vand.u32 %v540, 4294901760
      %542 = vmatmul.f32.gmra.mxu0 %v541
      %v543 = vpop.f32.mrf.mxu0
      %v544 = vadd.f32 %v475, %v543
      %v545 = vand.u32 %v229, 4294901760
      %v546 = vsub.f32 %v229, %v545
      %v547 = vand.u32 %v546, 4294901760
      %548 = vmatmul.f32.gmra.mxu0 %v547
      %v549 = vpop.f32.mrf.mxu0
      %v550 = vadd.f32 %v480, %v549
      %v551 = vand.u32 %v232, 4294901760
      %v552 = vsub.f32 %v232, %v551
      %v553 = vand.u32 %v552, 4294901760
      %554 = vmatmul.f32.gmra.mxu0 %v553
      %v555 = vpop.f32.mrf.mxu0
      %v556 = vadd.f32 %v485, %v555
      %v557 = vand.u32 %v235, 4294901760
      %v558 = vsub.f32 %v235, %v557
      %v559 = vand.u32 %v558, 4294901760
      %560 = vmatmul.f32.gmra.mxu0 %v559
      %v561 = vpop.f32.mrf.mxu0
      %v562 = vadd.f32 %v490, %v561
      %v563 = vand.u32 %v238, 4294901760
      %v564 = vsub.f32 %v238, %v563
      %v565 = vand.u32 %v564, 4294901760
      %566 = vmatmul.f32.gmra.mxu0 %v565
      %v567 = vpop.f32.mrf.mxu0
      %v568 = vadd.f32 %v495, %v567
      %v569 = vand.u32 %v241, 4294901760
      %v570 = vsub.f32 %v241, %v569
      %v571 = vand.u32 %v570, 4294901760
      %572 = vmatmul.f32.gmra.mxu0 %v571
      %v573 = vpop.f32.mrf.mxu0
      %v574 = vadd.f32 %v500, %v573
      %575 = vdwg.mxu0
      %576 = vmatpush.msra.mxu0 0.0
      %577 = vmatpush.msra.mxu0 0.0
      %578 = vmatpush.msra.mxu0 0.0
      %579 = vmatpush.msra.mxu0 0.0
      %580 = vmatpush.msra.mxu0 0.0
      %581 = vmatpush.msra.mxu0 0.0
      %582 = vmatpush.msra.mxu0 0.0
      %v583 = vand.u32 %v217, 4294901760
      %v584 = vsub.f32 %v217, %v583
      %v585 = vand.u32 %v584, 4294901760
      %586 = vmatpush.msra.mxu0 %v585
      %v587 = vand.u32 %v216, 4294901760
      %v588 = vsub.f32 %v216, %v587
      %v589 = vand.u32 %v588, 4294901760
      %590 = vmatpush.msra.mxu0 %v589
      %v591 = vand.u32 %v215, 4294901760
      %v592 = vsub.f32 %v215, %v591
      %v593 = vand.u32 %v592, 4294901760
      %594 = vmatpush.msra.mxu0 %v593
      %v595 = vand.u32 %v214, 4294901760
      %v596 = vsub.f32 %v214, %v595
      %v597 = vand.u32 %v596, 4294901760
      %598 = vmatpush.msra.mxu0 %v597
      %v599 = vand.u32 %v213, 4294901760
      %v600 = vsub.f32 %v213, %v599
      %v601 = vand.u32 %v600, 4294901760
      %602 = vmatpush.msra.mxu0 %v601
      %v603 = vand.u32 %v212, 4294901760
      %v604 = vsub.f32 %v212, %v603
      %v605 = vand.u32 %v604, 4294901760
      %606 = vmatpush.msra.mxu0 %v605
      %v607 = vand.u32 %v211, 4294901760
      %v608 = vsub.f32 %v211, %v607
      %v609 = vand.u32 %v608, 4294901760
      %610 = vmatpush.msra.mxu0 %v609
      %v611 = vand.u32 %v210, 4294901760
      %v612 = vsub.f32 %v210, %v611
      %v613 = vand.u32 %v612, 4294901760
      %614 = vmatpush.msra.mxu0 %v613
      %v615 = vand.u32 %v209, 4294901760
      %v616 = vsub.f32 %v209, %v615
      %v617 = vand.u32 %v616, 4294901760
      %618 = vmatpush.msra.mxu0 %v617
      %v619 = vand.u32 %v220, 4294901760
      %620 = vmatmul.f32.gmra.mxu0 %v619
      %v621 = vpop.f32.mrf.mxu0
      %v622 = vadd.f32 %v532, %v621
      %v623 = vand.u32 %v223, 4294901760
      %624 = vmatmul.f32.gmra.mxu0 %v623
      %v625 = vpop.f32.mrf.mxu0
      %v626 = vadd.f32 %v538, %v625
      %v627 = vand.u32 %v226, 4294901760
      %628 = vmatmul.f32.gmra.mxu0 %v627
      %v629 = vpop.f32.mrf.mxu0
      %v630 = vadd.f32 %v544, %v629
      %v631 = vand.u32 %v229, 4294901760
      %632 = vmatmul.f32.gmra.mxu0 %v631
      %v633 = vpop.f32.mrf.mxu0
      %v634 = vadd.f32 %v550, %v633
      %v635 = vand.u32 %v232, 4294901760
      %636 = vmatmul.f32.gmra.mxu0 %v635
      %v637 = vpop.f32.mrf.mxu0
      %v638 = vadd.f32 %v556, %v637
      %v639 = vand.u32 %v235, 4294901760
      %640 = vmatmul.f32.gmra.mxu0 %v639
      %v641 = vpop.f32.mrf.mxu0
      %v642 = vadd.f32 %v562, %v641
      %v643 = vand.u32 %v238, 4294901760
      %644 = vmatmul.f32.gmra.mxu0 %v643
      %v645 = vpop.f32.mrf.mxu0
      %v646 = vadd.f32 %v568, %v645
      %v647 = vand.u32 %v241, 4294901760
      %648 = vmatmul.f32.gmra.mxu0 %v647
      %v649 = vpop.f32.mrf.mxu0
      %v650 = vadd.f32 %v574, %v649
      %651 = vdwg.mxu0
      %652 = vmatpush.msra.mxu0 0.0
      %653 = vmatpush.msra.mxu0 0.0
      %654 = vmatpush.msra.mxu0 0.0
      %655 = vmatpush.msra.mxu0 0.0
      %656 = vmatpush.msra.mxu0 0.0
      %657 = vmatpush.msra.mxu0 0.0
      %658 = vmatpush.msra.mxu0 0.0
      %v659 = vand.u32 %v217, 4294901760
      %660 = vmatpush.msra.mxu0 %v659
      %v661 = vand.u32 %v216, 4294901760
      %662 = vmatpush.msra.mxu0 %v661
      %v663 = vand.u32 %v215, 4294901760
      %664 = vmatpush.msra.mxu0 %v663
      %v665 = vand.u32 %v214, 4294901760
      %666 = vmatpush.msra.mxu0 %v665
      %v667 = vand.u32 %v213, 4294901760
      %668 = vmatpush.msra.mxu0 %v667
      %v669 = vand.u32 %v212, 4294901760
      %670 = vmatpush.msra.mxu0 %v669
      %v671 = vand.u32 %v211, 4294901760
      %672 = vmatpush.msra.mxu0 %v671
      %v673 = vand.u32 %v210, 4294901760
      %674 = vmatpush.msra.mxu0 %v673
      %v675 = vand.u32 %v209, 4294901760
      %676 = vmatpush.msra.mxu0 %v675
      %v677 = vand.u32 %v220, 4294901760
      %678 = vmatmul.f32.gmra.mxu0 %v677
      %v679 = vpop.f32.mrf.mxu0
      %v680 = vadd.f32 %v622, %v679
      %v681 = vand.u32 %v223, 4294901760
      %682 = vmatmul.f32.gmra.mxu0 %v681
      %v683 = vpop.f32.mrf.mxu0
      %v684 = vadd.f32 %v626, %v683
      %v685 = vand.u32 %v226, 4294901760
      %686 = vmatmul.f32.gmra.mxu0 %v685
      %v687 = vpop.f32.mrf.mxu0
      %v688 = vadd.f32 %v630, %v687
      %v689 = vand.u32 %v229, 4294901760
      %690 = vmatmul.f32.gmra.mxu0 %v689
      %v691 = vpop.f32.mrf.mxu0
      %v692 = vadd.f32 %v634, %v691
      %v693 = vand.u32 %v232, 4294901760
      %694 = vmatmul.f32.gmra.mxu0 %v693
      %v695 = vpop.f32.mrf.mxu0
      %v696 = vadd.f32 %v638, %v695
      %v697 = vand.u32 %v235, 4294901760
      %698 = vmatmul.f32.gmra.mxu0 %v697
      %v699 = vpop.f32.mrf.mxu0
      %v700 = vadd.f32 %v642, %v699
      %v701 = vand.u32 %v238, 4294901760
      %702 = vmatmul.f32.gmra.mxu0 %v701
      %v703 = vpop.f32.mrf.mxu0
      %v704 = vadd.f32 %v646, %v703
      %v705 = vand.u32 %v241, 4294901760
      %706 = vmatmul.f32.gmra.mxu0 %v705
      %v707 = vpop.f32.mrf.mxu0
      %v708 = vadd.f32 %v650, %v707
      %709 = vdwg.mxu0
      %v710 = vlaneseq
      %v711 = vand.u32 %v710, 127
      %vm712 = vcmp.lt.s32.totalorder %v711, 4
      %v713 = vsel %vm712, 1, 0
      %v714 = vcvt.s32.f32 %v713
      %v715 = vsub.f32 1.0, %v714
      %v716 = vmul.f32 %v680, %v714
      %v717 = vmul.f32 %v684, %v714
      %v718 = vmul.f32 %v688, %v714
      %v719 = vmul.f32 %v692, %v714
      %v720 = vmul.f32 %v696, %v714
      %v721 = vmul.f32 %v700, %v714
      %v722 = vmul.f32 %v704, %v714
      %v723 = vmul.f32 %v708, %v714
      %vm724 = vcmask 97280
      %v725 = vsel %vm724, %v716, 0.0
      %726 = vadd.xlane.f32.xlu0 %v725
      %v727 = vpop.xlane.xlu0 %726
      %v728 = vsel %vm724, %v717, 0.0
      %729 = vadd.xlane.f32.xlu0 %v728
      %v730 = vpop.xlane.xlu0 %729
      %v731 = vsel %vm724, %v718, 0.0
      %732 = vadd.xlane.f32.xlu0 %v731
      %v733 = vpop.xlane.xlu0 %732
      %v734 = vsel %vm724, %v719, 0.0
      %735 = vadd.xlane.f32.xlu0 %v734
      %v736 = vpop.xlane.xlu0 %735
      %v737 = vsel %vm724, %v720, 0.0
      %738 = vadd.xlane.f32.xlu0 %v737
      %v739 = vpop.xlane.xlu0 %738
      %v740 = vsel %vm724, %v721, 0.0
      %741 = vadd.xlane.f32.xlu0 %v740
      %v742 = vpop.xlane.xlu0 %741
      %v743 = vsel %vm724, %v722, 0.0
      %744 = vadd.xlane.f32.xlu0 %v743
      %v745 = vpop.xlane.xlu0 %744
      %v746 = vsel %vm724, %v723, 0.0
      %747 = vadd.xlane.f32.xlu0 %v746
      %v748 = vpop.xlane.xlu0 %747
      %v749 = vrcp.pop 4.0
      %v750 = vmul.f32 4.0, %v749
      %v751 = vsub.f32 1.0, %v750
      %v752 = vmul.f32 %v749, %v751
      %v753 = vadd.f32 %v749, %v752
      %vm754 = vweird.f32 %v749
      %v755 = vsel %vm754, %v749, %v753
      %v756 = vmul.f32 %v727, %v755
      %v757 = vmul.f32 %v730, %v755
      %v758 = vmul.f32 %v733, %v755
      %v759 = vmul.f32 %v736, %v755
      %v760 = vmul.f32 %v739, %v755
      %v761 = vmul.f32 %v742, %v755
      %v762 = vmul.f32 %v745, %v755
      %v763 = vmul.f32 %v748, %v755
      %v764 = vmul.f32 %v680, %v715
      %v765 = vmul.f32 %v684, %v715
      %v766 = vmul.f32 %v688, %v715
      %v767 = vmul.f32 %v692, %v715
      %v768 = vmul.f32 %v696, %v715
      %v769 = vmul.f32 %v700, %v715
      %v770 = vmul.f32 %v704, %v715
      %v771 = vmul.f32 %v708, %v715
      %v772 = vsel %vm724, %v764, 0.0
      %773 = vadd.xlane.f32.xlu0 %v772
      %v774 = vpop.xlane.xlu0 %773
      %v775 = vsel %vm724, %v765, 0.0
      %776 = vadd.xlane.f32.xlu0 %v775
      %v777 = vpop.xlane.xlu0 %776
      %v778 = vsel %vm724, %v766, 0.0
      %779 = vadd.xlane.f32.xlu0 %v778
      %v780 = vpop.xlane.xlu0 %779
      %v781 = vsel %vm724, %v767, 0.0
      %782 = vadd.xlane.f32.xlu0 %v781
      %v783 = vpop.xlane.xlu0 %782
      %v784 = vsel %vm724, %v768, 0.0
      %785 = vadd.xlane.f32.xlu0 %v784
      %v786 = vpop.xlane.xlu0 %785
      %v787 = vsel %vm724, %v769, 0.0
      %788 = vadd.xlane.f32.xlu0 %v787
      %v789 = vpop.xlane.xlu0 %788
      %v790 = vsel %vm724, %v770, 0.0
      %791 = vadd.xlane.f32.xlu0 %v790
      %v792 = vpop.xlane.xlu0 %791
      %v793 = vsel %vm724, %v771, 0.0
      %794 = vadd.xlane.f32.xlu0 %v793
      %v795 = vpop.xlane.xlu0 %794
      %v796 = vrcp.pop 8.0
      %v797 = vmul.f32 8.0, %v796
      %v798 = vsub.f32 1.0, %v797
      %v799 = vmul.f32 %v796, %v798
      %v800 = vadd.f32 %v796, %v799
      %vm801 = vweird.f32 %v796
      %v802 = vsel %vm801, %v796, %v800
      %v803 = vmul.f32 %v774, %v802
      %v804 = vmul.f32 %v777, %v802
      %v805 = vmul.f32 %v780, %v802
      %v806 = vmul.f32 %v783, %v802
      %v807 = vmul.f32 %v786, %v802
      %v808 = vmul.f32 %v789, %v802
      %v809 = vmul.f32 %v792, %v802
      %v810 = vmul.f32 %v795, %v802
      %v811 = vmul.f32 %v714, %v756
      %v812 = vmul.f32 %v714, %v757
      %v813 = vmul.f32 %v714, %v758
      %v814 = vmul.f32 %v714, %v759
      %v815 = vmul.f32 %v714, %v760
      %v816 = vmul.f32 %v714, %v761
      %v817 = vmul.f32 %v714, %v762
      %v818 = vmul.f32 %v714, %v763
      %v819 = vmul.f32 %v715, %v803
      %v820 = vmul.f32 %v715, %v804
      %v821 = vmul.f32 %v715, %v805
      %v822 = vmul.f32 %v715, %v806
      %v823 = vmul.f32 %v715, %v807
      %v824 = vmul.f32 %v715, %v808
      %v825 = vmul.f32 %v715, %v809
      %v826 = vmul.f32 %v715, %v810
      %v827 = vadd.f32 %v811, %v819
      %v828 = vadd.f32 %v812, %v820
      %v829 = vadd.f32 %v813, %v821
      %v830 = vadd.f32 %v814, %v822
      %v831 = vadd.f32 %v815, %v823
      %v832 = vadd.f32 %v816, %v824
      %v833 = vadd.f32 %v817, %v825
      %v834 = vadd.f32 %v818, %v826
      %v835 = vsub.f32 %v680, %v827
      %v836 = vsub.f32 %v684, %v828
      %v837 = vsub.f32 %v688, %v829
      %v838 = vsub.f32 %v692, %v830
      %v839 = vsub.f32 %v696, %v831
      %v840 = vsub.f32 %v700, %v832
      %v841 = vsub.f32 %v704, %v833
      %v842 = vsub.f32 %v708, %v834
      %v843 = vmul.f32 %v835, %v835
      %v844 = vmul.f32 %v836, %v836
      %v845 = vmul.f32 %v837, %v837
      %v846 = vmul.f32 %v838, %v838
      %v847 = vmul.f32 %v839, %v839
      %v848 = vmul.f32 %v840, %v840
      %v849 = vmul.f32 %v841, %v841
      %v850 = vmul.f32 %v842, %v842
      %v851 = vmul.f32 %v843, %v714
      %v852 = vmul.f32 %v844, %v714
      %v853 = vmul.f32 %v845, %v714
      %v854 = vmul.f32 %v846, %v714
      %v855 = vmul.f32 %v847, %v714
      %v856 = vmul.f32 %v848, %v714
      %v857 = vmul.f32 %v849, %v714
      %v858 = vmul.f32 %v850, %v714
      %v859 = vsel %vm724, %v851, 0.0
      %860 = vadd.xlane.f32.xlu0 %v859
      %v861 = vpop.xlane.xlu0 %860
      %v862 = vsel %vm724, %v852, 0.0
      %863 = vadd.xlane.f32.xlu0 %v862
      %v864 = vpop.xlane.xlu0 %863
      %v865 = vsel %vm724, %v853, 0.0
      %866 = vadd.xlane.f32.xlu0 %v865
      %v867 = vpop.xlane.xlu0 %866
      %v868 = vsel %vm724, %v854, 0.0
      %869 = vadd.xlane.f32.xlu0 %v868
      %v870 = vpop.xlane.xlu0 %869
      %v871 = vsel %vm724, %v855, 0.0
      %872 = vadd.xlane.f32.xlu0 %v871
      %v873 = vpop.xlane.xlu0 %872
      %v874 = vsel %vm724, %v856, 0.0
      %875 = vadd.xlane.f32.xlu0 %v874
      %v876 = vpop.xlane.xlu0 %875
      %v877 = vsel %vm724, %v857, 0.0
      %878 = vadd.xlane.f32.xlu0 %v877
      %v879 = vpop.xlane.xlu0 %878
      %v880 = vsel %vm724, %v858, 0.0
      %881 = vadd.xlane.f32.xlu0 %v880
      %v882 = vpop.xlane.xlu0 %881
      %v883 = vmul.f32 %v861, %v755
      %v884 = vmul.f32 %v864, %v755
      %v885 = vmul.f32 %v867, %v755
      %v886 = vmul.f32 %v870, %v755
      %v887 = vmul.f32 %v873, %v755
      %v888 = vmul.f32 %v876, %v755
      %v889 = vmul.f32 %v879, %v755
      %v890 = vmul.f32 %v882, %v755
      %v891 = vmul.f32 %v843, %v715
      %v892 = vmul.f32 %v844, %v715
      %v893 = vmul.f32 %v845, %v715
      %v894 = vmul.f32 %v846, %v715
      %v895 = vmul.f32 %v847, %v715
      %v896 = vmul.f32 %v848, %v715
      %v897 = vmul.f32 %v849, %v715
      %v898 = vmul.f32 %v850, %v715
      %v899 = vsel %vm724, %v891, 0.0
      %900 = vadd.xlane.f32.xlu0 %v899
      %v901 = vpop.xlane.xlu0 %900
      %v902 = vsel %vm724, %v892, 0.0
      %903 = vadd.xlane.f32.xlu0 %v902
      %v904 = vpop.xlane.xlu0 %903
      %v905 = vsel %vm724, %v893, 0.0
      %906 = vadd.xlane.f32.xlu0 %v905
      %v907 = vpop.xlane.xlu0 %906
      %v908 = vsel %vm724, %v894, 0.0
      %909 = vadd.xlane.f32.xlu0 %v908
      %v910 = vpop.xlane.xlu0 %909
      %v911 = vsel %vm724, %v895, 0.0
      %912 = vadd.xlane.f32.xlu0 %v911
      %v913 = vpop.xlane.xlu0 %912
      %v914 = vsel %vm724, %v896, 0.0
      %915 = vadd.xlane.f32.xlu0 %v914
      %v916 = vpop.xlane.xlu0 %915
      %v917 = vsel %vm724, %v897, 0.0
      %918 = vadd.xlane.f32.xlu0 %v917
      %v919 = vpop.xlane.xlu0 %918
      %v920 = vsel %vm724, %v898, 0.0
      %921 = vadd.xlane.f32.xlu0 %v920
      %v922 = vpop.xlane.xlu0 %921
      %v923 = vmul.f32 %v901, %v802
      %v924 = vmul.f32 %v904, %v802
      %v925 = vmul.f32 %v907, %v802
      %v926 = vmul.f32 %v910, %v802
      %v927 = vmul.f32 %v913, %v802
      %v928 = vmul.f32 %v916, %v802
      %v929 = vmul.f32 %v919, %v802
      %v930 = vmul.f32 %v922, %v802
      %v931 = vmul.f32 %v714, %v883
      %v932 = vmul.f32 %v714, %v884
      %v933 = vmul.f32 %v714, %v885
      %v934 = vmul.f32 %v714, %v886
      %v935 = vmul.f32 %v714, %v887
      %v936 = vmul.f32 %v714, %v888
      %v937 = vmul.f32 %v714, %v889
      %v938 = vmul.f32 %v714, %v890
      %v939 = vmul.f32 %v715, %v923
      %v940 = vmul.f32 %v715, %v924
      %v941 = vmul.f32 %v715, %v925
      %v942 = vmul.f32 %v715, %v926
      %v943 = vmul.f32 %v715, %v927
      %v944 = vmul.f32 %v715, %v928
      %v945 = vmul.f32 %v715, %v929
      %v946 = vmul.f32 %v715, %v930
      %v947 = vadd.f32 %v931, %v939
      %v948 = vadd.f32 %v932, %v940
      %v949 = vadd.f32 %v933, %v941
      %v950 = vadd.f32 %v934, %v942
      %v951 = vadd.f32 %v935, %v943
      %v952 = vadd.f32 %v936, %v944
      %v953 = vadd.f32 %v937, %v945
      %v954 = vadd.f32 %v938, %v946
      %v955 = vadd.f32 %v947, 1e-06
      %v956 = vadd.f32 %v948, 1e-06
      %v957 = vadd.f32 %v949, 1e-06
      %v958 = vadd.f32 %v950, 1e-06
      %v959 = vadd.f32 %v951, 1e-06
      %v960 = vadd.f32 %v952, 1e-06
      %v961 = vadd.f32 %v953, 1e-06
      %v962 = vadd.f32 %v954, 1e-06
      %v963 = vrsqrt.pop %v955
      %v964 = vmul.f32 %v963, %v955
      %v965 = vmul.f32 %v964, %v963
      %v966 = vmul.f32 0.5, %v965
      %v967 = vsub.f32 1.5, %v966
      %v968 = vmul.f32 %v963, %v967
      %vm969 = vweird.f32 %v955
      %vm970 = vweird.f32 %v963
      %vm971 = vmor %vm969, %vm970
      %v972 = vsel %vm971, %v963, %v968
      %v973 = vrsqrt.pop %v956
      %v974 = vmul.f32 %v973, %v956
      %v975 = vmul.f32 %v974, %v973
      %v976 = vmul.f32 0.5, %v975
      %v977 = vsub.f32 1.5, %v976
      %v978 = vmul.f32 %v973, %v977
      %vm979 = vweird.f32 %v956
      %vm980 = vweird.f32 %v973
      %vm981 = vmor %vm979, %vm980
      %v982 = vsel %vm981, %v973, %v978
      %v983 = vrsqrt.pop %v957
      %v984 = vmul.f32 %v983, %v957
      %v985 = vmul.f32 %v984, %v983
      %v986 = vmul.f32 0.5, %v985
      %v987 = vsub.f32 1.5, %v986
      %v988 = vmul.f32 %v983, %v987
      %vm989 = vweird.f32 %v957
      %vm990 = vweird.f32 %v983
      %vm991 = vmor %vm989, %vm990
      %v992 = vsel %vm991, %v983, %v988
      %v993 = vrsqrt.pop %v958
      %v994 = vmul.f32 %v993, %v958
      %v995 = vmul.f32 %v994, %v993
      %v996 = vmul.f32 0.5, %v995
      %v997 = vsub.f32 1.5, %v996
      %v998 = vmul.f32 %v993, %v997
      %vm999 = vweird.f32 %v958
      %vm1000 = vweird.f32 %v993
      %vm1001 = vmor %vm999, %vm1000
      %v1002 = vsel %vm1001, %v993, %v998
      %v1003 = vrsqrt.pop %v959
      %v1004 = vmul.f32 %v1003, %v959
      %v1005 = vmul.f32 %v1004, %v1003
      %v1006 = vmul.f32 0.5, %v1005
      %v1007 = vsub.f32 1.5, %v1006
      %v1008 = vmul.f32 %v1003, %v1007
      %vm1009 = vweird.f32 %v959
      %vm1010 = vweird.f32 %v1003
      %vm1011 = vmor %vm1009, %vm1010
      %v1012 = vsel %vm1011, %v1003, %v1008
      %v1013 = vrsqrt.pop %v960
      %v1014 = vmul.f32 %v1013, %v960
      %v1015 = vmul.f32 %v1014, %v1013
      %v1016 = vmul.f32 0.5, %v1015
      %v1017 = vsub.f32 1.5, %v1016
      %v1018 = vmul.f32 %v1013, %v1017
      %vm1019 = vweird.f32 %v960
      %vm1020 = vweird.f32 %v1013
      %vm1021 = vmor %vm1019, %vm1020
      %v1022 = vsel %vm1021, %v1013, %v1018
      %v1023 = vrsqrt.pop %v961
      %v1024 = vmul.f32 %v1023, %v961
      %v1025 = vmul.f32 %v1024, %v1023
      %v1026 = vmul.f32 0.5, %v1025
      %v1027 = vsub.f32 1.5, %v1026
      %v1028 = vmul.f32 %v1023, %v1027
      %vm1029 = vweird.f32 %v961
      %vm1030 = vweird.f32 %v1023
      %vm1031 = vmor %vm1029, %vm1030
      %v1032 = vsel %vm1031, %v1023, %v1028
      %v1033 = vrsqrt.pop %v962
      %v1034 = vmul.f32 %v1033, %v962
      %v1035 = vmul.f32 %v1034, %v1033
      %v1036 = vmul.f32 0.5, %v1035
      %v1037 = vsub.f32 1.5, %v1036
      %v1038 = vmul.f32 %v1033, %v1037
      %vm1039 = vweird.f32 %v962
      %vm1040 = vweird.f32 %v1033
      %vm1041 = vmor %vm1039, %vm1040
      %v1042 = vsel %vm1041, %v1033, %v1038
      %v1043 = vmul.f32 %v835, %v972
      %v1044 = vmul.f32 %v836, %v982
      %v1045 = vmul.f32 %v837, %v992
      %v1046 = vmul.f32 %v838, %v1002
      %v1047 = vmul.f32 %v839, %v1012
      %v1048 = vmul.f32 %v840, %v1022
      %v1049 = vmul.f32 %v841, %v1032
      %v1050 = vmul.f32 %v842, %v1042
      %v1051 = vld [vmem:[%s2] sm:$0x1]
      %v1053 = vperm.slane %v1051, 0
      %v1055 = vmul.f32 %v1053, %v1043
      %v1056 = vmul.f32 %v1053, %v1044
      %v1057 = vmul.f32 %v1053, %v1045
      %v1058 = vmul.f32 %v1053, %v1046
      %v1059 = vmul.f32 %v1053, %v1047
      %v1060 = vmul.f32 %v1053, %v1048
      %v1061 = vmul.f32 %v1053, %v1049
      %v1062 = vmul.f32 %v1053, %v1050
      %v1063 = vld [vmem:[%s3] sm:$0x1]
      %v1065 = vperm.slane %v1063, 0
      %v1067 = vadd.f32 %v1055, %v1065
      %v1068 = vadd.f32 %v1056, %v1065
      %v1069 = vadd.f32 %v1057, %v1065
      %v1070 = vadd.f32 %v1058, %v1065
      %v1071 = vadd.f32 %v1059, %v1065
      %v1072 = vadd.f32 %v1060, %v1065
      %v1073 = vadd.f32 %v1061, %v1065
      %v1074 = vadd.f32 %v1062, %v1065
      %v1075 = vxor.u32 %v1067, 2147483648
      %v1076 = vxor.u32 %v1068, 2147483648
      %v1077 = vxor.u32 %v1069, 2147483648
      %v1078 = vxor.u32 %v1070, 2147483648
      %v1079 = vxor.u32 %v1071, 2147483648
      %v1080 = vxor.u32 %v1072, 2147483648
      %v1081 = vxor.u32 %v1073, 2147483648
      %v1082 = vxor.u32 %v1074, 2147483648
      %v1083 = vmul.f32 %v1075, 1.442695
      %v1084 = vpow.pop %v1083
      %v1085 = vmul.f32 %v1076, 1.442695
      %v1086 = vpow.pop %v1085
      %v1087 = vmul.f32 %v1077, 1.442695
      %v1088 = vpow.pop %v1087
      %v1089 = vmul.f32 %v1078, 1.442695
      %v1090 = vpow.pop %v1089
      %v1091 = vmul.f32 %v1079, 1.442695
      %v1092 = vpow.pop %v1091
      %v1093 = vmul.f32 %v1080, 1.442695
      %v1094 = vpow.pop %v1093
      %v1095 = vmul.f32 %v1081, 1.442695
      %v1096 = vpow.pop %v1095
      %v1097 = vmul.f32 %v1082, 1.442695
      %v1098 = vpow.pop %v1097
      %v1099 = vadd.f32 %v1084, 1.0
      %v1100 = vadd.f32 %v1086, 1.0
      %v1101 = vadd.f32 %v1088, 1.0
      %v1102 = vadd.f32 %v1090, 1.0
      %v1103 = vadd.f32 %v1092, 1.0
      %v1104 = vadd.f32 %v1094, 1.0
      %v1105 = vadd.f32 %v1096, 1.0
      %v1106 = vadd.f32 %v1098, 1.0
      %v1107 = vrcp.pop %v1099
      %v1108 = vmul.f32 %v1099, %v1107
      %v1109 = vsub.f32 1.0, %v1108
      %v1110 = vmul.f32 %v1107, %v1109
      %v1111 = vadd.f32 %v1107, %v1110
      %vm1112 = vweird.f32 %v1099
      %vm1113 = vweird.f32 %v1107
      %vm1114 = vmor %vm1112, %vm1113
      %v1115 = vsel %vm1114, %v1107, %v1111
      %v1116 = vand.u32 2147483647, %v1099
      %vm1117 = vcmp.eq.f32.partialorder %v1116, 8.507059e+37
      %v1118 = vand.u32 %v1099, 2147483648
      %v1119 = vor.u32 1.1754944e-38, %v1118
      %v1120 = vsel %vm1117, %v1119, %v1115
      %v1121 = vmul.f32 1.0, %v1120
      %v1122 = vrcp.pop %v1100
      %v1123 = vmul.f32 %v1100, %v1122
      %v1124 = vsub.f32 1.0, %v1123
      %v1125 = vmul.f32 %v1122, %v1124
      %v1126 = vadd.f32 %v1122, %v1125
      %vm1127 = vweird.f32 %v1100
      %vm1128 = vweird.f32 %v1122
      %vm1129 = vmor %vm1127, %vm1128
      %v1130 = vsel %vm1129, %v1122, %v1126
      %v1131 = vand.u32 2147483647, %v1100
      %vm1132 = vcmp.eq.f32.partialorder %v1131, 8.507059e+37
      %v1133 = vand.u32 %v1100, 2147483648
      %v1134 = vor.u32 1.1754944e-38, %v1133
      %v1135 = vsel %vm1132, %v1134, %v1130
      %v1136 = vmul.f32 1.0, %v1135
      %v1137 = vrcp.pop %v1101
      %v1138 = vmul.f32 %v1101, %v1137
      %v1139 = vsub.f32 1.0, %v1138
      %v1140 = vmul.f32 %v1137, %v1139
      %v1141 = vadd.f32 %v1137, %v1140
      %vm1142 = vweird.f32 %v1101
      %vm1143 = vweird.f32 %v1137
      %vm1144 = vmor %vm1142, %vm1143
      %v1145 = vsel %vm1144, %v1137, %v1141
      %v1146 = vand.u32 2147483647, %v1101
      %vm1147 = vcmp.eq.f32.partialorder %v1146, 8.507059e+37
      %v1148 = vand.u32 %v1101, 2147483648
      %v1149 = vor.u32 1.1754944e-38, %v1148
      %v1150 = vsel %vm1147, %v1149, %v1145
      %v1151 = vmul.f32 1.0, %v1150
      %v1152 = vrcp.pop %v1102
      %v1153 = vmul.f32 %v1102, %v1152
      %v1154 = vsub.f32 1.0, %v1153
      %v1155 = vmul.f32 %v1152, %v1154
      %v1156 = vadd.f32 %v1152, %v1155
      %vm1157 = vweird.f32 %v1102
      %vm1158 = vweird.f32 %v1152
      %vm1159 = vmor %vm1157, %vm1158
      %v1160 = vsel %vm1159, %v1152, %v1156
      %v1161 = vand.u32 2147483647, %v1102
      %vm1162 = vcmp.eq.f32.partialorder %v1161, 8.507059e+37
      %v1163 = vand.u32 %v1102, 2147483648
      %v1164 = vor.u32 1.1754944e-38, %v1163
      %v1165 = vsel %vm1162, %v1164, %v1160
      %v1166 = vmul.f32 1.0, %v1165
      %v1167 = vrcp.pop %v1103
      %v1168 = vmul.f32 %v1103, %v1167
      %v1169 = vsub.f32 1.0, %v1168
      %v1170 = vmul.f32 %v1167, %v1169
      %v1171 = vadd.f32 %v1167, %v1170
      %vm1172 = vweird.f32 %v1103
      %vm1173 = vweird.f32 %v1167
      %vm1174 = vmor %vm1172, %vm1173
      %v1175 = vsel %vm1174, %v1167, %v1171
      %v1176 = vand.u32 2147483647, %v1103
      %vm1177 = vcmp.eq.f32.partialorder %v1176, 8.507059e+37
      %v1178 = vand.u32 %v1103, 2147483648
      %v1179 = vor.u32 1.1754944e-38, %v1178
      %v1180 = vsel %vm1177, %v1179, %v1175
      %v1181 = vmul.f32 1.0, %v1180
      %v1182 = vrcp.pop %v1104
      %v1183 = vmul.f32 %v1104, %v1182
      %v1184 = vsub.f32 1.0, %v1183
      %v1185 = vmul.f32 %v1182, %v1184
      %v1186 = vadd.f32 %v1182, %v1185
      %vm1187 = vweird.f32 %v1104
      %vm1188 = vweird.f32 %v1182
      %vm1189 = vmor %vm1187, %vm1188
      %v1190 = vsel %vm1189, %v1182, %v1186
      %v1191 = vand.u32 2147483647, %v1104
      %vm1192 = vcmp.eq.f32.partialorder %v1191, 8.507059e+37
      %v1193 = vand.u32 %v1104, 2147483648
      %v1194 = vor.u32 1.1754944e-38, %v1193
      %v1195 = vsel %vm1192, %v1194, %v1190
      %v1196 = vmul.f32 1.0, %v1195
      %v1197 = vrcp.pop %v1105
      %v1198 = vmul.f32 %v1105, %v1197
      %v1199 = vsub.f32 1.0, %v1198
      %v1200 = vmul.f32 %v1197, %v1199
      %v1201 = vadd.f32 %v1197, %v1200
      %vm1202 = vweird.f32 %v1105
      %vm1203 = vweird.f32 %v1197
      %vm1204 = vmor %vm1202, %vm1203
      %v1205 = vsel %vm1204, %v1197, %v1201
      %v1206 = vand.u32 2147483647, %v1105
      %vm1207 = vcmp.eq.f32.partialorder %v1206, 8.507059e+37
      %v1208 = vand.u32 %v1105, 2147483648
      %v1209 = vor.u32 1.1754944e-38, %v1208
      %v1210 = vsel %vm1207, %v1209, %v1205
      %v1211 = vmul.f32 1.0, %v1210
      %v1212 = vrcp.pop %v1106
      %v1213 = vmul.f32 %v1106, %v1212
      %v1214 = vsub.f32 1.0, %v1213
      %v1215 = vmul.f32 %v1212, %v1214
      %v1216 = vadd.f32 %v1212, %v1215
      %vm1217 = vweird.f32 %v1106
      %vm1218 = vweird.f32 %v1212
      %vm1219 = vmor %vm1217, %vm1218
      %v1220 = vsel %vm1219, %v1212, %v1216
      %v1221 = vand.u32 2147483647, %v1106
      %vm1222 = vcmp.eq.f32.partialorder %v1221, 8.507059e+37
      %v1223 = vand.u32 %v1106, 2147483648
      %v1224 = vor.u32 1.1754944e-38, %v1223
      %v1225 = vsel %vm1222, %v1224, %v1220
      %v1226 = vmul.f32 1.0, %v1225
      %v1227 = vmul.f32 %v1067, %v1121
      %v1228 = vmul.f32 %v1068, %v1136
      %v1229 = vmul.f32 %v1069, %v1151
      %v1230 = vmul.f32 %v1070, %v1166
      %v1231 = vmul.f32 %v1071, %v1181
      %v1232 = vmul.f32 %v1072, %v1196
      %v1233 = vmul.f32 %v1073, %v1211
      %v1234 = vmul.f32 %v1074, %v1226
      %1235 = vst.msk [vmem:[%s199] sm:$0xff] %vm724, %v1227
      %1236 = vst.msk [vmem:[%s199 + $0x8] sm:$0xff] %vm724, %v1228
      %1237 = vst.msk [vmem:[%s199 + $0x10] sm:$0xff] %vm724, %v1229
      %1238 = vst.msk [vmem:[%s199 + $0x18] sm:$0xff] %vm724, %v1230
      %1239 = vst.msk [vmem:[%s199 + $0x20] sm:$0xff] %vm724, %v1231
      %1240 = vst.msk [vmem:[%s199 + $0x28] sm:$0xff] %vm724, %v1232
      %1241 = vst.msk [vmem:[%s199 + $0x30] sm:$0xff] %vm724, %v1233
      %1242 = vst.msk [vmem:[%s199 + $0x38] sm:$0xff] %vm724, %v1234
      %s1243 = smul.u32 8, %s15
      %p1244 = scmp.lt.s32.totalorder %s1243, 15
      %s1245 = scalar_select %p1244, %s1243, 15
      %s1246 = smul.addr %s1245, 8
      %s1247 = scalar_lea.vmem %s4, %s1246
      // Predicated region
      $region37: #{mbfd_forward.5} parent=35 // pred_check
        %p1248 = pneg %p122
      $region38: #{mbfd_forward.5} parent=35 // pred_check_branch
        %1250 = sbr.rel (%p1248) target = $region40
      $region39: #{mbfd_forward.5} parent=35 // pred_region
        %s1251 = smul.u32 8, %s15
      $region40: #{mbfd_forward.5} parent=35 // pred_fallthru
        _
    $region36: #{mbfd_forward.5} parent=5 // pred_fallthru
      _
    %p1252 = scmp.le.s32.totalorder 2, %s10
    // Predicated region
    $region41: #{mbfd_forward.5} parent=5 // pred_check
      %p1253 = pneg %p1252
    $region42: #{mbfd_forward.5} parent=5 // pred_check_branch
      %1255 = sbr.rel (%p1253) target = $region44
    $region43: #{mbfd_forward.5} parent=5 // pred_region
      %s1256 = ssub.s32 %s10, 2
      // Predicated region
      $region45: #{mbfd_forward.5} parent=43 // pred_check
        %p1257 = pneg %p128
      $region46: #{mbfd_forward.5} parent=43 // pred_check_branch
        %1259 = sbr.rel (%p1257) target = $region48
      $region47: #{mbfd_forward.5} parent=43 // pred_region
        %s1260 = smul.u32 8, %s16
        %p1261 = scmp.lt.s32.totalorder %s1260, 15
        %s1262 = scalar_select %p1261, %s1260, 15
        %s1263 = smul.addr %s1262, 8
        %s1264 = scalar_lea.vmem %s4, %s1263
      $region48: #{mbfd_forward.5} parent=43 // pred_fallthru
        _
    $region44: #{mbfd_forward.5} parent=5 // pred_fallthru
      _
  $region6: #{mbfd_forward.5} parent=0 // loop_footer
    %s14 = sadd.s32 1, %s10
  $region7: #{mbfd_forward.5} parent=0 // loop_footer_branch
    %9 = sbr.rel target = $region3
  $region8: #{mbfd_forward.5} parent=0 // loop_exit
    _

// kernel: mbfd_forward.7
$region0: #{mbfd_forward.7}
  #allocation0 [shape = 'u32[]', space=smem, size = 0x4, offset = 0x4, fixed_abs, tag = 'smem constant byte address 0x4 - core index']
  #allocation1 [shape = 'u32[72,128]{1,0:T(1,128)}', space=vmem, size = 0x9000, scoped, tag = 'internal scratch']
  %s0 = inlined_call_operand.vmem [shape: f32[128,12], index: 0, kind: input, shape index: {}]
  %s1 = inlined_call_operand.vmem [shape: f32[128,4], index: 1, kind: input, shape index: {}]
  %s2 = inlined_call_operand.vmem [shape: f32[12,8], index: 2, kind: input, shape index: {}]
  %s3 = inlined_call_operand.vmem [shape: f32[4,8], index: 3, kind: input, shape index: {}]
  %s4 = inlined_call_operand.vmem [shape: f32[1,8], index: 4, kind: input, shape index: {}]
  %s5 = inlined_call_operand.vmem [shape: f32[1,8], index: 5, kind: input, shape index: {}]
  %s6 = inlined_call_operand.vmem [shape: f32[128,8], index: 6, kind: output, shape index: {}]
  %s7 = sld [smem:[#allocation0]]
  $region57: #{mbfd_forward.7} parent=0
    _
  %s9 = ssub.s32 1, %s7
  %s10 = scalar_select 0, %s9, %s7
  loop: start=0, step=1, limit=4
  $region2: #{mbfd_forward.7} parent=0 // loop_pre_header
    _
  $region3: #{mbfd_forward.7} parent=0 // loop_header
    %s12 = sphi 0, %s16
    %p13 = scmp.ge.s32.totalorder %s12, 4
    %s22 = sphi 0, %s24
    %s25 = sphi 0, %s22
    %s26 = sphi 0, %s25
    %s42 = sphi 0, %s26
    %s48 = sphi 0, %s50
    %s51 = sphi 0, %s48
    %s52 = sphi 0, %s51
    %s68 = sphi 0, %s52
    %s72 = sphi 0, %s72
    %s74 = sphi 0, %s72
    %s75 = sphi 0, %s74
    %s89 = sphi 0, %s75
    %s93 = sphi 0, %s93
    %s95 = sphi 0, %s93
    %s96 = sphi 0, %s95
    %s110 = sphi 0, %s96
    %s114 = sphi 0, %s114
    %s116 = sphi 0, %s114
    %s117 = sphi 0, %s116
    %s131 = sphi 0, %s117
    %s135 = sphi 0, %s135
    %s137 = sphi 0, %s135
    %s138 = sphi 0, %s137
    %s152 = sphi 0, %s138
    %s158 = sphi 0, %s160
    %s161 = sphi 0, %s158
    %s162 = sphi 0, %s161
    %s178 = sphi 0, %s162
  $region4: #{mbfd_forward.7} parent=0 // loop_header_branch
    %15 = sbr.rel (%p13) target = $region8
  $region5: #{mbfd_forward.7} parent=0 // loop_body
    %s17 = ssub.s32 %s12, 1
    %s18 = ssub.s32 %s12, 2
    %s19 = sadd.s32 %s12, 1
    %s20 = ssub.s32 %s12, %s19
    %p21 = scmp.eq.s32.totalorder %s20, 0
    %s23 = sadd.s32 %s22, 1
    %s24 = scalar_select %p21, %s22, %s23
    %p27 = pneg %p21
    %p28 = scmp.eq.s32.totalorder %s12, 1
    %p29 = por %p27, %p28
    %p30 = scmp.ne.s32.totalorder %s22, %s25
    %p31 = scmp.eq.s32.totalorder %s12, 0
    %p32 = por %p30, %p31
    %p33 = scmp.ne.s32.totalorder %s22, %s25
    %p34 = scmp.eq.s32.totalorder %s17, 1
    %p35 = por %p33, %p34
    %p36 = scmp.ne.s32.totalorder %s25, %s26
    %p37 = scmp.eq.s32.totalorder %s17, 0
    %p38 = por %p36, %p37
    %p39 = scmp.ne.s32.totalorder %s25, %s26
    %p40 = scmp.eq.s32.totalorder %s18, 1
    %p41 = por %p39, %p40
    %p43 = scmp.ne.s32.totalorder %s26, %s42
    %p44 = scmp.eq.s32.totalorder %s18, 0
    %p45 = por %p43, %p44
    %s46 = ssub.s32 %s12, %s19
    %p47 = scmp.eq.s32.totalorder %s46, 0
    %s49 = sadd.s32 %s48, 1
    %s50 = scalar_select %p47, %s48, %s49
    %p53 = pneg %p47
    %p54 = scmp.eq.s32.totalorder %s12, 1
    %p55 = por %p53, %p54
    %p56 = scmp.ne.s32.totalorder %s48, %s51
    %p57 = scmp.eq.s32.totalorder %s12, 0
    %p58 = por %p56, %p57
    %p59 = scmp.ne.s32.totalorder %s48, %s51
    %p60 = scmp.eq.s32.totalorder %s17, 1
    %p61 = por %p59, %p60
    %p62 = scmp.ne.s32.totalorder %s51, %s52
    %p63 = scmp.eq.s32.totalorder %s17, 0
    %p64 = por %p62, %p63
    %p65 = scmp.ne.s32.totalorder %s51, %s52
    %p66 = scmp.eq.s32.totalorder %s18, 1
    %p67 = por %p65, %p66
    %p69 = scmp.ne.s32.totalorder %s52, %s68
    %p70 = scmp.eq.s32.totalorder %s18, 0
    %p71 = por %p69, %p70
    %s73 = sadd.s32 %s72, 1
    %p76 = scmp.eq.s32.totalorder %s12, 1
    %p77 = scmp.ne.s32.totalorder %s72, %s74
    %p78 = scmp.eq.s32.totalorder %s12, 0
    %p79 = por %p77, %p78
    %p80 = scmp.ne.s32.totalorder %s72, %s74
    %p81 = scmp.eq.s32.totalorder %s17, 1
    %p82 = por %p80, %p81
    %p83 = scmp.ne.s32.totalorder %s74, %s75
    %p84 = scmp.eq.s32.totalorder %s17, 0
    %p85 = por %p83, %p84
    %p86 = scmp.ne.s32.totalorder %s74, %s75
    %p87 = scmp.eq.s32.totalorder %s18, 1
    %p88 = por %p86, %p87
    %p90 = scmp.ne.s32.totalorder %s75, %s89
    %p91 = scmp.eq.s32.totalorder %s18, 0
    %p92 = por %p90, %p91
    %s94 = sadd.s32 %s93, 1
    %p97 = scmp.eq.s32.totalorder %s12, 1
    %p98 = scmp.ne.s32.totalorder %s93, %s95
    %p99 = scmp.eq.s32.totalorder %s12, 0
    %p100 = por %p98, %p99
    %p101 = scmp.ne.s32.totalorder %s93, %s95
    %p102 = scmp.eq.s32.totalorder %s17, 1
    %p103 = por %p101, %p102
    %p104 = scmp.ne.s32.totalorder %s95, %s96
    %p105 = scmp.eq.s32.totalorder %s17, 0
    %p106 = por %p104, %p105
    %p107 = scmp.ne.s32.totalorder %s95, %s96
    %p108 = scmp.eq.s32.totalorder %s18, 1
    %p109 = por %p107, %p108
    %p111 = scmp.ne.s32.totalorder %s96, %s110
    %p112 = scmp.eq.s32.totalorder %s18, 0
    %p113 = por %p111, %p112
    %s115 = sadd.s32 %s114, 1
    %p118 = scmp.eq.s32.totalorder %s12, 1
    %p119 = scmp.ne.s32.totalorder %s114, %s116
    %p120 = scmp.eq.s32.totalorder %s12, 0
    %p121 = por %p119, %p120
    %p122 = scmp.ne.s32.totalorder %s114, %s116
    %p123 = scmp.eq.s32.totalorder %s17, 1
    %p124 = por %p122, %p123
    %p125 = scmp.ne.s32.totalorder %s116, %s117
    %p126 = scmp.eq.s32.totalorder %s17, 0
    %p127 = por %p125, %p126
    %p128 = scmp.ne.s32.totalorder %s116, %s117
    %p129 = scmp.eq.s32.totalorder %s18, 1
    %p130 = por %p128, %p129
    %p132 = scmp.ne.s32.totalorder %s117, %s131
    %p133 = scmp.eq.s32.totalorder %s18, 0
    %p134 = por %p132, %p133
    %s136 = sadd.s32 %s135, 1
    %p139 = scmp.eq.s32.totalorder %s12, 1
    %p140 = scmp.ne.s32.totalorder %s135, %s137
    %p141 = scmp.eq.s32.totalorder %s12, 0
    %p142 = por %p140, %p141
    %p143 = scmp.ne.s32.totalorder %s135, %s137
    %p144 = scmp.eq.s32.totalorder %s17, 1
    %p145 = por %p143, %p144
    %p146 = scmp.ne.s32.totalorder %s137, %s138
    %p147 = scmp.eq.s32.totalorder %s17, 0
    %p148 = por %p146, %p147
    %p149 = scmp.ne.s32.totalorder %s137, %s138
    %p150 = scmp.eq.s32.totalorder %s18, 1
    %p151 = por %p149, %p150
    %p153 = scmp.ne.s32.totalorder %s138, %s152
    %p154 = scmp.eq.s32.totalorder %s18, 0
    %p155 = por %p153, %p154
    %s156 = ssub.s32 %s12, %s19
    %p157 = scmp.eq.s32.totalorder %s156, 0
    %s159 = sadd.s32 %s158, 1
    %s160 = scalar_select %p157, %s158, %s159
    %p163 = pneg %p157
    %p164 = scmp.eq.s32.totalorder %s12, 1
    %p165 = por %p163, %p164
    %p166 = scmp.ne.s32.totalorder %s158, %s161
    %p167 = scmp.eq.s32.totalorder %s12, 0
    %p168 = por %p166, %p167
    %p169 = scmp.ne.s32.totalorder %s158, %s161
    %p170 = scmp.eq.s32.totalorder %s17, 1
    %p171 = por %p169, %p170
    %p172 = scmp.ne.s32.totalorder %s161, %s162
    %p173 = scmp.eq.s32.totalorder %s17, 0
    %p174 = por %p172, %p173
    %p175 = scmp.ne.s32.totalorder %s161, %s162
    %p176 = scmp.eq.s32.totalorder %s18, 1
    %p177 = por %p175, %p176
    %p179 = scmp.ne.s32.totalorder %s162, %s178
    %p180 = scmp.eq.s32.totalorder %s18, 0
    %p181 = por %p179, %p180
    %p182 = scmp.le.s32.totalorder 1, %s12
    %p183 = scmp.lt.s32.totalorder %s12, 3
    %p184 = pnand %p182, %p183
    %p185 = pneg %p184
    // Predicated region
    $region9: #{mbfd_forward.7} parent=5 // pred_check
      _
    $region10: #{mbfd_forward.7} parent=5 // pred_check_branch
      %187 = sbr.rel (%p184) target = $region12
    $region11: #{mbfd_forward.7} parent=5 // pred_region
      %s188 = ssub.s32 %s12, 1
      // Predicated region
      $region13: #{mbfd_forward.7} parent=11 // pred_check
        %p189 = pneg %p85
      $region14: #{mbfd_forward.7} parent=11 // pred_check_branch
        %191 = sbr.rel (%p189) target = $region16
      $region15: #{mbfd_forward.7} parent=11 // pred_region
        _
      $region16: #{mbfd_forward.7} parent=11 // pred_fallthru
        _
      // Predicated region
      $region17: #{mbfd_forward.7} parent=11 // pred_check
        %p192 = pneg %p106
      $region18: #{mbfd_forward.7} parent=11 // pred_check_branch
        %194 = sbr.rel (%p192) target = $region20
      $region19: #{mbfd_forward.7} parent=11 // pred_region
        _
      $region20: #{mbfd_forward.7} parent=11 // pred_fallthru
        _
      // Predicated region
      $region21: #{mbfd_forward.7} parent=11 // pred_check
        %p195 = pneg %p127
      $region22: #{mbfd_forward.7} parent=11 // pred_check_branch
        %197 = sbr.rel (%p195) target = $region24
      $region23: #{mbfd_forward.7} parent=11 // pred_region
        _
      $region24: #{mbfd_forward.7} parent=11 // pred_fallthru
        _
      // Predicated region
      $region25: #{mbfd_forward.7} parent=11 // pred_check
        %p198 = pneg %p148
      $region26: #{mbfd_forward.7} parent=11 // pred_check_branch
        %200 = sbr.rel (%p198) target = $region28
      $region27: #{mbfd_forward.7} parent=11 // pred_region
        _
      $region28: #{mbfd_forward.7} parent=11 // pred_fallthru
        _
    $region12: #{mbfd_forward.7} parent=5 // pred_fallthru
      _
    %p201 = scmp.lt.s32.totalorder %s12, 2
    // Predicated region
    $region29: #{mbfd_forward.7} parent=5 // pred_check
      %p202 = pneg %p201
    $region30: #{mbfd_forward.7} parent=5 // pred_check_branch
      %204 = sbr.rel (%p202) target = $region32
    $region31: #{mbfd_forward.7} parent=5 // pred_region
      // Predicated region
      $region33: #{mbfd_forward.7} parent=31 // pred_check
        %p205 = pneg %p32
      $region34: #{mbfd_forward.7} parent=31 // pred_check_branch
        %207 = sbr.rel (%p205) target = $region36
      $region35: #{mbfd_forward.7} parent=31 // pred_region
        %s208 = smul.u32 8, %s12
        %p209 = scmp.lt.s32.totalorder %s208, 15
        %s210 = scalar_select %p209, %s208, 15
        %s211 = smul.addr %s210, 8
        %s212 = scalar_lea.vmem %s0, %s211
        %s213 = smul.u32 8, %s12
      $region36: #{mbfd_forward.7} parent=31 // pred_fallthru
        _
      // Predicated region
      $region37: #{mbfd_forward.7} parent=31 // pred_check
        %p214 = pneg %p58
      $region38: #{mbfd_forward.7} parent=31 // pred_check_branch
        %216 = sbr.rel (%p214) target = $region40
      $region39: #{mbfd_forward.7} parent=31 // pred_region
        %s217 = smul.u32 8, %s12
        %p218 = scmp.lt.s32.totalorder %s217, 15
        %s219 = scalar_select %p218, %s217, 15
        %s220 = smul.addr %s219, 8
        %s221 = scalar_lea.vmem %s1, %s220
        %s222 = smul.u32 8, %s12
      $region40: #{mbfd_forward.7} parent=31 // pred_fallthru
        _
    $region32: #{mbfd_forward.7} parent=5 // pred_fallthru
      _
    %p223 = scmp.le.s32.totalorder 1, %s12
    %p224 = scmp.lt.s32.totalorder %s12, 3
    %p225 = pnand %p223, %p224
    %p226 = pneg %p225
    // Predicated region
    $region41: #{mbfd_forward.7} parent=5 // pred_check
      _
    $region42: #{mbfd_forward.7} parent=5 // pred_check_branch
      %228 = sbr.rel (%p225) target = $region44
    $region43: #{mbfd_forward.7} parent=5 // pred_region
      %s229 = ssub.s32 %s12, 1
      %s230 = smul.u32 8, %s17
      %p231 = scmp.lt.s32.totalorder %s230, 15
      %s232 = scalar_select %p231, %s230, 15
      %s233 = smul.addr %s232, 8
      %s234 = scalar_lea.vmem %s0, %s233
      %p235 = pneg %p38
      %p236 = pneg %p35
      %s237 = smul.u32 8, %s17
      %p238 = scmp.lt.s32.totalorder %s237, 15
      %s239 = scalar_select %p238, %s237, 15
      %s240 = smul.addr %s239, 8
      %s241 = scalar_lea.vmem %s1, %s240
      %p242 = pneg %p64
      %p243 = pneg %p61
      %p244 = pneg %p85
      %p245 = pneg %p82
      %p246 = pneg %p106
      %p247 = pneg %p103
      %p248 = pneg %p127
      %p249 = pneg %p124
      %p250 = pneg %p148
      %p251 = pneg %p145
      %p252 = pneg %p174
      %p253 = pneg %p171
      %s254 = smul.u32 8, %s17
      %p255 = scmp.lt.s32.totalorder %s254, 15
      %s256 = scalar_select %p255, %s254, 15
      %s257 = smul.addr %s256, 8
      %s258 = scalar_lea.vmem %s6, %s257
      %s259 = smul.u32 8, %s17
      %p260 = scmp.lt.s32.totalorder %s259, 15
      %s261 = scalar_select %p260, %s259, 15
      %s262 = smul.addr %s261, 8
      %s263 = scalar_lea.vmem %s0, %s262
      %s264 = smul.u32 8, %s17
      %s265 = smul.u32 8, %s17
      %p266 = scmp.lt.s32.totalorder %s265, 15
      %s267 = scalar_select %p266, %s265, 15
      %s268 = smul.addr %s267, 8
      %s269 = scalar_lea.vmem %s1, %s268
      %s270 = smul.u32 8, %s17
      %s271 = smul.u32 8, %s17
      %p272 = scmp.lt.s32.totalorder %s271, 15
      %s273 = scalar_select %p272, %s271, 15
      %s274 = smul.addr %s273, 8
      %s275 = scalar_lea.vmem %s6, %s274
      %s276 = smul.u32 8, %s17
      %v277 = vld [vmem:[%s263] sm:$0xff]
      %v278 = vld [vmem:[%s263 + $0x8] sm:$0xff]
      %v279 = vld [vmem:[%s263 + $0x10] sm:$0xff]
      %v280 = vld [vmem:[%s263 + $0x18] sm:$0xff]
      %v281 = vld [vmem:[%s263 + $0x20] sm:$0xff]
      %v282 = vld [vmem:[%s263 + $0x28] sm:$0xff]
      %v283 = vld [vmem:[%s263 + $0x30] sm:$0xff]
      %v284 = vld [vmem:[%s263 + $0x38] sm:$0xff]
      %v285 = vld [vmem:[%s2] sm:$0xff]
      %v286 = vld [vmem:[%s2 + $0x8] sm:$0xf]
      %v287 = vld [vmem:[%s269] sm:$0xff]
      %v288 = vld [vmem:[%s269 + $0x8] sm:$0xff]
      %v289 = vld [vmem:[%s269 + $0x10] sm:$0xff]
      %v290 = vld [vmem:[%s269 + $0x18] sm:$0xff]
      %v291 = vld [vmem:[%s269 + $0x20] sm:$0xff]
      %v292 = vld [vmem:[%s269 + $0x28] sm:$0xff]
      %v293 = vld [vmem:[%s269 + $0x30] sm:$0xff]
      %v294 = vld [vmem:[%s269 + $0x38] sm:$0xff]
      %v295 = vld [vmem:[%s3] sm:$0xf]
      %vm296 = vcmask 31744
      %v298 = vsel %vm296, %v287, 0
      %v301 = vsel %vm296, %v288, 0
      %v304 = vsel %vm296, %v289, 0
      %v307 = vsel %vm296, %v290, 0
      %v310 = vsel %vm296, %v291, 0
      %v313 = vsel %vm296, %v292, 0
      %v316 = vsel %vm296, %v293, 0
      %v319 = vsel %vm296, %v294, 0
      %vm321 = vcmask 1043456
      %v323 = vsel %vm321, %v295, 0
      %325 = vmatpush.msra.mxu0 0.0
      %326 = vmatpush.msra.mxu0 0.0
      %327 = vmatpush.msra.mxu0 0.0
      %328 = vmatpush.msra.mxu0 0.0
      %329 = vmatpush.msra.mxu0 0.0
      %330 = vmatpush.msra.mxu0 0.0
      %331 = vmatpush.msra.mxu0 0.0
      %332 = vmatpush.msra.mxu0 0.0
      %333 = vmatpush.msra.mxu0 0.0
      %334 = vmatpush.msra.mxu0 0.0
      %335 = vmatpush.msra.mxu0 0.0
      %336 = vmatpush.msra.mxu0 0.0
      %337 = vmatpush.msra.mxu0 0.0
      %338 = vmatpush.msra.mxu0 0.0
      %339 = vmatpush.msra.mxu0 0.0
      %v340 = vand.u32 %v323, 4294901760
      %341 = vmatpush.msra.mxu0 %v340
      %v342 = vand.u32 %v298, 4294901760
      %v343 = vsub.f32 %v298, %v342
      %v344 = vand.u32 %v343, 4294901760
      %v345 = vsub.f32 %v343, %v344
      %v346 = vand.u32 %v345, 4294901760
      %347 = vmatmul.f32.gmra.mxu0 %v346
      %v348 = vpop.f32.mrf.mxu0
      %v349 = vadd.f32 0.0, %v348
      %v350 = vand.u32 %v301, 4294901760
      %v351 = vsub.f32 %v301, %v350
      %v352 = vand.u32 %v351, 4294901760
      %v353 = vsub.f32 %v351, %v352
      %v354 = vand.u32 %v353, 4294901760
      %355 = vmatmul.f32.gmra.mxu0 %v354
      %v356 = vpop.f32.mrf.mxu0
      %v357 = vadd.f32 0.0, %v356
      %v358 = vand.u32 %v304, 4294901760
      %v359 = vsub.f32 %v304, %v358
      %v360 = vand.u32 %v359, 4294901760
      %v361 = vsub.f32 %v359, %v360
      %v362 = vand.u32 %v361, 4294901760
      %363 = vmatmul.f32.gmra.mxu0 %v362
      %v364 = vpop.f32.mrf.mxu0
      %v365 = vadd.f32 0.0, %v364
      %v366 = vand.u32 %v307, 4294901760
      %v367 = vsub.f32 %v307, %v366
      %v368 = vand.u32 %v367, 4294901760
      %v369 = vsub.f32 %v367, %v368
      %v370 = vand.u32 %v369, 4294901760
      %371 = vmatmul.f32.gmra.mxu0 %v370
      %v372 = vpop.f32.mrf.mxu0
      %v373 = vadd.f32 0.0, %v372
      %v374 = vand.u32 %v310, 4294901760
      %v375 = vsub.f32 %v310, %v374
      %v376 = vand.u32 %v375, 4294901760
      %v377 = vsub.f32 %v375, %v376
      %v378 = vand.u32 %v377, 4294901760
      %379 = vmatmul.f32.gmra.mxu0 %v378
      %v380 = vpop.f32.mrf.mxu0
      %v381 = vadd.f32 0.0, %v380
      %v382 = vand.u32 %v313, 4294901760
      %v383 = vsub.f32 %v313, %v382
      %v384 = vand.u32 %v383, 4294901760
      %v385 = vsub.f32 %v383, %v384
      %v386 = vand.u32 %v385, 4294901760
      %387 = vmatmul.f32.gmra.mxu0 %v386
      %v388 = vpop.f32.mrf.mxu0
      %v389 = vadd.f32 0.0, %v388
      %v390 = vand.u32 %v316, 4294901760
      %v391 = vsub.f32 %v316, %v390
      %v392 = vand.u32 %v391, 4294901760
      %v393 = vsub.f32 %v391, %v392
      %v394 = vand.u32 %v393, 4294901760
      %395 = vmatmul.f32.gmra.mxu0 %v394
      %v396 = vpop.f32.mrf.mxu0
      %v397 = vadd.f32 0.0, %v396
      %v398 = vand.u32 %v319, 4294901760
      %v399 = vsub.f32 %v319, %v398
      %v400 = vand.u32 %v399, 4294901760
      %v401 = vsub.f32 %v399, %v400
      %v402 = vand.u32 %v401, 4294901760
      %403 = vmatmul.f32.gmra.mxu0 %v402
      %v404 = vpop.f32.mrf.mxu0
      %v405 = vadd.f32 0.0, %v404
      %406 = vdwg.mxu0
      %407 = vmatpush.msra.mxu0 0.0
      %408 = vmatpush.msra.mxu0 0.0
      %409 = vmatpush.msra.mxu0 0.0
      %410 = vmatpush.msra.mxu0 0.0
      %411 = vmatpush.msra.mxu0 0.0
      %412 = vmatpush.msra.mxu0 0.0
      %413 = vmatpush.msra.mxu0 0.0
      %414 = vmatpush.msra.mxu0 0.0
      %415 = vmatpush.msra.mxu0 0.0
      %416 = vmatpush.msra.mxu0 0.0
      %417 = vmatpush.msra.mxu0 0.0
      %418 = vmatpush.msra.mxu0 0.0
      %419 = vmatpush.msra.mxu0 0.0
      %420 = vmatpush.msra.mxu0 0.0
      %421 = vmatpush.msra.mxu0 0.0
      %v422 = vand.u32 %v323, 4294901760
      %v423 = vsub.f32 %v323, %v422
      %v424 = vand.u32 %v423, 4294901760
      %v425 = vsub.f32 %v423, %v424
      %v426 = vand.u32 %v425, 4294901760
      %427 = vmatpush.msra.mxu0 %v426
      %v428 = vand.u32 %v298, 4294901760
      %429 = vmatmul.f32.gmra.mxu0 %v428
      %v430 = vpop.f32.mrf.mxu0
      %v431 = vadd.f32 %v349, %v430
      %v432 = vand.u32 %v301, 4294901760
      %433 = vmatmul.f32.gmra.mxu0 %v432
      %v434 = vpop.f32.mrf.mxu0
      %v435 = vadd.f32 %v357, %v434
      %v436 = vand.u32 %v304, 4294901760
      %437 = vmatmul.f32.gmra.mxu0 %v436
      %v438 = vpop.f32.mrf.mxu0
      %v439 = vadd.f32 %v365, %v438
      %v440 = vand.u32 %v307, 4294901760
      %441 = vmatmul.f32.gmra.mxu0 %v440
      %v442 = vpop.f32.mrf.mxu0
      %v443 = vadd.f32 %v373, %v442
      %v444 = vand.u32 %v310, 4294901760
      %445 = vmatmul.f32.gmra.mxu0 %v444
      %v446 = vpop.f32.mrf.mxu0
      %v447 = vadd.f32 %v381, %v446
      %v448 = vand.u32 %v313, 4294901760
      %449 = vmatmul.f32.gmra.mxu0 %v448
      %v450 = vpop.f32.mrf.mxu0
      %v451 = vadd.f32 %v389, %v450
      %v452 = vand.u32 %v316, 4294901760
      %453 = vmatmul.f32.gmra.mxu0 %v452
      %v454 = vpop.f32.mrf.mxu0
      %v455 = vadd.f32 %v397, %v454
      %v456 = vand.u32 %v319, 4294901760
      %457 = vmatmul.f32.gmra.mxu0 %v456
      %v458 = vpop.f32.mrf.mxu0
      %v459 = vadd.f32 %v405, %v458
      %460 = vdwg.mxu0
      %461 = vmatpush.msra.mxu0 0.0
      %462 = vmatpush.msra.mxu0 0.0
      %463 = vmatpush.msra.mxu0 0.0
      %464 = vmatpush.msra.mxu0 0.0
      %465 = vmatpush.msra.mxu0 0.0
      %466 = vmatpush.msra.mxu0 0.0
      %467 = vmatpush.msra.mxu0 0.0
      %468 = vmatpush.msra.mxu0 0.0
      %469 = vmatpush.msra.mxu0 0.0
      %470 = vmatpush.msra.mxu0 0.0
      %471 = vmatpush.msra.mxu0 0.0
      %472 = vmatpush.msra.mxu0 0.0
      %473 = vmatpush.msra.mxu0 0.0
      %474 = vmatpush.msra.mxu0 0.0
      %475 = vmatpush.msra.mxu0 0.0
      %v476 = vand.u32 %v323, 4294901760
      %v477 = vsub.f32 %v323, %v476
      %478 = vmatpush.msra.mxu0 %v477
      %v479 = vand.u32 %v298, 4294901760
      %v480 = vsub.f32 %v298, %v479
      %481 = vmatmul.f32.gmra.mxu0 %v480
      %v482 = vpop.f32.mrf.mxu0
      %v483 = vadd.f32 %v431, %v482
      %v484 = vand.u32 %v301, 4294901760
      %v485 = vsub.f32 %v301, %v484
      %486 = vmatmul.f32.gmra.mxu0 %v485
      %v487 = vpop.f32.mrf.mxu0
      %v488 = vadd.f32 %v435, %v487
      %v489 = vand.u32 %v304, 4294901760
      %v490 = vsub.f32 %v304, %v489
      %491 = vmatmul.f32.gmra.mxu0 %v490
      %v492 = vpop.f32.mrf.mxu0
      %v493 = vadd.f32 %v439, %v492
      %v494 = vand.u32 %v307, 4294901760
      %v495 = vsub.f32 %v307, %v494
      %496 = vmatmul.f32.gmra.mxu0 %v495
      %v497 = vpop.f32.mrf.mxu0
      %v498 = vadd.f32 %v443, %v497
      %v499 = vand.u32 %v310, 4294901760
      %v500 = vsub.f32 %v310, %v499
      %501 = vmatmul.f32.gmra.mxu0 %v500
      %v502 = vpop.f32.mrf.mxu0
      %v503 = vadd.f32 %v447, %v502
      %v504 = vand.u32 %v313, 4294901760
      %v505 = vsub.f32 %v313, %v504
      %506 = vmatmul.f32.gmra.mxu0 %v505
      %v507 = vpop.f32.mrf.mxu0
      %v508 = vadd.f32 %v451, %v507
      %v509 = vand.u32 %v316, 4294901760
      %v510 = vsub.f32 %v316, %v509
      %511 = vmatmul.f32.gmra.mxu0 %v510
      %v512 = vpop.f32.mrf.mxu0
      %v513 = vadd.f32 %v455, %v512
      %v514 = vand.u32 %v319, 4294901760
      %v515 = vsub.f32 %v319, %v514
      %516 = vmatmul.f32.gmra.mxu0 %v515
      %v517 = vpop.f32.mrf.mxu0
      %v518 = vadd.f32 %v459, %v517
      %519 = vdwg.mxu0
      %520 = vmatpush.msra.mxu0 0.0
      %521 = vmatpush.msra.mxu0 0.0
      %522 = vmatpush.msra.mxu0 0.0
      %523 = vmatpush.msra.mxu0 0.0
      %524 = vmatpush.msra.mxu0 0.0
      %525 = vmatpush.msra.mxu0 0.0
      %526 = vmatpush.msra.mxu0 0.0
      %527 = vmatpush.msra.mxu0 0.0
      %528 = vmatpush.msra.mxu0 0.0
      %529 = vmatpush.msra.mxu0 0.0
      %530 = vmatpush.msra.mxu0 0.0
      %531 = vmatpush.msra.mxu0 0.0
      %532 = vmatpush.msra.mxu0 0.0
      %533 = vmatpush.msra.mxu0 0.0
      %534 = vmatpush.msra.mxu0 0.0
      %v535 = vand.u32 %v323, 4294901760
      %536 = vmatpush.msra.mxu0 %v535
      %v537 = vand.u32 %v298, 4294901760
      %v538 = vsub.f32 %v298, %v537
      %v539 = vand.u32 %v538, 4294901760
      %540 = vmatmul.f32.gmra.mxu0 %v539
      %v541 = vpop.f32.mrf.mxu0
      %v542 = vadd.f32 %v483, %v541
      %v543 = vand.u32 %v301, 4294901760
      %v544 = vsub.f32 %v301, %v543
      %v545 = vand.u32 %v544, 4294901760
      %546 = vmatmul.f32.gmra.mxu0 %v545
      %v547 = vpop.f32.mrf.mxu0
      %v548 = vadd.f32 %v488, %v547
      %v549 = vand.u32 %v304, 4294901760
      %v550 = vsub.f32 %v304, %v549
      %v551 = vand.u32 %v550, 4294901760
      %552 = vmatmul.f32.gmra.mxu0 %v551
      %v553 = vpop.f32.mrf.mxu0
      %v554 = vadd.f32 %v493, %v553
      %v555 = vand.u32 %v307, 4294901760
      %v556 = vsub.f32 %v307, %v555
      %v557 = vand.u32 %v556, 4294901760
      %558 = vmatmul.f32.gmra.mxu0 %v557
      %v559 = vpop.f32.mrf.mxu0
      %v560 = vadd.f32 %v498, %v559
      %v561 = vand.u32 %v310, 4294901760
      %v562 = vsub.f32 %v310, %v561
      %v563 = vand.u32 %v562, 4294901760
      %564 = vmatmul.f32.gmra.mxu0 %v563
      %v565 = vpop.f32.mrf.mxu0
      %v566 = vadd.f32 %v503, %v565
      %v567 = vand.u32 %v313, 4294901760
      %v568 = vsub.f32 %v313, %v567
      %v569 = vand.u32 %v568, 4294901760
      %570 = vmatmul.f32.gmra.mxu0 %v569
      %v571 = vpop.f32.mrf.mxu0
      %v572 = vadd.f32 %v508, %v571
      %v573 = vand.u32 %v316, 4294901760
      %v574 = vsub.f32 %v316, %v573
      %v575 = vand.u32 %v574, 4294901760
      %576 = vmatmul.f32.gmra.mxu0 %v575
      %v577 = vpop.f32.mrf.mxu0
      %v578 = vadd.f32 %v513, %v577
      %v579 = vand.u32 %v319, 4294901760
      %v580 = vsub.f32 %v319, %v579
      %v581 = vand.u32 %v580, 4294901760
      %582 = vmatmul.f32.gmra.mxu0 %v581
      %v583 = vpop.f32.mrf.mxu0
      %v584 = vadd.f32 %v518, %v583
      %585 = vdwg.mxu0
      %586 = vmatpush.msra.mxu0 0.0
      %587 = vmatpush.msra.mxu0 0.0
      %588 = vmatpush.msra.mxu0 0.0
      %589 = vmatpush.msra.mxu0 0.0
      %590 = vmatpush.msra.mxu0 0.0
      %591 = vmatpush.msra.mxu0 0.0
      %592 = vmatpush.msra.mxu0 0.0
      %593 = vmatpush.msra.mxu0 0.0
      %594 = vmatpush.msra.mxu0 0.0
      %595 = vmatpush.msra.mxu0 0.0
      %596 = vmatpush.msra.mxu0 0.0
      %597 = vmatpush.msra.mxu0 0.0
      %598 = vmatpush.msra.mxu0 0.0
      %599 = vmatpush.msra.mxu0 0.0
      %600 = vmatpush.msra.mxu0 0.0
      %v601 = vand.u32 %v323, 4294901760
      %v602 = vsub.f32 %v323, %v601
      %v603 = vand.u32 %v602, 4294901760
      %604 = vmatpush.msra.mxu0 %v603
      %v605 = vand.u32 %v298, 4294901760
      %606 = vmatmul.f32.gmra.mxu0 %v605
      %v607 = vpop.f32.mrf.mxu0
      %v608 = vadd.f32 %v542, %v607
      %v609 = vand.u32 %v301, 4294901760
      %610 = vmatmul.f32.gmra.mxu0 %v609
      %v611 = vpop.f32.mrf.mxu0
      %v612 = vadd.f32 %v548, %v611
      %v613 = vand.u32 %v304, 4294901760
      %614 = vmatmul.f32.gmra.mxu0 %v613
      %v615 = vpop.f32.mrf.mxu0
      %v616 = vadd.f32 %v554, %v615
      %v617 = vand.u32 %v307, 4294901760
      %618 = vmatmul.f32.gmra.mxu0 %v617
      %v619 = vpop.f32.mrf.mxu0
      %v620 = vadd.f32 %v560, %v619
      %v621 = vand.u32 %v310, 4294901760
      %622 = vmatmul.f32.gmra.mxu0 %v621
      %v623 = vpop.f32.mrf.mxu0
      %v624 = vadd.f32 %v566, %v623
      %v625 = vand.u32 %v313, 4294901760
      %626 = vmatmul.f32.gmra.mxu0 %v625
      %v627 = vpop.f32.mrf.mxu0
      %v628 = vadd.f32 %v572, %v627
      %v629 = vand.u32 %v316, 4294901760
      %630 = vmatmul.f32.gmra.mxu0 %v629
      %v631 = vpop.f32.mrf.mxu0
      %v632 = vadd.f32 %v578, %v631
      %v633 = vand.u32 %v319, 4294901760
      %634 = vmatmul.f32.gmra.mxu0 %v633
      %v635 = vpop.f32.mrf.mxu0
      %v636 = vadd.f32 %v584, %v635
      %637 = vdwg.mxu0
      %638 = vmatpush.msra.mxu0 0.0
      %639 = vmatpush.msra.mxu0 0.0
      %640 = vmatpush.msra.mxu0 0.0
      %641 = vmatpush.msra.mxu0 0.0
      %642 = vmatpush.msra.mxu0 0.0
      %643 = vmatpush.msra.mxu0 0.0
      %644 = vmatpush.msra.mxu0 0.0
      %645 = vmatpush.msra.mxu0 0.0
      %646 = vmatpush.msra.mxu0 0.0
      %647 = vmatpush.msra.mxu0 0.0
      %648 = vmatpush.msra.mxu0 0.0
      %649 = vmatpush.msra.mxu0 0.0
      %650 = vmatpush.msra.mxu0 0.0
      %651 = vmatpush.msra.mxu0 0.0
      %652 = vmatpush.msra.mxu0 0.0
      %v653 = vand.u32 %v323, 4294901760
      %654 = vmatpush.msra.mxu0 %v653
      %v655 = vand.u32 %v298, 4294901760
      %656 = vmatmul.f32.gmra.mxu0 %v655
      %v657 = vpop.f32.mrf.mxu0
      %v658 = vadd.f32 %v608, %v657
      %v659 = vand.u32 %v301, 4294901760
      %660 = vmatmul.f32.gmra.mxu0 %v659
      %v661 = vpop.f32.mrf.mxu0
      %v662 = vadd.f32 %v612, %v661
      %v663 = vand.u32 %v304, 4294901760
      %664 = vmatmul.f32.gmra.mxu0 %v663
      %v665 = vpop.f32.mrf.mxu0
      %v666 = vadd.f32 %v616, %v665
      %v667 = vand.u32 %v307, 4294901760
      %668 = vmatmul.f32.gmra.mxu0 %v667
      %v669 = vpop.f32.mrf.mxu0
      %v670 = vadd.f32 %v620, %v669
      %v671 = vand.u32 %v310, 4294901760
      %672 = vmatmul.f32.gmra.mxu0 %v671
      %v673 = vpop.f32.mrf.mxu0
      %v674 = vadd.f32 %v624, %v673
      %v675 = vand.u32 %v313, 4294901760
      %676 = vmatmul.f32.gmra.mxu0 %v675
      %v677 = vpop.f32.mrf.mxu0
      %v678 = vadd.f32 %v628, %v677
      %v679 = vand.u32 %v316, 4294901760
      %680 = vmatmul.f32.gmra.mxu0 %v679
      %v681 = vpop.f32.mrf.mxu0
      %v682 = vadd.f32 %v632, %v681
      %v683 = vand.u32 %v319, 4294901760
      %684 = vmatmul.f32.gmra.mxu0 %v683
      %v685 = vpop.f32.mrf.mxu0
      %v686 = vadd.f32 %v636, %v685
      %687 = vdwg.mxu0
      %vm688 = vcmask 97280
      %v690 = vsel %vm688, %v277, 0
      %v693 = vsel %vm688, %v278, 0
      %v696 = vsel %vm688, %v279, 0
      %v699 = vsel %vm688, %v280, 0
      %v702 = vsel %vm688, %v281, 0
      %v705 = vsel %vm688, %v282, 0
      %v708 = vsel %vm688, %v283, 0
      %v711 = vsel %vm688, %v284, 0
      %v714 = vsel %vm321, %v286, 0
      %716 = vmatpush.msra.mxu0 0.0
      %717 = vmatpush.msra.mxu0 0.0
      %718 = vmatpush.msra.mxu0 0.0
      %719 = vmatpush.msra.mxu0 0.0
      %720 = vmatpush.msra.mxu0 0.0
      %721 = vmatpush.msra.mxu0 0.0
      %722 = vmatpush.msra.mxu0 0.0
      %723 = vmatpush.msra.mxu0 0.0
      %724 = vmatpush.msra.mxu0 0.0
      %725 = vmatpush.msra.mxu0 0.0
      %726 = vmatpush.msra.mxu0 0.0
      %727 = vmatpush.msra.mxu0 0.0
      %728 = vmatpush.msra.mxu0 0.0
      %729 = vmatpush.msra.mxu0 0.0
      %v730 = vand.u32 %v714, 4294901760
      %731 = vmatpush.msra.mxu0 %v730
      %v732 = vand.u32 %v285, 4294901760
      %733 = vmatpush.msra.mxu0 %v732
      %v734 = vand.u32 %v690, 4294901760
      %v735 = vsub.f32 %v690, %v734
      %v736 = vand.u32 %v735, 4294901760
      %v737 = vsub.f32 %v735, %v736
      %v738 = vand.u32 %v737, 4294901760
      %739 = vmatmul.f32.gmra.mxu0 %v738
      %v740 = vpop.f32.mrf.mxu0
      %v741 = vadd.f32 %v658, %v740
      %v742 = vand.u32 %v693, 4294901760
      %v743 = vsub.f32 %v693, %v742
      %v744 = vand.u32 %v743, 4294901760
      %v745 = vsub.f32 %v743, %v744
      %v746 = vand.u32 %v745, 4294901760
      %747 = vmatmul.f32.gmra.mxu0 %v746
      %v748 = vpop.f32.mrf.mxu0
      %v749 = vadd.f32 %v662, %v748
      %v750 = vand.u32 %v696, 4294901760
      %v751 = vsub.f32 %v696, %v750
      %v752 = vand.u32 %v751, 4294901760
      %v753 = vsub.f32 %v751, %v752
      %v754 = vand.u32 %v753, 4294901760
      %755 = vmatmul.f32.gmra.mxu0 %v754
      %v756 = vpop.f32.mrf.mxu0
      %v757 = vadd.f32 %v666, %v756
      %v758 = vand.u32 %v699, 4294901760
      %v759 = vsub.f32 %v699, %v758
      %v760 = vand.u32 %v759, 4294901760
      %v761 = vsub.f32 %v759, %v760
      %v762 = vand.u32 %v761, 4294901760
      %763 = vmatmul.f32.gmra.mxu0 %v762
      %v764 = vpop.f32.mrf.mxu0
      %v765 = vadd.f32 %v670, %v764
      %v766 = vand.u32 %v702, 4294901760
      %v767 = vsub.f32 %v702, %v766
      %v768 = vand.u32 %v767, 4294901760
      %v769 = vsub.f32 %v767, %v768
      %v770 = vand.u32 %v769, 4294901760
      %771 = vmatmul.f32.gmra.mxu0 %v770
      %v772 = vpop.f32.mrf.mxu0
      %v773 = vadd.f32 %v674, %v772
      %v774 = vand.u32 %v705, 4294901760
      %v775 = vsub.f32 %v705, %v774
      %v776 = vand.u32 %v775, 4294901760
      %v777 = vsub.f32 %v775, %v776
      %v778 = vand.u32 %v777, 4294901760
      %779 = vmatmul.f32.gmra.mxu0 %v778
      %v780 = vpop.f32.mrf.mxu0
      %v781 = vadd.f32 %v678, %v780
      %v782 = vand.u32 %v708, 4294901760
      %v783 = vsub.f32 %v708, %v782
      %v784 = vand.u32 %v783, 4294901760
      %v785 = vsub.f32 %v783, %v784
      %v786 = vand.u32 %v785, 4294901760
      %787 = vmatmul.f32.gmra.mxu0 %v786
      %v788 = vpop.f32.mrf.mxu0
      %v789 = vadd.f32 %v682, %v788
      %v790 = vand.u32 %v711, 4294901760
      %v791 = vsub.f32 %v711, %v790
      %v792 = vand.u32 %v791, 4294901760
      %v793 = vsub.f32 %v791, %v792
      %v794 = vand.u32 %v793, 4294901760
      %795 = vmatmul.f32.gmra.mxu0 %v794
      %v796 = vpop.f32.mrf.mxu0
      %v797 = vadd.f32 %v686, %v796
      %798 = vdwg.mxu0
      %799 = vmatpush.msra.mxu0 0.0
      %800 = vmatpush.msra.mxu0 0.0
      %801 = vmatpush.msra.mxu0 0.0
      %802 = vmatpush.msra.mxu0 0.0
      %803 = vmatpush.msra.mxu0 0.0
      %804 = vmatpush.msra.mxu0 0.0
      %805 = vmatpush.msra.mxu0 0.0
      %806 = vmatpush.msra.mxu0 0.0
      %807 = vmatpush.msra.mxu0 0.0
      %808 = vmatpush.msra.mxu0 0.0
      %809 = vmatpush.msra.mxu0 0.0
      %810 = vmatpush.msra.mxu0 0.0
      %811 = vmatpush.msra.mxu0 0.0
      %812 = vmatpush.msra.mxu0 0.0
      %v813 = vand.u32 %v714, 4294901760
      %v814 = vsub.f32 %v714, %v813
      %v815 = vand.u32 %v814, 4294901760
      %v816 = vsub.f32 %v814, %v815
      %v817 = vand.u32 %v816, 4294901760
      %818 = vmatpush.msra.mxu0 %v817
      %v819 = vand.u32 %v285, 4294901760
      %v820 = vsub.f32 %v285, %v819
      %v821 = vand.u32 %v820, 4294901760
      %v822 = vsub.f32 %v820, %v821
      %v823 = vand.u32 %v822, 4294901760
      %824 = vmatpush.msra.mxu0 %v823
      %v825 = vand.u32 %v690, 4294901760
      %826 = vmatmul.f32.gmra.mxu0 %v825
      %v827 = vpop.f32.mrf.mxu0
      %v828 = vadd.f32 %v741, %v827
      %v829 = vand.u32 %v693, 4294901760
      %830 = vmatmul.f32.gmra.mxu0 %v829
      %v831 = vpop.f32.mrf.mxu0
      %v832 = vadd.f32 %v749, %v831
      %v833 = vand.u32 %v696, 4294901760
      %834 = vmatmul.f32.gmra.mxu0 %v833
      %v835 = vpop.f32.mrf.mxu0
      %v836 = vadd.f32 %v757, %v835
      %v837 = vand.u32 %v699, 4294901760
      %838 = vmatmul.f32.gmra.mxu0 %v837
      %v839 = vpop.f32.mrf.mxu0
      %v840 = vadd.f32 %v765, %v839
      %v841 = vand.u32 %v702, 4294901760
      %842 = vmatmul.f32.gmra.mxu0 %v841
      %v843 = vpop.f32.mrf.mxu0
      %v844 = vadd.f32 %v773, %v843
      %v845 = vand.u32 %v705, 4294901760
      %846 = vmatmul.f32.gmra.mxu0 %v845
      %v847 = vpop.f32.mrf.mxu0
      %v848 = vadd.f32 %v781, %v847
      %v849 = vand.u32 %v708, 4294901760
      %850 = vmatmul.f32.gmra.mxu0 %v849
      %v851 = vpop.f32.mrf.mxu0
      %v852 = vadd.f32 %v789, %v851
      %v853 = vand.u32 %v711, 4294901760
      %854 = vmatmul.f32.gmra.mxu0 %v853
      %v855 = vpop.f32.mrf.mxu0
      %v856 = vadd.f32 %v797, %v855
      %857 = vdwg.mxu0
      %858 = vmatpush.msra.mxu0 0.0
      %859 = vmatpush.msra.mxu0 0.0
      %860 = vmatpush.msra.mxu0 0.0
      %861 = vmatpush.msra.mxu0 0.0
      %862 = vmatpush.msra.mxu0 0.0
      %863 = vmatpush.msra.mxu0 0.0
      %864 = vmatpush.msra.mxu0 0.0
      %865 = vmatpush.msra.mxu0 0.0
      %866 = vmatpush.msra.mxu0 0.0
      %867 = vmatpush.msra.mxu0 0.0
      %868 = vmatpush.msra.mxu0 0.0
      %869 = vmatpush.msra.mxu0 0.0
      %870 = vmatpush.msra.mxu0 0.0
      %871 = vmatpush.msra.mxu0 0.0
      %v872 = vand.u32 %v714, 4294901760
      %v873 = vsub.f32 %v714, %v872
      %874 = vmatpush.msra.mxu0 %v873
      %v875 = vand.u32 %v285, 4294901760
      %v876 = vsub.f32 %v285, %v875
      %877 = vmatpush.msra.mxu0 %v876
      %v878 = vand.u32 %v690, 4294901760
      %v879 = vsub.f32 %v690, %v878
      %880 = vmatmul.f32.gmra.mxu0 %v879
      %v881 = vpop.f32.mrf.mxu0
      %v882 = vadd.f32 %v828, %v881
      %v883 = vand.u32 %v693, 4294901760
      %v884 = vsub.f32 %v693, %v883
      %885 = vmatmul.f32.gmra.mxu0 %v884
      %v886 = vpop.f32.mrf.mxu0
      %v887 = vadd.f32 %v832, %v886
      %v888 = vand.u32 %v696, 4294901760
      %v889 = vsub.f32 %v696, %v888
      %890 = vmatmul.f32.gmra.mxu0 %v889
      %v891 = vpop.f32.mrf.mxu0
      %v892 = vadd.f32 %v836, %v891
      %v893 = vand.u32 %v699, 4294901760
      %v894 = vsub.f32 %v699, %v893
      %895 = vmatmul.f32.gmra.mxu0 %v894
      %v896 = vpop.f32.mrf.mxu0
      %v897 = vadd.f32 %v840, %v896
      %v898 = vand.u32 %v702, 4294901760
      %v899 = vsub.f32 %v702, %v898
      %900 = vmatmul.f32.gmra.mxu0 %v899
      %v901 = vpop.f32.mrf.mxu0
      %v902 = vadd.f32 %v844, %v901
      %v903 = vand.u32 %v705, 4294901760
      %v904 = vsub.f32 %v705, %v903
      %905 = vmatmul.f32.gmra.mxu0 %v904
      %v906 = vpop.f32.mrf.mxu0
      %v907 = vadd.f32 %v848, %v906
      %v908 = vand.u32 %v708, 4294901760
      %v909 = vsub.f32 %v708, %v908
      %910 = vmatmul.f32.gmra.mxu0 %v909
      %v911 = vpop.f32.mrf.mxu0
      %v912 = vadd.f32 %v852, %v911
      %v913 = vand.u32 %v711, 4294901760
      %v914 = vsub.f32 %v711, %v913
      %915 = vmatmul.f32.gmra.mxu0 %v914
      %v916 = vpop.f32.mrf.mxu0
      %v917 = vadd.f32 %v856, %v916
      %918 = vdwg.mxu0
      %919 = vmatpush.msra.mxu0 0.0
      %920 = vmatpush.msra.mxu0 0.0
      %921 = vmatpush.msra.mxu0 0.0
      %922 = vmatpush.msra.mxu0 0.0
      %923 = vmatpush.msra.mxu0 0.0
      %924 = vmatpush.msra.mxu0 0.0
      %925 = vmatpush.msra.mxu0 0.0
      %926 = vmatpush.msra.mxu0 0.0
      %927 = vmatpush.msra.mxu0 0.0
      %928 = vmatpush.msra.mxu0 0.0
      %929 = vmatpush.msra.mxu0 0.0
      %930 = vmatpush.msra.mxu0 0.0
      %931 = vmatpush.msra.mxu0 0.0
      %932 = vmatpush.msra.mxu0 0.0
      %v933 = vand.u32 %v714, 4294901760
      %934 = vmatpush.msra.mxu0 %v933
      %v935 = vand.u32 %v285, 4294901760
      %936 = vmatpush.msra.mxu0 %v935
      %v937 = vand.u32 %v690, 4294901760
      %v938 = vsub.f32 %v690, %v937
      %v939 = vand.u32 %v938, 4294901760
      %940 = vmatmul.f32.gmra.mxu0 %v939
      %v941 = vpop.f32.mrf.mxu0
      %v942 = vadd.f32 %v882, %v941
      %v943 = vand.u32 %v693, 4294901760
      %v944 = vsub.f32 %v693, %v943
      %v945 = vand.u32 %v944, 4294901760
      %946 = vmatmul.f32.gmra.mxu0 %v945
      %v947 = vpop.f32.mrf.mxu0
      %v948 = vadd.f32 %v887, %v947
      %v949 = vand.u32 %v696, 4294901760
      %v950 = vsub.f32 %v696, %v949
      %v951 = vand.u32 %v950, 4294901760
      %952 = vmatmul.f32.gmra.mxu0 %v951
      %v953 = vpop.f32.mrf.mxu0
      %v954 = vadd.f32 %v892, %v953
      %v955 = vand.u32 %v699, 4294901760
      %v956 = vsub.f32 %v699, %v955
      %v957 = vand.u32 %v956, 4294901760
      %958 = vmatmul.f32.gmra.mxu0 %v957
      %v959 = vpop.f32.mrf.mxu0
      %v960 = vadd.f32 %v897, %v959
      %v961 = vand.u32 %v702, 4294901760
      %v962 = vsub.f32 %v702, %v961
      %v963 = vand.u32 %v962, 4294901760
      %964 = vmatmul.f32.gmra.mxu0 %v963
      %v965 = vpop.f32.mrf.mxu0
      %v966 = vadd.f32 %v902, %v965
      %v967 = vand.u32 %v705, 4294901760
      %v968 = vsub.f32 %v705, %v967
      %v969 = vand.u32 %v968, 4294901760
      %970 = vmatmul.f32.gmra.mxu0 %v969
      %v971 = vpop.f32.mrf.mxu0
      %v972 = vadd.f32 %v907, %v971
      %v973 = vand.u32 %v708, 4294901760
      %v974 = vsub.f32 %v708, %v973
      %v975 = vand.u32 %v974, 4294901760
      %976 = vmatmul.f32.gmra.mxu0 %v975
      %v977 = vpop.f32.mrf.mxu0
      %v978 = vadd.f32 %v912, %v977
      %v979 = vand.u32 %v711, 4294901760
      %v980 = vsub.f32 %v711, %v979
      %v981 = vand.u32 %v980, 4294901760
      %982 = vmatmul.f32.gmra.mxu0 %v981
      %v983 = vpop.f32.mrf.mxu0
      %v984 = vadd.f32 %v917, %v983
      %985 = vdwg.mxu0
      %986 = vmatpush.msra.mxu0 0.0
      %987 = vmatpush.msra.mxu0 0.0
      %988 = vmatpush.msra.mxu0 0.0
      %989 = vmatpush.msra.mxu0 0.0
      %990 = vmatpush.msra.mxu0 0.0
      %991 = vmatpush.msra.mxu0 0.0
      %992 = vmatpush.msra.mxu0 0.0
      %993 = vmatpush.msra.mxu0 0.0
      %994 = vmatpush.msra.mxu0 0.0
      %995 = vmatpush.msra.mxu0 0.0
      %996 = vmatpush.msra.mxu0 0.0
      %997 = vmatpush.msra.mxu0 0.0
      %998 = vmatpush.msra.mxu0 0.0
      %999 = vmatpush.msra.mxu0 0.0
      %v1000 = vand.u32 %v714, 4294901760
      %v1001 = vsub.f32 %v714, %v1000
      %v1002 = vand.u32 %v1001, 4294901760
      %1003 = vmatpush.msra.mxu0 %v1002
      %v1004 = vand.u32 %v285, 4294901760
      %v1005 = vsub.f32 %v285, %v1004
      %v1006 = vand.u32 %v1005, 4294901760
      %1007 = vmatpush.msra.mxu0 %v1006
      %v1008 = vand.u32 %v690, 4294901760
      %1009 = vmatmul.f32.gmra.mxu0 %v1008
      %v1010 = vpop.f32.mrf.mxu0
      %v1011 = vadd.f32 %v942, %v1010
      %v1012 = vand.u32 %v693, 4294901760
      %1013 = vmatmul.f32.gmra.mxu0 %v1012
      %v1014 = vpop.f32.mrf.mxu0
      %v1015 = vadd.f32 %v948, %v1014
      %v1016 = vand.u32 %v696, 4294901760
      %1017 = vmatmul.f32.gmra.mxu0 %v1016
      %v1018 = vpop.f32.mrf.mxu0
      %v1019 = vadd.f32 %v954, %v1018
      %v1020 = vand.u32 %v699, 4294901760
      %1021 = vmatmul.f32.gmra.mxu0 %v1020
      %v1022 = vpop.f32.mrf.mxu0
      %v1023 = vadd.f32 %v960, %v1022
      %v1024 = vand.u32 %v702, 4294901760
      %1025 = vmatmul.f32.gmra.mxu0 %v1024
      %v1026 = vpop.f32.mrf.mxu0
      %v1027 = vadd.f32 %v966, %v1026
      %v1028 = vand.u32 %v705, 4294901760
      %1029 = vmatmul.f32.gmra.mxu0 %v1028
      %v1030 = vpop.f32.mrf.mxu0
      %v1031 = vadd.f32 %v972, %v1030
      %v1032 = vand.u32 %v708, 4294901760
      %1033 = vmatmul.f32.gmra.mxu0 %v1032
      %v1034 = vpop.f32.mrf.mxu0
      %v1035 = vadd.f32 %v978, %v1034
      %v1036 = vand.u32 %v711, 4294901760
      %1037 = vmatmul.f32.gmra.mxu0 %v1036
      %v1038 = vpop.f32.mrf.mxu0
      %v1039 = vadd.f32 %v984, %v1038
      %1040 = vdwg.mxu0
      %1041 = vmatpush.msra.mxu0 0.0
      %1042 = vmatpush.msra.mxu0 0.0
      %1043 = vmatpush.msra.mxu0 0.0
      %1044 = vmatpush.msra.mxu0 0.0
      %1045 = vmatpush.msra.mxu0 0.0
      %1046 = vmatpush.msra.mxu0 0.0
      %1047 = vmatpush.msra.mxu0 0.0
      %1048 = vmatpush.msra.mxu0 0.0
      %1049 = vmatpush.msra.mxu0 0.0
      %1050 = vmatpush.msra.mxu0 0.0
      %1051 = vmatpush.msra.mxu0 0.0
      %1052 = vmatpush.msra.mxu0 0.0
      %1053 = vmatpush.msra.mxu0 0.0
      %1054 = vmatpush.msra.mxu0 0.0
      %v1055 = vand.u32 %v714, 4294901760
      %1056 = vmatpush.msra.mxu0 %v1055
      %v1057 = vand.u32 %v285, 4294901760
      %1058 = vmatpush.msra.mxu0 %v1057
      %v1059 = vand.u32 %v690, 4294901760
      %1060 = vmatmul.f32.gmra.mxu0 %v1059
      %v1061 = vpop.f32.mrf.mxu0
      %v1062 = vadd.f32 %v1011, %v1061
      %v1063 = vand.u32 %v693, 4294901760
      %1064 = vmatmul.f32.gmra.mxu0 %v1063
      %v1065 = vpop.f32.mrf.mxu0
      %v1066 = vadd.f32 %v1015, %v1065
      %v1067 = vand.u32 %v696, 4294901760
      %1068 = vmatmul.f32.gmra.mxu0 %v1067
      %v1069 = vpop.f32.mrf.mxu0
      %v1070 = vadd.f32 %v1019, %v1069
      %v1071 = vand.u32 %v699, 4294901760
      %1072 = vmatmul.f32.gmra.mxu0 %v1071
      %v1073 = vpop.f32.mrf.mxu0
      %v1074 = vadd.f32 %v1023, %v1073
      %v1075 = vand.u32 %v702, 4294901760
      %1076 = vmatmul.f32.gmra.mxu0 %v1075
      %v1077 = vpop.f32.mrf.mxu0
      %v1078 = vadd.f32 %v1027, %v1077
      %v1079 = vand.u32 %v705, 4294901760
      %1080 = vmatmul.f32.gmra.mxu0 %v1079
      %v1081 = vpop.f32.mrf.mxu0
      %v1082 = vadd.f32 %v1031, %v1081
      %v1083 = vand.u32 %v708, 4294901760
      %1084 = vmatmul.f32.gmra.mxu0 %v1083
      %v1085 = vpop.f32.mrf.mxu0
      %v1086 = vadd.f32 %v1035, %v1085
      %v1087 = vand.u32 %v711, 4294901760
      %1088 = vmatmul.f32.gmra.mxu0 %v1087
      %v1089 = vpop.f32.mrf.mxu0
      %v1090 = vadd.f32 %v1039, %v1089
      %1091 = vdwg.mxu0
      %v1092 = vld [vmem:[%s4] sm:$0x1]
      %v1093 = vld [vmem:[%s5] sm:$0x1]
      %vm1094 = vcmask 64512
      %v1095 = vsel %vm1094, %v1062, 0.0
      %1096 = vadd.xlane.f32.xlu0 %v1095
      %v1097 = vpop.xlane.xlu0 %1096
      %v1098 = vsel %vm1094, %v1066, 0.0
      %1099 = vadd.xlane.f32.xlu0 %v1098
      %v1100 = vpop.xlane.xlu0 %1099
      %v1101 = vsel %vm1094, %v1070, 0.0
      %1102 = vadd.xlane.f32.xlu0 %v1101
      %v1103 = vpop.xlane.xlu0 %1102
      %v1104 = vsel %vm1094, %v1074, 0.0
      %1105 = vadd.xlane.f32.xlu0 %v1104
      %v1106 = vpop.xlane.xlu0 %1105
      %v1107 = vsel %vm1094, %v1078, 0.0
      %1108 = vadd.xlane.f32.xlu0 %v1107
      %v1109 = vpop.xlane.xlu0 %1108
      %v1110 = vsel %vm1094, %v1082, 0.0
      %1111 = vadd.xlane.f32.xlu0 %v1110
      %v1112 = vpop.xlane.xlu0 %1111
      %v1113 = vsel %vm1094, %v1086, 0.0
      %1114 = vadd.xlane.f32.xlu0 %v1113
      %v1115 = vpop.xlane.xlu0 %1114
      %v1116 = vsel %vm1094, %v1090, 0.0
      %1117 = vadd.xlane.f32.xlu0 %v1116
      %v1118 = vpop.xlane.xlu0 %1117
      %v1119 = vrcp.pop 8.0
      %v1120 = vmul.f32 8.0, %v1119
      %v1121 = vsub.f32 1.0, %v1120
      %v1122 = vmul.f32 %v1119, %v1121
      %v1123 = vadd.f32 %v1119, %v1122
      %vm1124 = vweird.f32 %v1119
      %v1125 = vsel %vm1124, %v1119, %v1123
      %v1126 = vmul.f32 %v1097, %v1125
      %v1127 = vmul.f32 %v1100, %v1125
      %v1128 = vmul.f32 %v1103, %v1125
      %v1129 = vmul.f32 %v1106, %v1125
      %v1130 = vmul.f32 %v1109, %v1125
      %v1131 = vmul.f32 %v1112, %v1125
      %v1132 = vmul.f32 %v1115, %v1125
      %v1133 = vmul.f32 %v1118, %v1125
      %v1134 = vsub.f32 %v1062, %v1126
      %v1135 = vsub.f32 %v1066, %v1127
      %v1136 = vsub.f32 %v1070, %v1128
      %v1137 = vsub.f32 %v1074, %v1129
      %v1138 = vsub.f32 %v1078, %v1130
      %v1139 = vsub.f32 %v1082, %v1131
      %v1140 = vsub.f32 %v1086, %v1132
      %v1141 = vsub.f32 %v1090, %v1133
      %v1142 = vmul.f32 %v1134, %v1134
      %v1143 = vmul.f32 %v1135, %v1135
      %v1144 = vmul.f32 %v1136, %v1136
      %v1145 = vmul.f32 %v1137, %v1137
      %v1146 = vmul.f32 %v1138, %v1138
      %v1147 = vmul.f32 %v1139, %v1139
      %v1148 = vmul.f32 %v1140, %v1140
      %v1149 = vmul.f32 %v1141, %v1141
      %v1150 = vsel %vm1094, %v1142, 0.0
      %1151 = vadd.xlane.f32.xlu0 %v1150
      %v1152 = vpop.xlane.xlu0 %1151
      %v1153 = vsel %vm1094, %v1143, 0.0
      %1154 = vadd.xlane.f32.xlu0 %v1153
      %v1155 = vpop.xlane.xlu0 %1154
      %v1156 = vsel %vm1094, %v1144, 0.0
      %1157 = vadd.xlane.f32.xlu0 %v1156
      %v1158 = vpop.xlane.xlu0 %1157
      %v1159 = vsel %vm1094, %v1145, 0.0
      %1160 = vadd.xlane.f32.xlu0 %v1159
      %v1161 = vpop.xlane.xlu0 %1160
      %v1162 = vsel %vm1094, %v1146, 0.0
      %1163 = vadd.xlane.f32.xlu0 %v1162
      %v1164 = vpop.xlane.xlu0 %1163
      %v1165 = vsel %vm1094, %v1147, 0.0
      %1166 = vadd.xlane.f32.xlu0 %v1165
      %v1167 = vpop.xlane.xlu0 %1166
      %v1168 = vsel %vm1094, %v1148, 0.0
      %1169 = vadd.xlane.f32.xlu0 %v1168
      %v1170 = vpop.xlane.xlu0 %1169
      %v1171 = vsel %vm1094, %v1149, 0.0
      %1172 = vadd.xlane.f32.xlu0 %v1171
      %v1173 = vpop.xlane.xlu0 %1172
      %v1174 = vmul.f32 %v1152, %v1125
      %v1175 = vmul.f32 %v1155, %v1125
      %v1176 = vmul.f32 %v1158, %v1125
      %v1177 = vmul.f32 %v1161, %v1125
      %v1178 = vmul.f32 %v1164, %v1125
      %v1179 = vmul.f32 %v1167, %v1125
      %v1180 = vmul.f32 %v1170, %v1125
      %v1181 = vmul.f32 %v1173, %v1125
      %v1182 = vadd.f32 %v1174, 1e-06
      %v1183 = vadd.f32 %v1175, 1e-06
      %v1184 = vadd.f32 %v1176, 1e-06
      %v1185 = vadd.f32 %v1177, 1e-06
      %v1186 = vadd.f32 %v1178, 1e-06
      %v1187 = vadd.f32 %v1179, 1e-06
      %v1188 = vadd.f32 %v1180, 1e-06
      %v1189 = vadd.f32 %v1181, 1e-06
      %v1190 = vrsqrt.pop %v1182
      %v1191 = vmul.f32 %v1190, %v1182
      %v1192 = vmul.f32 %v1191, %v1190
      %v1193 = vmul.f32 0.5, %v1192
      %v1194 = vsub.f32 1.5, %v1193
      %v1195 = vmul.f32 %v1190, %v1194
      %vm1196 = vweird.f32 %v1182
      %vm1197 = vweird.f32 %v1190
      %vm1198 = vmor %vm1196, %vm1197
      %v1199 = vsel %vm1198, %v1190, %v1195
      %v1200 = vrsqrt.pop %v1183
      %v1201 = vmul.f32 %v1200, %v1183
      %v1202 = vmul.f32 %v1201, %v1200
      %v1203 = vmul.f32 0.5, %v1202
      %v1204 = vsub.f32 1.5, %v1203
      %v1205 = vmul.f32 %v1200, %v1204
      %vm1206 = vweird.f32 %v1183
      %vm1207 = vweird.f32 %v1200
      %vm1208 = vmor %vm1206, %vm1207
      %v1209 = vsel %vm1208, %v1200, %v1205
      %v1210 = vrsqrt.pop %v1184
      %v1211 = vmul.f32 %v1210, %v1184
      %v1212 = vmul.f32 %v1211, %v1210
      %v1213 = vmul.f32 0.5, %v1212
      %v1214 = vsub.f32 1.5, %v1213
      %v1215 = vmul.f32 %v1210, %v1214
      %vm1216 = vweird.f32 %v1184
      %vm1217 = vweird.f32 %v1210
      %vm1218 = vmor %vm1216, %vm1217
      %v1219 = vsel %vm1218, %v1210, %v1215
      %v1220 = vrsqrt.pop %v1185
      %v1221 = vmul.f32 %v1220, %v1185
      %v1222 = vmul.f32 %v1221, %v1220
      %v1223 = vmul.f32 0.5, %v1222
      %v1224 = vsub.f32 1.5, %v1223
      %v1225 = vmul.f32 %v1220, %v1224
      %vm1226 = vweird.f32 %v1185
      %vm1227 = vweird.f32 %v1220
      %vm1228 = vmor %vm1226, %vm1227
      %v1229 = vsel %vm1228, %v1220, %v1225
      %v1230 = vrsqrt.pop %v1186
      %v1231 = vmul.f32 %v1230, %v1186
      %v1232 = vmul.f32 %v1231, %v1230
      %v1233 = vmul.f32 0.5, %v1232
      %v1234 = vsub.f32 1.5, %v1233
      %v1235 = vmul.f32 %v1230, %v1234
      %vm1236 = vweird.f32 %v1186
      %vm1237 = vweird.f32 %v1230
      %vm1238 = vmor %vm1236, %vm1237
      %v1239 = vsel %vm1238, %v1230, %v1235
      %v1240 = vrsqrt.pop %v1187
      %v1241 = vmul.f32 %v1240, %v1187
      %v1242 = vmul.f32 %v1241, %v1240
      %v1243 = vmul.f32 0.5, %v1242
      %v1244 = vsub.f32 1.5, %v1243
      %v1245 = vmul.f32 %v1240, %v1244
      %vm1246 = vweird.f32 %v1187
      %vm1247 = vweird.f32 %v1240
      %vm1248 = vmor %vm1246, %vm1247
      %v1249 = vsel %vm1248, %v1240, %v1245
      %v1250 = vrsqrt.pop %v1188
      %v1251 = vmul.f32 %v1250, %v1188
      %v1252 = vmul.f32 %v1251, %v1250
      %v1253 = vmul.f32 0.5, %v1252
      %v1254 = vsub.f32 1.5, %v1253
      %v1255 = vmul.f32 %v1250, %v1254
      %vm1256 = vweird.f32 %v1188
      %vm1257 = vweird.f32 %v1250
      %vm1258 = vmor %vm1256, %vm1257
      %v1259 = vsel %vm1258, %v1250, %v1255
      %v1260 = vrsqrt.pop %v1189
      %v1261 = vmul.f32 %v1260, %v1189
      %v1262 = vmul.f32 %v1261, %v1260
      %v1263 = vmul.f32 0.5, %v1262
      %v1264 = vsub.f32 1.5, %v1263
      %v1265 = vmul.f32 %v1260, %v1264
      %vm1266 = vweird.f32 %v1189
      %vm1267 = vweird.f32 %v1260
      %vm1268 = vmor %vm1266, %vm1267
      %v1269 = vsel %vm1268, %v1260, %v1265
      %v1270 = vmul.f32 %v1134, %v1199
      %v1271 = vmul.f32 %v1135, %v1209
      %v1272 = vmul.f32 %v1136, %v1219
      %v1273 = vmul.f32 %v1137, %v1229
      %v1274 = vmul.f32 %v1138, %v1239
      %v1275 = vmul.f32 %v1139, %v1249
      %v1276 = vmul.f32 %v1140, %v1259
      %v1277 = vmul.f32 %v1141, %v1269
      %v1279 = vperm.slane %v1092, 0
      %v1281 = vmul.f32 %v1279, %v1270
      %v1282 = vmul.f32 %v1279, %v1271
      %v1283 = vmul.f32 %v1279, %v1272
      %v1284 = vmul.f32 %v1279, %v1273
      %v1285 = vmul.f32 %v1279, %v1274
      %v1286 = vmul.f32 %v1279, %v1275
      %v1287 = vmul.f32 %v1279, %v1276
      %v1288 = vmul.f32 %v1279, %v1277
      %v1290 = vperm.slane %v1093, 0
      %v1292 = vadd.f32 %v1281, %v1290
      %v1293 = vadd.f32 %v1282, %v1290
      %v1294 = vadd.f32 %v1283, %v1290
      %v1295 = vadd.f32 %v1284, %v1290
      %v1296 = vadd.f32 %v1285, %v1290
      %v1297 = vadd.f32 %v1286, %v1290
      %v1298 = vadd.f32 %v1287, %v1290
      %v1299 = vadd.f32 %v1288, %v1290
      %v1300 = vxor.u32 %v1292, 2147483648
      %v1301 = vxor.u32 %v1293, 2147483648
      %v1302 = vxor.u32 %v1294, 2147483648
      %v1303 = vxor.u32 %v1295, 2147483648
      %v1304 = vxor.u32 %v1296, 2147483648
      %v1305 = vxor.u32 %v1297, 2147483648
      %v1306 = vxor.u32 %v1298, 2147483648
      %v1307 = vxor.u32 %v1299, 2147483648
      %v1308 = vmul.f32 %v1300, 1.442695
      %v1309 = vpow.pop %v1308
      %v1310 = vmul.f32 %v1301, 1.442695
      %v1311 = vpow.pop %v1310
      %v1312 = vmul.f32 %v1302, 1.442695
      %v1313 = vpow.pop %v1312
      %v1314 = vmul.f32 %v1303, 1.442695
      %v1315 = vpow.pop %v1314
      %v1316 = vmul.f32 %v1304, 1.442695
      %v1317 = vpow.pop %v1316
      %v1318 = vmul.f32 %v1305, 1.442695
      %v1319 = vpow.pop %v1318
      %v1320 = vmul.f32 %v1306, 1.442695
      %v1321 = vpow.pop %v1320
      %v1322 = vmul.f32 %v1307, 1.442695
      %v1323 = vpow.pop %v1322
      %v1324 = vadd.f32 %v1309, 1.0
      %v1325 = vadd.f32 %v1311, 1.0
      %v1326 = vadd.f32 %v1313, 1.0
      %v1327 = vadd.f32 %v1315, 1.0
      %v1328 = vadd.f32 %v1317, 1.0
      %v1329 = vadd.f32 %v1319, 1.0
      %v1330 = vadd.f32 %v1321, 1.0
      %v1331 = vadd.f32 %v1323, 1.0
      %v1332 = vrcp.pop %v1324
      %v1333 = vmul.f32 %v1324, %v1332
      %v1334 = vsub.f32 1.0, %v1333
      %v1335 = vmul.f32 %v1332, %v1334
      %v1336 = vadd.f32 %v1332, %v1335
      %vm1337 = vweird.f32 %v1324
      %vm1338 = vweird.f32 %v1332
      %vm1339 = vmor %vm1337, %vm1338
      %v1340 = vsel %vm1339, %v1332, %v1336
      %v1341 = vand.u32 2147483647, %v1324
      %vm1342 = vcmp.eq.f32.partialorder %v1341, 8.507059e+37
      %v1343 = vand.u32 %v1324, 2147483648
      %v1344 = vor.u32 1.1754944e-38, %v1343
      %v1345 = vsel %vm1342, %v1344, %v1340
      %v1346 = vmul.f32 1.0, %v1345
      %v1347 = vrcp.pop %v1325
      %v1348 = vmul.f32 %v1325, %v1347
      %v1349 = vsub.f32 1.0, %v1348
      %v1350 = vmul.f32 %v1347, %v1349
      %v1351 = vadd.f32 %v1347, %v1350
      %vm1352 = vweird.f32 %v1325
      %vm1353 = vweird.f32 %v1347
      %vm1354 = vmor %vm1352, %vm1353
      %v1355 = vsel %vm1354, %v1347, %v1351
      %v1356 = vand.u32 2147483647, %v1325
      %vm1357 = vcmp.eq.f32.partialorder %v1356, 8.507059e+37
      %v1358 = vand.u32 %v1325, 2147483648
      %v1359 = vor.u32 1.1754944e-38, %v1358
      %v1360 = vsel %vm1357, %v1359, %v1355
      %v1361 = vmul.f32 1.0, %v1360
      %v1362 = vrcp.pop %v1326
      %v1363 = vmul.f32 %v1326, %v1362
      %v1364 = vsub.f32 1.0, %v1363
      %v1365 = vmul.f32 %v1362, %v1364
      %v1366 = vadd.f32 %v1362, %v1365
      %vm1367 = vweird.f32 %v1326
      %vm1368 = vweird.f32 %v1362
      %vm1369 = vmor %vm1367, %vm1368
      %v1370 = vsel %vm1369, %v1362, %v1366
      %v1371 = vand.u32 2147483647, %v1326
      %vm1372 = vcmp.eq.f32.partialorder %v1371, 8.507059e+37
      %v1373 = vand.u32 %v1326, 2147483648
      %v1374 = vor.u32 1.1754944e-38, %v1373
      %v1375 = vsel %vm1372, %v1374, %v1370
      %v1376 = vmul.f32 1.0, %v1375
      %v1377 = vrcp.pop %v1327
      %v1378 = vmul.f32 %v1327, %v1377
      %v1379 = vsub.f32 1.0, %v1378
      %v1380 = vmul.f32 %v1377, %v1379
      %v1381 = vadd.f32 %v1377, %v1380
      %vm1382 = vweird.f32 %v1327
      %vm1383 = vweird.f32 %v1377
      %vm1384 = vmor %vm1382, %vm1383
      %v1385 = vsel %vm1384, %v1377, %v1381
      %v1386 = vand.u32 2147483647, %v1327
      %vm1387 = vcmp.eq.f32.partialorder %v1386, 8.507059e+37
      %v1388 = vand.u32 %v1327, 2147483648
      %v1389 = vor.u32 1.1754944e-38, %v1388
      %v1390 = vsel %vm1387, %v1389, %v1385
      %v1391 = vmul.f32 1.0, %v1390
      %v1392 = vrcp.pop %v1328
      %v1393 = vmul.f32 %v1328, %v1392
      %v1394 = vsub.f32 1.0, %v1393
      %v1395 = vmul.f32 %v1392, %v1394
      %v1396 = vadd.f32 %v1392, %v1395
      %vm1397 = vweird.f32 %v1328
      %vm1398 = vweird.f32 %v1392
      %vm1399 = vmor %vm1397, %vm1398
      %v1400 = vsel %vm1399, %v1392, %v1396
      %v1401 = vand.u32 2147483647, %v1328
      %vm1402 = vcmp.eq.f32.partialorder %v1401, 8.507059e+37
      %v1403 = vand.u32 %v1328, 2147483648
      %v1404 = vor.u32 1.1754944e-38, %v1403
      %v1405 = vsel %vm1402, %v1404, %v1400
      %v1406 = vmul.f32 1.0, %v1405
      %v1407 = vrcp.pop %v1329
      %v1408 = vmul.f32 %v1329, %v1407
      %v1409 = vsub.f32 1.0, %v1408
      %v1410 = vmul.f32 %v1407, %v1409
      %v1411 = vadd.f32 %v1407, %v1410
      %vm1412 = vweird.f32 %v1329
      %vm1413 = vweird.f32 %v1407
      %vm1414 = vmor %vm1412, %vm1413
      %v1415 = vsel %vm1414, %v1407, %v1411
      %v1416 = vand.u32 2147483647, %v1329
      %vm1417 = vcmp.eq.f32.partialorder %v1416, 8.507059e+37
      %v1418 = vand.u32 %v1329, 2147483648
      %v1419 = vor.u32 1.1754944e-38, %v1418
      %v1420 = vsel %vm1417, %v1419, %v1415
      %v1421 = vmul.f32 1.0, %v1420
      %v1422 = vrcp.pop %v1330
      %v1423 = vmul.f32 %v1330, %v1422
      %v1424 = vsub.f32 1.0, %v1423
      %v1425 = vmul.f32 %v1422, %v1424
      %v1426 = vadd.f32 %v1422, %v1425
      %vm1427 = vweird.f32 %v1330
      %vm1428 = vweird.f32 %v1422
      %vm1429 = vmor %vm1427, %vm1428
      %v1430 = vsel %vm1429, %v1422, %v1426
      %v1431 = vand.u32 2147483647, %v1330
      %vm1432 = vcmp.eq.f32.partialorder %v1431, 8.507059e+37
      %v1433 = vand.u32 %v1330, 2147483648
      %v1434 = vor.u32 1.1754944e-38, %v1433
      %v1435 = vsel %vm1432, %v1434, %v1430
      %v1436 = vmul.f32 1.0, %v1435
      %v1437 = vrcp.pop %v1331
      %v1438 = vmul.f32 %v1331, %v1437
      %v1439 = vsub.f32 1.0, %v1438
      %v1440 = vmul.f32 %v1437, %v1439
      %v1441 = vadd.f32 %v1437, %v1440
      %vm1442 = vweird.f32 %v1331
      %vm1443 = vweird.f32 %v1437
      %vm1444 = vmor %vm1442, %vm1443
      %v1445 = vsel %vm1444, %v1437, %v1441
      %v1446 = vand.u32 2147483647, %v1331
      %vm1447 = vcmp.eq.f32.partialorder %v1446, 8.507059e+37
      %v1448 = vand.u32 %v1331, 2147483648
      %v1449 = vor.u32 1.1754944e-38, %v1448
      %v1450 = vsel %vm1447, %v1449, %v1445
      %v1451 = vmul.f32 1.0, %v1450
      %v1452 = vmul.f32 %v1292, %v1346
      %v1453 = vmul.f32 %v1293, %v1361
      %v1454 = vmul.f32 %v1294, %v1376
      %v1455 = vmul.f32 %v1295, %v1391
      %v1456 = vmul.f32 %v1296, %v1406
      %v1457 = vmul.f32 %v1297, %v1421
      %v1458 = vmul.f32 %v1298, %v1436
      %v1459 = vmul.f32 %v1299, %v1451
      %1460 = vst.msk [vmem:[%s275] sm:$0xff] %vm1094, %v1452
      %1461 = vst.msk [vmem:[%s275 + $0x8] sm:$0xff] %vm1094, %v1453
      %1462 = vst.msk [vmem:[%s275 + $0x10] sm:$0xff] %vm1094, %v1454
      %1463 = vst.msk [vmem:[%s275 + $0x18] sm:$0xff] %vm1094, %v1455
      %1464 = vst.msk [vmem:[%s275 + $0x20] sm:$0xff] %vm1094, %v1456
      %1465 = vst.msk [vmem:[%s275 + $0x28] sm:$0xff] %vm1094, %v1457
      %1466 = vst.msk [vmem:[%s275 + $0x30] sm:$0xff] %vm1094, %v1458
      %1467 = vst.msk [vmem:[%s275 + $0x38] sm:$0xff] %vm1094, %v1459
      %s1468 = smul.u32 8, %s17
      %p1469 = scmp.lt.s32.totalorder %s1468, 15
      %s1470 = scalar_select %p1469, %s1468, 15
      %s1471 = smul.addr %s1470, 8
      %s1472 = scalar_lea.vmem %s6, %s1471
      // Predicated region
      $region45: #{mbfd_forward.7} parent=43 // pred_check
        %p1473 = pneg %p171
      $region46: #{mbfd_forward.7} parent=43 // pred_check_branch
        %1475 = sbr.rel (%p1473) target = $region48
      $region47: #{mbfd_forward.7} parent=43 // pred_region
        %s1476 = smul.u32 8, %s17
      $region48: #{mbfd_forward.7} parent=43 // pred_fallthru
        _
    $region44: #{mbfd_forward.7} parent=5 // pred_fallthru
      _
    %p1477 = scmp.le.s32.totalorder 2, %s12
    // Predicated region
    $region49: #{mbfd_forward.7} parent=5 // pred_check
      %p1478 = pneg %p1477
    $region50: #{mbfd_forward.7} parent=5 // pred_check_branch
      %1480 = sbr.rel (%p1478) target = $region52
    $region51: #{mbfd_forward.7} parent=5 // pred_region
      %s1481 = ssub.s32 %s12, 2
      // Predicated region
      $region53: #{mbfd_forward.7} parent=51 // pred_check
        %p1482 = pneg %p177
      $region54: #{mbfd_forward.7} parent=51 // pred_check_branch
        %1484 = sbr.rel (%p1482) target = $region56
      $region55: #{mbfd_forward.7} parent=51 // pred_region
        %s1485 = smul.u32 8, %s18
        %p1486 = scmp.lt.s32.totalorder %s1485, 15
        %s1487 = scalar_select %p1486, %s1485, 15
        %s1488 = smul.addr %s1487, 8
        %s1489 = scalar_lea.vmem %s6, %s1488
      $region56: #{mbfd_forward.7} parent=51 // pred_fallthru
        _
    $region52: #{mbfd_forward.7} parent=5 // pred_fallthru
      _
  $region6: #{mbfd_forward.7} parent=0 // loop_footer
    %s16 = sadd.s32 1, %s12
  $region7: #{mbfd_forward.7} parent=0 // loop_footer_branch
    %11 = sbr.rel target = $region3
  $region8: #{mbfd_forward.7} parent=0 // loop_exit
    _

// kernel: mbfd_forward.6
$region0: #{mbfd_forward.6}
  #allocation0 [shape = 'u32[]', space=smem, size = 0x4, offset = 0x4, fixed_abs, tag = 'smem constant byte address 0x4 - core index']
  #allocation1 [shape = 'u32[72,128]{1,0:T(1,128)}', space=vmem, size = 0x9000, scoped, tag = 'internal scratch']
  %s0 = inlined_call_operand.vmem [shape: f32[128,4], index: 0, kind: input, shape index: {}]
  %s1 = inlined_call_operand.vmem [shape: f32[128,4], index: 1, kind: input, shape index: {}]
  %s2 = inlined_call_operand.vmem [shape: f32[128,4], index: 2, kind: input, shape index: {}]
  %s3 = inlined_call_operand.vmem [shape: f32[128,4], index: 3, kind: input, shape index: {}]
  %s4 = inlined_call_operand.vmem [shape: f32[4,4], index: 4, kind: input, shape index: {}]
  %s5 = inlined_call_operand.vmem [shape: f32[4,4], index: 5, kind: input, shape index: {}]
  %s6 = inlined_call_operand.vmem [shape: f32[1,4], index: 6, kind: input, shape index: {}]
  %s7 = inlined_call_operand.vmem [shape: f32[1,4], index: 7, kind: input, shape index: {}]
  %s8 = inlined_call_operand.vmem [shape: f32[1,4], index: 8, kind: input, shape index: {}]
  %s9 = inlined_call_operand.vmem [shape: f32[128,4], index: 9, kind: output, shape index: {}]
  %s10 = sld [smem:[#allocation0]]
  $region69: #{mbfd_forward.6} parent=0
    _
  %s12 = ssub.s32 1, %s10
  %s13 = scalar_select 0, %s12, %s10
  loop: start=0, step=1, limit=4
  $region2: #{mbfd_forward.6} parent=0 // loop_pre_header
    _
  $region3: #{mbfd_forward.6} parent=0 // loop_header
    %s15 = sphi 0, %s19
    %p16 = scmp.ge.s32.totalorder %s15, 4
    %s25 = sphi 0, %s27
    %s28 = sphi 0, %s25
    %s29 = sphi 0, %s28
    %s45 = sphi 0, %s29
    %s51 = sphi 0, %s53
    %s54 = sphi 0, %s51
    %s55 = sphi 0, %s54
    %s71 = sphi 0, %s55
    %s77 = sphi 0, %s79
    %s80 = sphi 0, %s77
    %s81 = sphi 0, %s80
    %s97 = sphi 0, %s81
    %s103 = sphi 0, %s105
    %s106 = sphi 0, %s103
    %s107 = sphi 0, %s106
    %s123 = sphi 0, %s107
    %s127 = sphi 0, %s127
    %s129 = sphi 0, %s127
    %s130 = sphi 0, %s129
    %s144 = sphi 0, %s130
    %s148 = sphi 0, %s148
    %s150 = sphi 0, %s148
    %s151 = sphi 0, %s150
    %s165 = sphi 0, %s151
    %s169 = sphi 0, %s169
    %s171 = sphi 0, %s169
    %s172 = sphi 0, %s171
    %s186 = sphi 0, %s172
    %s190 = sphi 0, %s190
    %s192 = sphi 0, %s190
    %s193 = sphi 0, %s192
    %s207 = sphi 0, %s193
    %s211 = sphi 0, %s211
    %s213 = sphi 0, %s211
    %s214 = sphi 0, %s213
    %s228 = sphi 0, %s214
    %s234 = sphi 0, %s236
    %s237 = sphi 0, %s234
    %s238 = sphi 0, %s237
    %s254 = sphi 0, %s238
  $region4: #{mbfd_forward.6} parent=0 // loop_header_branch
    %18 = sbr.rel (%p16) target = $region8
  $region5: #{mbfd_forward.6} parent=0 // loop_body
    %s20 = ssub.s32 %s15, 1
    %s21 = ssub.s32 %s15, 2
    %s22 = sadd.s32 %s15, 1
    %s23 = ssub.s32 %s15, %s22
    %p24 = scmp.eq.s32.totalorder %s23, 0
    %s26 = sadd.s32 %s25, 1
    %s27 = scalar_select %p24, %s25, %s26
    %p30 = pneg %p24
    %p31 = scmp.eq.s32.totalorder %s15, 1
    %p32 = por %p30, %p31
    %p33 = scmp.ne.s32.totalorder %s25, %s28
    %p34 = scmp.eq.s32.totalorder %s15, 0
    %p35 = por %p33, %p34
    %p36 = scmp.ne.s32.totalorder %s25, %s28
    %p37 = scmp.eq.s32.totalorder %s20, 1
    %p38 = por %p36, %p37
    %p39 = scmp.ne.s32.totalorder %s28, %s29
    %p40 = scmp.eq.s32.totalorder %s20, 0
    %p41 = por %p39, %p40
    %p42 = scmp.ne.s32.totalorder %s28, %s29
    %p43 = scmp.eq.s32.totalorder %s21, 1
    %p44 = por %p42, %p43
    %p46 = scmp.ne.s32.totalorder %s29, %s45
    %p47 = scmp.eq.s32.totalorder %s21, 0
    %p48 = por %p46, %p47
    %s49 = ssub.s32 %s15, %s22
    %p50 = scmp.eq.s32.totalorder %s49, 0
    %s52 = sadd.s32 %s51, 1
    %s53 = scalar_select %p50, %s51, %s52
    %p56 = pneg %p50
    %p57 = scmp.eq.s32.totalorder %s15, 1
    %p58 = por %p56, %p57
    %p59 = scmp.ne.s32.totalorder %s51, %s54
    %p60 = scmp.eq.s32.totalorder %s15, 0
    %p61 = por %p59, %p60
    %p62 = scmp.ne.s32.totalorder %s51, %s54
    %p63 = scmp.eq.s32.totalorder %s20, 1
    %p64 = por %p62, %p63
    %p65 = scmp.ne.s32.totalorder %s54, %s55
    %p66 = scmp.eq.s32.totalorder %s20, 0
    %p67 = por %p65, %p66
    %p68 = scmp.ne.s32.totalorder %s54, %s55
    %p69 = scmp.eq.s32.totalorder %s21, 1
    %p70 = por %p68, %p69
    %p72 = scmp.ne.s32.totalorder %s55, %s71
    %p73 = scmp.eq.s32.totalorder %s21, 0
    %p74 = por %p72, %p73
    %s75 = ssub.s32 %s15, %s22
    %p76 = scmp.eq.s32.totalorder %s75, 0
    %s78 = sadd.s32 %s77, 1
    %s79 = scalar_select %p76, %s77, %s78
    %p82 = pneg %p76
    %p83 = scmp.eq.s32.totalorder %s15, 1
    %p84 = por %p82, %p83
    %p85 = scmp.ne.s32.totalorder %s77, %s80
    %p86 = scmp.eq.s32.totalorder %s15, 0
    %p87 = por %p85, %p86
    %p88 = scmp.ne.s32.totalorder %s77, %s80
    %p89 = scmp.eq.s32.totalorder %s20, 1
    %p90 = por %p88, %p89
    %p91 = scmp.ne.s32.totalorder %s80, %s81
    %p92 = scmp.eq.s32.totalorder %s20, 0
    %p93 = por %p91, %p92
    %p94 = scmp.ne.s32.totalorder %s80, %s81
    %p95 = scmp.eq.s32.totalorder %s21, 1
    %p96 = por %p94, %p95
    %p98 = scmp.ne.s32.totalorder %s81, %s97
    %p99 = scmp.eq.s32.totalorder %s21, 0
    %p100 = por %p98, %p99
    %s101 = ssub.s32 %s15, %s22
    %p102 = scmp.eq.s32.totalorder %s101, 0
    %s104 = sadd.s32 %s103, 1
    %s105 = scalar_select %p102, %s103, %s104
    %p108 = pneg %p102
    %p109 = scmp.eq.s32.totalorder %s15, 1
    %p110 = por %p108, %p109
    %p111 = scmp.ne.s32.totalorder %s103, %s106
    %p112 = scmp.eq.s32.totalorder %s15, 0
    %p113 = por %p111, %p112
    %p114 = scmp.ne.s32.totalorder %s103, %s106
    %p115 = scmp.eq.s32.totalorder %s20, 1
    %p116 = por %p114, %p115
    %p117 = scmp.ne.s32.totalorder %s106, %s107
    %p118 = scmp.eq.s32.totalorder %s20, 0
    %p119 = por %p117, %p118
    %p120 = scmp.ne.s32.totalorder %s106, %s107
    %p121 = scmp.eq.s32.totalorder %s21, 1
    %p122 = por %p120, %p121
    %p124 = scmp.ne.s32.totalorder %s107, %s123
    %p125 = scmp.eq.s32.totalorder %s21, 0
    %p126 = por %p124, %p125
    %s128 = sadd.s32 %s127, 1
    %p131 = scmp.eq.s32.totalorder %s15, 1
    %p132 = scmp.ne.s32.totalorder %s127, %s129
    %p133 = scmp.eq.s32.totalorder %s15, 0
    %p134 = por %p132, %p133
    %p135 = scmp.ne.s32.totalorder %s127, %s129
    %p136 = scmp.eq.s32.totalorder %s20, 1
    %p137 = por %p135, %p136
    %p138 = scmp.ne.s32.totalorder %s129, %s130
    %p139 = scmp.eq.s32.totalorder %s20, 0
    %p140 = por %p138, %p139
    %p141 = scmp.ne.s32.totalorder %s129, %s130
    %p142 = scmp.eq.s32.totalorder %s21, 1
    %p143 = por %p141, %p142
    %p145 = scmp.ne.s32.totalorder %s130, %s144
    %p146 = scmp.eq.s32.totalorder %s21, 0
    %p147 = por %p145, %p146
    %s149 = sadd.s32 %s148, 1
    %p152 = scmp.eq.s32.totalorder %s15, 1
    %p153 = scmp.ne.s32.totalorder %s148, %s150
    %p154 = scmp.eq.s32.totalorder %s15, 0
    %p155 = por %p153, %p154
    %p156 = scmp.ne.s32.totalorder %s148, %s150
    %p157 = scmp.eq.s32.totalorder %s20, 1
    %p158 = por %p156, %p157
    %p159 = scmp.ne.s32.totalorder %s150, %s151
    %p160 = scmp.eq.s32.totalorder %s20, 0
    %p161 = por %p159, %p160
    %p162 = scmp.ne.s32.totalorder %s150, %s151
    %p163 = scmp.eq.s32.totalorder %s21, 1
    %p164 = por %p162, %p163
    %p166 = scmp.ne.s32.totalorder %s151, %s165
    %p167 = scmp.eq.s32.totalorder %s21, 0
    %p168 = por %p166, %p167
    %s170 = sadd.s32 %s169, 1
    %p173 = scmp.eq.s32.totalorder %s15, 1
    %p174 = scmp.ne.s32.totalorder %s169, %s171
    %p175 = scmp.eq.s32.totalorder %s15, 0
    %p176 = por %p174, %p175
    %p177 = scmp.ne.s32.totalorder %s169, %s171
    %p178 = scmp.eq.s32.totalorder %s20, 1
    %p179 = por %p177, %p178
    %p180 = scmp.ne.s32.totalorder %s171, %s172
    %p181 = scmp.eq.s32.totalorder %s20, 0
    %p182 = por %p180, %p181
    %p183 = scmp.ne.s32.totalorder %s171, %s172
    %p184 = scmp.eq.s32.totalorder %s21, 1
    %p185 = por %p183, %p184
    %p187 = scmp.ne.s32.totalorder %s172, %s186
    %p188 = scmp.eq.s32.totalorder %s21, 0
    %p189 = por %p187, %p188
    %s191 = sadd.s32 %s190, 1
    %p194 = scmp.eq.s32.totalorder %s15, 1
    %p195 = scmp.ne.s32.totalorder %s190, %s192
    %p196 = scmp.eq.s32.totalorder %s15, 0
    %p197 = por %p195, %p196
    %p198 = scmp.ne.s32.totalorder %s190, %s192
    %p199 = scmp.eq.s32.totalorder %s20, 1
    %p200 = por %p198, %p199
    %p201 = scmp.ne.s32.totalorder %s192, %s193
    %p202 = scmp.eq.s32.totalorder %s20, 0
    %p203 = por %p201, %p202
    %p204 = scmp.ne.s32.totalorder %s192, %s193
    %p205 = scmp.eq.s32.totalorder %s21, 1
    %p206 = por %p204, %p205
    %p208 = scmp.ne.s32.totalorder %s193, %s207
    %p209 = scmp.eq.s32.totalorder %s21, 0
    %p210 = por %p208, %p209
    %s212 = sadd.s32 %s211, 1
    %p215 = scmp.eq.s32.totalorder %s15, 1
    %p216 = scmp.ne.s32.totalorder %s211, %s213
    %p217 = scmp.eq.s32.totalorder %s15, 0
    %p218 = por %p216, %p217
    %p219 = scmp.ne.s32.totalorder %s211, %s213
    %p220 = scmp.eq.s32.totalorder %s20, 1
    %p221 = por %p219, %p220
    %p222 = scmp.ne.s32.totalorder %s213, %s214
    %p223 = scmp.eq.s32.totalorder %s20, 0
    %p224 = por %p222, %p223
    %p225 = scmp.ne.s32.totalorder %s213, %s214
    %p226 = scmp.eq.s32.totalorder %s21, 1
    %p227 = por %p225, %p226
    %p229 = scmp.ne.s32.totalorder %s214, %s228
    %p230 = scmp.eq.s32.totalorder %s21, 0
    %p231 = por %p229, %p230
    %s232 = ssub.s32 %s15, %s22
    %p233 = scmp.eq.s32.totalorder %s232, 0
    %s235 = sadd.s32 %s234, 1
    %s236 = scalar_select %p233, %s234, %s235
    %p239 = pneg %p233
    %p240 = scmp.eq.s32.totalorder %s15, 1
    %p241 = por %p239, %p240
    %p242 = scmp.ne.s32.totalorder %s234, %s237
    %p243 = scmp.eq.s32.totalorder %s15, 0
    %p244 = por %p242, %p243
    %p245 = scmp.ne.s32.totalorder %s234, %s237
    %p246 = scmp.eq.s32.totalorder %s20, 1
    %p247 = por %p245, %p246
    %p248 = scmp.ne.s32.totalorder %s237, %s238
    %p249 = scmp.eq.s32.totalorder %s20, 0
    %p250 = por %p248, %p249
    %p251 = scmp.ne.s32.totalorder %s237, %s238
    %p252 = scmp.eq.s32.totalorder %s21, 1
    %p253 = por %p251, %p252
    %p255 = scmp.ne.s32.totalorder %s238, %s254
    %p256 = scmp.eq.s32.totalorder %s21, 0
    %p257 = por %p255, %p256
    %p258 = scmp.le.s32.totalorder 1, %s15
    %p259 = scmp.lt.s32.totalorder %s15, 3
    %p260 = pnand %p258, %p259
    %p261 = pneg %p260
    // Predicated region
    $region9: #{mbfd_forward.6} parent=5 // pred_check
      _
    $region10: #{mbfd_forward.6} parent=5 // pred_check_branch
      %263 = sbr.rel (%p260) target = $region12
    $region11: #{mbfd_forward.6} parent=5 // pred_region
      %s264 = ssub.s32 %s15, 1
      // Predicated region
      $region13: #{mbfd_forward.6} parent=11 // pred_check
        %p265 = pneg %p140
      $region14: #{mbfd_forward.6} parent=11 // pred_check_branch
        %267 = sbr.rel (%p265) target = $region16
      $region15: #{mbfd_forward.6} parent=11 // pred_region
        _
      $region16: #{mbfd_forward.6} parent=11 // pred_fallthru
        _
      // Predicated region
      $region17: #{mbfd_forward.6} parent=11 // pred_check
        %p268 = pneg %p161
      $region18: #{mbfd_forward.6} parent=11 // pred_check_branch
        %270 = sbr.rel (%p268) target = $region20
      $region19: #{mbfd_forward.6} parent=11 // pred_region
        _
      $region20: #{mbfd_forward.6} parent=11 // pred_fallthru
        _
      // Predicated region
      $region21: #{mbfd_forward.6} parent=11 // pred_check
        %p271 = pneg %p182
      $region22: #{mbfd_forward.6} parent=11 // pred_check_branch
        %273 = sbr.rel (%p271) target = $region24
      $region23: #{mbfd_forward.6} parent=11 // pred_region
        _
      $region24: #{mbfd_forward.6} parent=11 // pred_fallthru
        _
      // Predicated region
      $region25: #{mbfd_forward.6} parent=11 // pred_check
        %p274 = pneg %p203
      $region26: #{mbfd_forward.6} parent=11 // pred_check_branch
        %276 = sbr.rel (%p274) target = $region28
      $region27: #{mbfd_forward.6} parent=11 // pred_region
        _
      $region28: #{mbfd_forward.6} parent=11 // pred_fallthru
        _
      // Predicated region
      $region29: #{mbfd_forward.6} parent=11 // pred_check
        %p277 = pneg %p224
      $region30: #{mbfd_forward.6} parent=11 // pred_check_branch
        %279 = sbr.rel (%p277) target = $region32
      $region31: #{mbfd_forward.6} parent=11 // pred_region
        _
      $region32: #{mbfd_forward.6} parent=11 // pred_fallthru
        _
    $region12: #{mbfd_forward.6} parent=5 // pred_fallthru
      _
    %p280 = scmp.lt.s32.totalorder %s15, 2
    // Predicated region
    $region33: #{mbfd_forward.6} parent=5 // pred_check
      %p281 = pneg %p280
    $region34: #{mbfd_forward.6} parent=5 // pred_check_branch
      %283 = sbr.rel (%p281) target = $region36
    $region35: #{mbfd_forward.6} parent=5 // pred_region
      // Predicated region
      $region37: #{mbfd_forward.6} parent=35 // pred_check
        %p284 = pneg %p35
      $region38: #{mbfd_forward.6} parent=35 // pred_check_branch
        %286 = sbr.rel (%p284) target = $region40
      $region39: #{mbfd_forward.6} parent=35 // pred_region
        %s287 = smul.u32 8, %s15
        %p288 = scmp.lt.s32.totalorder %s287, 15
        %s289 = scalar_select %p288, %s287, 15
        %s290 = smul.addr %s289, 8
        %s291 = scalar_lea.vmem %s0, %s290
        %s292 = smul.u32 8, %s15
      $region40: #{mbfd_forward.6} parent=35 // pred_fallthru
        _
      // Predicated region
      $region41: #{mbfd_forward.6} parent=35 // pred_check
        %p293 = pneg %p61
      $region42: #{mbfd_forward.6} parent=35 // pred_check_branch
        %295 = sbr.rel (%p293) target = $region44
      $region43: #{mbfd_forward.6} parent=35 // pred_region
        %s296 = smul.u32 8, %s15
        %p297 = scmp.lt.s32.totalorder %s296, 15
        %s298 = scalar_select %p297, %s296, 15
        %s299 = smul.addr %s298, 8
        %s300 = scalar_lea.vmem %s1, %s299
        %s301 = smul.u32 8, %s15
      $region44: #{mbfd_forward.6} parent=35 // pred_fallthru
        _
      // Predicated region
      $region45: #{mbfd_forward.6} parent=35 // pred_check
        %p302 = pneg %p87
      $region46: #{mbfd_forward.6} parent=35 // pred_check_branch
        %304 = sbr.rel (%p302) target = $region48
      $region47: #{mbfd_forward.6} parent=35 // pred_region
        %s305 = smul.u32 8, %s15
        %p306 = scmp.lt.s32.totalorder %s305, 15
        %s307 = scalar_select %p306, %s305, 15
        %s308 = smul.addr %s307, 8
        %s309 = scalar_lea.vmem %s2, %s308
        %s310 = smul.u32 8, %s15
      $region48: #{mbfd_forward.6} parent=35 // pred_fallthru
        _
      // Predicated region
      $region49: #{mbfd_forward.6} parent=35 // pred_check
        %p311 = pneg %p113
      $region50: #{mbfd_forward.6} parent=35 // pred_check_branch
        %313 = sbr.rel (%p311) target = $region52
      $region51: #{mbfd_forward.6} parent=35 // pred_region
        %s314 = smul.u32 8, %s15
        %p315 = scmp.lt.s32.totalorder %s314, 15
        %s316 = scalar_select %p315, %s314, 15
        %s317 = smul.addr %s316, 8
        %s318 = scalar_lea.vmem %s3, %s317
        %s319 = smul.u32 8, %s15
      $region52: #{mbfd_forward.6} parent=35 // pred_fallthru
        _
    $region36: #{mbfd_forward.6} parent=5 // pred_fallthru
      _
    %p320 = scmp.le.s32.totalorder 1, %s15
    %p321 = scmp.lt.s32.totalorder %s15, 3
    %p322 = pnand %p320, %p321
    %p323 = pneg %p322
    // Predicated region
    $region53: #{mbfd_forward.6} parent=5 // pred_check
      _
    $region54: #{mbfd_forward.6} parent=5 // pred_check_branch
      %325 = sbr.rel (%p322) target = $region56
    $region55: #{mbfd_forward.6} parent=5 // pred_region
      %s326 = ssub.s32 %s15, 1
      %s327 = smul.u32 8, %s20
      %p328 = scmp.lt.s32.totalorder %s327, 15
      %s329 = scalar_select %p328, %s327, 15
      %s330 = smul.addr %s329, 8
      %s331 = scalar_lea.vmem %s0, %s330
      %p332 = pneg %p41
      %p333 = pneg %p38
      %s334 = smul.u32 8, %s20
      %p335 = scmp.lt.s32.totalorder %s334, 15
      %s336 = scalar_select %p335, %s334, 15
      %s337 = smul.addr %s336, 8
      %s338 = scalar_lea.vmem %s1, %s337
      %p339 = pneg %p67
      %p340 = pneg %p64
      %s341 = smul.u32 8, %s20
      %p342 = scmp.lt.s32.totalorder %s341, 15
      %s343 = scalar_select %p342, %s341, 15
      %s344 = smul.addr %s343, 8
      %s345 = scalar_lea.vmem %s2, %s344
      %p346 = pneg %p93
      %p347 = pneg %p90
      %s348 = smul.u32 8, %s20
      %p349 = scmp.lt.s32.totalorder %s348, 15
      %s350 = scalar_select %p349, %s348, 15
      %s351 = smul.addr %s350, 8
      %s352 = scalar_lea.vmem %s3, %s351
      %p353 = pneg %p119
      %p354 = pneg %p116
      %p355 = pneg %p140
      %p356 = pneg %p137
      %p357 = pneg %p161
      %p358 = pneg %p158
      %p359 = pneg %p182
      %p360 = pneg %p179
      %p361 = pneg %p203
      %p362 = pneg %p200
      %p363 = pneg %p224
      %p364 = pneg %p221
      %p365 = pneg %p250
      %p366 = pneg %p247
      %s367 = smul.u32 8, %s20
      %p368 = scmp.lt.s32.totalorder %s367, 15
      %s369 = scalar_select %p368, %s367, 15
      %s370 = smul.addr %s369, 8
      %s371 = scalar_lea.vmem %s9, %s370
      %s372 = smul.u32 8, %s20
      %p373 = scmp.lt.s32.totalorder %s372, 15
      %s374 = scalar_select %p373, %s372, 15
      %s375 = smul.addr %s374, 8
      %s376 = scalar_lea.vmem %s0, %s375
      %s377 = smul.u32 8, %s20
      %s378 = smul.u32 8, %s20
      %p379 = scmp.lt.s32.totalorder %s378, 15
      %s380 = scalar_select %p379, %s378, 15
      %s381 = smul.addr %s380, 8
      %s382 = scalar_lea.vmem %s1, %s381
      %s383 = smul.u32 8, %s20
      %s384 = smul.u32 8, %s20
      %p385 = scmp.lt.s32.totalorder %s384, 15
      %s386 = scalar_select %p385, %s384, 15
      %s387 = smul.addr %s386, 8
      %s388 = scalar_lea.vmem %s2, %s387
      %s389 = smul.u32 8, %s20
      %s390 = smul.u32 8, %s20
      %p391 = scmp.lt.s32.totalorder %s390, 15
      %s392 = scalar_select %p391, %s390, 15
      %s393 = smul.addr %s392, 8
      %s394 = scalar_lea.vmem %s3, %s393
      %s395 = smul.u32 8, %s20
      %s396 = smul.u32 8, %s20
      %p397 = scmp.lt.s32.totalorder %s396, 15
      %s398 = scalar_select %p397, %s396, 15
      %s399 = smul.addr %s398, 8
      %s400 = scalar_lea.vmem %s9, %s399
      %s401 = smul.u32 8, %s20
      %v402 = vld [vmem:[%s376] sm:$0xff]
      %v403 = vld [vmem:[%s376 + $0x8] sm:$0xff]
      %v404 = vld [vmem:[%s376 + $0x10] sm:$0xff]
      %v405 = vld [vmem:[%s376 + $0x18] sm:$0xff]
      %v406 = vld [vmem:[%s376 + $0x20] sm:$0xff]
      %v407 = vld [vmem:[%s376 + $0x28] sm:$0xff]
      %v408 = vld [vmem:[%s376 + $0x30] sm:$0xff]
      %v409 = vld [vmem:[%s376 + $0x38] sm:$0xff]
      %v410 = vld [vmem:[%s382] sm:$0xff]
      %v411 = vld [vmem:[%s382 + $0x8] sm:$0xff]
      %v412 = vld [vmem:[%s382 + $0x10] sm:$0xff]
      %v413 = vld [vmem:[%s382 + $0x18] sm:$0xff]
      %v414 = vld [vmem:[%s382 + $0x20] sm:$0xff]
      %v415 = vld [vmem:[%s382 + $0x28] sm:$0xff]
      %v416 = vld [vmem:[%s382 + $0x30] sm:$0xff]
      %v417 = vld [vmem:[%s382 + $0x38] sm:$0xff]
      %v418 = vld [vmem:[%s388] sm:$0xff]
      %v419 = vld [vmem:[%s388 + $0x8] sm:$0xff]
      %v420 = vld [vmem:[%s388 + $0x10] sm:$0xff]
      %v421 = vld [vmem:[%s388 + $0x18] sm:$0xff]
      %v422 = vld [vmem:[%s388 + $0x20] sm:$0xff]
      %v423 = vld [vmem:[%s388 + $0x28] sm:$0xff]
      %v424 = vld [vmem:[%s388 + $0x30] sm:$0xff]
      %v425 = vld [vmem:[%s388 + $0x38] sm:$0xff]
      %v426 = vld [vmem:[%s394] sm:$0xff]
      %v427 = vld [vmem:[%s394 + $0x8] sm:$0xff]
      %v428 = vld [vmem:[%s394 + $0x10] sm:$0xff]
      %v429 = vld [vmem:[%s394 + $0x18] sm:$0xff]
      %v430 = vld [vmem:[%s394 + $0x20] sm:$0xff]
      %v431 = vld [vmem:[%s394 + $0x28] sm:$0xff]
      %v432 = vld [vmem:[%s394 + $0x30] sm:$0xff]
      %v433 = vld [vmem:[%s394 + $0x38] sm:$0xff]
      %v434 = vadd.f32 %v402, %v410
      %v435 = vadd.f32 %v403, %v411
      %v436 = vadd.f32 %v404, %v412
      %v437 = vadd.f32 %v405, %v413
      %v438 = vadd.f32 %v406, %v414
      %v439 = vadd.f32 %v407, %v415
      %v440 = vadd.f32 %v408, %v416
      %v441 = vadd.f32 %v409, %v417
      %v442 = vadd.f32 %v434, %v418
      %v443 = vadd.f32 %v435, %v419
      %v444 = vadd.f32 %v436, %v420
      %v445 = vadd.f32 %v437, %v421
      %v446 = vadd.f32 %v438, %v422
      %v447 = vadd.f32 %v439, %v423
      %v448 = vadd.f32 %v440, %v424
      %v449 = vadd.f32 %v441, %v425
      %v450 = vadd.f32 %v442, %v426
      %v451 = vadd.f32 %v443, %v427
      %v452 = vadd.f32 %v444, %v428
      %v453 = vadd.f32 %v445, %v429
      %v454 = vadd.f32 %v446, %v430
      %v455 = vadd.f32 %v447, %v431
      %v456 = vadd.f32 %v448, %v432
      %v457 = vadd.f32 %v449, %v433
      %v458 = vmul.f32 %v450, 0.5
      %v459 = vmul.f32 %v451, 0.5
      %v460 = vmul.f32 %v452, 0.5
      %v461 = vmul.f32 %v453, 0.5
      %v462 = vmul.f32 %v454, 0.5
      %v463 = vmul.f32 %v455, 0.5
      %v464 = vmul.f32 %v456, 0.5
      %v465 = vmul.f32 %v457, 0.5
      %v466 = vadd.f32 %v402, %v402
      %v467 = vadd.f32 %v403, %v403
      %v468 = vadd.f32 %v404, %v404
      %v469 = vadd.f32 %v405, %v405
      %v470 = vadd.f32 %v406, %v406
      %v471 = vadd.f32 %v407, %v407
      %v472 = vadd.f32 %v408, %v408
      %v473 = vadd.f32 %v409, %v409
      %v474 = vld [vmem:[%s4] sm:$0xf]
      %v475 = vld [vmem:[%s5] sm:$0xf]
      %vm476 = vcmask 31744
      %v478 = vsel %vm476, %v466, 0
      %v481 = vsel %vm476, %v467, 0
      %v484 = vsel %vm476, %v468, 0
      %v487 = vsel %vm476, %v469, 0
      %v490 = vsel %vm476, %v470, 0
      %v493 = vsel %vm476, %v471, 0
      %v496 = vsel %vm476, %v472, 0
      %v499 = vsel %vm476, %v473, 0
      %vm501 = vcmask 1043456
      %v503 = vsel %vm501, %v475, 0
      %505 = vmatpush.msra.mxu0 0.0
      %506 = vmatpush.msra.mxu0 0.0
      %507 = vmatpush.msra.mxu0 0.0
      %508 = vmatpush.msra.mxu0 0.0
      %509 = vmatpush.msra.mxu0 0.0
      %510 = vmatpush.msra.mxu0 0.0
      %511 = vmatpush.msra.mxu0 0.0
      %512 = vmatpush.msra.mxu0 0.0
      %513 = vmatpush.msra.mxu0 0.0
      %514 = vmatpush.msra.mxu0 0.0
      %515 = vmatpush.msra.mxu0 0.0
      %516 = vmatpush.msra.mxu0 0.0
      %517 = vmatpush.msra.mxu0 0.0
      %518 = vmatpush.msra.mxu0 0.0
      %519 = vmatpush.msra.mxu0 0.0
      %v520 = vand.u32 %v503, 4294901760
      %521 = vmatpush.msra.mxu0 %v520
      %v522 = vand.u32 %v478, 4294901760
      %v523 = vsub.f32 %v478, %v522
      %v524 = vand.u32 %v523, 4294901760
      %v525 = vsub.f32 %v523, %v524
      %v526 = vand.u32 %v525, 4294901760
      %527 = vmatmul.f32.gmra.mxu0 %v526
      %v528 = vpop.f32.mrf.mxu0
      %v529 = vadd.f32 0.0, %v528
      %v530 = vand.u32 %v481, 4294901760
      %v531 = vsub.f32 %v481, %v530
      %v532 = vand.u32 %v531, 4294901760
      %v533 = vsub.f32 %v531, %v532
      %v534 = vand.u32 %v533, 4294901760
      %535 = vmatmul.f32.gmra.mxu0 %v534
      %v536 = vpop.f32.mrf.mxu0
      %v537 = vadd.f32 0.0, %v536
      %v538 = vand.u32 %v484, 4294901760
      %v539 = vsub.f32 %v484, %v538
      %v540 = vand.u32 %v539, 4294901760
      %v541 = vsub.f32 %v539, %v540
      %v542 = vand.u32 %v541, 4294901760
      %543 = vmatmul.f32.gmra.mxu0 %v542
      %v544 = vpop.f32.mrf.mxu0
      %v545 = vadd.f32 0.0, %v544
      %v546 = vand.u32 %v487, 4294901760
      %v547 = vsub.f32 %v487, %v546
      %v548 = vand.u32 %v547, 4294901760
      %v549 = vsub.f32 %v547, %v548
      %v550 = vand.u32 %v549, 4294901760
      %551 = vmatmul.f32.gmra.mxu0 %v550
      %v552 = vpop.f32.mrf.mxu0
      %v553 = vadd.f32 0.0, %v552
      %v554 = vand.u32 %v490, 4294901760
      %v555 = vsub.f32 %v490, %v554
      %v556 = vand.u32 %v555, 4294901760
      %v557 = vsub.f32 %v555, %v556
      %v558 = vand.u32 %v557, 4294901760
      %559 = vmatmul.f32.gmra.mxu0 %v558
      %v560 = vpop.f32.mrf.mxu0
      %v561 = vadd.f32 0.0, %v560
      %v562 = vand.u32 %v493, 4294901760
      %v563 = vsub.f32 %v493, %v562
      %v564 = vand.u32 %v563, 4294901760
      %v565 = vsub.f32 %v563, %v564
      %v566 = vand.u32 %v565, 4294901760
      %567 = vmatmul.f32.gmra.mxu0 %v566
      %v568 = vpop.f32.mrf.mxu0
      %v569 = vadd.f32 0.0, %v568
      %v570 = vand.u32 %v496, 4294901760
      %v571 = vsub.f32 %v496, %v570
      %v572 = vand.u32 %v571, 4294901760
      %v573 = vsub.f32 %v571, %v572
      %v574 = vand.u32 %v573, 4294901760
      %575 = vmatmul.f32.gmra.mxu0 %v574
      %v576 = vpop.f32.mrf.mxu0
      %v577 = vadd.f32 0.0, %v576
      %v578 = vand.u32 %v499, 4294901760
      %v579 = vsub.f32 %v499, %v578
      %v580 = vand.u32 %v579, 4294901760
      %v581 = vsub.f32 %v579, %v580
      %v582 = vand.u32 %v581, 4294901760
      %583 = vmatmul.f32.gmra.mxu0 %v582
      %v584 = vpop.f32.mrf.mxu0
      %v585 = vadd.f32 0.0, %v584
      %586 = vdwg.mxu0
      %587 = vmatpush.msra.mxu0 0.0
      %588 = vmatpush.msra.mxu0 0.0
      %589 = vmatpush.msra.mxu0 0.0
      %590 = vmatpush.msra.mxu0 0.0
      %591 = vmatpush.msra.mxu0 0.0
      %592 = vmatpush.msra.mxu0 0.0
      %593 = vmatpush.msra.mxu0 0.0
      %594 = vmatpush.msra.mxu0 0.0
      %595 = vmatpush.msra.mxu0 0.0
      %596 = vmatpush.msra.mxu0 0.0
      %597 = vmatpush.msra.mxu0 0.0
      %598 = vmatpush.msra.mxu0 0.0
      %599 = vmatpush.msra.mxu0 0.0
      %600 = vmatpush.msra.mxu0 0.0
      %601 = vmatpush.msra.mxu0 0.0
      %v602 = vand.u32 %v503, 4294901760
      %v603 = vsub.f32 %v503, %v602
      %v604 = vand.u32 %v603, 4294901760
      %v605 = vsub.f32 %v603, %v604
      %v606 = vand.u32 %v605, 4294901760
      %607 = vmatpush.msra.mxu0 %v606
      %v608 = vand.u32 %v478, 4294901760
      %609 = vmatmul.f32.gmra.mxu0 %v608
      %v610 = vpop.f32.mrf.mxu0
      %v611 = vadd.f32 %v529, %v610
      %v612 = vand.u32 %v481, 4294901760
      %613 = vmatmul.f32.gmra.mxu0 %v612
      %v614 = vpop.f32.mrf.mxu0
      %v615 = vadd.f32 %v537, %v614
      %v616 = vand.u32 %v484, 4294901760
      %617 = vmatmul.f32.gmra.mxu0 %v616
      %v618 = vpop.f32.mrf.mxu0
      %v619 = vadd.f32 %v545, %v618
      %v620 = vand.u32 %v487, 4294901760
      %621 = vmatmul.f32.gmra.mxu0 %v620
      %v622 = vpop.f32.mrf.mxu0
      %v623 = vadd.f32 %v553, %v622
      %v624 = vand.u32 %v490, 4294901760
      %625 = vmatmul.f32.gmra.mxu0 %v624
      %v626 = vpop.f32.mrf.mxu0
      %v627 = vadd.f32 %v561, %v626
      %v628 = vand.u32 %v493, 4294901760
      %629 = vmatmul.f32.gmra.mxu0 %v628
      %v630 = vpop.f32.mrf.mxu0
      %v631 = vadd.f32 %v569, %v630
      %v632 = vand.u32 %v496, 4294901760
      %633 = vmatmul.f32.gmra.mxu0 %v632
      %v634 = vpop.f32.mrf.mxu0
      %v635 = vadd.f32 %v577, %v634
      %v636 = vand.u32 %v499, 4294901760
      %637 = vmatmul.f32.gmra.mxu0 %v636
      %v638 = vpop.f32.mrf.mxu0
      %v639 = vadd.f32 %v585, %v638
      %640 = vdwg.mxu0
      %641 = vmatpush.msra.mxu0 0.0
      %642 = vmatpush.msra.mxu0 0.0
      %643 = vmatpush.msra.mxu0 0.0
      %644 = vmatpush.msra.mxu0 0.0
      %645 = vmatpush.msra.mxu0 0.0
      %646 = vmatpush.msra.mxu0 0.0
      %647 = vmatpush.msra.mxu0 0.0
      %648 = vmatpush.msra.mxu0 0.0
      %649 = vmatpush.msra.mxu0 0.0
      %650 = vmatpush.msra.mxu0 0.0
      %651 = vmatpush.msra.mxu0 0.0
      %652 = vmatpush.msra.mxu0 0.0
      %653 = vmatpush.msra.mxu0 0.0
      %654 = vmatpush.msra.mxu0 0.0
      %655 = vmatpush.msra.mxu0 0.0
      %v656 = vand.u32 %v503, 4294901760
      %v657 = vsub.f32 %v503, %v656
      %658 = vmatpush.msra.mxu0 %v657
      %v659 = vand.u32 %v478, 4294901760
      %v660 = vsub.f32 %v478, %v659
      %661 = vmatmul.f32.gmra.mxu0 %v660
      %v662 = vpop.f32.mrf.mxu0
      %v663 = vadd.f32 %v611, %v662
      %v664 = vand.u32 %v481, 4294901760
      %v665 = vsub.f32 %v481, %v664
      %666 = vmatmul.f32.gmra.mxu0 %v665
      %v667 = vpop.f32.mrf.mxu0
      %v668 = vadd.f32 %v615, %v667
      %v669 = vand.u32 %v484, 4294901760
      %v670 = vsub.f32 %v484, %v669
      %671 = vmatmul.f32.gmra.mxu0 %v670
      %v672 = vpop.f32.mrf.mxu0
      %v673 = vadd.f32 %v619, %v672
      %v674 = vand.u32 %v487, 4294901760
      %v675 = vsub.f32 %v487, %v674
      %676 = vmatmul.f32.gmra.mxu0 %v675
      %v677 = vpop.f32.mrf.mxu0
      %v678 = vadd.f32 %v623, %v677
      %v679 = vand.u32 %v490, 4294901760
      %v680 = vsub.f32 %v490, %v679
      %681 = vmatmul.f32.gmra.mxu0 %v680
      %v682 = vpop.f32.mrf.mxu0
      %v683 = vadd.f32 %v627, %v682
      %v684 = vand.u32 %v493, 4294901760
      %v685 = vsub.f32 %v493, %v684
      %686 = vmatmul.f32.gmra.mxu0 %v685
      %v687 = vpop.f32.mrf.mxu0
      %v688 = vadd.f32 %v631, %v687
      %v689 = vand.u32 %v496, 4294901760
      %v690 = vsub.f32 %v496, %v689
      %691 = vmatmul.f32.gmra.mxu0 %v690
      %v692 = vpop.f32.mrf.mxu0
      %v693 = vadd.f32 %v635, %v692
      %v694 = vand.u32 %v499, 4294901760
      %v695 = vsub.f32 %v499, %v694
      %696 = vmatmul.f32.gmra.mxu0 %v695
      %v697 = vpop.f32.mrf.mxu0
      %v698 = vadd.f32 %v639, %v697
      %699 = vdwg.mxu0
      %700 = vmatpush.msra.mxu0 0.0
      %701 = vmatpush.msra.mxu0 0.0
      %702 = vmatpush.msra.mxu0 0.0
      %703 = vmatpush.msra.mxu0 0.0
      %704 = vmatpush.msra.mxu0 0.0
      %705 = vmatpush.msra.mxu0 0.0
      %706 = vmatpush.msra.mxu0 0.0
      %707 = vmatpush.msra.mxu0 0.0
      %708 = vmatpush.msra.mxu0 0.0
      %709 = vmatpush.msra.mxu0 0.0
      %710 = vmatpush.msra.mxu0 0.0
      %711 = vmatpush.msra.mxu0 0.0
      %712 = vmatpush.msra.mxu0 0.0
      %713 = vmatpush.msra.mxu0 0.0
      %714 = vmatpush.msra.mxu0 0.0
      %v715 = vand.u32 %v503, 4294901760
      %716 = vmatpush.msra.mxu0 %v715
      %v717 = vand.u32 %v478, 4294901760
      %v718 = vsub.f32 %v478, %v717
      %v719 = vand.u32 %v718, 4294901760
      %720 = vmatmul.f32.gmra.mxu0 %v719
      %v721 = vpop.f32.mrf.mxu0
      %v722 = vadd.f32 %v663, %v721
      %v723 = vand.u32 %v481, 4294901760
      %v724 = vsub.f32 %v481, %v723
      %v725 = vand.u32 %v724, 4294901760
      %726 = vmatmul.f32.gmra.mxu0 %v725
      %v727 = vpop.f32.mrf.mxu0
      %v728 = vadd.f32 %v668, %v727
      %v729 = vand.u32 %v484, 4294901760
      %v730 = vsub.f32 %v484, %v729
      %v731 = vand.u32 %v730, 4294901760
      %732 = vmatmul.f32.gmra.mxu0 %v731
      %v733 = vpop.f32.mrf.mxu0
      %v734 = vadd.f32 %v673, %v733
      %v735 = vand.u32 %v487, 4294901760
      %v736 = vsub.f32 %v487, %v735
      %v737 = vand.u32 %v736, 4294901760
      %738 = vmatmul.f32.gmra.mxu0 %v737
      %v739 = vpop.f32.mrf.mxu0
      %v740 = vadd.f32 %v678, %v739
      %v741 = vand.u32 %v490, 4294901760
      %v742 = vsub.f32 %v490, %v741
      %v743 = vand.u32 %v742, 4294901760
      %744 = vmatmul.f32.gmra.mxu0 %v743
      %v745 = vpop.f32.mrf.mxu0
      %v746 = vadd.f32 %v683, %v745
      %v747 = vand.u32 %v493, 4294901760
      %v748 = vsub.f32 %v493, %v747
      %v749 = vand.u32 %v748, 4294901760
      %750 = vmatmul.f32.gmra.mxu0 %v749
      %v751 = vpop.f32.mrf.mxu0
      %v752 = vadd.f32 %v688, %v751
      %v753 = vand.u32 %v496, 4294901760
      %v754 = vsub.f32 %v496, %v753
      %v755 = vand.u32 %v754, 4294901760
      %756 = vmatmul.f32.gmra.mxu0 %v755
      %v757 = vpop.f32.mrf.mxu0
      %v758 = vadd.f32 %v693, %v757
      %v759 = vand.u32 %v499, 4294901760
      %v760 = vsub.f32 %v499, %v759
      %v761 = vand.u32 %v760, 4294901760
      %762 = vmatmul.f32.gmra.mxu0 %v761
      %v763 = vpop.f32.mrf.mxu0
      %v764 = vadd.f32 %v698, %v763
      %765 = vdwg.mxu0
      %766 = vmatpush.msra.mxu0 0.0
      %767 = vmatpush.msra.mxu0 0.0
      %768 = vmatpush.msra.mxu0 0.0
      %769 = vmatpush.msra.mxu0 0.0
      %770 = vmatpush.msra.mxu0 0.0
      %771 = vmatpush.msra.mxu0 0.0
      %772 = vmatpush.msra.mxu0 0.0
      %773 = vmatpush.msra.mxu0 0.0
      %774 = vmatpush.msra.mxu0 0.0
      %775 = vmatpush.msra.mxu0 0.0
      %776 = vmatpush.msra.mxu0 0.0
      %777 = vmatpush.msra.mxu0 0.0
      %778 = vmatpush.msra.mxu0 0.0
      %779 = vmatpush.msra.mxu0 0.0
      %780 = vmatpush.msra.mxu0 0.0
      %v781 = vand.u32 %v503, 4294901760
      %v782 = vsub.f32 %v503, %v781
      %v783 = vand.u32 %v782, 4294901760
      %784 = vmatpush.msra.mxu0 %v783
      %v785 = vand.u32 %v478, 4294901760
      %786 = vmatmul.f32.gmra.mxu0 %v785
      %v787 = vpop.f32.mrf.mxu0
      %v788 = vadd.f32 %v722, %v787
      %v789 = vand.u32 %v481, 4294901760
      %790 = vmatmul.f32.gmra.mxu0 %v789
      %v791 = vpop.f32.mrf.mxu0
      %v792 = vadd.f32 %v728, %v791
      %v793 = vand.u32 %v484, 4294901760
      %794 = vmatmul.f32.gmra.mxu0 %v793
      %v795 = vpop.f32.mrf.mxu0
      %v796 = vadd.f32 %v734, %v795
      %v797 = vand.u32 %v487, 4294901760
      %798 = vmatmul.f32.gmra.mxu0 %v797
      %v799 = vpop.f32.mrf.mxu0
      %v800 = vadd.f32 %v740, %v799
      %v801 = vand.u32 %v490, 4294901760
      %802 = vmatmul.f32.gmra.mxu0 %v801
      %v803 = vpop.f32.mrf.mxu0
      %v804 = vadd.f32 %v746, %v803
      %v805 = vand.u32 %v493, 4294901760
      %806 = vmatmul.f32.gmra.mxu0 %v805
      %v807 = vpop.f32.mrf.mxu0
      %v808 = vadd.f32 %v752, %v807
      %v809 = vand.u32 %v496, 4294901760
      %810 = vmatmul.f32.gmra.mxu0 %v809
      %v811 = vpop.f32.mrf.mxu0
      %v812 = vadd.f32 %v758, %v811
      %v813 = vand.u32 %v499, 4294901760
      %814 = vmatmul.f32.gmra.mxu0 %v813
      %v815 = vpop.f32.mrf.mxu0
      %v816 = vadd.f32 %v764, %v815
      %817 = vdwg.mxu0
      %818 = vmatpush.msra.mxu0 0.0
      %819 = vmatpush.msra.mxu0 0.0
      %820 = vmatpush.msra.mxu0 0.0
      %821 = vmatpush.msra.mxu0 0.0
      %822 = vmatpush.msra.mxu0 0.0
      %823 = vmatpush.msra.mxu0 0.0
      %824 = vmatpush.msra.mxu0 0.0
      %825 = vmatpush.msra.mxu0 0.0
      %826 = vmatpush.msra.mxu0 0.0
      %827 = vmatpush.msra.mxu0 0.0
      %828 = vmatpush.msra.mxu0 0.0
      %829 = vmatpush.msra.mxu0 0.0
      %830 = vmatpush.msra.mxu0 0.0
      %831 = vmatpush.msra.mxu0 0.0
      %832 = vmatpush.msra.mxu0 0.0
      %v833 = vand.u32 %v503, 4294901760
      %834 = vmatpush.msra.mxu0 %v833
      %v835 = vand.u32 %v478, 4294901760
      %836 = vmatmul.f32.gmra.mxu0 %v835
      %v837 = vpop.f32.mrf.mxu0
      %v838 = vadd.f32 %v788, %v837
      %v839 = vand.u32 %v481, 4294901760
      %840 = vmatmul.f32.gmra.mxu0 %v839
      %v841 = vpop.f32.mrf.mxu0
      %v842 = vadd.f32 %v792, %v841
      %v843 = vand.u32 %v484, 4294901760
      %844 = vmatmul.f32.gmra.mxu0 %v843
      %v845 = vpop.f32.mrf.mxu0
      %v846 = vadd.f32 %v796, %v845
      %v847 = vand.u32 %v487, 4294901760
      %848 = vmatmul.f32.gmra.mxu0 %v847
      %v849 = vpop.f32.mrf.mxu0
      %v850 = vadd.f32 %v800, %v849
      %v851 = vand.u32 %v490, 4294901760
      %852 = vmatmul.f32.gmra.mxu0 %v851
      %v853 = vpop.f32.mrf.mxu0
      %v854 = vadd.f32 %v804, %v853
      %v855 = vand.u32 %v493, 4294901760
      %856 = vmatmul.f32.gmra.mxu0 %v855
      %v857 = vpop.f32.mrf.mxu0
      %v858 = vadd.f32 %v808, %v857
      %v859 = vand.u32 %v496, 4294901760
      %860 = vmatmul.f32.gmra.mxu0 %v859
      %v861 = vpop.f32.mrf.mxu0
      %v862 = vadd.f32 %v812, %v861
      %v863 = vand.u32 %v499, 4294901760
      %864 = vmatmul.f32.gmra.mxu0 %v863
      %v865 = vpop.f32.mrf.mxu0
      %v866 = vadd.f32 %v816, %v865
      %867 = vdwg.mxu0
      %v869 = vsel %vm476, %v458, 0
      %v872 = vsel %vm476, %v459, 0
      %v875 = vsel %vm476, %v460, 0
      %v878 = vsel %vm476, %v461, 0
      %v881 = vsel %vm476, %v462, 0
      %v884 = vsel %vm476, %v463, 0
      %v887 = vsel %vm476, %v464, 0
      %v890 = vsel %vm476, %v465, 0
      %v893 = vsel %vm501, %v474, 0
      %895 = vmatpush.msra.mxu0 0.0
      %896 = vmatpush.msra.mxu0 0.0
      %897 = vmatpush.msra.mxu0 0.0
      %898 = vmatpush.msra.mxu0 0.0
      %899 = vmatpush.msra.mxu0 0.0
      %900 = vmatpush.msra.mxu0 0.0
      %901 = vmatpush.msra.mxu0 0.0
      %902 = vmatpush.msra.mxu0 0.0
      %903 = vmatpush.msra.mxu0 0.0
      %904 = vmatpush.msra.mxu0 0.0
      %905 = vmatpush.msra.mxu0 0.0
      %906 = vmatpush.msra.mxu0 0.0
      %907 = vmatpush.msra.mxu0 0.0
      %908 = vmatpush.msra.mxu0 0.0
      %909 = vmatpush.msra.mxu0 0.0
      %v910 = vand.u32 %v893, 4294901760
      %911 = vmatpush.msra.mxu0 %v910
      %v912 = vand.u32 %v869, 4294901760
      %v913 = vsub.f32 %v869, %v912
      %v914 = vand.u32 %v913, 4294901760
      %v915 = vsub.f32 %v913, %v914
      %v916 = vand.u32 %v915, 4294901760
      %917 = vmatmul.f32.gmra.mxu0 %v916
      %v918 = vpop.f32.mrf.mxu0
      %v919 = vadd.f32 %v838, %v918
      %v920 = vand.u32 %v872, 4294901760
      %v921 = vsub.f32 %v872, %v920
      %v922 = vand.u32 %v921, 4294901760
      %v923 = vsub.f32 %v921, %v922
      %v924 = vand.u32 %v923, 4294901760
      %925 = vmatmul.f32.gmra.mxu0 %v924
      %v926 = vpop.f32.mrf.mxu0
      %v927 = vadd.f32 %v842, %v926
      %v928 = vand.u32 %v875, 4294901760
      %v929 = vsub.f32 %v875, %v928
      %v930 = vand.u32 %v929, 4294901760
      %v931 = vsub.f32 %v929, %v930
      %v932 = vand.u32 %v931, 4294901760
      %933 = vmatmul.f32.gmra.mxu0 %v932
      %v934 = vpop.f32.mrf.mxu0
      %v935 = vadd.f32 %v846, %v934
      %v936 = vand.u32 %v878, 4294901760
      %v937 = vsub.f32 %v878, %v936
      %v938 = vand.u32 %v937, 4294901760
      %v939 = vsub.f32 %v937, %v938
      %v940 = vand.u32 %v939, 4294901760
      %941 = vmatmul.f32.gmra.mxu0 %v940
      %v942 = vpop.f32.mrf.mxu0
      %v943 = vadd.f32 %v850, %v942
      %v944 = vand.u32 %v881, 4294901760
      %v945 = vsub.f32 %v881, %v944
      %v946 = vand.u32 %v945, 4294901760
      %v947 = vsub.f32 %v945, %v946
      %v948 = vand.u32 %v947, 4294901760
      %949 = vmatmul.f32.gmra.mxu0 %v948
      %v950 = vpop.f32.mrf.mxu0
      %v951 = vadd.f32 %v854, %v950
      %v952 = vand.u32 %v884, 4294901760
      %v953 = vsub.f32 %v884, %v952
      %v954 = vand.u32 %v953, 4294901760
      %v955 = vsub.f32 %v953, %v954
      %v956 = vand.u32 %v955, 4294901760
      %957 = vmatmul.f32.gmra.mxu0 %v956
      %v958 = vpop.f32.mrf.mxu0
      %v959 = vadd.f32 %v858, %v958
      %v960 = vand.u32 %v887, 4294901760
      %v961 = vsub.f32 %v887, %v960
      %v962 = vand.u32 %v961, 4294901760
      %v963 = vsub.f32 %v961, %v962
      %v964 = vand.u32 %v963, 4294901760
      %965 = vmatmul.f32.gmra.mxu0 %v964
      %v966 = vpop.f32.mrf.mxu0
      %v967 = vadd.f32 %v862, %v966
      %v968 = vand.u32 %v890, 4294901760
      %v969 = vsub.f32 %v890, %v968
      %v970 = vand.u32 %v969, 4294901760
      %v971 = vsub.f32 %v969, %v970
      %v972 = vand.u32 %v971, 4294901760
      %973 = vmatmul.f32.gmra.mxu0 %v972
      %v974 = vpop.f32.mrf.mxu0
      %v975 = vadd.f32 %v866, %v974
      %976 = vdwg.mxu0
      %977 = vmatpush.msra.mxu0 0.0
      %978 = vmatpush.msra.mxu0 0.0
      %979 = vmatpush.msra.mxu0 0.0
      %980 = vmatpush.msra.mxu0 0.0
      %981 = vmatpush.msra.mxu0 0.0
      %982 = vmatpush.msra.mxu0 0.0
      %983 = vmatpush.msra.mxu0 0.0
      %984 = vmatpush.msra.mxu0 0.0
      %985 = vmatpush.msra.mxu0 0.0
      %986 = vmatpush.msra.mxu0 0.0
      %987 = vmatpush.msra.mxu0 0.0
      %988 = vmatpush.msra.mxu0 0.0
      %989 = vmatpush.msra.mxu0 0.0
      %990 = vmatpush.msra.mxu0 0.0
      %991 = vmatpush.msra.mxu0 0.0
      %v992 = vand.u32 %v893, 4294901760
      %v993 = vsub.f32 %v893, %v992
      %v994 = vand.u32 %v993, 4294901760
      %v995 = vsub.f32 %v993, %v994
      %v996 = vand.u32 %v995, 4294901760
      %997 = vmatpush.msra.mxu0 %v996
      %v998 = vand.u32 %v869, 4294901760
      %999 = vmatmul.f32.gmra.mxu0 %v998
      %v1000 = vpop.f32.mrf.mxu0
      %v1001 = vadd.f32 %v919, %v1000
      %v1002 = vand.u32 %v872, 4294901760
      %1003 = vmatmul.f32.gmra.mxu0 %v1002
      %v1004 = vpop.f32.mrf.mxu0
      %v1005 = vadd.f32 %v927, %v1004
      %v1006 = vand.u32 %v875, 4294901760
      %1007 = vmatmul.f32.gmra.mxu0 %v1006
      %v1008 = vpop.f32.mrf.mxu0
      %v1009 = vadd.f32 %v935, %v1008
      %v1010 = vand.u32 %v878, 4294901760
      %1011 = vmatmul.f32.gmra.mxu0 %v1010
      %v1012 = vpop.f32.mrf.mxu0
      %v1013 = vadd.f32 %v943, %v1012
      %v1014 = vand.u32 %v881, 4294901760
      %1015 = vmatmul.f32.gmra.mxu0 %v1014
      %v1016 = vpop.f32.mrf.mxu0
      %v1017 = vadd.f32 %v951, %v1016
      %v1018 = vand.u32 %v884, 4294901760
      %1019 = vmatmul.f32.gmra.mxu0 %v1018
      %v1020 = vpop.f32.mrf.mxu0
      %v1021 = vadd.f32 %v959, %v1020
      %v1022 = vand.u32 %v887, 4294901760
      %1023 = vmatmul.f32.gmra.mxu0 %v1022
      %v1024 = vpop.f32.mrf.mxu0
      %v1025 = vadd.f32 %v967, %v1024
      %v1026 = vand.u32 %v890, 4294901760
      %1027 = vmatmul.f32.gmra.mxu0 %v1026
      %v1028 = vpop.f32.mrf.mxu0
      %v1029 = vadd.f32 %v975, %v1028
      %1030 = vdwg.mxu0
      %1031 = vmatpush.msra.mxu0 0.0
      %1032 = vmatpush.msra.mxu0 0.0
      %1033 = vmatpush.msra.mxu0 0.0
      %1034 = vmatpush.msra.mxu0 0.0
      %1035 = vmatpush.msra.mxu0 0.0
      %1036 = vmatpush.msra.mxu0 0.0
      %1037 = vmatpush.msra.mxu0 0.0
      %1038 = vmatpush.msra.mxu0 0.0
      %1039 = vmatpush.msra.mxu0 0.0
      %1040 = vmatpush.msra.mxu0 0.0
      %1041 = vmatpush.msra.mxu0 0.0
      %1042 = vmatpush.msra.mxu0 0.0
      %1043 = vmatpush.msra.mxu0 0.0
      %1044 = vmatpush.msra.mxu0 0.0
      %1045 = vmatpush.msra.mxu0 0.0
      %v1046 = vand.u32 %v893, 4294901760
      %v1047 = vsub.f32 %v893, %v1046
      %1048 = vmatpush.msra.mxu0 %v1047
      %v1049 = vand.u32 %v869, 4294901760
      %v1050 = vsub.f32 %v869, %v1049
      %1051 = vmatmul.f32.gmra.mxu0 %v1050
      %v1052 = vpop.f32.mrf.mxu0
      %v1053 = vadd.f32 %v1001, %v1052
      %v1054 = vand.u32 %v872, 4294901760
      %v1055 = vsub.f32 %v872, %v1054
      %1056 = vmatmul.f32.gmra.mxu0 %v1055
      %v1057 = vpop.f32.mrf.mxu0
      %v1058 = vadd.f32 %v1005, %v1057
      %v1059 = vand.u32 %v875, 4294901760
      %v1060 = vsub.f32 %v875, %v1059
      %1061 = vmatmul.f32.gmra.mxu0 %v1060
      %v1062 = vpop.f32.mrf.mxu0
      %v1063 = vadd.f32 %v1009, %v1062
      %v1064 = vand.u32 %v878, 4294901760
      %v1065 = vsub.f32 %v878, %v1064
      %1066 = vmatmul.f32.gmra.mxu0 %v1065
      %v1067 = vpop.f32.mrf.mxu0
      %v1068 = vadd.f32 %v1013, %v1067
      %v1069 = vand.u32 %v881, 4294901760
      %v1070 = vsub.f32 %v881, %v1069
      %1071 = vmatmul.f32.gmra.mxu0 %v1070
      %v1072 = vpop.f32.mrf.mxu0
      %v1073 = vadd.f32 %v1017, %v1072
      %v1074 = vand.u32 %v884, 4294901760
      %v1075 = vsub.f32 %v884, %v1074
      %1076 = vmatmul.f32.gmra.mxu0 %v1075
      %v1077 = vpop.f32.mrf.mxu0
      %v1078 = vadd.f32 %v1021, %v1077
      %v1079 = vand.u32 %v887, 4294901760
      %v1080 = vsub.f32 %v887, %v1079
      %1081 = vmatmul.f32.gmra.mxu0 %v1080
      %v1082 = vpop.f32.mrf.mxu0
      %v1083 = vadd.f32 %v1025, %v1082
      %v1084 = vand.u32 %v890, 4294901760
      %v1085 = vsub.f32 %v890, %v1084
      %1086 = vmatmul.f32.gmra.mxu0 %v1085
      %v1087 = vpop.f32.mrf.mxu0
      %v1088 = vadd.f32 %v1029, %v1087
      %1089 = vdwg.mxu0
      %1090 = vmatpush.msra.mxu0 0.0
      %1091 = vmatpush.msra.mxu0 0.0
      %1092 = vmatpush.msra.mxu0 0.0
      %1093 = vmatpush.msra.mxu0 0.0
      %1094 = vmatpush.msra.mxu0 0.0
      %1095 = vmatpush.msra.mxu0 0.0
      %1096 = vmatpush.msra.mxu0 0.0
      %1097 = vmatpush.msra.mxu0 0.0
      %1098 = vmatpush.msra.mxu0 0.0
      %1099 = vmatpush.msra.mxu0 0.0
      %1100 = vmatpush.msra.mxu0 0.0
      %1101 = vmatpush.msra.mxu0 0.0
      %1102 = vmatpush.msra.mxu0 0.0
      %1103 = vmatpush.msra.mxu0 0.0
      %1104 = vmatpush.msra.mxu0 0.0
      %v1105 = vand.u32 %v893, 4294901760
      %1106 = vmatpush.msra.mxu0 %v1105
      %v1107 = vand.u32 %v869, 4294901760
      %v1108 = vsub.f32 %v869, %v1107
      %v1109 = vand.u32 %v1108, 4294901760
      %1110 = vmatmul.f32.gmra.mxu0 %v1109
      %v1111 = vpop.f32.mrf.mxu0
      %v1112 = vadd.f32 %v1053, %v1111
      %v1113 = vand.u32 %v872, 4294901760
      %v1114 = vsub.f32 %v872, %v1113
      %v1115 = vand.u32 %v1114, 4294901760
      %1116 = vmatmul.f32.gmra.mxu0 %v1115
      %v1117 = vpop.f32.mrf.mxu0
      %v1118 = vadd.f32 %v1058, %v1117
      %v1119 = vand.u32 %v875, 4294901760
      %v1120 = vsub.f32 %v875, %v1119
      %v1121 = vand.u32 %v1120, 4294901760
      %1122 = vmatmul.f32.gmra.mxu0 %v1121
      %v1123 = vpop.f32.mrf.mxu0
      %v1124 = vadd.f32 %v1063, %v1123
      %v1125 = vand.u32 %v878, 4294901760
      %v1126 = vsub.f32 %v878, %v1125
      %v1127 = vand.u32 %v1126, 4294901760
      %1128 = vmatmul.f32.gmra.mxu0 %v1127
      %v1129 = vpop.f32.mrf.mxu0
      %v1130 = vadd.f32 %v1068, %v1129
      %v1131 = vand.u32 %v881, 4294901760
      %v1132 = vsub.f32 %v881, %v1131
      %v1133 = vand.u32 %v1132, 4294901760
      %1134 = vmatmul.f32.gmra.mxu0 %v1133
      %v1135 = vpop.f32.mrf.mxu0
      %v1136 = vadd.f32 %v1073, %v1135
      %v1137 = vand.u32 %v884, 4294901760
      %v1138 = vsub.f32 %v884, %v1137
      %v1139 = vand.u32 %v1138, 4294901760
      %1140 = vmatmul.f32.gmra.mxu0 %v1139
      %v1141 = vpop.f32.mrf.mxu0
      %v1142 = vadd.f32 %v1078, %v1141
      %v1143 = vand.u32 %v887, 4294901760
      %v1144 = vsub.f32 %v887, %v1143
      %v1145 = vand.u32 %v1144, 4294901760
      %1146 = vmatmul.f32.gmra.mxu0 %v1145
      %v1147 = vpop.f32.mrf.mxu0
      %v1148 = vadd.f32 %v1083, %v1147
      %v1149 = vand.u32 %v890, 4294901760
      %v1150 = vsub.f32 %v890, %v1149
      %v1151 = vand.u32 %v1150, 4294901760
      %1152 = vmatmul.f32.gmra.mxu0 %v1151
      %v1153 = vpop.f32.mrf.mxu0
      %v1154 = vadd.f32 %v1088, %v1153
      %1155 = vdwg.mxu0
      %1156 = vmatpush.msra.mxu0 0.0
      %1157 = vmatpush.msra.mxu0 0.0
      %1158 = vmatpush.msra.mxu0 0.0
      %1159 = vmatpush.msra.mxu0 0.0
      %1160 = vmatpush.msra.mxu0 0.0
      %1161 = vmatpush.msra.mxu0 0.0
      %1162 = vmatpush.msra.mxu0 0.0
      %1163 = vmatpush.msra.mxu0 0.0
      %1164 = vmatpush.msra.mxu0 0.0
      %1165 = vmatpush.msra.mxu0 0.0
      %1166 = vmatpush.msra.mxu0 0.0
      %1167 = vmatpush.msra.mxu0 0.0
      %1168 = vmatpush.msra.mxu0 0.0
      %1169 = vmatpush.msra.mxu0 0.0
      %1170 = vmatpush.msra.mxu0 0.0
      %v1171 = vand.u32 %v893, 4294901760
      %v1172 = vsub.f32 %v893, %v1171
      %v1173 = vand.u32 %v1172, 4294901760
      %1174 = vmatpush.msra.mxu0 %v1173
      %v1175 = vand.u32 %v869, 4294901760
      %1176 = vmatmul.f32.gmra.mxu0 %v1175
      %v1177 = vpop.f32.mrf.mxu0
      %v1178 = vadd.f32 %v1112, %v1177
      %v1179 = vand.u32 %v872, 4294901760
      %1180 = vmatmul.f32.gmra.mxu0 %v1179
      %v1181 = vpop.f32.mrf.mxu0
      %v1182 = vadd.f32 %v1118, %v1181
      %v1183 = vand.u32 %v875, 4294901760
      %1184 = vmatmul.f32.gmra.mxu0 %v1183
      %v1185 = vpop.f32.mrf.mxu0
      %v1186 = vadd.f32 %v1124, %v1185
      %v1187 = vand.u32 %v878, 4294901760
      %1188 = vmatmul.f32.gmra.mxu0 %v1187
      %v1189 = vpop.f32.mrf.mxu0
      %v1190 = vadd.f32 %v1130, %v1189
      %v1191 = vand.u32 %v881, 4294901760
      %1192 = vmatmul.f32.gmra.mxu0 %v1191
      %v1193 = vpop.f32.mrf.mxu0
      %v1194 = vadd.f32 %v1136, %v1193
      %v1195 = vand.u32 %v884, 4294901760
      %1196 = vmatmul.f32.gmra.mxu0 %v1195
      %v1197 = vpop.f32.mrf.mxu0
      %v1198 = vadd.f32 %v1142, %v1197
      %v1199 = vand.u32 %v887, 4294901760
      %1200 = vmatmul.f32.gmra.mxu0 %v1199
      %v1201 = vpop.f32.mrf.mxu0
      %v1202 = vadd.f32 %v1148, %v1201
      %v1203 = vand.u32 %v890, 4294901760
      %1204 = vmatmul.f32.gmra.mxu0 %v1203
      %v1205 = vpop.f32.mrf.mxu0
      %v1206 = vadd.f32 %v1154, %v1205
      %1207 = vdwg.mxu0
      %1208 = vmatpush.msra.mxu0 0.0
      %1209 = vmatpush.msra.mxu0 0.0
      %1210 = vmatpush.msra.mxu0 0.0
      %1211 = vmatpush.msra.mxu0 0.0
      %1212 = vmatpush.msra.mxu0 0.0
      %1213 = vmatpush.msra.mxu0 0.0
      %1214 = vmatpush.msra.mxu0 0.0
      %1215 = vmatpush.msra.mxu0 0.0
      %1216 = vmatpush.msra.mxu0 0.0
      %1217 = vmatpush.msra.mxu0 0.0
      %1218 = vmatpush.msra.mxu0 0.0
      %1219 = vmatpush.msra.mxu0 0.0
      %1220 = vmatpush.msra.mxu0 0.0
      %1221 = vmatpush.msra.mxu0 0.0
      %1222 = vmatpush.msra.mxu0 0.0
      %v1223 = vand.u32 %v893, 4294901760
      %1224 = vmatpush.msra.mxu0 %v1223
      %v1225 = vand.u32 %v869, 4294901760
      %1226 = vmatmul.f32.gmra.mxu0 %v1225
      %v1227 = vpop.f32.mrf.mxu0
      %v1228 = vadd.f32 %v1178, %v1227
      %v1229 = vand.u32 %v872, 4294901760
      %1230 = vmatmul.f32.gmra.mxu0 %v1229
      %v1231 = vpop.f32.mrf.mxu0
      %v1232 = vadd.f32 %v1182, %v1231
      %v1233 = vand.u32 %v875, 4294901760
      %1234 = vmatmul.f32.gmra.mxu0 %v1233
      %v1235 = vpop.f32.mrf.mxu0
      %v1236 = vadd.f32 %v1186, %v1235
      %v1237 = vand.u32 %v878, 4294901760
      %1238 = vmatmul.f32.gmra.mxu0 %v1237
      %v1239 = vpop.f32.mrf.mxu0
      %v1240 = vadd.f32 %v1190, %v1239
      %v1241 = vand.u32 %v881, 4294901760
      %1242 = vmatmul.f32.gmra.mxu0 %v1241
      %v1243 = vpop.f32.mrf.mxu0
      %v1244 = vadd.f32 %v1194, %v1243
      %v1245 = vand.u32 %v884, 4294901760
      %1246 = vmatmul.f32.gmra.mxu0 %v1245
      %v1247 = vpop.f32.mrf.mxu0
      %v1248 = vadd.f32 %v1198, %v1247
      %v1249 = vand.u32 %v887, 4294901760
      %1250 = vmatmul.f32.gmra.mxu0 %v1249
      %v1251 = vpop.f32.mrf.mxu0
      %v1252 = vadd.f32 %v1202, %v1251
      %v1253 = vand.u32 %v890, 4294901760
      %1254 = vmatmul.f32.gmra.mxu0 %v1253
      %v1255 = vpop.f32.mrf.mxu0
      %v1256 = vadd.f32 %v1206, %v1255
      %1257 = vdwg.mxu0
      %v1258 = vld [vmem:[%s6] sm:$0x1]
      %v1260 = vperm.slane %v1258, 0
      %v1262 = vadd.f32 %v1228, %v1260
      %v1263 = vadd.f32 %v1232, %v1260
      %v1264 = vadd.f32 %v1236, %v1260
      %v1265 = vadd.f32 %v1240, %v1260
      %v1266 = vadd.f32 %v1244, %v1260
      %v1267 = vadd.f32 %v1248, %v1260
      %v1268 = vadd.f32 %v1252, %v1260
      %v1269 = vadd.f32 %v1256, %v1260
      %v1270 = vld [vmem:[%s7] sm:$0x1]
      %v1271 = vld [vmem:[%s8] sm:$0x1]
      %v1272 = vsel %vm476, %v1262, 0.0
      %1273 = vadd.xlane.f32.xlu0 %v1272
      %v1274 = vpop.xlane.xlu0 %1273
      %v1275 = vsel %vm476, %v1263, 0.0
      %1276 = vadd.xlane.f32.xlu0 %v1275
      %v1277 = vpop.xlane.xlu0 %1276
      %v1278 = vsel %vm476, %v1264, 0.0
      %1279 = vadd.xlane.f32.xlu0 %v1278
      %v1280 = vpop.xlane.xlu0 %1279
      %v1281 = vsel %vm476, %v1265, 0.0
      %1282 = vadd.xlane.f32.xlu0 %v1281
      %v1283 = vpop.xlane.xlu0 %1282
      %v1284 = vsel %vm476, %v1266, 0.0
      %1285 = vadd.xlane.f32.xlu0 %v1284
      %v1286 = vpop.xlane.xlu0 %1285
      %v1287 = vsel %vm476, %v1267, 0.0
      %1288 = vadd.xlane.f32.xlu0 %v1287
      %v1289 = vpop.xlane.xlu0 %1288
      %v1290 = vsel %vm476, %v1268, 0.0
      %1291 = vadd.xlane.f32.xlu0 %v1290
      %v1292 = vpop.xlane.xlu0 %1291
      %v1293 = vsel %vm476, %v1269, 0.0
      %1294 = vadd.xlane.f32.xlu0 %v1293
      %v1295 = vpop.xlane.xlu0 %1294
      %v1296 = vrcp.pop 4.0
      %v1297 = vmul.f32 4.0, %v1296
      %v1298 = vsub.f32 1.0, %v1297
      %v1299 = vmul.f32 %v1296, %v1298
      %v1300 = vadd.f32 %v1296, %v1299
      %vm1301 = vweird.f32 %v1296
      %v1302 = vsel %vm1301, %v1296, %v1300
      %v1303 = vmul.f32 %v1274, %v1302
      %v1304 = vmul.f32 %v1277, %v1302
      %v1305 = vmul.f32 %v1280, %v1302
      %v1306 = vmul.f32 %v1283, %v1302
      %v1307 = vmul.f32 %v1286, %v1302
      %v1308 = vmul.f32 %v1289, %v1302
      %v1309 = vmul.f32 %v1292, %v1302
      %v1310 = vmul.f32 %v1295, %v1302
      %v1311 = vsub.f32 %v1262, %v1303
      %v1312 = vsub.f32 %v1263, %v1304
      %v1313 = vsub.f32 %v1264, %v1305
      %v1314 = vsub.f32 %v1265, %v1306
      %v1315 = vsub.f32 %v1266, %v1307
      %v1316 = vsub.f32 %v1267, %v1308
      %v1317 = vsub.f32 %v1268, %v1309
      %v1318 = vsub.f32 %v1269, %v1310
      %v1319 = vmul.f32 %v1311, %v1311
      %v1320 = vmul.f32 %v1312, %v1312
      %v1321 = vmul.f32 %v1313, %v1313
      %v1322 = vmul.f32 %v1314, %v1314
      %v1323 = vmul.f32 %v1315, %v1315
      %v1324 = vmul.f32 %v1316, %v1316
      %v1325 = vmul.f32 %v1317, %v1317
      %v1326 = vmul.f32 %v1318, %v1318
      %v1327 = vsel %vm476, %v1319, 0.0
      %1328 = vadd.xlane.f32.xlu0 %v1327
      %v1329 = vpop.xlane.xlu0 %1328
      %v1330 = vsel %vm476, %v1320, 0.0
      %1331 = vadd.xlane.f32.xlu0 %v1330
      %v1332 = vpop.xlane.xlu0 %1331
      %v1333 = vsel %vm476, %v1321, 0.0
      %1334 = vadd.xlane.f32.xlu0 %v1333
      %v1335 = vpop.xlane.xlu0 %1334
      %v1336 = vsel %vm476, %v1322, 0.0
      %1337 = vadd.xlane.f32.xlu0 %v1336
      %v1338 = vpop.xlane.xlu0 %1337
      %v1339 = vsel %vm476, %v1323, 0.0
      %1340 = vadd.xlane.f32.xlu0 %v1339
      %v1341 = vpop.xlane.xlu0 %1340
      %v1342 = vsel %vm476, %v1324, 0.0
      %1343 = vadd.xlane.f32.xlu0 %v1342
      %v1344 = vpop.xlane.xlu0 %1343
      %v1345 = vsel %vm476, %v1325, 0.0
      %1346 = vadd.xlane.f32.xlu0 %v1345
      %v1347 = vpop.xlane.xlu0 %1346
      %v1348 = vsel %vm476, %v1326, 0.0
      %1349 = vadd.xlane.f32.xlu0 %v1348
      %v1350 = vpop.xlane.xlu0 %1349
      %v1351 = vmul.f32 %v1329, %v1302
      %v1352 = vmul.f32 %v1332, %v1302
      %v1353 = vmul.f32 %v1335, %v1302
      %v1354 = vmul.f32 %v1338, %v1302
      %v1355 = vmul.f32 %v1341, %v1302
      %v1356 = vmul.f32 %v1344, %v1302
      %v1357 = vmul.f32 %v1347, %v1302
      %v1358 = vmul.f32 %v1350, %v1302
      %v1359 = vadd.f32 %v1351, 1e-06
      %v1360 = vadd.f32 %v1352, 1e-06
      %v1361 = vadd.f32 %v1353, 1e-06
      %v1362 = vadd.f32 %v1354, 1e-06
      %v1363 = vadd.f32 %v1355, 1e-06
      %v1364 = vadd.f32 %v1356, 1e-06
      %v1365 = vadd.f32 %v1357, 1e-06
      %v1366 = vadd.f32 %v1358, 1e-06
      %v1367 = vrsqrt.pop %v1359
      %v1368 = vmul.f32 %v1367, %v1359
      %v1369 = vmul.f32 %v1368, %v1367
      %v1370 = vmul.f32 0.5, %v1369
      %v1371 = vsub.f32 1.5, %v1370
      %v1372 = vmul.f32 %v1367, %v1371
      %vm1373 = vweird.f32 %v1359
      %vm1374 = vweird.f32 %v1367
      %vm1375 = vmor %vm1373, %vm1374
      %v1376 = vsel %vm1375, %v1367, %v1372
      %v1377 = vrsqrt.pop %v1360
      %v1378 = vmul.f32 %v1377, %v1360
      %v1379 = vmul.f32 %v1378, %v1377
      %v1380 = vmul.f32 0.5, %v1379
      %v1381 = vsub.f32 1.5, %v1380
      %v1382 = vmul.f32 %v1377, %v1381
      %vm1383 = vweird.f32 %v1360
      %vm1384 = vweird.f32 %v1377
      %vm1385 = vmor %vm1383, %vm1384
      %v1386 = vsel %vm1385, %v1377, %v1382
      %v1387 = vrsqrt.pop %v1361
      %v1388 = vmul.f32 %v1387, %v1361
      %v1389 = vmul.f32 %v1388, %v1387
      %v1390 = vmul.f32 0.5, %v1389
      %v1391 = vsub.f32 1.5, %v1390
      %v1392 = vmul.f32 %v1387, %v1391
      %vm1393 = vweird.f32 %v1361
      %vm1394 = vweird.f32 %v1387
      %vm1395 = vmor %vm1393, %vm1394
      %v1396 = vsel %vm1395, %v1387, %v1392
      %v1397 = vrsqrt.pop %v1362
      %v1398 = vmul.f32 %v1397, %v1362
      %v1399 = vmul.f32 %v1398, %v1397
      %v1400 = vmul.f32 0.5, %v1399
      %v1401 = vsub.f32 1.5, %v1400
      %v1402 = vmul.f32 %v1397, %v1401
      %vm1403 = vweird.f32 %v1362
      %vm1404 = vweird.f32 %v1397
      %vm1405 = vmor %vm1403, %vm1404
      %v1406 = vsel %vm1405, %v1397, %v1402
      %v1407 = vrsqrt.pop %v1363
      %v1408 = vmul.f32 %v1407, %v1363
      %v1409 = vmul.f32 %v1408, %v1407
      %v1410 = vmul.f32 0.5, %v1409
      %v1411 = vsub.f32 1.5, %v1410
      %v1412 = vmul.f32 %v1407, %v1411
      %vm1413 = vweird.f32 %v1363
      %vm1414 = vweird.f32 %v1407
      %vm1415 = vmor %vm1413, %vm1414
      %v1416 = vsel %vm1415, %v1407, %v1412
      %v1417 = vrsqrt.pop %v1364
      %v1418 = vmul.f32 %v1417, %v1364
      %v1419 = vmul.f32 %v1418, %v1417
      %v1420 = vmul.f32 0.5, %v1419
      %v1421 = vsub.f32 1.5, %v1420
      %v1422 = vmul.f32 %v1417, %v1421
      %vm1423 = vweird.f32 %v1364
      %vm1424 = vweird.f32 %v1417
      %vm1425 = vmor %vm1423, %vm1424
      %v1426 = vsel %vm1425, %v1417, %v1422
      %v1427 = vrsqrt.pop %v1365
      %v1428 = vmul.f32 %v1427, %v1365
      %v1429 = vmul.f32 %v1428, %v1427
      %v1430 = vmul.f32 0.5, %v1429
      %v1431 = vsub.f32 1.5, %v1430
      %v1432 = vmul.f32 %v1427, %v1431
      %vm1433 = vweird.f32 %v1365
      %vm1434 = vweird.f32 %v1427
      %vm1435 = vmor %vm1433, %vm1434
      %v1436 = vsel %vm1435, %v1427, %v1432
      %v1437 = vrsqrt.pop %v1366
      %v1438 = vmul.f32 %v1437, %v1366
      %v1439 = vmul.f32 %v1438, %v1437
      %v1440 = vmul.f32 0.5, %v1439
      %v1441 = vsub.f32 1.5, %v1440
      %v1442 = vmul.f32 %v1437, %v1441
      %vm1443 = vweird.f32 %v1366
      %vm1444 = vweird.f32 %v1437
      %vm1445 = vmor %vm1443, %vm1444
      %v1446 = vsel %vm1445, %v1437, %v1442
      %v1447 = vmul.f32 %v1311, %v1376
      %v1448 = vmul.f32 %v1312, %v1386
      %v1449 = vmul.f32 %v1313, %v1396
      %v1450 = vmul.f32 %v1314, %v1406
      %v1451 = vmul.f32 %v1315, %v1416
      %v1452 = vmul.f32 %v1316, %v1426
      %v1453 = vmul.f32 %v1317, %v1436
      %v1454 = vmul.f32 %v1318, %v1446
      %v1456 = vperm.slane %v1270, 0
      %v1458 = vmul.f32 %v1456, %v1447
      %v1459 = vmul.f32 %v1456, %v1448
      %v1460 = vmul.f32 %v1456, %v1449
      %v1461 = vmul.f32 %v1456, %v1450
      %v1462 = vmul.f32 %v1456, %v1451
      %v1463 = vmul.f32 %v1456, %v1452
      %v1464 = vmul.f32 %v1456, %v1453
      %v1465 = vmul.f32 %v1456, %v1454
      %v1467 = vperm.slane %v1271, 0
      %v1469 = vadd.f32 %v1458, %v1467
      %v1470 = vadd.f32 %v1459, %v1467
      %v1471 = vadd.f32 %v1460, %v1467
      %v1472 = vadd.f32 %v1461, %v1467
      %v1473 = vadd.f32 %v1462, %v1467
      %v1474 = vadd.f32 %v1463, %v1467
      %v1475 = vadd.f32 %v1464, %v1467
      %v1476 = vadd.f32 %v1465, %v1467
      %v1477 = vxor.u32 %v1469, 2147483648
      %v1478 = vxor.u32 %v1470, 2147483648
      %v1479 = vxor.u32 %v1471, 2147483648
      %v1480 = vxor.u32 %v1472, 2147483648
      %v1481 = vxor.u32 %v1473, 2147483648
      %v1482 = vxor.u32 %v1474, 2147483648
      %v1483 = vxor.u32 %v1475, 2147483648
      %v1484 = vxor.u32 %v1476, 2147483648
      %v1485 = vmul.f32 %v1477, 1.442695
      %v1486 = vpow.pop %v1485
      %v1487 = vmul.f32 %v1478, 1.442695
      %v1488 = vpow.pop %v1487
      %v1489 = vmul.f32 %v1479, 1.442695
      %v1490 = vpow.pop %v1489
      %v1491 = vmul.f32 %v1480, 1.442695
      %v1492 = vpow.pop %v1491
      %v1493 = vmul.f32 %v1481, 1.442695
      %v1494 = vpow.pop %v1493
      %v1495 = vmul.f32 %v1482, 1.442695
      %v1496 = vpow.pop %v1495
      %v1497 = vmul.f32 %v1483, 1.442695
      %v1498 = vpow.pop %v1497
      %v1499 = vmul.f32 %v1484, 1.442695
      %v1500 = vpow.pop %v1499
      %v1501 = vadd.f32 %v1486, 1.0
      %v1502 = vadd.f32 %v1488, 1.0
      %v1503 = vadd.f32 %v1490, 1.0
      %v1504 = vadd.f32 %v1492, 1.0
      %v1505 = vadd.f32 %v1494, 1.0
      %v1506 = vadd.f32 %v1496, 1.0
      %v1507 = vadd.f32 %v1498, 1.0
      %v1508 = vadd.f32 %v1500, 1.0
      %v1509 = vrcp.pop %v1501
      %v1510 = vmul.f32 %v1501, %v1509
      %v1511 = vsub.f32 1.0, %v1510
      %v1512 = vmul.f32 %v1509, %v1511
      %v1513 = vadd.f32 %v1509, %v1512
      %vm1514 = vweird.f32 %v1501
      %vm1515 = vweird.f32 %v1509
      %vm1516 = vmor %vm1514, %vm1515
      %v1517 = vsel %vm1516, %v1509, %v1513
      %v1518 = vand.u32 2147483647, %v1501
      %vm1519 = vcmp.eq.f32.partialorder %v1518, 8.507059e+37
      %v1520 = vand.u32 %v1501, 2147483648
      %v1521 = vor.u32 1.1754944e-38, %v1520
      %v1522 = vsel %vm1519, %v1521, %v1517
      %v1523 = vmul.f32 1.0, %v1522
      %v1524 = vrcp.pop %v1502
      %v1525 = vmul.f32 %v1502, %v1524
      %v1526 = vsub.f32 1.0, %v1525
      %v1527 = vmul.f32 %v1524, %v1526
      %v1528 = vadd.f32 %v1524, %v1527
      %vm1529 = vweird.f32 %v1502
      %vm1530 = vweird.f32 %v1524
      %vm1531 = vmor %vm1529, %vm1530
      %v1532 = vsel %vm1531, %v1524, %v1528
      %v1533 = vand.u32 2147483647, %v1502
      %vm1534 = vcmp.eq.f32.partialorder %v1533, 8.507059e+37
      %v1535 = vand.u32 %v1502, 2147483648
      %v1536 = vor.u32 1.1754944e-38, %v1535
      %v1537 = vsel %vm1534, %v1536, %v1532
      %v1538 = vmul.f32 1.0, %v1537
      %v1539 = vrcp.pop %v1503
      %v1540 = vmul.f32 %v1503, %v1539
      %v1541 = vsub.f32 1.0, %v1540
      %v1542 = vmul.f32 %v1539, %v1541
      %v1543 = vadd.f32 %v1539, %v1542
      %vm1544 = vweird.f32 %v1503
      %vm1545 = vweird.f32 %v1539
      %vm1546 = vmor %vm1544, %vm1545
      %v1547 = vsel %vm1546, %v1539, %v1543
      %v1548 = vand.u32 2147483647, %v1503
      %vm1549 = vcmp.eq.f32.partialorder %v1548, 8.507059e+37
      %v1550 = vand.u32 %v1503, 2147483648
      %v1551 = vor.u32 1.1754944e-38, %v1550
      %v1552 = vsel %vm1549, %v1551, %v1547
      %v1553 = vmul.f32 1.0, %v1552
      %v1554 = vrcp.pop %v1504
      %v1555 = vmul.f32 %v1504, %v1554
      %v1556 = vsub.f32 1.0, %v1555
      %v1557 = vmul.f32 %v1554, %v1556
      %v1558 = vadd.f32 %v1554, %v1557
      %vm1559 = vweird.f32 %v1504
      %vm1560 = vweird.f32 %v1554
      %vm1561 = vmor %vm1559, %vm1560
      %v1562 = vsel %vm1561, %v1554, %v1558
      %v1563 = vand.u32 2147483647, %v1504
      %vm1564 = vcmp.eq.f32.partialorder %v1563, 8.507059e+37
      %v1565 = vand.u32 %v1504, 2147483648
      %v1566 = vor.u32 1.1754944e-38, %v1565
      %v1567 = vsel %vm1564, %v1566, %v1562
      %v1568 = vmul.f32 1.0, %v1567
      %v1569 = vrcp.pop %v1505
      %v1570 = vmul.f32 %v1505, %v1569
      %v1571 = vsub.f32 1.0, %v1570
      %v1572 = vmul.f32 %v1569, %v1571
      %v1573 = vadd.f32 %v1569, %v1572
      %vm1574 = vweird.f32 %v1505
      %vm1575 = vweird.f32 %v1569
      %vm1576 = vmor %vm1574, %vm1575
      %v1577 = vsel %vm1576, %v1569, %v1573
      %v1578 = vand.u32 2147483647, %v1505
      %vm1579 = vcmp.eq.f32.partialorder %v1578, 8.507059e+37
      %v1580 = vand.u32 %v1505, 2147483648
      %v1581 = vor.u32 1.1754944e-38, %v1580
      %v1582 = vsel %vm1579, %v1581, %v1577
      %v1583 = vmul.f32 1.0, %v1582
      %v1584 = vrcp.pop %v1506
      %v1585 = vmul.f32 %v1506, %v1584
      %v1586 = vsub.f32 1.0, %v1585
      %v1587 = vmul.f32 %v1584, %v1586
      %v1588 = vadd.f32 %v1584, %v1587
      %vm1589 = vweird.f32 %v1506
      %vm1590 = vweird.f32 %v1584
      %vm1591 = vmor %vm1589, %vm1590
      %v1592 = vsel %vm1591, %v1584, %v1588
      %v1593 = vand.u32 2147483647, %v1506
      %vm1594 = vcmp.eq.f32.partialorder %v1593, 8.507059e+37
      %v1595 = vand.u32 %v1506, 2147483648
      %v1596 = vor.u32 1.1754944e-38, %v1595
      %v1597 = vsel %vm1594, %v1596, %v1592
      %v1598 = vmul.f32 1.0, %v1597
      %v1599 = vrcp.pop %v1507
      %v1600 = vmul.f32 %v1507, %v1599
      %v1601 = vsub.f32 1.0, %v1600
      %v1602 = vmul.f32 %v1599, %v1601
      %v1603 = vadd.f32 %v1599, %v1602
      %vm1604 = vweird.f32 %v1507
      %vm1605 = vweird.f32 %v1599
      %vm1606 = vmor %vm1604, %vm1605
      %v1607 = vsel %vm1606, %v1599, %v1603
      %v1608 = vand.u32 2147483647, %v1507
      %vm1609 = vcmp.eq.f32.partialorder %v1608, 8.507059e+37
      %v1610 = vand.u32 %v1507, 2147483648
      %v1611 = vor.u32 1.1754944e-38, %v1610
      %v1612 = vsel %vm1609, %v1611, %v1607
      %v1613 = vmul.f32 1.0, %v1612
      %v1614 = vrcp.pop %v1508
      %v1615 = vmul.f32 %v1508, %v1614
      %v1616 = vsub.f32 1.0, %v1615
      %v1617 = vmul.f32 %v1614, %v1616
      %v1618 = vadd.f32 %v1614, %v1617
      %vm1619 = vweird.f32 %v1508
      %vm1620 = vweird.f32 %v1614
      %vm1621 = vmor %vm1619, %vm1620
      %v1622 = vsel %vm1621, %v1614, %v1618
      %v1623 = vand.u32 2147483647, %v1508
      %vm1624 = vcmp.eq.f32.partialorder %v1623, 8.507059e+37
      %v1625 = vand.u32 %v1508, 2147483648
      %v1626 = vor.u32 1.1754944e-38, %v1625
      %v1627 = vsel %vm1624, %v1626, %v1622
      %v1628 = vmul.f32 1.0, %v1627
      %v1629 = vmul.f32 %v1469, %v1523
      %v1630 = vmul.f32 %v1470, %v1538
      %v1631 = vmul.f32 %v1471, %v1553
      %v1632 = vmul.f32 %v1472, %v1568
      %v1633 = vmul.f32 %v1473, %v1583
      %v1634 = vmul.f32 %v1474, %v1598
      %v1635 = vmul.f32 %v1475, %v1613
      %v1636 = vmul.f32 %v1476, %v1628
      %1637 = vst.msk [vmem:[%s400] sm:$0xff] %vm476, %v1629
      %1638 = vst.msk [vmem:[%s400 + $0x8] sm:$0xff] %vm476, %v1630
      %1639 = vst.msk [vmem:[%s400 + $0x10] sm:$0xff] %vm476, %v1631
      %1640 = vst.msk [vmem:[%s400 + $0x18] sm:$0xff] %vm476, %v1632
      %1641 = vst.msk [vmem:[%s400 + $0x20] sm:$0xff] %vm476, %v1633
      %1642 = vst.msk [vmem:[%s400 + $0x28] sm:$0xff] %vm476, %v1634
      %1643 = vst.msk [vmem:[%s400 + $0x30] sm:$0xff] %vm476, %v1635
      %1644 = vst.msk [vmem:[%s400 + $0x38] sm:$0xff] %vm476, %v1636
      %s1645 = smul.u32 8, %s20
      %p1646 = scmp.lt.s32.totalorder %s1645, 15
      %s1647 = scalar_select %p1646, %s1645, 15
      %s1648 = smul.addr %s1647, 8
      %s1649 = scalar_lea.vmem %s9, %s1648
      // Predicated region
      $region57: #{mbfd_forward.6} parent=55 // pred_check
        %p1650 = pneg %p247
      $region58: #{mbfd_forward.6} parent=55 // pred_check_branch
        %1652 = sbr.rel (%p1650) target = $region60
      $region59: #{mbfd_forward.6} parent=55 // pred_region
        %s1653 = smul.u32 8, %s20
      $region60: #{mbfd_forward.6} parent=55 // pred_fallthru
        _
    $region56: #{mbfd_forward.6} parent=5 // pred_fallthru
      _
    %p1654 = scmp.le.s32.totalorder 2, %s15
    // Predicated region
    $region61: #{mbfd_forward.6} parent=5 // pred_check
      %p1655 = pneg %p1654
    $region62: #{mbfd_forward.6} parent=5 // pred_check_branch
      %1657 = sbr.rel (%p1655) target = $region64
    $region63: #{mbfd_forward.6} parent=5 // pred_region
      %s1658 = ssub.s32 %s15, 2
      // Predicated region
      $region65: #{mbfd_forward.6} parent=63 // pred_check
        %p1659 = pneg %p253
      $region66: #{mbfd_forward.6} parent=63 // pred_check_branch
        %1661 = sbr.rel (%p1659) target = $region68
      $region67: #{mbfd_forward.6} parent=63 // pred_region
        %s1662 = smul.u32 8, %s21
        %p1663 = scmp.lt.s32.totalorder %s1662, 15
        %s1664 = scalar_select %p1663, %s1662, 15
        %s1665 = smul.addr %s1664, 8
        %s1666 = scalar_lea.vmem %s9, %s1665
      $region68: #{mbfd_forward.6} parent=63 // pred_fallthru
        _
    $region64: #{mbfd_forward.6} parent=5 // pred_fallthru
      _
  $region6: #{mbfd_forward.6} parent=0 // loop_footer
    %s19 = sadd.s32 1, %s15
  $region7: #{mbfd_forward.6} parent=0 // loop_footer_branch
    %14 = sbr.rel target = $region3
  $region8: #{mbfd_forward.6} parent=0 // loop_exit
    _

</llo_original>
